<compile_context>
chip_gen: v7x
topology: tpu7x:2x2x1
jax: 0.10.0
libtpu: 0.0.40
codegen_flags: <defaults>
</compile_context>

<pallas_src>
import functools

import jax
import jax.numpy as jnp
from jax.experimental import pallas as pl
from jax.experimental.pallas import tpu as pltpu


_EPS = 1e-10
_NEG_INF = -1e9

_ENC_KEYS = ("wqkv", "bqkv", "wp", "bp", "g1", "be1",
             "w1", "bf1", "w2", "bf2", "g2", "be2")

_DEC_KEYS = ("s_wqkv", "s_bqkv", "s_wp", "s_bp", "g1", "be1",
             "c_wq", "c_bq", "c_wkv", "c_bkv", "c_wp", "c_bp", "g2", "be2",
             "w1", "bf1", "w2", "bf2", "g3", "be3")


# ----------------------------------------------------------------------------
# In-kernel helpers (traced inside the fused forward kernel)
# ----------------------------------------------------------------------------

def _ln(x, gamma, beta, eps):
    """LayerNorm over the last (emb) axis."""
    mean = jnp.mean(x, axis=-1, keepdims=True)
    var = jnp.mean(jnp.square(x - mean), axis=-1, keepdims=True)
    return gamma * ((x - mean) * jax.lax.rsqrt(var + eps)) + beta


def _ffn_body(x, w1, b1, w2, b2):
    """relu(x @ W1 + b1) @ W2 + b2."""
    h = jnp.maximum(jnp.dot(x, w1, preferred_element_type=jnp.float32) + b1, 0.0)
    return jnp.dot(h, w2, preferred_element_type=jnp.float32) + b2


def _mha_heads(q, k, v, wp, bp, num_heads, dim_head, mask=None):
    """Multi-head attention on pre-projected q/k/v.

    q: (Sq, H*Dh)   k, v: (Sk, H*Dh)   wp: (H*Dh, E)   bp: (1, E)
    The 1/sqrt(Dh) softmax scale is already folded into q (weight packing).
    """
    heads = []
    for h in range(num_heads):
        lo = h * dim_head
        qh = q[:, lo:lo + dim_head]
        kh = k[:, lo:lo + dim_head]
        vh = v[:, lo:lo + dim_head]
        # q @ k^T without materializing a transpose.
        s = jax.lax.dot_general(qh, kh, (((1,), (1,)), ((), ())),
                                preferred_element_type=jnp.float32)
        if mask is not None:
            s = jnp.where(mask, _NEG_INF, s)           # masked_fill semantics
        s = s - jnp.max(s, axis=-1, keepdims=True)     # stable softmax
        p = jnp.exp(s)
        p = p * pl.reciprocal(jnp.sum(p, axis=-1, keepdims=True), approx=True)
        heads.append(jnp.dot(p, vh, preferred_element_type=jnp.float32))
    concat = jnp.concatenate(heads, axis=-1)           # (Sq, H*Dh)
    return jnp.dot(concat, wp, preferred_element_type=jnp.float32) + bp


def _encoder_block(x, w, l, num_heads, dim_head, eps):
    hd = num_heads * dim_head
    qkv = (jnp.dot(x, w["wqkv"][l], preferred_element_type=jnp.float32)
           + w["bqkv"][l])
    attn = _mha_heads(qkv[:, :hd], qkv[:, hd:2 * hd], qkv[:, 2 * hd:3 * hd],
                      w["wp"][l], w["bp"][l], num_heads, dim_head, mask=None)
    h1 = _ln(x + attn, w["g1"][l], w["be1"][l], eps)
    f = _ffn_body(h1, w["w1"][l], w["bf1"][l], w["w2"][l], w["bf2"][l])
    return _ln(h1 + f, w["g2"][l], w["be2"][l], eps)


def _decoder_block(y, enc, causal, w, l, num_heads, dim_head, eps):
    hd = num_heads * dim_head
    # Masked self-attention.
    qkv = (jnp.dot(y, w["s_wqkv"][l], preferred_element_type=jnp.float32)
           + w["s_bqkv"][l])
    attn = _mha_heads(qkv[:, :hd], qkv[:, hd:2 * hd], qkv[:, 2 * hd:3 * hd],
                      w["s_wp"][l], w["s_bp"][l], num_heads, dim_head,
                      mask=causal)
    h1 = _ln(y + attn, w["g1"][l], w["be1"][l], eps)
    # Cross attention: Q from decoder stream, K/V from encoder output.
    q = (jnp.dot(h1, w["c_wq"][l], preferred_element_type=jnp.float32)
         + w["c_bq"][l])
    kv = (jnp.dot(enc, w["c_wkv"][l], preferred_element_type=jnp.float32)
          + w["c_bkv"][l])
    attn = _mha_heads(q, kv[:, :hd], kv[:, hd:2 * hd],
                      w["c_wp"][l], w["c_bp"][l], num_heads, dim_head,
                      mask=None)
    h2 = _ln(h1 + attn, w["g2"][l], w["be2"][l], eps)
    # FFN + add & norm.
    f = _ffn_body(h2, w["w1"][l], w["bf1"][l], w["w2"][l], w["bf2"][l])
    return _ln(h2 + f, w["g3"][l], w["be3"][l], eps)


# ----------------------------------------------------------------------------
# Fully fused forward kernel (one batch element per grid step)
# ----------------------------------------------------------------------------

def _transformer_kernel(*refs, num_heads, dim_head, num_enc, num_dec, eps):
    x_ref, y_ref = refs[0], refs[1]
    idx = 2
    enc_w = dict(zip(_ENC_KEYS, refs[idx:idx + len(_ENC_KEYS)]))
    idx += len(_ENC_KEYS)
    dec_w = dict(zip(_DEC_KEYS, refs[idx:idx + len(_DEC_KEYS)]))
    idx += len(_DEC_KEYS)
    vw_ref, vb_ref = refs[idx], refs[idx + 1]
    out_ref = refs[idx + 2]

    x = x_ref[0]                                       # (S, E)
    y = y_ref[0]                                       # (T, E)

    # Encoder stack (unrolled; activations never leave VMEM/vregs).
    for l in range(num_enc):
        x = _encoder_block(x, enc_w, l, num_heads, dim_head, eps)
    enc = x

    # Causal mask generated in-kernel (no HBM traffic).
    t = y.shape[0]
    row = jax.lax.broadcasted_iota(jnp.int32, (t, t), 0)
    col = jax.lax.broadcasted_iota(jnp.int32, (t, t), 1)
    causal = col > row

    # Decoder stack.
    for l in range(num_dec):
        y = _decoder_block(y, enc, causal, dec_w, l, num_heads, dim_head, eps)

    # Lane-dense padded vocab projection: (T, Vpad).
    out_ref[0] = (jnp.dot(y, vw_ref[...], preferred_element_type=jnp.float32)
                  + vb_ref[...])


def _const_index_map(ndim):
    return lambda b, n=ndim: (0,) * n


def transformer_forward(packed, inp_seq, inp_pos, tgt_seq, tgt_pos,
                        num_heads, emb_dim):
    dh = emb_dim // num_heads

    # Embedding lookup + positional add done with plain JAX (tiny gather).
    # TODO(synk): at realistic vocab sizes move the gather into the kernel via
    # scalar-prefetched token ids + DMA'd embedding rows.
    x = packed["emb"][inp_seq] + inp_pos            # (B, S, E)
    y = packed["emb"][tgt_seq] + tgt_pos            # (B, T, E)

    B, S, E = x.shape
    T = y.shape[1]
    Vp = packed["proj_vocab"]["w"].shape[1]
    V = packed["proj_vocab"]["v"]

    weights = ([packed["enc"][k] for k in _ENC_KEYS]
               + [packed["dec"][k] for k in _DEC_KEYS]
               + [packed["proj_vocab"]["w"], packed["proj_vocab"]["b"]])

    in_specs = [pl.BlockSpec((1, S, E), lambda b: (b, 0, 0)),
                pl.BlockSpec((1, T, E), lambda b: (b, 0, 0))]
    in_specs += [pl.BlockSpec(w.shape, _const_index_map(w.ndim)) for w in weights]

    kernel = functools.partial(
        _transformer_kernel, num_heads=num_heads, dim_head=dh,
        num_enc=packed["num_enc"], num_dec=packed["num_dec"], eps=_EPS)

    out = pl.pallas_call(
        kernel,
        out_shape=jax.ShapeDtypeStruct((B, T, Vp), jnp.float32),
        grid=(B,),
        in_specs=in_specs,
        out_specs=pl.BlockSpec((1, T, Vp), lambda b: (b, 0, 0)),
        compiler_params=pltpu.CompilerParams(dimension_semantics=("parallel",)),
    )(x, y, *weights)

    logits = out[:, :T - 1, :V]                       # drop last pos, unpad vocab
    return logits.reshape(-1, V)                      # (B*(T-1), V)


# ----------------------------------------------------------------------------
# Parameter init (deterministic, synthetic) — mirrors the PyTorch module layout
# ----------------------------------------------------------------------------

def _uniform(key, shape, bound):
    return jax.random.uniform(key, shape, jnp.float32, -bound, bound)


def init_mha(key, num_heads, emb_dim):
    dh = emb_dim // num_heads
    keys = jax.random.split(key, 8)
    c_qk = (6.0 / (emb_dim + dh)) ** 0.5
    c_p = (6.0 / (emb_dim + emb_dim)) ** 0.5
    return {
        "wq": _uniform(keys[0], (num_heads, emb_dim, dh), c_qk),
        "bq": _uniform(keys[1], (num_heads, 1, dh), c_qk),
        "wk": _uniform(keys[2], (num_heads, emb_dim, dh), c_qk),
        "bk": _uniform(keys[3], (num_heads, 1, dh), c_qk),
        "wv": _uniform(keys[4], (num_heads, emb_dim, dh), c_qk),
        "bv": _uniform(keys[5], (num_heads, 1, dh), c_qk),
        "wp": _uniform(keys[6], (emb_dim, emb_dim), c_p),
        "bp": _uniform(keys[7], (1, emb_dim), c_p),
    }


def init_ffn(key, emb_dim, ffn_dim):
    keys = jax.random.split(key, 4)
    c1 = (6.0 / (emb_dim + ffn_dim)) ** 0.5
    return {
        "w1": _uniform(keys[0], (emb_dim, ffn_dim), c1),
        "b1": _uniform(keys[1], (1, ffn_dim), c1),
        "w2": _uniform(keys[2], (ffn_dim, emb_dim), c1),
        "b2": _uniform(keys[3], (1, emb_dim), c1),
    }


def init_ln(emb_dim):
    return {"gamma": jnp.ones((1, emb_dim), jnp.float32),
            "beta": jnp.zeros((1, emb_dim), jnp.float32)}


def init_params(key, num_heads, emb_dim, ffn_dim, num_enc, num_dec, vocab_len):
    k_emb, k_enc, k_dec, k_vocab = jax.random.split(key, 4)
    params = {"emb": 0.1 * jax.random.normal(k_emb, (vocab_len, emb_dim), jnp.float32)}

    enc_layers = []
    for lk in jax.random.split(k_enc, num_enc):
        k1, k2 = jax.random.split(lk)
        enc_layers.append({"attn": init_mha(k1, num_heads, emb_dim),
                           "norm1": init_ln(emb_dim),
                           "ffn": init_ffn(k2, emb_dim, ffn_dim),
                           "norm2": init_ln(emb_dim)})
    params["enc"] = enc_layers

    dec_layers = []
    for lk in jax.random.split(k_dec, num_dec):
        k1, k2, k3 = jax.random.split(lk, 3)
        dec_layers.append({"attn_mask": init_mha(k1, num_heads, emb_dim),
                           "norm1": init_ln(emb_dim),
                           "attn_cross": init_mha(k2, num_heads, emb_dim),
                           "norm2": init_ln(emb_dim),
                           "ffn": init_ffn(k3, emb_dim, ffn_dim),
                           "norm3": init_ln(emb_dim)})
    params["dec"] = dec_layers

    kv1, kv2 = jax.random.split(k_vocab)
    cv = (6.0 / (emb_dim + vocab_len)) ** 0.5
    params["proj_vocab"] = {"w": _uniform(kv1, (emb_dim, vocab_len), cv),
                            "b": _uniform(kv2, (1, vocab_len), cv)}
    return params


# ----------------------------------------------------------------------------
# Host-side weight packing for the fused kernel
# ----------------------------------------------------------------------------

def _pack_mha(p, dim_head):
    """(H, E, Dh) per-head weights -> (E, H*Dh) fused weights; fold softmax scale
    into wq/bq (scale = 1/sqrt(Dh), matching scaled_dot_product on per-head q)."""
    scale = 1.0 / (float(dim_head) ** 0.5)

    def pack_w(w):                       # (H, E, Dh) -> (E, H*Dh)
        return jnp.transpose(w, (1, 0, 2)).reshape(w.shape[1], -1)

    def pack_b(b):                       # (H, 1, Dh) -> (1, H*Dh)
        return b.reshape(1, -1)

    return {
        "wq": pack_w(p["wq"]) * scale, "bq": pack_b(p["bq"]) * scale,
        "wk": pack_w(p["wk"]), "bk": pack_b(p["bk"]),
        "wv": pack_w(p["wv"]), "bv": pack_b(p["bv"]),
        "wp": p["wp"], "bp": p["bp"],
    }


def pack_params(params, num_heads, emb_dim):
    dh = emb_dim // num_heads
    packed = {"emb": params["emb"]}

    enc_list = []
    for layer in params["enc"]:
        a = _pack_mha(layer["attn"], dh)
        enc_list.append({
            "wqkv": jnp.concatenate([a["wq"], a["wk"], a["wv"]], axis=1),
            "bqkv": jnp.concatenate([a["bq"], a["bk"], a["bv"]], axis=1),
            "wp": a["wp"], "bp": a["bp"],
            "g1": layer["norm1"]["gamma"], "be1": layer["norm1"]["beta"],
            "w1": layer["ffn"]["w1"], "bf1": layer["ffn"]["b1"],
            "w2": layer["ffn"]["w2"], "bf2": layer["ffn"]["b2"],
            "g2": layer["norm2"]["gamma"], "be2": layer["norm2"]["beta"],
        })
    # Stack per-layer weights along a leading layer axis (static in-kernel index).
    packed["enc"] = {k: jnp.stack([lp[k] for lp in enc_list]) for k in _ENC_KEYS}
    packed["num_enc"] = len(enc_list)

    dec_list = []
    for layer in params["dec"]:
        sa = _pack_mha(layer["attn_mask"], dh)
        ca = _pack_mha(layer["attn_cross"], dh)
        dec_list.append({
            "s_wqkv": jnp.concatenate([sa["wq"], sa["wk"], sa["wv"]], axis=1),
            "s_bqkv": jnp.concatenate([sa["bq"], sa["bk"], sa["bv"]], axis=1),
            "s_wp": sa["wp"], "s_bp": sa["bp"],
            "g1": layer["norm1"]["gamma"], "be1": layer["norm1"]["beta"],
            "c_wq": ca["wq"], "c_bq": ca["bq"],
            "c_wkv": jnp.concatenate([ca["wk"], ca["wv"]], axis=1),
            "c_bkv": jnp.concatenate([ca["bk"], ca["bv"]], axis=1),
            "c_wp": ca["wp"], "c_bp": ca["bp"],
            "g2": layer["norm2"]["gamma"], "be2": layer["norm2"]["beta"],
            "w1": layer["ffn"]["w1"], "bf1": layer["ffn"]["b1"],
            "w2": layer["ffn"]["w2"], "bf2": layer["ffn"]["b2"],
            "g3": layer["norm3"]["gamma"], "be3": layer["norm3"]["beta"],
        })
    packed["dec"] = {k: jnp.stack([lp[k] for lp in dec_list]) for k in _DEC_KEYS}
    packed["num_dec"] = len(dec_list)

    w = params["proj_vocab"]["w"]
    b = params["proj_vocab"]["b"]
    V = w.shape[1]
    Vp = ((V + 127) // 128) * 128        # lane-dense output slab
    packed["proj_vocab"] = {
        "w": jnp.pad(w, ((0, 0), (0, Vp - V))),
        "b": jnp.pad(b, ((0, 0), (0, Vp - V))),
        "v": V,
    }
    return packed


# ----------------------------------------------------------------------------
# Pure-JAX reference (mirrors the PyTorch module) for validation
# ----------------------------------------------------------------------------

def _ref_mha(xq, xkv, p, mask):
    H, _, Dh = p["wq"].shape
    outs = []
    for h in range(H):
        q = xq @ p["wq"][h] + p["bq"][h]
        k = xkv @ p["wk"][h] + p["bk"][h]
        v = xkv @ p["wv"][h] + p["bv"][h]
        s = jnp.einsum("bqd,bkd->bqk", q, k) / jnp.sqrt(jnp.float32(Dh))
        s = jnp.where(mask > 0.5, -1e9, s)
        a = jax.nn.softmax(s, axis=-1)
        outs.append(jnp.einsum("bqk,bkd->bqd", a, v))
    concat = jnp.concatenate(outs, axis=-1)
    return concat @ p["wp"] + p["bp"]


def _ref_ln(x, p, eps=_EPS):
    mean = x.mean(-1, keepdims=True)
    var = ((x - mean) ** 2).mean(-1, keepdims=True)
    return p["gamma"] * ((x - mean) / jnp.sqrt(var + eps)) + p["beta"]


def _ref_ffn(x, p):
    return jnp.maximum(x @ p["w1"] + p["b1"], 0.0) @ p["w2"] + p["b2"]


def reference_forward(params, inp_seq, inp_pos, tgt_seq, tgt_pos):
    B, S = inp_seq.shape
    T = tgt_seq.shape[1]
    x = params["emb"][inp_seq] + inp_pos
    y = params["emb"][tgt_seq] + tgt_pos
    no_mask_enc = jnp.zeros((B, S, S), jnp.float32)
    for layer in params["enc"]:
        x = _ref_ln(x + _ref_mha(x, x, layer["attn"], no_mask_enc), layer["norm1"])
        x = _ref_ln(x + _ref_ffn(x, layer["ffn"]), layer["norm2"])
    enc_out = x
    causal = jnp.broadcast_to(jnp.triu(jnp.ones((T, T), jnp.float32), k=1)[None], (B, T, T))
    no_mask_cross = jnp.zeros((B, T, S), jnp.float32)
    for layer in params["dec"]:
        y = _ref_ln(y + _ref_mha(y, y, layer["attn_mask"], causal), layer["norm1"])
        y = _ref_ln(y + _ref_mha(y, enc_out, layer["attn_cross"], no_mask_cross), layer["norm2"])
        y = _ref_ln(y + _ref_ffn(y, layer["ffn"]), layer["norm3"])
    out = y @ params["proj_vocab"]["w"] + params["proj_vocab"]["b"]
    out = out[:, :-1, :]
    return out.reshape(-1, out.shape[-1])


# ----------------------------------------------------------------------------
# Main
# ----------------------------------------------------------------------------

if __name__ == "__main__":
    NUM_HEADS, EMB_DIM, FFN_DIM = 4, 32, 64
    NUM_ENC, NUM_DEC, VOCAB = 2, 2, 16
    B, S, T = 2, 8, 8

    root = jax.random.PRNGKey(0)
    kp, k1, k2, k3, k4 = jax.random.split(root, 5)

    params = init_params(kp, NUM_HEADS, EMB_DIM, FFN_DIM, NUM_ENC, NUM_DEC, VOCAB)
    packed = pack_params(params, NUM_HEADS, EMB_DIM)

    inp_seq = jax.random.randint(k1, (B, S), 0, VOCAB, dtype=jnp.int32)
    tgt_seq = jax.random.randint(k2, (B, T), 0, VOCAB, dtype=jnp.int32)
    inp_pos = 0.1 * jax.random.normal(k3, (B, S, EMB_DIM), jnp.float32)
    tgt_pos = 0.1 * jax.random.normal(k4, (B, T, EMB_DIM), jnp.float32)

    out = transformer_forward(packed, inp_seq, inp_pos, tgt_seq, tgt_pos,
                              NUM_HEADS, EMB_DIM)
    out = jax.block_until_ready(out)

    assert out.shape == (B * (T - 1), VOCAB), out.shape

    ref = jax.block_until_ready(
        reference_forward(params, inp_seq, inp_pos, tgt_seq, tgt_pos))
    max_err = float(jnp.max(jnp.abs(out - ref)))
    assert max_err < 5e-2, f"mismatch vs reference: {max_err}"

    print("KERNEL_OK")
</pallas_src>

<mosaic_0001>
module attributes {stable_mosaic.version = 11 : i64} {
  func.func @_transformer_kernel(%arg0: i32, %arg1: memref<1x8x32xf32, #tpu.memory_space<vmem>>, %arg2: memref<1x8x32xf32, #tpu.memory_space<vmem>>, %arg3: memref<2x32x96xf32, #tpu.memory_space<vmem>>, %arg4: memref<2x1x96xf32, #tpu.memory_space<vmem>>, %arg5: memref<2x32x32xf32, #tpu.memory_space<vmem>>, %arg6: memref<2x1x32xf32, #tpu.memory_space<vmem>>, %arg7: memref<2x1x32xf32, #tpu.memory_space<vmem>>, %arg8: memref<2x1x32xf32, #tpu.memory_space<vmem>>, %arg9: memref<2x32x64xf32, #tpu.memory_space<vmem>>, %arg10: memref<2x1x64xf32, #tpu.memory_space<vmem>>, %arg11: memref<2x64x32xf32, #tpu.memory_space<vmem>>, %arg12: memref<2x1x32xf32, #tpu.memory_space<vmem>>, %arg13: memref<2x1x32xf32, #tpu.memory_space<vmem>>, %arg14: memref<2x1x32xf32, #tpu.memory_space<vmem>>, %arg15: memref<2x32x96xf32, #tpu.memory_space<vmem>>, %arg16: memref<2x1x96xf32, #tpu.memory_space<vmem>>, %arg17: memref<2x32x32xf32, #tpu.memory_space<vmem>>, %arg18: memref<2x1x32xf32, #tpu.memory_space<vmem>>, %arg19: memref<2x1x32xf32, #tpu.memory_space<vmem>>, %arg20: memref<2x1x32xf32, #tpu.memory_space<vmem>>, %arg21: memref<2x32x32xf32, #tpu.memory_space<vmem>>, %arg22: memref<2x1x32xf32, #tpu.memory_space<vmem>>, %arg23: memref<2x32x64xf32, #tpu.memory_space<vmem>>, %arg24: memref<2x1x64xf32, #tpu.memory_space<vmem>>, %arg25: memref<2x32x32xf32, #tpu.memory_space<vmem>>, %arg26: memref<2x1x32xf32, #tpu.memory_space<vmem>>, %arg27: memref<2x1x32xf32, #tpu.memory_space<vmem>>, %arg28: memref<2x1x32xf32, #tpu.memory_space<vmem>>, %arg29: memref<2x32x64xf32, #tpu.memory_space<vmem>>, %arg30: memref<2x1x64xf32, #tpu.memory_space<vmem>>, %arg31: memref<2x64x32xf32, #tpu.memory_space<vmem>>, %arg32: memref<2x1x32xf32, #tpu.memory_space<vmem>>, %arg33: memref<2x1x32xf32, #tpu.memory_space<vmem>>, %arg34: memref<2x1x32xf32, #tpu.memory_space<vmem>>, %arg35: memref<32x128xf32, #tpu.memory_space<vmem>>, %arg36: memref<1x128xf32, #tpu.memory_space<vmem>>, %arg37: memref<1x8x128xf32, #tpu.memory_space<vmem>>) attributes {dimension_semantics = [#tpu.dimension_semantics<parallel>], iteration_bounds = array<i64: 2>, scalar_prefetch = 0 : i64, scratch_operands = 0 : i64, tpu.core_type = #tpu.core_type<tc>, window_params = [{transform_indices = @transform_0, window_bounds = array<i64: 1, 8, 32>}, {transform_indices = @transform_1, window_bounds = array<i64: 1, 8, 32>}, {pipeline_mode = #tpu.pipeline_mode<synchronous>, transform_indices = @transform_2, window_bounds = array<i64: 2, 32, 96>}, {pipeline_mode = #tpu.pipeline_mode<synchronous>, transform_indices = @transform_3, window_bounds = array<i64: 2, 1, 96>}, {pipeline_mode = #tpu.pipeline_mode<synchronous>, transform_indices = @transform_4, window_bounds = array<i64: 2, 32, 32>}, {pipeline_mode = #tpu.pipeline_mode<synchronous>, transform_indices = @transform_5, window_bounds = array<i64: 2, 1, 32>}, {pipeline_mode = #tpu.pipeline_mode<synchronous>, transform_indices = @transform_6, window_bounds = array<i64: 2, 1, 32>}, {pipeline_mode = #tpu.pipeline_mode<synchronous>, transform_indices = @transform_7, window_bounds = array<i64: 2, 1, 32>}, {pipeline_mode = #tpu.pipeline_mode<synchronous>, transform_indices = @transform_8, window_bounds = array<i64: 2, 32, 64>}, {pipeline_mode = #tpu.pipeline_mode<synchronous>, transform_indices = @transform_9, window_bounds = array<i64: 2, 1, 64>}, {pipeline_mode = #tpu.pipeline_mode<synchronous>, transform_indices = @transform_10, window_bounds = array<i64: 2, 64, 32>}, {pipeline_mode = #tpu.pipeline_mode<synchronous>, transform_indices = @transform_11, window_bounds = array<i64: 2, 1, 32>}, {pipeline_mode = #tpu.pipeline_mode<synchronous>, transform_indices = @transform_12, window_bounds = array<i64: 2, 1, 32>}, {pipeline_mode = #tpu.pipeline_mode<synchronous>, transform_indices = @transform_13, window_bounds = array<i64: 2, 1, 32>}, {pipeline_mode = #tpu.pipeline_mode<synchronous>, transform_indices = @transform_14, window_bounds = array<i64: 2, 32, 96>}, {pipeline_mode = #tpu.pipeline_mode<synchronous>, transform_indices = @transform_15, window_bounds = array<i64: 2, 1, 96>}, {pipeline_mode = #tpu.pipeline_mode<synchronous>, transform_indices = @transform_16, window_bounds = array<i64: 2, 32, 32>}, {pipeline_mode = #tpu.pipeline_mode<synchronous>, transform_indices = @transform_17, window_bounds = array<i64: 2, 1, 32>}, {pipeline_mode = #tpu.pipeline_mode<synchronous>, transform_indices = @transform_18, window_bounds = array<i64: 2, 1, 32>}, {pipeline_mode = #tpu.pipeline_mode<synchronous>, transform_indices = @transform_19, window_bounds = array<i64: 2, 1, 32>}, {pipeline_mode = #tpu.pipeline_mode<synchronous>, transform_indices = @transform_20, window_bounds = array<i64: 2, 32, 32>}, {pipeline_mode = #tpu.pipeline_mode<synchronous>, transform_indices = @transform_21, window_bounds = array<i64: 2, 1, 32>}, {pipeline_mode = #tpu.pipeline_mode<synchronous>, transform_indices = @transform_22, window_bounds = array<i64: 2, 32, 64>}, {pipeline_mode = #tpu.pipeline_mode<synchronous>, transform_indices = @transform_23, window_bounds = array<i64: 2, 1, 64>}, {pipeline_mode = #tpu.pipeline_mode<synchronous>, transform_indices = @transform_24, window_bounds = array<i64: 2, 32, 32>}, {pipeline_mode = #tpu.pipeline_mode<synchronous>, transform_indices = @transform_25, window_bounds = array<i64: 2, 1, 32>}, {pipeline_mode = #tpu.pipeline_mode<synchronous>, transform_indices = @transform_26, window_bounds = array<i64: 2, 1, 32>}, {pipeline_mode = #tpu.pipeline_mode<synchronous>, transform_indices = @transform_27, window_bounds = array<i64: 2, 1, 32>}, {pipeline_mode = #tpu.pipeline_mode<synchronous>, transform_indices = @transform_28, window_bounds = array<i64: 2, 32, 64>}, {pipeline_mode = #tpu.pipeline_mode<synchronous>, transform_indices = @transform_29, window_bounds = array<i64: 2, 1, 64>}, {pipeline_mode = #tpu.pipeline_mode<synchronous>, transform_indices = @transform_30, window_bounds = array<i64: 2, 64, 32>}, {pipeline_mode = #tpu.pipeline_mode<synchronous>, transform_indices = @transform_31, window_bounds = array<i64: 2, 1, 32>}, {pipeline_mode = #tpu.pipeline_mode<synchronous>, transform_indices = @transform_32, window_bounds = array<i64: 2, 1, 32>}, {pipeline_mode = #tpu.pipeline_mode<synchronous>, transform_indices = @transform_33, window_bounds = array<i64: 2, 1, 32>}, {pipeline_mode = #tpu.pipeline_mode<synchronous>, transform_indices = @transform_34, window_bounds = array<i64: 32, 128>}, {pipeline_mode = #tpu.pipeline_mode<synchronous>, transform_indices = @transform_35, window_bounds = array<i64: 1, 128>}, {transform_indices = @transform_36, window_bounds = array<i64: 1, 8, 128>}]} {
    %c0 = arith.constant 0 : index
    %c0_0 = arith.constant 0 : index
    %c0_1 = arith.constant 0 : index
    %0 = vector.load %arg1[%c0, %c0_0, %c0_1] : memref<1x8x32xf32, #tpu.memory_space<vmem>>, vector<1x8x32xf32>
    %1 = vector.shape_cast %0 : vector<1x8x32xf32> to vector<8x32xf32>
    %c0_2 = arith.constant 0 : index
    %c0_3 = arith.constant 0 : index
    %c0_4 = arith.constant 0 : index
    %2 = vector.load %arg2[%c0_2, %c0_3, %c0_4] : memref<1x8x32xf32, #tpu.memory_space<vmem>>, vector<1x8x32xf32>
    %3 = vector.shape_cast %2 : vector<1x8x32xf32> to vector<8x32xf32>
    %c0_5 = arith.constant 0 : index
    %c0_6 = arith.constant 0 : index
    %c0_7 = arith.constant 0 : index
    %4 = vector.load %arg3[%c0_5, %c0_6, %c0_7] : memref<2x32x96xf32, #tpu.memory_space<vmem>>, vector<1x32x96xf32>
    %5 = vector.shape_cast %4 : vector<1x32x96xf32> to vector<32x96xf32>
    %cst = arith.constant dense<0.000000e+00> : vector<8x96xf32>
    %6 = tpu.matmul %1, %5, %cst {dimension_numbers = #tpu.dot_dimension_numbers<[1], [0], [0], [1], [0, 0, 1, 1], [], []>} : vector<8x32xf32>, vector<32x96xf32>, vector<8x96xf32> -> vector<8x96xf32>
    %c0_8 = arith.constant 0 : index
    %c0_9 = arith.constant 0 : index
    %c0_10 = arith.constant 0 : index
    %7 = vector.load %arg4[%c0_8, %c0_9, %c0_10] : memref<2x1x96xf32, #tpu.memory_space<vmem>>, vector<1x1x96xf32>
    %8 = vector.shape_cast %7 : vector<1x1x96xf32> to vector<1x96xf32>
    %9 = vector.broadcast %8 : vector<1x96xf32> to vector<8x96xf32>
    %10 = arith.addf %6, %9 : vector<8x96xf32>
    %11 = vector.extract_strided_slice %10 {offsets = [0, 0], sizes = [8, 32], strides = [1, 1]} : vector<8x96xf32> to vector<8x32xf32>
    %12 = vector.extract_strided_slice %10 {offsets = [0, 32], sizes = [8, 32], strides = [1, 1]} : vector<8x96xf32> to vector<8x32xf32>
    %13 = vector.extract_strided_slice %10 {offsets = [0, 64], sizes = [8, 32], strides = [1, 1]} : vector<8x96xf32> to vector<8x32xf32>
    %c0_11 = arith.constant 0 : index
    %c0_12 = arith.constant 0 : index
    %c0_13 = arith.constant 0 : index
    %14 = vector.load %arg5[%c0_11, %c0_12, %c0_13] : memref<2x32x32xf32, #tpu.memory_space<vmem>>, vector<1x32x32xf32>
    %15 = vector.shape_cast %14 : vector<1x32x32xf32> to vector<32x32xf32>
    %c0_14 = arith.constant 0 : index
    %c0_15 = arith.constant 0 : index
    %c0_16 = arith.constant 0 : index
    %16 = vector.load %arg6[%c0_14, %c0_15, %c0_16] : memref<2x1x32xf32, #tpu.memory_space<vmem>>, vector<1x1x32xf32>
    %17 = vector.shape_cast %16 : vector<1x1x32xf32> to vector<1x32xf32>
    %18 = vector.extract_strided_slice %11 {offsets = [0, 0], sizes = [8, 8], strides = [1, 1]} : vector<8x32xf32> to vector<8x8xf32>
    %19 = vector.extract_strided_slice %12 {offsets = [0, 0], sizes = [8, 8], strides = [1, 1]} : vector<8x32xf32> to vector<8x8xf32>
    %20 = vector.extract_strided_slice %13 {offsets = [0, 0], sizes = [8, 8], strides = [1, 1]} : vector<8x32xf32> to vector<8x8xf32>
    %cst_17 = arith.constant dense<0.000000e+00> : vector<8x8xf32>
    %21 = tpu.matmul %18, %19, %cst_17 {dimension_numbers = #tpu.dot_dimension_numbers<[1], [1], [0], [0], [0, 0, 1, 0], [], []>} : vector<8x8xf32>, vector<8x8xf32>, vector<8x8xf32> -> vector<8x8xf32>
    %cst_18 = arith.constant dense<0xFF800000> : vector<8xf32>
    %22 = vector.multi_reduction <maximumf>, %21, %cst_18 [1] : vector<8x8xf32> to vector<8xf32>
    %23 = vector.shape_cast %22 : vector<8xf32> to vector<8x1xf32>
    %24 = vector.broadcast %23 : vector<8x1xf32> to vector<8x8xf32>
    %25 = arith.subf %21, %24 : vector<8x8xf32>
    %26 = math.exp %25 : vector<8x8xf32>
    %cst_19 = arith.constant dense<0.000000e+00> : vector<8xf32>
    %27 = vector.multi_reduction <add>, %26, %cst_19 [1] : vector<8x8xf32> to vector<8xf32>
    %28 = vector.shape_cast %27 : vector<8xf32> to vector<8x1xf32>
    %29 = tpu.reciprocal %28 {approx = true} : vector<8x1xf32> -> vector<8x1xf32>
    %30 = vector.broadcast %29 : vector<8x1xf32> to vector<8x8xf32>
    %31 = arith.mulf %26, %30 : vector<8x8xf32>
    %cst_20 = arith.constant dense<0.000000e+00> : vector<8x8xf32>
    %32 = tpu.matmul %31, %20, %cst_20 {dimension_numbers = #tpu.dot_dimension_numbers<[1], [0], [0], [1], [0, 0, 1, 1], [], []>} : vector<8x8xf32>, vector<8x8xf32>, vector<8x8xf32> -> vector<8x8xf32>
    %33 = vector.extract_strided_slice %11 {offsets = [0, 8], sizes = [8, 8], strides = [1, 1]} : vector<8x32xf32> to vector<8x8xf32>
    %34 = vector.extract_strided_slice %12 {offsets = [0, 8], sizes = [8, 8], strides = [1, 1]} : vector<8x32xf32> to vector<8x8xf32>
    %35 = vector.extract_strided_slice %13 {offsets = [0, 8], sizes = [8, 8], strides = [1, 1]} : vector<8x32xf32> to vector<8x8xf32>
    %cst_21 = arith.constant dense<0.000000e+00> : vector<8x8xf32>
    %36 = tpu.matmul %33, %34, %cst_21 {dimension_numbers = #tpu.dot_dimension_numbers<[1], [1], [0], [0], [0, 0, 1, 0], [], []>} : vector<8x8xf32>, vector<8x8xf32>, vector<8x8xf32> -> vector<8x8xf32>
    %cst_22 = arith.constant dense<0xFF800000> : vector<8xf32>
    %37 = vector.multi_reduction <maximumf>, %36, %cst_22 [1] : vector<8x8xf32> to vector<8xf32>
    %38 = vector.shape_cast %37 : vector<8xf32> to vector<8x1xf32>
    %39 = vector.broadcast %38 : vector<8x1xf32> to vector<8x8xf32>
    %40 = arith.subf %36, %39 : vector<8x8xf32>
    %41 = math.exp %40 : vector<8x8xf32>
    %cst_23 = arith.constant dense<0.000000e+00> : vector<8xf32>
    %42 = vector.multi_reduction <add>, %41, %cst_23 [1] : vector<8x8xf32> to vector<8xf32>
    %43 = vector.shape_cast %42 : vector<8xf32> to vector<8x1xf32>
    %44 = tpu.reciprocal %43 {approx = true} : vector<8x1xf32> -> vector<8x1xf32>
    %45 = vector.broadcast %44 : vector<8x1xf32> to vector<8x8xf32>
    %46 = arith.mulf %41, %45 : vector<8x8xf32>
    %cst_24 = arith.constant dense<0.000000e+00> : vector<8x8xf32>
    %47 = tpu.matmul %46, %35, %cst_24 {dimension_numbers = #tpu.dot_dimension_numbers<[1], [0], [0], [1], [0, 0, 1, 1], [], []>} : vector<8x8xf32>, vector<8x8xf32>, vector<8x8xf32> -> vector<8x8xf32>
    %48 = vector.extract_strided_slice %11 {offsets = [0, 16], sizes = [8, 8], strides = [1, 1]} : vector<8x32xf32> to vector<8x8xf32>
    %49 = vector.extract_strided_slice %12 {offsets = [0, 16], sizes = [8, 8], strides = [1, 1]} : vector<8x32xf32> to vector<8x8xf32>
    %50 = vector.extract_strided_slice %13 {offsets = [0, 16], sizes = [8, 8], strides = [1, 1]} : vector<8x32xf32> to vector<8x8xf32>
    %cst_25 = arith.constant dense<0.000000e+00> : vector<8x8xf32>
    %51 = tpu.matmul %48, %49, %cst_25 {dimension_numbers = #tpu.dot_dimension_numbers<[1], [1], [0], [0], [0, 0, 1, 0], [], []>} : vector<8x8xf32>, vector<8x8xf32>, vector<8x8xf32> -> vector<8x8xf32>
    %cst_26 = arith.constant dense<0xFF800000> : vector<8xf32>
    %52 = vector.multi_reduction <maximumf>, %51, %cst_26 [1] : vector<8x8xf32> to vector<8xf32>
    %53 = vector.shape_cast %52 : vector<8xf32> to vector<8x1xf32>
    %54 = vector.broadcast %53 : vector<8x1xf32> to vector<8x8xf32>
    %55 = arith.subf %51, %54 : vector<8x8xf32>
    %56 = math.exp %55 : vector<8x8xf32>
    %cst_27 = arith.constant dense<0.000000e+00> : vector<8xf32>
    %57 = vector.multi_reduction <add>, %56, %cst_27 [1] : vector<8x8xf32> to vector<8xf32>
    %58 = vector.shape_cast %57 : vector<8xf32> to vector<8x1xf32>
    %59 = tpu.reciprocal %58 {approx = true} : vector<8x1xf32> -> vector<8x1xf32>
    %60 = vector.broadcast %59 : vector<8x1xf32> to vector<8x8xf32>
    %61 = arith.mulf %56, %60 : vector<8x8xf32>
    %cst_28 = arith.constant dense<0.000000e+00> : vector<8x8xf32>
    %62 = tpu.matmul %61, %50, %cst_28 {dimension_numbers = #tpu.dot_dimension_numbers<[1], [0], [0], [1], [0, 0, 1, 1], [], []>} : vector<8x8xf32>, vector<8x8xf32>, vector<8x8xf32> -> vector<8x8xf32>
    %63 = vector.extract_strided_slice %11 {offsets = [0, 24], sizes = [8, 8], strides = [1, 1]} : vector<8x32xf32> to vector<8x8xf32>
    %64 = vector.extract_strided_slice %12 {offsets = [0, 24], sizes = [8, 8], strides = [1, 1]} : vector<8x32xf32> to vector<8x8xf32>
    %65 = vector.extract_strided_slice %13 {offsets = [0, 24], sizes = [8, 8], strides = [1, 1]} : vector<8x32xf32> to vector<8x8xf32>
    %cst_29 = arith.constant dense<0.000000e+00> : vector<8x8xf32>
    %66 = tpu.matmul %63, %64, %cst_29 {dimension_numbers = #tpu.dot_dimension_numbers<[1], [1], [0], [0], [0, 0, 1, 0], [], []>} : vector<8x8xf32>, vector<8x8xf32>, vector<8x8xf32> -> vector<8x8xf32>
    %cst_30 = arith.constant dense<0xFF800000> : vector<8xf32>
    %67 = vector.multi_reduction <maximumf>, %66, %cst_30 [1] : vector<8x8xf32> to vector<8xf32>
    %68 = vector.shape_cast %67 : vector<8xf32> to vector<8x1xf32>
    %69 = vector.broadcast %68 : vector<8x1xf32> to vector<8x8xf32>
    %70 = arith.subf %66, %69 : vector<8x8xf32>
    %71 = math.exp %70 : vector<8x8xf32>
    %cst_31 = arith.constant dense<0.000000e+00> : vector<8xf32>
    %72 = vector.multi_reduction <add>, %71, %cst_31 [1] : vector<8x8xf32> to vector<8xf32>
    %73 = vector.shape_cast %72 : vector<8xf32> to vector<8x1xf32>
    %74 = tpu.reciprocal %73 {approx = true} : vector<8x1xf32> -> vector<8x1xf32>
    %75 = vector.broadcast %74 : vector<8x1xf32> to vector<8x8xf32>
    %76 = arith.mulf %71, %75 : vector<8x8xf32>
    %cst_32 = arith.constant dense<0.000000e+00> : vector<8x8xf32>
    %77 = tpu.matmul %76, %65, %cst_32 {dimension_numbers = #tpu.dot_dimension_numbers<[1], [0], [0], [1], [0, 0, 1, 1], [], []>} : vector<8x8xf32>, vector<8x8xf32>, vector<8x8xf32> -> vector<8x8xf32>
    %78 = tpu.concatenate %32, %47, %62, %77 in 1 : vector<8x8xf32>, vector<8x8xf32>, vector<8x8xf32>, vector<8x8xf32> -> vector<8x32xf32>
    %cst_33 = arith.constant dense<0.000000e+00> : vector<8x32xf32>
    %79 = tpu.matmul %78, %15, %cst_33 {dimension_numbers = #tpu.dot_dimension_numbers<[1], [0], [0], [1], [0, 0, 1, 1], [], []>} : vector<8x32xf32>, vector<32x32xf32>, vector<8x32xf32> -> vector<8x32xf32>
    %80 = vector.broadcast %17 : vector<1x32xf32> to vector<8x32xf32>
    %81 = arith.addf %79, %80 : vector<8x32xf32>
    %82 = arith.addf %1, %81 : vector<8x32xf32>
    %c0_34 = arith.constant 0 : index
    %c0_35 = arith.constant 0 : index
    %c0_36 = arith.constant 0 : index
    %83 = vector.load %arg7[%c0_34, %c0_35, %c0_36] : memref<2x1x32xf32, #tpu.memory_space<vmem>>, vector<1x1x32xf32>
    %84 = vector.shape_cast %83 : vector<1x1x32xf32> to vector<1x32xf32>
    %c0_37 = arith.constant 0 : index
    %c0_38 = arith.constant 0 : index
    %c0_39 = arith.constant 0 : index
    %85 = vector.load %arg8[%c0_37, %c0_38, %c0_39] : memref<2x1x32xf32, #tpu.memory_space<vmem>>, vector<1x1x32xf32>
    %86 = vector.shape_cast %85 : vector<1x1x32xf32> to vector<1x32xf32>
    %cst_40 = arith.constant dense<0.000000e+00> : vector<8xf32>
    %87 = vector.multi_reduction <add>, %82, %cst_40 [1] : vector<8x32xf32> to vector<8xf32>
    %88 = vector.shape_cast %87 : vector<8xf32> to vector<8x1xf32>
    %cst_41 = arith.constant 3.200000e+01 : f32
    %89 = vector.broadcast %cst_41 : f32 to vector<8x1xf32>
    %90 = arith.divf %88, %89 : vector<8x1xf32>
    %91 = vector.broadcast %90 : vector<8x1xf32> to vector<8x32xf32>
    %92 = arith.subf %82, %91 : vector<8x32xf32>
    %93 = arith.mulf %92, %92 : vector<8x32xf32>
    %cst_42 = arith.constant dense<0.000000e+00> : vector<8xf32>
    %94 = vector.multi_reduction <add>, %93, %cst_42 [1] : vector<8x32xf32> to vector<8xf32>
    %95 = vector.shape_cast %94 : vector<8xf32> to vector<8x1xf32>
    %cst_43 = arith.constant 3.200000e+01 : f32
    %96 = vector.broadcast %cst_43 : f32 to vector<8x1xf32>
    %97 = arith.divf %95, %96 : vector<8x1xf32>
    %98 = vector.broadcast %90 : vector<8x1xf32> to vector<8x32xf32>
    %99 = arith.subf %82, %98 : vector<8x32xf32>
    %cst_44 = arith.constant 1.000000e-10 : f32
    %100 = vector.broadcast %cst_44 : f32 to vector<8x1xf32>
    %101 = arith.addf %97, %100 : vector<8x1xf32>
    %102 = math.rsqrt %101 : vector<8x1xf32>
    %103 = vector.broadcast %102 : vector<8x1xf32> to vector<8x32xf32>
    %104 = arith.mulf %99, %103 : vector<8x32xf32>
    %105 = vector.broadcast %84 : vector<1x32xf32> to vector<8x32xf32>
    %106 = arith.mulf %105, %104 : vector<8x32xf32>
    %107 = vector.broadcast %86 : vector<1x32xf32> to vector<8x32xf32>
    %108 = arith.addf %106, %107 : vector<8x32xf32>
    %c0_45 = arith.constant 0 : index
    %c0_46 = arith.constant 0 : index
    %c0_47 = arith.constant 0 : index
    %109 = vector.load %arg9[%c0_45, %c0_46, %c0_47] : memref<2x32x64xf32, #tpu.memory_space<vmem>>, vector<1x32x64xf32>
    %110 = vector.shape_cast %109 : vector<1x32x64xf32> to vector<32x64xf32>
    %c0_48 = arith.constant 0 : index
    %c0_49 = arith.constant 0 : index
    %c0_50 = arith.constant 0 : index
    %111 = vector.load %arg10[%c0_48, %c0_49, %c0_50] : memref<2x1x64xf32, #tpu.memory_space<vmem>>, vector<1x1x64xf32>
    %112 = vector.shape_cast %111 : vector<1x1x64xf32> to vector<1x64xf32>
    %c0_51 = arith.constant 0 : index
    %c0_52 = arith.constant 0 : index
    %c0_53 = arith.constant 0 : index
    %113 = vector.load %arg11[%c0_51, %c0_52, %c0_53] : memref<2x64x32xf32, #tpu.memory_space<vmem>>, vector<1x64x32xf32>
    %114 = vector.shape_cast %113 : vector<1x64x32xf32> to vector<64x32xf32>
    %c0_54 = arith.constant 0 : index
    %c0_55 = arith.constant 0 : index
    %c0_56 = arith.constant 0 : index
    %115 = vector.load %arg12[%c0_54, %c0_55, %c0_56] : memref<2x1x32xf32, #tpu.memory_space<vmem>>, vector<1x1x32xf32>
    %116 = vector.shape_cast %115 : vector<1x1x32xf32> to vector<1x32xf32>
    %cst_57 = arith.constant dense<0.000000e+00> : vector<8x64xf32>
    %117 = tpu.matmul %108, %110, %cst_57 {dimension_numbers = #tpu.dot_dimension_numbers<[1], [0], [0], [1], [0, 0, 1, 1], [], []>} : vector<8x32xf32>, vector<32x64xf32>, vector<8x64xf32> -> vector<8x64xf32>
    %118 = vector.broadcast %112 : vector<1x64xf32> to vector<8x64xf32>
    %119 = arith.addf %117, %118 : vector<8x64xf32>
    %cst_58 = arith.constant 0.000000e+00 : f32
    %120 = vector.broadcast %cst_58 : f32 to vector<8x64xf32>
    %121 = arith.maximumf %119, %120 : vector<8x64xf32>
    %cst_59 = arith.constant dense<0.000000e+00> : vector<8x32xf32>
    %122 = tpu.matmul %121, %114, %cst_59 {dimension_numbers = #tpu.dot_dimension_numbers<[1], [0], [0], [1], [0, 0, 1, 1], [], []>} : vector<8x64xf32>, vector<64x32xf32>, vector<8x32xf32> -> vector<8x32xf32>
    %123 = vector.broadcast %116 : vector<1x32xf32> to vector<8x32xf32>
    %124 = arith.addf %122, %123 : vector<8x32xf32>
    %125 = arith.addf %108, %124 : vector<8x32xf32>
    %c0_60 = arith.constant 0 : index
    %c0_61 = arith.constant 0 : index
    %c0_62 = arith.constant 0 : index
    %126 = vector.load %arg13[%c0_60, %c0_61, %c0_62] : memref<2x1x32xf32, #tpu.memory_space<vmem>>, vector<1x1x32xf32>
    %127 = vector.shape_cast %126 : vector<1x1x32xf32> to vector<1x32xf32>
    %c0_63 = arith.constant 0 : index
    %c0_64 = arith.constant 0 : index
    %c0_65 = arith.constant 0 : index
    %128 = vector.load %arg14[%c0_63, %c0_64, %c0_65] : memref<2x1x32xf32, #tpu.memory_space<vmem>>, vector<1x1x32xf32>
    %129 = vector.shape_cast %128 : vector<1x1x32xf32> to vector<1x32xf32>
    %cst_66 = arith.constant dense<0.000000e+00> : vector<8xf32>
    %130 = vector.multi_reduction <add>, %125, %cst_66 [1] : vector<8x32xf32> to vector<8xf32>
    %131 = vector.shape_cast %130 : vector<8xf32> to vector<8x1xf32>
    %cst_67 = arith.constant 3.200000e+01 : f32
    %132 = vector.broadcast %cst_67 : f32 to vector<8x1xf32>
    %133 = arith.divf %131, %132 : vector<8x1xf32>
    %134 = vector.broadcast %133 : vector<8x1xf32> to vector<8x32xf32>
    %135 = arith.subf %125, %134 : vector<8x32xf32>
    %136 = arith.mulf %135, %135 : vector<8x32xf32>
    %cst_68 = arith.constant dense<0.000000e+00> : vector<8xf32>
    %137 = vector.multi_reduction <add>, %136, %cst_68 [1] : vector<8x32xf32> to vector<8xf32>
    %138 = vector.shape_cast %137 : vector<8xf32> to vector<8x1xf32>
    %cst_69 = arith.constant 3.200000e+01 : f32
    %139 = vector.broadcast %cst_69 : f32 to vector<8x1xf32>
    %140 = arith.divf %138, %139 : vector<8x1xf32>
    %141 = vector.broadcast %133 : vector<8x1xf32> to vector<8x32xf32>
    %142 = arith.subf %125, %141 : vector<8x32xf32>
    %cst_70 = arith.constant 1.000000e-10 : f32
    %143 = vector.broadcast %cst_70 : f32 to vector<8x1xf32>
    %144 = arith.addf %140, %143 : vector<8x1xf32>
    %145 = math.rsqrt %144 : vector<8x1xf32>
    %146 = vector.broadcast %145 : vector<8x1xf32> to vector<8x32xf32>
    %147 = arith.mulf %142, %146 : vector<8x32xf32>
    %148 = vector.broadcast %127 : vector<1x32xf32> to vector<8x32xf32>
    %149 = arith.mulf %148, %147 : vector<8x32xf32>
    %150 = vector.broadcast %129 : vector<1x32xf32> to vector<8x32xf32>
    %151 = arith.addf %149, %150 : vector<8x32xf32>
    %c1 = arith.constant 1 : index
    %c0_71 = arith.constant 0 : index
    %c0_72 = arith.constant 0 : index
    %152 = vector.load %arg3[%c1, %c0_71, %c0_72] : memref<2x32x96xf32, #tpu.memory_space<vmem>>, vector<1x32x96xf32>
    %153 = vector.shape_cast %152 : vector<1x32x96xf32> to vector<32x96xf32>
    %cst_73 = arith.constant dense<0.000000e+00> : vector<8x96xf32>
    %154 = tpu.matmul %151, %153, %cst_73 {dimension_numbers = #tpu.dot_dimension_numbers<[1], [0], [0], [1], [0, 0, 1, 1], [], []>} : vector<8x32xf32>, vector<32x96xf32>, vector<8x96xf32> -> vector<8x96xf32>
    %c1_74 = arith.constant 1 : index
    %c0_75 = arith.constant 0 : index
    %c0_76 = arith.constant 0 : index
    %155 = vector.load %arg4[%c1_74, %c0_75, %c0_76] : memref<2x1x96xf32, #tpu.memory_space<vmem>>, vector<1x1x96xf32>
    %156 = vector.shape_cast %155 : vector<1x1x96xf32> to vector<1x96xf32>
    %157 = vector.broadcast %156 : vector<1x96xf32> to vector<8x96xf32>
    %158 = arith.addf %154, %157 : vector<8x96xf32>
    %159 = vector.extract_strided_slice %158 {offsets = [0, 0], sizes = [8, 32], strides = [1, 1]} : vector<8x96xf32> to vector<8x32xf32>
    %160 = vector.extract_strided_slice %158 {offsets = [0, 32], sizes = [8, 32], strides = [1, 1]} : vector<8x96xf32> to vector<8x32xf32>
    %161 = vector.extract_strided_slice %158 {offsets = [0, 64], sizes = [8, 32], strides = [1, 1]} : vector<8x96xf32> to vector<8x32xf32>
    %c1_77 = arith.constant 1 : index
    %c0_78 = arith.constant 0 : index
    %c0_79 = arith.constant 0 : index
    %162 = vector.load %arg5[%c1_77, %c0_78, %c0_79] : memref<2x32x32xf32, #tpu.memory_space<vmem>>, vector<1x32x32xf32>
    %163 = vector.shape_cast %162 : vector<1x32x32xf32> to vector<32x32xf32>
    %c1_80 = arith.constant 1 : index
    %c0_81 = arith.constant 0 : index
    %c0_82 = arith.constant 0 : index
    %164 = vector.load %arg6[%c1_80, %c0_81, %c0_82] : memref<2x1x32xf32, #tpu.memory_space<vmem>>, vector<1x1x32xf32>
    %165 = vector.shape_cast %164 : vector<1x1x32xf32> to vector<1x32xf32>
    %166 = vector.extract_strided_slice %159 {offsets = [0, 0], sizes = [8, 8], strides = [1, 1]} : vector<8x32xf32> to vector<8x8xf32>
    %167 = vector.extract_strided_slice %160 {offsets = [0, 0], sizes = [8, 8], strides = [1, 1]} : vector<8x32xf32> to vector<8x8xf32>
    %168 = vector.extract_strided_slice %161 {offsets = [0, 0], sizes = [8, 8], strides = [1, 1]} : vector<8x32xf32> to vector<8x8xf32>
    %cst_83 = arith.constant dense<0.000000e+00> : vector<8x8xf32>
    %169 = tpu.matmul %166, %167, %cst_83 {dimension_numbers = #tpu.dot_dimension_numbers<[1], [1], [0], [0], [0, 0, 1, 0], [], []>} : vector<8x8xf32>, vector<8x8xf32>, vector<8x8xf32> -> vector<8x8xf32>
    %cst_84 = arith.constant dense<0xFF800000> : vector<8xf32>
    %170 = vector.multi_reduction <maximumf>, %169, %cst_84 [1] : vector<8x8xf32> to vector<8xf32>
    %171 = vector.shape_cast %170 : vector<8xf32> to vector<8x1xf32>
    %172 = vector.broadcast %171 : vector<8x1xf32> to vector<8x8xf32>
    %173 = arith.subf %169, %172 : vector<8x8xf32>
    %174 = math.exp %173 : vector<8x8xf32>
    %cst_85 = arith.constant dense<0.000000e+00> : vector<8xf32>
    %175 = vector.multi_reduction <add>, %174, %cst_85 [1] : vector<8x8xf32> to vector<8xf32>
    %176 = vector.shape_cast %175 : vector<8xf32> to vector<8x1xf32>
    %177 = tpu.reciprocal %176 {approx = true} : vector<8x1xf32> -> vector<8x1xf32>
    %178 = vector.broadcast %177 : vector<8x1xf32> to vector<8x8xf32>
    %179 = arith.mulf %174, %178 : vector<8x8xf32>
    %cst_86 = arith.constant dense<0.000000e+00> : vector<8x8xf32>
    %180 = tpu.matmul %179, %168, %cst_86 {dimension_numbers = #tpu.dot_dimension_numbers<[1], [0], [0], [1], [0, 0, 1, 1], [], []>} : vector<8x8xf32>, vector<8x8xf32>, vector<8x8xf32> -> vector<8x8xf32>
    %181 = vector.extract_strided_slice %159 {offsets = [0, 8], sizes = [8, 8], strides = [1, 1]} : vector<8x32xf32> to vector<8x8xf32>
    %182 = vector.extract_strided_slice %160 {offsets = [0, 8], sizes = [8, 8], strides = [1, 1]} : vector<8x32xf32> to vector<8x8xf32>
    %183 = vector.extract_strided_slice %161 {offsets = [0, 8], sizes = [8, 8], strides = [1, 1]} : vector<8x32xf32> to vector<8x8xf32>
    %cst_87 = arith.constant dense<0.000000e+00> : vector<8x8xf32>
    %184 = tpu.matmul %181, %182, %cst_87 {dimension_numbers = #tpu.dot_dimension_numbers<[1], [1], [0], [0], [0, 0, 1, 0], [], []>} : vector<8x8xf32>, vector<8x8xf32>, vector<8x8xf32> -> vector<8x8xf32>
    %cst_88 = arith.constant dense<0xFF800000> : vector<8xf32>
    %185 = vector.multi_reduction <maximumf>, %184, %cst_88 [1] : vector<8x8xf32> to vector<8xf32>
    %186 = vector.shape_cast %185 : vector<8xf32> to vector<8x1xf32>
    %187 = vector.broadcast %186 : vector<8x1xf32> to vector<8x8xf32>
    %188 = arith.subf %184, %187 : vector<8x8xf32>
    %189 = math.exp %188 : vector<8x8xf32>
    %cst_89 = arith.constant dense<0.000000e+00> : vector<8xf32>
    %190 = vector.multi_reduction <add>, %189, %cst_89 [1] : vector<8x8xf32> to vector<8xf32>
    %191 = vector.shape_cast %190 : vector<8xf32> to vector<8x1xf32>
    %192 = tpu.reciprocal %191 {approx = true} : vector<8x1xf32> -> vector<8x1xf32>
    %193 = vector.broadcast %192 : vector<8x1xf32> to vector<8x8xf32>
    %194 = arith.mulf %189, %193 : vector<8x8xf32>
    %cst_90 = arith.constant dense<0.000000e+00> : vector<8x8xf32>
    %195 = tpu.matmul %194, %183, %cst_90 {dimension_numbers = #tpu.dot_dimension_numbers<[1], [0], [0], [1], [0, 0, 1, 1], [], []>} : vector<8x8xf32>, vector<8x8xf32>, vector<8x8xf32> -> vector<8x8xf32>
    %196 = vector.extract_strided_slice %159 {offsets = [0, 16], sizes = [8, 8], strides = [1, 1]} : vector<8x32xf32> to vector<8x8xf32>
    %197 = vector.extract_strided_slice %160 {offsets = [0, 16], sizes = [8, 8], strides = [1, 1]} : vector<8x32xf32> to vector<8x8xf32>
    %198 = vector.extract_strided_slice %161 {offsets = [0, 16], sizes = [8, 8], strides = [1, 1]} : vector<8x32xf32> to vector<8x8xf32>
    %cst_91 = arith.constant dense<0.000000e+00> : vector<8x8xf32>
    %199 = tpu.matmul %196, %197, %cst_91 {dimension_numbers = #tpu.dot_dimension_numbers<[1], [1], [0], [0], [0, 0, 1, 0], [], []>} : vector<8x8xf32>, vector<8x8xf32>, vector<8x8xf32> -> vector<8x8xf32>
    %cst_92 = arith.constant dense<0xFF800000> : vector<8xf32>
    %200 = vector.multi_reduction <maximumf>, %199, %cst_92 [1] : vector<8x8xf32> to vector<8xf32>
    %201 = vector.shape_cast %200 : vector<8xf32> to vector<8x1xf32>
    %202 = vector.broadcast %201 : vector<8x1xf32> to vector<8x8xf32>
    %203 = arith.subf %199, %202 : vector<8x8xf32>
    %204 = math.exp %203 : vector<8x8xf32>
    %cst_93 = arith.constant dense<0.000000e+00> : vector<8xf32>
    %205 = vector.multi_reduction <add>, %204, %cst_93 [1] : vector<8x8xf32> to vector<8xf32>
    %206 = vector.shape_cast %205 : vector<8xf32> to vector<8x1xf32>
    %207 = tpu.reciprocal %206 {approx = true} : vector<8x1xf32> -> vector<8x1xf32>
    %208 = vector.broadcast %207 : vector<8x1xf32> to vector<8x8xf32>
    %209 = arith.mulf %204, %208 : vector<8x8xf32>
    %cst_94 = arith.constant dense<0.000000e+00> : vector<8x8xf32>
    %210 = tpu.matmul %209, %198, %cst_94 {dimension_numbers = #tpu.dot_dimension_numbers<[1], [0], [0], [1], [0, 0, 1, 1], [], []>} : vector<8x8xf32>, vector<8x8xf32>, vector<8x8xf32> -> vector<8x8xf32>
    %211 = vector.extract_strided_slice %159 {offsets = [0, 24], sizes = [8, 8], strides = [1, 1]} : vector<8x32xf32> to vector<8x8xf32>
    %212 = vector.extract_strided_slice %160 {offsets = [0, 24], sizes = [8, 8], strides = [1, 1]} : vector<8x32xf32> to vector<8x8xf32>
    %213 = vector.extract_strided_slice %161 {offsets = [0, 24], sizes = [8, 8], strides = [1, 1]} : vector<8x32xf32> to vector<8x8xf32>
    %cst_95 = arith.constant dense<0.000000e+00> : vector<8x8xf32>
    %214 = tpu.matmul %211, %212, %cst_95 {dimension_numbers = #tpu.dot_dimension_numbers<[1], [1], [0], [0], [0, 0, 1, 0], [], []>} : vector<8x8xf32>, vector<8x8xf32>, vector<8x8xf32> -> vector<8x8xf32>
    %cst_96 = arith.constant dense<0xFF800000> : vector<8xf32>
    %215 = vector.multi_reduction <maximumf>, %214, %cst_96 [1] : vector<8x8xf32> to vector<8xf32>
    %216 = vector.shape_cast %215 : vector<8xf32> to vector<8x1xf32>
    %217 = vector.broadcast %216 : vector<8x1xf32> to vector<8x8xf32>
    %218 = arith.subf %214, %217 : vector<8x8xf32>
    %219 = math.exp %218 : vector<8x8xf32>
    %cst_97 = arith.constant dense<0.000000e+00> : vector<8xf32>
    %220 = vector.multi_reduction <add>, %219, %cst_97 [1] : vector<8x8xf32> to vector<8xf32>
    %221 = vector.shape_cast %220 : vector<8xf32> to vector<8x1xf32>
    %222 = tpu.reciprocal %221 {approx = true} : vector<8x1xf32> -> vector<8x1xf32>
    %223 = vector.broadcast %222 : vector<8x1xf32> to vector<8x8xf32>
    %224 = arith.mulf %219, %223 : vector<8x8xf32>
    %cst_98 = arith.constant dense<0.000000e+00> : vector<8x8xf32>
    %225 = tpu.matmul %224, %213, %cst_98 {dimension_numbers = #tpu.dot_dimension_numbers<[1], [0], [0], [1], [0, 0, 1, 1], [], []>} : vector<8x8xf32>, vector<8x8xf32>, vector<8x8xf32> -> vector<8x8xf32>
    %226 = tpu.concatenate %180, %195, %210, %225 in 1 : vector<8x8xf32>, vector<8x8xf32>, vector<8x8xf32>, vector<8x8xf32> -> vector<8x32xf32>
    %cst_99 = arith.constant dense<0.000000e+00> : vector<8x32xf32>
    %227 = tpu.matmul %226, %163, %cst_99 {dimension_numbers = #tpu.dot_dimension_numbers<[1], [0], [0], [1], [0, 0, 1, 1], [], []>} : vector<8x32xf32>, vector<32x32xf32>, vector<8x32xf32> -> vector<8x32xf32>
    %228 = vector.broadcast %165 : vector<1x32xf32> to vector<8x32xf32>
    %229 = arith.addf %227, %228 : vector<8x32xf32>
    %230 = arith.addf %151, %229 : vector<8x32xf32>
    %c1_100 = arith.constant 1 : index
    %c0_101 = arith.constant 0 : index
    %c0_102 = arith.constant 0 : index
    %231 = vector.load %arg7[%c1_100, %c0_101, %c0_102] : memref<2x1x32xf32, #tpu.memory_space<vmem>>, vector<1x1x32xf32>
    %232 = vector.shape_cast %231 : vector<1x1x32xf32> to vector<1x32xf32>
    %c1_103 = arith.constant 1 : index
    %c0_104 = arith.constant 0 : index
    %c0_105 = arith.constant 0 : index
    %233 = vector.load %arg8[%c1_103, %c0_104, %c0_105] : memref<2x1x32xf32, #tpu.memory_space<vmem>>, vector<1x1x32xf32>
    %234 = vector.shape_cast %233 : vector<1x1x32xf32> to vector<1x32xf32>
    %cst_106 = arith.constant dense<0.000000e+00> : vector<8xf32>
    %235 = vector.multi_reduction <add>, %230, %cst_106 [1] : vector<8x32xf32> to vector<8xf32>
    %236 = vector.shape_cast %235 : vector<8xf32> to vector<8x1xf32>
    %cst_107 = arith.constant 3.200000e+01 : f32
    %237 = vector.broadcast %cst_107 : f32 to vector<8x1xf32>
    %238 = arith.divf %236, %237 : vector<8x1xf32>
    %239 = vector.broadcast %238 : vector<8x1xf32> to vector<8x32xf32>
    %240 = arith.subf %230, %239 : vector<8x32xf32>
    %241 = arith.mulf %240, %240 : vector<8x32xf32>
    %cst_108 = arith.constant dense<0.000000e+00> : vector<8xf32>
    %242 = vector.multi_reduction <add>, %241, %cst_108 [1] : vector<8x32xf32> to vector<8xf32>
    %243 = vector.shape_cast %242 : vector<8xf32> to vector<8x1xf32>
    %cst_109 = arith.constant 3.200000e+01 : f32
    %244 = vector.broadcast %cst_109 : f32 to vector<8x1xf32>
    %245 = arith.divf %243, %244 : vector<8x1xf32>
    %246 = vector.broadcast %238 : vector<8x1xf32> to vector<8x32xf32>
    %247 = arith.subf %230, %246 : vector<8x32xf32>
    %cst_110 = arith.constant 1.000000e-10 : f32
    %248 = vector.broadcast %cst_110 : f32 to vector<8x1xf32>
    %249 = arith.addf %245, %248 : vector<8x1xf32>
    %250 = math.rsqrt %249 : vector<8x1xf32>
    %251 = vector.broadcast %250 : vector<8x1xf32> to vector<8x32xf32>
    %252 = arith.mulf %247, %251 : vector<8x32xf32>
    %253 = vector.broadcast %232 : vector<1x32xf32> to vector<8x32xf32>
    %254 = arith.mulf %253, %252 : vector<8x32xf32>
    %255 = vector.broadcast %234 : vector<1x32xf32> to vector<8x32xf32>
    %256 = arith.addf %254, %255 : vector<8x32xf32>
    %c1_111 = arith.constant 1 : index
    %c0_112 = arith.constant 0 : index
    %c0_113 = arith.constant 0 : index
    %257 = vector.load %arg9[%c1_111, %c0_112, %c0_113] : memref<2x32x64xf32, #tpu.memory_space<vmem>>, vector<1x32x64xf32>
    %258 = vector.shape_cast %257 : vector<1x32x64xf32> to vector<32x64xf32>
    %c1_114 = arith.constant 1 : index
    %c0_115 = arith.constant 0 : index
    %c0_116 = arith.constant 0 : index
    %259 = vector.load %arg10[%c1_114, %c0_115, %c0_116] : memref<2x1x64xf32, #tpu.memory_space<vmem>>, vector<1x1x64xf32>
    %260 = vector.shape_cast %259 : vector<1x1x64xf32> to vector<1x64xf32>
    %c1_117 = arith.constant 1 : index
    %c0_118 = arith.constant 0 : index
    %c0_119 = arith.constant 0 : index
    %261 = vector.load %arg11[%c1_117, %c0_118, %c0_119] : memref<2x64x32xf32, #tpu.memory_space<vmem>>, vector<1x64x32xf32>
    %262 = vector.shape_cast %261 : vector<1x64x32xf32> to vector<64x32xf32>
    %c1_120 = arith.constant 1 : index
    %c0_121 = arith.constant 0 : index
    %c0_122 = arith.constant 0 : index
    %263 = vector.load %arg12[%c1_120, %c0_121, %c0_122] : memref<2x1x32xf32, #tpu.memory_space<vmem>>, vector<1x1x32xf32>
    %264 = vector.shape_cast %263 : vector<1x1x32xf32> to vector<1x32xf32>
    %cst_123 = arith.constant dense<0.000000e+00> : vector<8x64xf32>
    %265 = tpu.matmul %256, %258, %cst_123 {dimension_numbers = #tpu.dot_dimension_numbers<[1], [0], [0], [1], [0, 0, 1, 1], [], []>} : vector<8x32xf32>, vector<32x64xf32>, vector<8x64xf32> -> vector<8x64xf32>
    %266 = vector.broadcast %260 : vector<1x64xf32> to vector<8x64xf32>
    %267 = arith.addf %265, %266 : vector<8x64xf32>
    %cst_124 = arith.constant 0.000000e+00 : f32
    %268 = vector.broadcast %cst_124 : f32 to vector<8x64xf32>
    %269 = arith.maximumf %267, %268 : vector<8x64xf32>
    %cst_125 = arith.constant dense<0.000000e+00> : vector<8x32xf32>
    %270 = tpu.matmul %269, %262, %cst_125 {dimension_numbers = #tpu.dot_dimension_numbers<[1], [0], [0], [1], [0, 0, 1, 1], [], []>} : vector<8x64xf32>, vector<64x32xf32>, vector<8x32xf32> -> vector<8x32xf32>
    %271 = vector.broadcast %264 : vector<1x32xf32> to vector<8x32xf32>
    %272 = arith.addf %270, %271 : vector<8x32xf32>
    %273 = arith.addf %256, %272 : vector<8x32xf32>
    %c1_126 = arith.constant 1 : index
    %c0_127 = arith.constant 0 : index
    %c0_128 = arith.constant 0 : index
    %274 = vector.load %arg13[%c1_126, %c0_127, %c0_128] : memref<2x1x32xf32, #tpu.memory_space<vmem>>, vector<1x1x32xf32>
    %275 = vector.shape_cast %274 : vector<1x1x32xf32> to vector<1x32xf32>
    %c1_129 = arith.constant 1 : index
    %c0_130 = arith.constant 0 : index
    %c0_131 = arith.constant 0 : index
    %276 = vector.load %arg14[%c1_129, %c0_130, %c0_131] : memref<2x1x32xf32, #tpu.memory_space<vmem>>, vector<1x1x32xf32>
    %277 = vector.shape_cast %276 : vector<1x1x32xf32> to vector<1x32xf32>
    %cst_132 = arith.constant dense<0.000000e+00> : vector<8xf32>
    %278 = vector.multi_reduction <add>, %273, %cst_132 [1] : vector<8x32xf32> to vector<8xf32>
    %279 = vector.shape_cast %278 : vector<8xf32> to vector<8x1xf32>
    %cst_133 = arith.constant 3.200000e+01 : f32
    %280 = vector.broadcast %cst_133 : f32 to vector<8x1xf32>
    %281 = arith.divf %279, %280 : vector<8x1xf32>
    %282 = vector.broadcast %281 : vector<8x1xf32> to vector<8x32xf32>
    %283 = arith.subf %273, %282 : vector<8x32xf32>
    %284 = arith.mulf %283, %283 : vector<8x32xf32>
    %cst_134 = arith.constant dense<0.000000e+00> : vector<8xf32>
    %285 = vector.multi_reduction <add>, %284, %cst_134 [1] : vector<8x32xf32> to vector<8xf32>
    %286 = vector.shape_cast %285 : vector<8xf32> to vector<8x1xf32>
    %cst_135 = arith.constant 3.200000e+01 : f32
    %287 = vector.broadcast %cst_135 : f32 to vector<8x1xf32>
    %288 = arith.divf %286, %287 : vector<8x1xf32>
    %289 = vector.broadcast %281 : vector<8x1xf32> to vector<8x32xf32>
    %290 = arith.subf %273, %289 : vector<8x32xf32>
    %cst_136 = arith.constant 1.000000e-10 : f32
    %291 = vector.broadcast %cst_136 : f32 to vector<8x1xf32>
    %292 = arith.addf %288, %291 : vector<8x1xf32>
    %293 = math.rsqrt %292 : vector<8x1xf32>
    %294 = vector.broadcast %293 : vector<8x1xf32> to vector<8x32xf32>
    %295 = arith.mulf %290, %294 : vector<8x32xf32>
    %296 = vector.broadcast %275 : vector<1x32xf32> to vector<8x32xf32>
    %297 = arith.mulf %296, %295 : vector<8x32xf32>
    %298 = vector.broadcast %277 : vector<1x32xf32> to vector<8x32xf32>
    %299 = arith.addf %297, %298 : vector<8x32xf32>
    %300 = tpu.iota {dimensions = array<i32: 0>} : vector<8x8xi32>
    %301 = tpu.iota {dimensions = array<i32: 1>} : vector<8x8xi32>
    %302 = arith.cmpi sgt, %301, %300 : vector<8x8xi32>
    %c0_137 = arith.constant 0 : index
    %c0_138 = arith.constant 0 : index
    %c0_139 = arith.constant 0 : index
    %303 = vector.load %arg15[%c0_137, %c0_138, %c0_139] : memref<2x32x96xf32, #tpu.memory_space<vmem>>, vector<1x32x96xf32>
    %304 = vector.shape_cast %303 : vector<1x32x96xf32> to vector<32x96xf32>
    %cst_140 = arith.constant dense<0.000000e+00> : vector<8x96xf32>
    %305 = tpu.matmul %3, %304, %cst_140 {dimension_numbers = #tpu.dot_dimension_numbers<[1], [0], [0], [1], [0, 0, 1, 1], [], []>} : vector<8x32xf32>, vector<32x96xf32>, vector<8x96xf32> -> vector<8x96xf32>
    %c0_141 = arith.constant 0 : index
    %c0_142 = arith.constant 0 : index
    %c0_143 = arith.constant 0 : index
    %306 = vector.load %arg16[%c0_141, %c0_142, %c0_143] : memref<2x1x96xf32, #tpu.memory_space<vmem>>, vector<1x1x96xf32>
    %307 = vector.shape_cast %306 : vector<1x1x96xf32> to vector<1x96xf32>
    %308 = vector.broadcast %307 : vector<1x96xf32> to vector<8x96xf32>
    %309 = arith.addf %305, %308 : vector<8x96xf32>
    %310 = vector.extract_strided_slice %309 {offsets = [0, 0], sizes = [8, 32], strides = [1, 1]} : vector<8x96xf32> to vector<8x32xf32>
    %311 = vector.extract_strided_slice %309 {offsets = [0, 32], sizes = [8, 32], strides = [1, 1]} : vector<8x96xf32> to vector<8x32xf32>
    %312 = vector.extract_strided_slice %309 {offsets = [0, 64], sizes = [8, 32], strides = [1, 1]} : vector<8x96xf32> to vector<8x32xf32>
    %c0_144 = arith.constant 0 : index
    %c0_145 = arith.constant 0 : index
    %c0_146 = arith.constant 0 : index
    %313 = vector.load %arg17[%c0_144, %c0_145, %c0_146] : memref<2x32x32xf32, #tpu.memory_space<vmem>>, vector<1x32x32xf32>
    %314 = vector.shape_cast %313 : vector<1x32x32xf32> to vector<32x32xf32>
    %c0_147 = arith.constant 0 : index
    %c0_148 = arith.constant 0 : index
    %c0_149 = arith.constant 0 : index
    %315 = vector.load %arg18[%c0_147, %c0_148, %c0_149] : memref<2x1x32xf32, #tpu.memory_space<vmem>>, vector<1x1x32xf32>
    %316 = vector.shape_cast %315 : vector<1x1x32xf32> to vector<1x32xf32>
    %317 = vector.extract_strided_slice %310 {offsets = [0, 0], sizes = [8, 8], strides = [1, 1]} : vector<8x32xf32> to vector<8x8xf32>
    %318 = vector.extract_strided_slice %311 {offsets = [0, 0], sizes = [8, 8], strides = [1, 1]} : vector<8x32xf32> to vector<8x8xf32>
    %319 = vector.extract_strided_slice %312 {offsets = [0, 0], sizes = [8, 8], strides = [1, 1]} : vector<8x32xf32> to vector<8x8xf32>
    %cst_150 = arith.constant dense<0.000000e+00> : vector<8x8xf32>
    %320 = tpu.matmul %317, %318, %cst_150 {dimension_numbers = #tpu.dot_dimension_numbers<[1], [1], [0], [0], [0, 0, 1, 0], [], []>} : vector<8x8xf32>, vector<8x8xf32>, vector<8x8xf32> -> vector<8x8xf32>
    %cst_151 = arith.constant -1.000000e+09 : f32
    %321 = vector.broadcast %cst_151 : f32 to vector<8x8xf32>
    %322 = arith.select %302, %321, %320 : vector<8x8xi1>, vector<8x8xf32>
    %cst_152 = arith.constant dense<0xFF800000> : vector<8xf32>
    %323 = vector.multi_reduction <maximumf>, %322, %cst_152 [1] : vector<8x8xf32> to vector<8xf32>
    %324 = vector.shape_cast %323 : vector<8xf32> to vector<8x1xf32>
    %325 = vector.broadcast %324 : vector<8x1xf32> to vector<8x8xf32>
    %326 = arith.subf %322, %325 : vector<8x8xf32>
    %327 = math.exp %326 : vector<8x8xf32>
    %cst_153 = arith.constant dense<0.000000e+00> : vector<8xf32>
    %328 = vector.multi_reduction <add>, %327, %cst_153 [1] : vector<8x8xf32> to vector<8xf32>
    %329 = vector.shape_cast %328 : vector<8xf32> to vector<8x1xf32>
    %330 = tpu.reciprocal %329 {approx = true} : vector<8x1xf32> -> vector<8x1xf32>
    %331 = vector.broadcast %330 : vector<8x1xf32> to vector<8x8xf32>
    %332 = arith.mulf %327, %331 : vector<8x8xf32>
    %cst_154 = arith.constant dense<0.000000e+00> : vector<8x8xf32>
    %333 = tpu.matmul %332, %319, %cst_154 {dimension_numbers = #tpu.dot_dimension_numbers<[1], [0], [0], [1], [0, 0, 1, 1], [], []>} : vector<8x8xf32>, vector<8x8xf32>, vector<8x8xf32> -> vector<8x8xf32>
    %334 = vector.extract_strided_slice %310 {offsets = [0, 8], sizes = [8, 8], strides = [1, 1]} : vector<8x32xf32> to vector<8x8xf32>
    %335 = vector.extract_strided_slice %311 {offsets = [0, 8], sizes = [8, 8], strides = [1, 1]} : vector<8x32xf32> to vector<8x8xf32>
    %336 = vector.extract_strided_slice %312 {offsets = [0, 8], sizes = [8, 8], strides = [1, 1]} : vector<8x32xf32> to vector<8x8xf32>
    %cst_155 = arith.constant dense<0.000000e+00> : vector<8x8xf32>
    %337 = tpu.matmul %334, %335, %cst_155 {dimension_numbers = #tpu.dot_dimension_numbers<[1], [1], [0], [0], [0, 0, 1, 0], [], []>} : vector<8x8xf32>, vector<8x8xf32>, vector<8x8xf32> -> vector<8x8xf32>
    %cst_156 = arith.constant -1.000000e+09 : f32
    %338 = vector.broadcast %cst_156 : f32 to vector<8x8xf32>
    %339 = arith.select %302, %338, %337 : vector<8x8xi1>, vector<8x8xf32>
    %cst_157 = arith.constant dense<0xFF800000> : vector<8xf32>
    %340 = vector.multi_reduction <maximumf>, %339, %cst_157 [1] : vector<8x8xf32> to vector<8xf32>
    %341 = vector.shape_cast %340 : vector<8xf32> to vector<8x1xf32>
    %342 = vector.broadcast %341 : vector<8x1xf32> to vector<8x8xf32>
    %343 = arith.subf %339, %342 : vector<8x8xf32>
    %344 = math.exp %343 : vector<8x8xf32>
    %cst_158 = arith.constant dense<0.000000e+00> : vector<8xf32>
    %345 = vector.multi_reduction <add>, %344, %cst_158 [1] : vector<8x8xf32> to vector<8xf32>
    %346 = vector.shape_cast %345 : vector<8xf32> to vector<8x1xf32>
    %347 = tpu.reciprocal %346 {approx = true} : vector<8x1xf32> -> vector<8x1xf32>
    %348 = vector.broadcast %347 : vector<8x1xf32> to vector<8x8xf32>
    %349 = arith.mulf %344, %348 : vector<8x8xf32>
    %cst_159 = arith.constant dense<0.000000e+00> : vector<8x8xf32>
    %350 = tpu.matmul %349, %336, %cst_159 {dimension_numbers = #tpu.dot_dimension_numbers<[1], [0], [0], [1], [0, 0, 1, 1], [], []>} : vector<8x8xf32>, vector<8x8xf32>, vector<8x8xf32> -> vector<8x8xf32>
    %351 = vector.extract_strided_slice %310 {offsets = [0, 16], sizes = [8, 8], strides = [1, 1]} : vector<8x32xf32> to vector<8x8xf32>
    %352 = vector.extract_strided_slice %311 {offsets = [0, 16], sizes = [8, 8], strides = [1, 1]} : vector<8x32xf32> to vector<8x8xf32>
    %353 = vector.extract_strided_slice %312 {offsets = [0, 16], sizes = [8, 8], strides = [1, 1]} : vector<8x32xf32> to vector<8x8xf32>
    %cst_160 = arith.constant dense<0.000000e+00> : vector<8x8xf32>
    %354 = tpu.matmul %351, %352, %cst_160 {dimension_numbers = #tpu.dot_dimension_numbers<[1], [1], [0], [0], [0, 0, 1, 0], [], []>} : vector<8x8xf32>, vector<8x8xf32>, vector<8x8xf32> -> vector<8x8xf32>
    %cst_161 = arith.constant -1.000000e+09 : f32
    %355 = vector.broadcast %cst_161 : f32 to vector<8x8xf32>
    %356 = arith.select %302, %355, %354 : vector<8x8xi1>, vector<8x8xf32>
    %cst_162 = arith.constant dense<0xFF800000> : vector<8xf32>
    %357 = vector.multi_reduction <maximumf>, %356, %cst_162 [1] : vector<8x8xf32> to vector<8xf32>
    %358 = vector.shape_cast %357 : vector<8xf32> to vector<8x1xf32>
    %359 = vector.broadcast %358 : vector<8x1xf32> to vector<8x8xf32>
    %360 = arith.subf %356, %359 : vector<8x8xf32>
    %361 = math.exp %360 : vector<8x8xf32>
    %cst_163 = arith.constant dense<0.000000e+00> : vector<8xf32>
    %362 = vector.multi_reduction <add>, %361, %cst_163 [1] : vector<8x8xf32> to vector<8xf32>
    %363 = vector.shape_cast %362 : vector<8xf32> to vector<8x1xf32>
    %364 = tpu.reciprocal %363 {approx = true} : vector<8x1xf32> -> vector<8x1xf32>
    %365 = vector.broadcast %364 : vector<8x1xf32> to vector<8x8xf32>
    %366 = arith.mulf %361, %365 : vector<8x8xf32>
    %cst_164 = arith.constant dense<0.000000e+00> : vector<8x8xf32>
    %367 = tpu.matmul %366, %353, %cst_164 {dimension_numbers = #tpu.dot_dimension_numbers<[1], [0], [0], [1], [0, 0, 1, 1], [], []>} : vector<8x8xf32>, vector<8x8xf32>, vector<8x8xf32> -> vector<8x8xf32>
    %368 = vector.extract_strided_slice %310 {offsets = [0, 24], sizes = [8, 8], strides = [1, 1]} : vector<8x32xf32> to vector<8x8xf32>
    %369 = vector.extract_strided_slice %311 {offsets = [0, 24], sizes = [8, 8], strides = [1, 1]} : vector<8x32xf32> to vector<8x8xf32>
    %370 = vector.extract_strided_slice %312 {offsets = [0, 24], sizes = [8, 8], strides = [1, 1]} : vector<8x32xf32> to vector<8x8xf32>
    %cst_165 = arith.constant dense<0.000000e+00> : vector<8x8xf32>
    %371 = tpu.matmul %368, %369, %cst_165 {dimension_numbers = #tpu.dot_dimension_numbers<[1], [1], [0], [0], [0, 0, 1, 0], [], []>} : vector<8x8xf32>, vector<8x8xf32>, vector<8x8xf32> -> vector<8x8xf32>
    %cst_166 = arith.constant -1.000000e+09 : f32
    %372 = vector.broadcast %cst_166 : f32 to vector<8x8xf32>
    %373 = arith.select %302, %372, %371 : vector<8x8xi1>, vector<8x8xf32>
    %cst_167 = arith.constant dense<0xFF800000> : vector<8xf32>
    %374 = vector.multi_reduction <maximumf>, %373, %cst_167 [1] : vector<8x8xf32> to vector<8xf32>
    %375 = vector.shape_cast %374 : vector<8xf32> to vector<8x1xf32>
    %376 = vector.broadcast %375 : vector<8x1xf32> to vector<8x8xf32>
    %377 = arith.subf %373, %376 : vector<8x8xf32>
    %378 = math.exp %377 : vector<8x8xf32>
    %cst_168 = arith.constant dense<0.000000e+00> : vector<8xf32>
    %379 = vector.multi_reduction <add>, %378, %cst_168 [1] : vector<8x8xf32> to vector<8xf32>
    %380 = vector.shape_cast %379 : vector<8xf32> to vector<8x1xf32>
    %381 = tpu.reciprocal %380 {approx = true} : vector<8x1xf32> -> vector<8x1xf32>
    %382 = vector.broadcast %381 : vector<8x1xf32> to vector<8x8xf32>
    %383 = arith.mulf %378, %382 : vector<8x8xf32>
    %cst_169 = arith.constant dense<0.000000e+00> : vector<8x8xf32>
    %384 = tpu.matmul %383, %370, %cst_169 {dimension_numbers = #tpu.dot_dimension_numbers<[1], [0], [0], [1], [0, 0, 1, 1], [], []>} : vector<8x8xf32>, vector<8x8xf32>, vector<8x8xf32> -> vector<8x8xf32>
    %385 = tpu.concatenate %333, %350, %367, %384 in 1 : vector<8x8xf32>, vector<8x8xf32>, vector<8x8xf32>, vector<8x8xf32> -> vector<8x32xf32>
    %cst_170 = arith.constant dense<0.000000e+00> : vector<8x32xf32>
    %386 = tpu.matmul %385, %314, %cst_170 {dimension_numbers = #tpu.dot_dimension_numbers<[1], [0], [0], [1], [0, 0, 1, 1], [], []>} : vector<8x32xf32>, vector<32x32xf32>, vector<8x32xf32> -> vector<8x32xf32>
    %387 = vector.broadcast %316 : vector<1x32xf32> to vector<8x32xf32>
    %388 = arith.addf %386, %387 : vector<8x32xf32>
    %389 = arith.addf %3, %388 : vector<8x32xf32>
    %c0_171 = arith.constant 0 : index
    %c0_172 = arith.constant 0 : index
    %c0_173 = arith.constant 0 : index
    %390 = vector.load %arg19[%c0_171, %c0_172, %c0_173] : memref<2x1x32xf32, #tpu.memory_space<vmem>>, vector<1x1x32xf32>
    %391 = vector.shape_cast %390 : vector<1x1x32xf32> to vector<1x32xf32>
    %c0_174 = arith.constant 0 : index
    %c0_175 = arith.constant 0 : index
    %c0_176 = arith.constant 0 : index
    %392 = vector.load %arg20[%c0_174, %c0_175, %c0_176] : memref<2x1x32xf32, #tpu.memory_space<vmem>>, vector<1x1x32xf32>
    %393 = vector.shape_cast %392 : vector<1x1x32xf32> to vector<1x32xf32>
    %cst_177 = arith.constant dense<0.000000e+00> : vector<8xf32>
    %394 = vector.multi_reduction <add>, %389, %cst_177 [1] : vector<8x32xf32> to vector<8xf32>
    %395 = vector.shape_cast %394 : vector<8xf32> to vector<8x1xf32>
    %cst_178 = arith.constant 3.200000e+01 : f32
    %396 = vector.broadcast %cst_178 : f32 to vector<8x1xf32>
    %397 = arith.divf %395, %396 : vector<8x1xf32>
    %398 = vector.broadcast %397 : vector<8x1xf32> to vector<8x32xf32>
    %399 = arith.subf %389, %398 : vector<8x32xf32>
    %400 = arith.mulf %399, %399 : vector<8x32xf32>
    %cst_179 = arith.constant dense<0.000000e+00> : vector<8xf32>
    %401 = vector.multi_reduction <add>, %400, %cst_179 [1] : vector<8x32xf32> to vector<8xf32>
    %402 = vector.shape_cast %401 : vector<8xf32> to vector<8x1xf32>
    %cst_180 = arith.constant 3.200000e+01 : f32
    %403 = vector.broadcast %cst_180 : f32 to vector<8x1xf32>
    %404 = arith.divf %402, %403 : vector<8x1xf32>
    %405 = vector.broadcast %397 : vector<8x1xf32> to vector<8x32xf32>
    %406 = arith.subf %389, %405 : vector<8x32xf32>
    %cst_181 = arith.constant 1.000000e-10 : f32
    %407 = vector.broadcast %cst_181 : f32 to vector<8x1xf32>
    %408 = arith.addf %404, %407 : vector<8x1xf32>
    %409 = math.rsqrt %408 : vector<8x1xf32>
    %410 = vector.broadcast %409 : vector<8x1xf32> to vector<8x32xf32>
    %411 = arith.mulf %406, %410 : vector<8x32xf32>
    %412 = vector.broadcast %391 : vector<1x32xf32> to vector<8x32xf32>
    %413 = arith.mulf %412, %411 : vector<8x32xf32>
    %414 = vector.broadcast %393 : vector<1x32xf32> to vector<8x32xf32>
    %415 = arith.addf %413, %414 : vector<8x32xf32>
    %c0_182 = arith.constant 0 : index
    %c0_183 = arith.constant 0 : index
    %c0_184 = arith.constant 0 : index
    %416 = vector.load %arg21[%c0_182, %c0_183, %c0_184] : memref<2x32x32xf32, #tpu.memory_space<vmem>>, vector<1x32x32xf32>
    %417 = vector.shape_cast %416 : vector<1x32x32xf32> to vector<32x32xf32>
    %cst_185 = arith.constant dense<0.000000e+00> : vector<8x32xf32>
    %418 = tpu.matmul %415, %417, %cst_185 {dimension_numbers = #tpu.dot_dimension_numbers<[1], [0], [0], [1], [0, 0, 1, 1], [], []>} : vector<8x32xf32>, vector<32x32xf32>, vector<8x32xf32> -> vector<8x32xf32>
    %c0_186 = arith.constant 0 : index
    %c0_187 = arith.constant 0 : index
    %c0_188 = arith.constant 0 : index
    %419 = vector.load %arg22[%c0_186, %c0_187, %c0_188] : memref<2x1x32xf32, #tpu.memory_space<vmem>>, vector<1x1x32xf32>
    %420 = vector.shape_cast %419 : vector<1x1x32xf32> to vector<1x32xf32>
    %421 = vector.broadcast %420 : vector<1x32xf32> to vector<8x32xf32>
    %422 = arith.addf %418, %421 : vector<8x32xf32>
    %c0_189 = arith.constant 0 : index
    %c0_190 = arith.constant 0 : index
    %c0_191 = arith.constant 0 : index
    %423 = vector.load %arg23[%c0_189, %c0_190, %c0_191] : memref<2x32x64xf32, #tpu.memory_space<vmem>>, vector<1x32x64xf32>
    %424 = vector.shape_cast %423 : vector<1x32x64xf32> to vector<32x64xf32>
    %cst_192 = arith.constant dense<0.000000e+00> : vector<8x64xf32>
    %425 = tpu.matmul %299, %424, %cst_192 {dimension_numbers = #tpu.dot_dimension_numbers<[1], [0], [0], [1], [0, 0, 1, 1], [], []>} : vector<8x32xf32>, vector<32x64xf32>, vector<8x64xf32> -> vector<8x64xf32>
    %c0_193 = arith.constant 0 : index
    %c0_194 = arith.constant 0 : index
    %c0_195 = arith.constant 0 : index
    %426 = vector.load %arg24[%c0_193, %c0_194, %c0_195] : memref<2x1x64xf32, #tpu.memory_space<vmem>>, vector<1x1x64xf32>
    %427 = vector.shape_cast %426 : vector<1x1x64xf32> to vector<1x64xf32>
    %428 = vector.broadcast %427 : vector<1x64xf32> to vector<8x64xf32>
    %429 = arith.addf %425, %428 : vector<8x64xf32>
    %430 = vector.extract_strided_slice %429 {offsets = [0, 0], sizes = [8, 32], strides = [1, 1]} : vector<8x64xf32> to vector<8x32xf32>
    %431 = vector.extract_strided_slice %429 {offsets = [0, 32], sizes = [8, 32], strides = [1, 1]} : vector<8x64xf32> to vector<8x32xf32>
    %c0_196 = arith.constant 0 : index
    %c0_197 = arith.constant 0 : index
    %c0_198 = arith.constant 0 : index
    %432 = vector.load %arg25[%c0_196, %c0_197, %c0_198] : memref<2x32x32xf32, #tpu.memory_space<vmem>>, vector<1x32x32xf32>
    %433 = vector.shape_cast %432 : vector<1x32x32xf32> to vector<32x32xf32>
    %c0_199 = arith.constant 0 : index
    %c0_200 = arith.constant 0 : index
    %c0_201 = arith.constant 0 : index
    %434 = vector.load %arg26[%c0_199, %c0_200, %c0_201] : memref<2x1x32xf32, #tpu.memory_space<vmem>>, vector<1x1x32xf32>
    %435 = vector.shape_cast %434 : vector<1x1x32xf32> to vector<1x32xf32>
    %436 = vector.extract_strided_slice %422 {offsets = [0, 0], sizes = [8, 8], strides = [1, 1]} : vector<8x32xf32> to vector<8x8xf32>
    %437 = vector.extract_strided_slice %430 {offsets = [0, 0], sizes = [8, 8], strides = [1, 1]} : vector<8x32xf32> to vector<8x8xf32>
    %438 = vector.extract_strided_slice %431 {offsets = [0, 0], sizes = [8, 8], strides = [1, 1]} : vector<8x32xf32> to vector<8x8xf32>
    %cst_202 = arith.constant dense<0.000000e+00> : vector<8x8xf32>
    %439 = tpu.matmul %436, %437, %cst_202 {dimension_numbers = #tpu.dot_dimension_numbers<[1], [1], [0], [0], [0, 0, 1, 0], [], []>} : vector<8x8xf32>, vector<8x8xf32>, vector<8x8xf32> -> vector<8x8xf32>
    %cst_203 = arith.constant dense<0xFF800000> : vector<8xf32>
    %440 = vector.multi_reduction <maximumf>, %439, %cst_203 [1] : vector<8x8xf32> to vector<8xf32>
    %441 = vector.shape_cast %440 : vector<8xf32> to vector<8x1xf32>
    %442 = vector.broadcast %441 : vector<8x1xf32> to vector<8x8xf32>
    %443 = arith.subf %439, %442 : vector<8x8xf32>
    %444 = math.exp %443 : vector<8x8xf32>
    %cst_204 = arith.constant dense<0.000000e+00> : vector<8xf32>
    %445 = vector.multi_reduction <add>, %444, %cst_204 [1] : vector<8x8xf32> to vector<8xf32>
    %446 = vector.shape_cast %445 : vector<8xf32> to vector<8x1xf32>
    %447 = tpu.reciprocal %446 {approx = true} : vector<8x1xf32> -> vector<8x1xf32>
    %448 = vector.broadcast %447 : vector<8x1xf32> to vector<8x8xf32>
    %449 = arith.mulf %444, %448 : vector<8x8xf32>
    %cst_205 = arith.constant dense<0.000000e+00> : vector<8x8xf32>
    %450 = tpu.matmul %449, %438, %cst_205 {dimension_numbers = #tpu.dot_dimension_numbers<[1], [0], [0], [1], [0, 0, 1, 1], [], []>} : vector<8x8xf32>, vector<8x8xf32>, vector<8x8xf32> -> vector<8x8xf32>
    %451 = vector.extract_strided_slice %422 {offsets = [0, 8], sizes = [8, 8], strides = [1, 1]} : vector<8x32xf32> to vector<8x8xf32>
    %452 = vector.extract_strided_slice %430 {offsets = [0, 8], sizes = [8, 8], strides = [1, 1]} : vector<8x32xf32> to vector<8x8xf32>
    %453 = vector.extract_strided_slice %431 {offsets = [0, 8], sizes = [8, 8], strides = [1, 1]} : vector<8x32xf32> to vector<8x8xf32>
    %cst_206 = arith.constant dense<0.000000e+00> : vector<8x8xf32>
    %454 = tpu.matmul %451, %452, %cst_206 {dimension_numbers = #tpu.dot_dimension_numbers<[1], [1], [0], [0], [0, 0, 1, 0], [], []>} : vector<8x8xf32>, vector<8x8xf32>, vector<8x8xf32> -> vector<8x8xf32>
    %cst_207 = arith.constant dense<0xFF800000> : vector<8xf32>
    %455 = vector.multi_reduction <maximumf>, %454, %cst_207 [1] : vector<8x8xf32> to vector<8xf32>
    %456 = vector.shape_cast %455 : vector<8xf32> to vector<8x1xf32>
    %457 = vector.broadcast %456 : vector<8x1xf32> to vector<8x8xf32>
    %458 = arith.subf %454, %457 : vector<8x8xf32>
    %459 = math.exp %458 : vector<8x8xf32>
    %cst_208 = arith.constant dense<0.000000e+00> : vector<8xf32>
    %460 = vector.multi_reduction <add>, %459, %cst_208 [1] : vector<8x8xf32> to vector<8xf32>
    %461 = vector.shape_cast %460 : vector<8xf32> to vector<8x1xf32>
    %462 = tpu.reciprocal %461 {approx = true} : vector<8x1xf32> -> vector<8x1xf32>
    %463 = vector.broadcast %462 : vector<8x1xf32> to vector<8x8xf32>
    %464 = arith.mulf %459, %463 : vector<8x8xf32>
    %cst_209 = arith.constant dense<0.000000e+00> : vector<8x8xf32>
    %465 = tpu.matmul %464, %453, %cst_209 {dimension_numbers = #tpu.dot_dimension_numbers<[1], [0], [0], [1], [0, 0, 1, 1], [], []>} : vector<8x8xf32>, vector<8x8xf32>, vector<8x8xf32> -> vector<8x8xf32>
    %466 = vector.extract_strided_slice %422 {offsets = [0, 16], sizes = [8, 8], strides = [1, 1]} : vector<8x32xf32> to vector<8x8xf32>
    %467 = vector.extract_strided_slice %430 {offsets = [0, 16], sizes = [8, 8], strides = [1, 1]} : vector<8x32xf32> to vector<8x8xf32>
    %468 = vector.extract_strided_slice %431 {offsets = [0, 16], sizes = [8, 8], strides = [1, 1]} : vector<8x32xf32> to vector<8x8xf32>
    %cst_210 = arith.constant dense<0.000000e+00> : vector<8x8xf32>
    %469 = tpu.matmul %466, %467, %cst_210 {dimension_numbers = #tpu.dot_dimension_numbers<[1], [1], [0], [0], [0, 0, 1, 0], [], []>} : vector<8x8xf32>, vector<8x8xf32>, vector<8x8xf32> -> vector<8x8xf32>
    %cst_211 = arith.constant dense<0xFF800000> : vector<8xf32>
    %470 = vector.multi_reduction <maximumf>, %469, %cst_211 [1] : vector<8x8xf32> to vector<8xf32>
    %471 = vector.shape_cast %470 : vector<8xf32> to vector<8x1xf32>
    %472 = vector.broadcast %471 : vector<8x1xf32> to vector<8x8xf32>
    %473 = arith.subf %469, %472 : vector<8x8xf32>
    %474 = math.exp %473 : vector<8x8xf32>
    %cst_212 = arith.constant dense<0.000000e+00> : vector<8xf32>
    %475 = vector.multi_reduction <add>, %474, %cst_212 [1] : vector<8x8xf32> to vector<8xf32>
    %476 = vector.shape_cast %475 : vector<8xf32> to vector<8x1xf32>
    %477 = tpu.reciprocal %476 {approx = true} : vector<8x1xf32> -> vector<8x1xf32>
    %478 = vector.broadcast %477 : vector<8x1xf32> to vector<8x8xf32>
    %479 = arith.mulf %474, %478 : vector<8x8xf32>
    %cst_213 = arith.constant dense<0.000000e+00> : vector<8x8xf32>
    %480 = tpu.matmul %479, %468, %cst_213 {dimension_numbers = #tpu.dot_dimension_numbers<[1], [0], [0], [1], [0, 0, 1, 1], [], []>} : vector<8x8xf32>, vector<8x8xf32>, vector<8x8xf32> -> vector<8x8xf32>
    %481 = vector.extract_strided_slice %422 {offsets = [0, 24], sizes = [8, 8], strides = [1, 1]} : vector<8x32xf32> to vector<8x8xf32>
    %482 = vector.extract_strided_slice %430 {offsets = [0, 24], sizes = [8, 8], strides = [1, 1]} : vector<8x32xf32> to vector<8x8xf32>
    %483 = vector.extract_strided_slice %431 {offsets = [0, 24], sizes = [8, 8], strides = [1, 1]} : vector<8x32xf32> to vector<8x8xf32>
    %cst_214 = arith.constant dense<0.000000e+00> : vector<8x8xf32>
    %484 = tpu.matmul %481, %482, %cst_214 {dimension_numbers = #tpu.dot_dimension_numbers<[1], [1], [0], [0], [0, 0, 1, 0], [], []>} : vector<8x8xf32>, vector<8x8xf32>, vector<8x8xf32> -> vector<8x8xf32>
    %cst_215 = arith.constant dense<0xFF800000> : vector<8xf32>
    %485 = vector.multi_reduction <maximumf>, %484, %cst_215 [1] : vector<8x8xf32> to vector<8xf32>
    %486 = vector.shape_cast %485 : vector<8xf32> to vector<8x1xf32>
    %487 = vector.broadcast %486 : vector<8x1xf32> to vector<8x8xf32>
    %488 = arith.subf %484, %487 : vector<8x8xf32>
    %489 = math.exp %488 : vector<8x8xf32>
    %cst_216 = arith.constant dense<0.000000e+00> : vector<8xf32>
    %490 = vector.multi_reduction <add>, %489, %cst_216 [1] : vector<8x8xf32> to vector<8xf32>
    %491 = vector.shape_cast %490 : vector<8xf32> to vector<8x1xf32>
    %492 = tpu.reciprocal %491 {approx = true} : vector<8x1xf32> -> vector<8x1xf32>
    %493 = vector.broadcast %492 : vector<8x1xf32> to vector<8x8xf32>
    %494 = arith.mulf %489, %493 : vector<8x8xf32>
    %cst_217 = arith.constant dense<0.000000e+00> : vector<8x8xf32>
    %495 = tpu.matmul %494, %483, %cst_217 {dimension_numbers = #tpu.dot_dimension_numbers<[1], [0], [0], [1], [0, 0, 1, 1], [], []>} : vector<8x8xf32>, vector<8x8xf32>, vector<8x8xf32> -> vector<8x8xf32>
    %496 = tpu.concatenate %450, %465, %480, %495 in 1 : vector<8x8xf32>, vector<8x8xf32>, vector<8x8xf32>, vector<8x8xf32> -> vector<8x32xf32>
    %cst_218 = arith.constant dense<0.000000e+00> : vector<8x32xf32>
    %497 = tpu.matmul %496, %433, %cst_218 {dimension_numbers = #tpu.dot_dimension_numbers<[1], [0], [0], [1], [0, 0, 1, 1], [], []>} : vector<8x32xf32>, vector<32x32xf32>, vector<8x32xf32> -> vector<8x32xf32>
    %498 = vector.broadcast %435 : vector<1x32xf32> to vector<8x32xf32>
    %499 = arith.addf %497, %498 : vector<8x32xf32>
    %500 = arith.addf %415, %499 : vector<8x32xf32>
    %c0_219 = arith.constant 0 : index
    %c0_220 = arith.constant 0 : index
    %c0_221 = arith.constant 0 : index
    %501 = vector.load %arg27[%c0_219, %c0_220, %c0_221] : memref<2x1x32xf32, #tpu.memory_space<vmem>>, vector<1x1x32xf32>
    %502 = vector.shape_cast %501 : vector<1x1x32xf32> to vector<1x32xf32>
    %c0_222 = arith.constant 0 : index
    %c0_223 = arith.constant 0 : index
    %c0_224 = arith.constant 0 : index
    %503 = vector.load %arg28[%c0_222, %c0_223, %c0_224] : memref<2x1x32xf32, #tpu.memory_space<vmem>>, vector<1x1x32xf32>
    %504 = vector.shape_cast %503 : vector<1x1x32xf32> to vector<1x32xf32>
    %cst_225 = arith.constant dense<0.000000e+00> : vector<8xf32>
    %505 = vector.multi_reduction <add>, %500, %cst_225 [1] : vector<8x32xf32> to vector<8xf32>
    %506 = vector.shape_cast %505 : vector<8xf32> to vector<8x1xf32>
    %cst_226 = arith.constant 3.200000e+01 : f32
    %507 = vector.broadcast %cst_226 : f32 to vector<8x1xf32>
    %508 = arith.divf %506, %507 : vector<8x1xf32>
    %509 = vector.broadcast %508 : vector<8x1xf32> to vector<8x32xf32>
    %510 = arith.subf %500, %509 : vector<8x32xf32>
    %511 = arith.mulf %510, %510 : vector<8x32xf32>
    %cst_227 = arith.constant dense<0.000000e+00> : vector<8xf32>
    %512 = vector.multi_reduction <add>, %511, %cst_227 [1] : vector<8x32xf32> to vector<8xf32>
    %513 = vector.shape_cast %512 : vector<8xf32> to vector<8x1xf32>
    %cst_228 = arith.constant 3.200000e+01 : f32
    %514 = vector.broadcast %cst_228 : f32 to vector<8x1xf32>
    %515 = arith.divf %513, %514 : vector<8x1xf32>
    %516 = vector.broadcast %508 : vector<8x1xf32> to vector<8x32xf32>
    %517 = arith.subf %500, %516 : vector<8x32xf32>
    %cst_229 = arith.constant 1.000000e-10 : f32
    %518 = vector.broadcast %cst_229 : f32 to vector<8x1xf32>
    %519 = arith.addf %515, %518 : vector<8x1xf32>
    %520 = math.rsqrt %519 : vector<8x1xf32>
    %521 = vector.broadcast %520 : vector<8x1xf32> to vector<8x32xf32>
    %522 = arith.mulf %517, %521 : vector<8x32xf32>
    %523 = vector.broadcast %502 : vector<1x32xf32> to vector<8x32xf32>
    %524 = arith.mulf %523, %522 : vector<8x32xf32>
    %525 = vector.broadcast %504 : vector<1x32xf32> to vector<8x32xf32>
    %526 = arith.addf %524, %525 : vector<8x32xf32>
    %c0_230 = arith.constant 0 : index
    %c0_231 = arith.constant 0 : index
    %c0_232 = arith.constant 0 : index
    %527 = vector.load %arg29[%c0_230, %c0_231, %c0_232] : memref<2x32x64xf32, #tpu.memory_space<vmem>>, vector<1x32x64xf32>
    %528 = vector.shape_cast %527 : vector<1x32x64xf32> to vector<32x64xf32>
    %c0_233 = arith.constant 0 : index
    %c0_234 = arith.constant 0 : index
    %c0_235 = arith.constant 0 : index
    %529 = vector.load %arg30[%c0_233, %c0_234, %c0_235] : memref<2x1x64xf32, #tpu.memory_space<vmem>>, vector<1x1x64xf32>
    %530 = vector.shape_cast %529 : vector<1x1x64xf32> to vector<1x64xf32>
    %c0_236 = arith.constant 0 : index
    %c0_237 = arith.constant 0 : index
    %c0_238 = arith.constant 0 : index
    %531 = vector.load %arg31[%c0_236, %c0_237, %c0_238] : memref<2x64x32xf32, #tpu.memory_space<vmem>>, vector<1x64x32xf32>
    %532 = vector.shape_cast %531 : vector<1x64x32xf32> to vector<64x32xf32>
    %c0_239 = arith.constant 0 : index
    %c0_240 = arith.constant 0 : index
    %c0_241 = arith.constant 0 : index
    %533 = vector.load %arg32[%c0_239, %c0_240, %c0_241] : memref<2x1x32xf32, #tpu.memory_space<vmem>>, vector<1x1x32xf32>
    %534 = vector.shape_cast %533 : vector<1x1x32xf32> to vector<1x32xf32>
    %cst_242 = arith.constant dense<0.000000e+00> : vector<8x64xf32>
    %535 = tpu.matmul %526, %528, %cst_242 {dimension_numbers = #tpu.dot_dimension_numbers<[1], [0], [0], [1], [0, 0, 1, 1], [], []>} : vector<8x32xf32>, vector<32x64xf32>, vector<8x64xf32> -> vector<8x64xf32>
    %536 = vector.broadcast %530 : vector<1x64xf32> to vector<8x64xf32>
    %537 = arith.addf %535, %536 : vector<8x64xf32>
    %cst_243 = arith.constant 0.000000e+00 : f32
    %538 = vector.broadcast %cst_243 : f32 to vector<8x64xf32>
    %539 = arith.maximumf %537, %538 : vector<8x64xf32>
    %cst_244 = arith.constant dense<0.000000e+00> : vector<8x32xf32>
    %540 = tpu.matmul %539, %532, %cst_244 {dimension_numbers = #tpu.dot_dimension_numbers<[1], [0], [0], [1], [0, 0, 1, 1], [], []>} : vector<8x64xf32>, vector<64x32xf32>, vector<8x32xf32> -> vector<8x32xf32>
    %541 = vector.broadcast %534 : vector<1x32xf32> to vector<8x32xf32>
    %542 = arith.addf %540, %541 : vector<8x32xf32>
    %543 = arith.addf %526, %542 : vector<8x32xf32>
    %c0_245 = arith.constant 0 : index
    %c0_246 = arith.constant 0 : index
    %c0_247 = arith.constant 0 : index
    %544 = vector.load %arg33[%c0_245, %c0_246, %c0_247] : memref<2x1x32xf32, #tpu.memory_space<vmem>>, vector<1x1x32xf32>
    %545 = vector.shape_cast %544 : vector<1x1x32xf32> to vector<1x32xf32>
    %c0_248 = arith.constant 0 : index
    %c0_249 = arith.constant 0 : index
    %c0_250 = arith.constant 0 : index
    %546 = vector.load %arg34[%c0_248, %c0_249, %c0_250] : memref<2x1x32xf32, #tpu.memory_space<vmem>>, vector<1x1x32xf32>
    %547 = vector.shape_cast %546 : vector<1x1x32xf32> to vector<1x32xf32>
    %cst_251 = arith.constant dense<0.000000e+00> : vector<8xf32>
    %548 = vector.multi_reduction <add>, %543, %cst_251 [1] : vector<8x32xf32> to vector<8xf32>
    %549 = vector.shape_cast %548 : vector<8xf32> to vector<8x1xf32>
    %cst_252 = arith.constant 3.200000e+01 : f32
    %550 = vector.broadcast %cst_252 : f32 to vector<8x1xf32>
    %551 = arith.divf %549, %550 : vector<8x1xf32>
    %552 = vector.broadcast %551 : vector<8x1xf32> to vector<8x32xf32>
    %553 = arith.subf %543, %552 : vector<8x32xf32>
    %554 = arith.mulf %553, %553 : vector<8x32xf32>
    %cst_253 = arith.constant dense<0.000000e+00> : vector<8xf32>
    %555 = vector.multi_reduction <add>, %554, %cst_253 [1] : vector<8x32xf32> to vector<8xf32>
    %556 = vector.shape_cast %555 : vector<8xf32> to vector<8x1xf32>
    %cst_254 = arith.constant 3.200000e+01 : f32
    %557 = vector.broadcast %cst_254 : f32 to vector<8x1xf32>
    %558 = arith.divf %556, %557 : vector<8x1xf32>
    %559 = vector.broadcast %551 : vector<8x1xf32> to vector<8x32xf32>
    %560 = arith.subf %543, %559 : vector<8x32xf32>
    %cst_255 = arith.constant 1.000000e-10 : f32
    %561 = vector.broadcast %cst_255 : f32 to vector<8x1xf32>
    %562 = arith.addf %558, %561 : vector<8x1xf32>
    %563 = math.rsqrt %562 : vector<8x1xf32>
    %564 = vector.broadcast %563 : vector<8x1xf32> to vector<8x32xf32>
    %565 = arith.mulf %560, %564 : vector<8x32xf32>
    %566 = vector.broadcast %545 : vector<1x32xf32> to vector<8x32xf32>
    %567 = arith.mulf %566, %565 : vector<8x32xf32>
    %568 = vector.broadcast %547 : vector<1x32xf32> to vector<8x32xf32>
    %569 = arith.addf %567, %568 : vector<8x32xf32>
    %c1_256 = arith.constant 1 : index
    %c0_257 = arith.constant 0 : index
    %c0_258 = arith.constant 0 : index
    %570 = vector.load %arg15[%c1_256, %c0_257, %c0_258] : memref<2x32x96xf32, #tpu.memory_space<vmem>>, vector<1x32x96xf32>
    %571 = vector.shape_cast %570 : vector<1x32x96xf32> to vector<32x96xf32>
    %cst_259 = arith.constant dense<0.000000e+00> : vector<8x96xf32>
    %572 = tpu.matmul %569, %571, %cst_259 {dimension_numbers = #tpu.dot_dimension_numbers<[1], [0], [0], [1], [0, 0, 1, 1], [], []>} : vector<8x32xf32>, vector<32x96xf32>, vector<8x96xf32> -> vector<8x96xf32>
    %c1_260 = arith.constant 1 : index
    %c0_261 = arith.constant 0 : index
    %c0_262 = arith.constant 0 : index
    %573 = vector.load %arg16[%c1_260, %c0_261, %c0_262] : memref<2x1x96xf32, #tpu.memory_space<vmem>>, vector<1x1x96xf32>
    %574 = vector.shape_cast %573 : vector<1x1x96xf32> to vector<1x96xf32>
    %575 = vector.broadcast %574 : vector<1x96xf32> to vector<8x96xf32>
    %576 = arith.addf %572, %575 : vector<8x96xf32>
    %577 = vector.extract_strided_slice %576 {offsets = [0, 0], sizes = [8, 32], strides = [1, 1]} : vector<8x96xf32> to vector<8x32xf32>
    %578 = vector.extract_strided_slice %576 {offsets = [0, 32], sizes = [8, 32], strides = [1, 1]} : vector<8x96xf32> to vector<8x32xf32>
    %579 = vector.extract_strided_slice %576 {offsets = [0, 64], sizes = [8, 32], strides = [1, 1]} : vector<8x96xf32> to vector<8x32xf32>
    %c1_263 = arith.constant 1 : index
    %c0_264 = arith.constant 0 : index
    %c0_265 = arith.constant 0 : index
    %580 = vector.load %arg17[%c1_263, %c0_264, %c0_265] : memref<2x32x32xf32, #tpu.memory_space<vmem>>, vector<1x32x32xf32>
    %581 = vector.shape_cast %580 : vector<1x32x32xf32> to vector<32x32xf32>
    %c1_266 = arith.constant 1 : index
    %c0_267 = arith.constant 0 : index
    %c0_268 = arith.constant 0 : index
    %582 = vector.load %arg18[%c1_266, %c0_267, %c0_268] : memref<2x1x32xf32, #tpu.memory_space<vmem>>, vector<1x1x32xf32>
    %583 = vector.shape_cast %582 : vector<1x1x32xf32> to vector<1x32xf32>
    %584 = vector.extract_strided_slice %577 {offsets = [0, 0], sizes = [8, 8], strides = [1, 1]} : vector<8x32xf32> to vector<8x8xf32>
    %585 = vector.extract_strided_slice %578 {offsets = [0, 0], sizes = [8, 8], strides = [1, 1]} : vector<8x32xf32> to vector<8x8xf32>
    %586 = vector.extract_strided_slice %579 {offsets = [0, 0], sizes = [8, 8], strides = [1, 1]} : vector<8x32xf32> to vector<8x8xf32>
    %cst_269 = arith.constant dense<0.000000e+00> : vector<8x8xf32>
    %587 = tpu.matmul %584, %585, %cst_269 {dimension_numbers = #tpu.dot_dimension_numbers<[1], [1], [0], [0], [0, 0, 1, 0], [], []>} : vector<8x8xf32>, vector<8x8xf32>, vector<8x8xf32> -> vector<8x8xf32>
    %cst_270 = arith.constant -1.000000e+09 : f32
    %588 = vector.broadcast %cst_270 : f32 to vector<8x8xf32>
    %589 = arith.select %302, %588, %587 : vector<8x8xi1>, vector<8x8xf32>
    %cst_271 = arith.constant dense<0xFF800000> : vector<8xf32>
    %590 = vector.multi_reduction <maximumf>, %589, %cst_271 [1] : vector<8x8xf32> to vector<8xf32>
    %591 = vector.shape_cast %590 : vector<8xf32> to vector<8x1xf32>
    %592 = vector.broadcast %591 : vector<8x1xf32> to vector<8x8xf32>
    %593 = arith.subf %589, %592 : vector<8x8xf32>
    %594 = math.exp %593 : vector<8x8xf32>
    %cst_272 = arith.constant dense<0.000000e+00> : vector<8xf32>
    %595 = vector.multi_reduction <add>, %594, %cst_272 [1] : vector<8x8xf32> to vector<8xf32>
    %596 = vector.shape_cast %595 : vector<8xf32> to vector<8x1xf32>
    %597 = tpu.reciprocal %596 {approx = true} : vector<8x1xf32> -> vector<8x1xf32>
    %598 = vector.broadcast %597 : vector<8x1xf32> to vector<8x8xf32>
    %599 = arith.mulf %594, %598 : vector<8x8xf32>
    %cst_273 = arith.constant dense<0.000000e+00> : vector<8x8xf32>
    %600 = tpu.matmul %599, %586, %cst_273 {dimension_numbers = #tpu.dot_dimension_numbers<[1], [0], [0], [1], [0, 0, 1, 1], [], []>} : vector<8x8xf32>, vector<8x8xf32>, vector<8x8xf32> -> vector<8x8xf32>
    %601 = vector.extract_strided_slice %577 {offsets = [0, 8], sizes = [8, 8], strides = [1, 1]} : vector<8x32xf32> to vector<8x8xf32>
    %602 = vector.extract_strided_slice %578 {offsets = [0, 8], sizes = [8, 8], strides = [1, 1]} : vector<8x32xf32> to vector<8x8xf32>
    %603 = vector.extract_strided_slice %579 {offsets = [0, 8], sizes = [8, 8], strides = [1, 1]} : vector<8x32xf32> to vector<8x8xf32>
    %cst_274 = arith.constant dense<0.000000e+00> : vector<8x8xf32>
    %604 = tpu.matmul %601, %602, %cst_274 {dimension_numbers = #tpu.dot_dimension_numbers<[1], [1], [0], [0], [0, 0, 1, 0], [], []>} : vector<8x8xf32>, vector<8x8xf32>, vector<8x8xf32> -> vector<8x8xf32>
    %cst_275 = arith.constant -1.000000e+09 : f32
    %605 = vector.broadcast %cst_275 : f32 to vector<8x8xf32>
    %606 = arith.select %302, %605, %604 : vector<8x8xi1>, vector<8x8xf32>
    %cst_276 = arith.constant dense<0xFF800000> : vector<8xf32>
    %607 = vector.multi_reduction <maximumf>, %606, %cst_276 [1] : vector<8x8xf32> to vector<8xf32>
    %608 = vector.shape_cast %607 : vector<8xf32> to vector<8x1xf32>
    %609 = vector.broadcast %608 : vector<8x1xf32> to vector<8x8xf32>
    %610 = arith.subf %606, %609 : vector<8x8xf32>
    %611 = math.exp %610 : vector<8x8xf32>
    %cst_277 = arith.constant dense<0.000000e+00> : vector<8xf32>
    %612 = vector.multi_reduction <add>, %611, %cst_277 [1] : vector<8x8xf32> to vector<8xf32>
    %613 = vector.shape_cast %612 : vector<8xf32> to vector<8x1xf32>
    %614 = tpu.reciprocal %613 {approx = true} : vector<8x1xf32> -> vector<8x1xf32>
    %615 = vector.broadcast %614 : vector<8x1xf32> to vector<8x8xf32>
    %616 = arith.mulf %611, %615 : vector<8x8xf32>
    %cst_278 = arith.constant dense<0.000000e+00> : vector<8x8xf32>
    %617 = tpu.matmul %616, %603, %cst_278 {dimension_numbers = #tpu.dot_dimension_numbers<[1], [0], [0], [1], [0, 0, 1, 1], [], []>} : vector<8x8xf32>, vector<8x8xf32>, vector<8x8xf32> -> vector<8x8xf32>
    %618 = vector.extract_strided_slice %577 {offsets = [0, 16], sizes = [8, 8], strides = [1, 1]} : vector<8x32xf32> to vector<8x8xf32>
    %619 = vector.extract_strided_slice %578 {offsets = [0, 16], sizes = [8, 8], strides = [1, 1]} : vector<8x32xf32> to vector<8x8xf32>
    %620 = vector.extract_strided_slice %579 {offsets = [0, 16], sizes = [8, 8], strides = [1, 1]} : vector<8x32xf32> to vector<8x8xf32>
    %cst_279 = arith.constant dense<0.000000e+00> : vector<8x8xf32>
    %621 = tpu.matmul %618, %619, %cst_279 {dimension_numbers = #tpu.dot_dimension_numbers<[1], [1], [0], [0], [0, 0, 1, 0], [], []>} : vector<8x8xf32>, vector<8x8xf32>, vector<8x8xf32> -> vector<8x8xf32>
    %cst_280 = arith.constant -1.000000e+09 : f32
    %622 = vector.broadcast %cst_280 : f32 to vector<8x8xf32>
    %623 = arith.select %302, %622, %621 : vector<8x8xi1>, vector<8x8xf32>
    %cst_281 = arith.constant dense<0xFF800000> : vector<8xf32>
    %624 = vector.multi_reduction <maximumf>, %623, %cst_281 [1] : vector<8x8xf32> to vector<8xf32>
    %625 = vector.shape_cast %624 : vector<8xf32> to vector<8x1xf32>
    %626 = vector.broadcast %625 : vector<8x1xf32> to vector<8x8xf32>
    %627 = arith.subf %623, %626 : vector<8x8xf32>
    %628 = math.exp %627 : vector<8x8xf32>
    %cst_282 = arith.constant dense<0.000000e+00> : vector<8xf32>
    %629 = vector.multi_reduction <add>, %628, %cst_282 [1] : vector<8x8xf32> to vector<8xf32>
    %630 = vector.shape_cast %629 : vector<8xf32> to vector<8x1xf32>
    %631 = tpu.reciprocal %630 {approx = true} : vector<8x1xf32> -> vector<8x1xf32>
    %632 = vector.broadcast %631 : vector<8x1xf32> to vector<8x8xf32>
    %633 = arith.mulf %628, %632 : vector<8x8xf32>
    %cst_283 = arith.constant dense<0.000000e+00> : vector<8x8xf32>
    %634 = tpu.matmul %633, %620, %cst_283 {dimension_numbers = #tpu.dot_dimension_numbers<[1], [0], [0], [1], [0, 0, 1, 1], [], []>} : vector<8x8xf32>, vector<8x8xf32>, vector<8x8xf32> -> vector<8x8xf32>
    %635 = vector.extract_strided_slice %577 {offsets = [0, 24], sizes = [8, 8], strides = [1, 1]} : vector<8x32xf32> to vector<8x8xf32>
    %636 = vector.extract_strided_slice %578 {offsets = [0, 24], sizes = [8, 8], strides = [1, 1]} : vector<8x32xf32> to vector<8x8xf32>
    %637 = vector.extract_strided_slice %579 {offsets = [0, 24], sizes = [8, 8], strides = [1, 1]} : vector<8x32xf32> to vector<8x8xf32>
    %cst_284 = arith.constant dense<0.000000e+00> : vector<8x8xf32>
    %638 = tpu.matmul %635, %636, %cst_284 {dimension_numbers = #tpu.dot_dimension_numbers<[1], [1], [0], [0], [0, 0, 1, 0], [], []>} : vector<8x8xf32>, vector<8x8xf32>, vector<8x8xf32> -> vector<8x8xf32>
    %cst_285 = arith.constant -1.000000e+09 : f32
    %639 = vector.broadcast %cst_285 : f32 to vector<8x8xf32>
    %640 = arith.select %302, %639, %638 : vector<8x8xi1>, vector<8x8xf32>
    %cst_286 = arith.constant dense<0xFF800000> : vector<8xf32>
    %641 = vector.multi_reduction <maximumf>, %640, %cst_286 [1] : vector<8x8xf32> to vector<8xf32>
    %642 = vector.shape_cast %641 : vector<8xf32> to vector<8x1xf32>
    %643 = vector.broadcast %642 : vector<8x1xf32> to vector<8x8xf32>
    %644 = arith.subf %640, %643 : vector<8x8xf32>
    %645 = math.exp %644 : vector<8x8xf32>
    %cst_287 = arith.constant dense<0.000000e+00> : vector<8xf32>
    %646 = vector.multi_reduction <add>, %645, %cst_287 [1] : vector<8x8xf32> to vector<8xf32>
    %647 = vector.shape_cast %646 : vector<8xf32> to vector<8x1xf32>
    %648 = tpu.reciprocal %647 {approx = true} : vector<8x1xf32> -> vector<8x1xf32>
    %649 = vector.broadcast %648 : vector<8x1xf32> to vector<8x8xf32>
    %650 = arith.mulf %645, %649 : vector<8x8xf32>
    %cst_288 = arith.constant dense<0.000000e+00> : vector<8x8xf32>
    %651 = tpu.matmul %650, %637, %cst_288 {dimension_numbers = #tpu.dot_dimension_numbers<[1], [0], [0], [1], [0, 0, 1, 1], [], []>} : vector<8x8xf32>, vector<8x8xf32>, vector<8x8xf32> -> vector<8x8xf32>
    %652 = tpu.concatenate %600, %617, %634, %651 in 1 : vector<8x8xf32>, vector<8x8xf32>, vector<8x8xf32>, vector<8x8xf32> -> vector<8x32xf32>
    %cst_289 = arith.constant dense<0.000000e+00> : vector<8x32xf32>
    %653 = tpu.matmul %652, %581, %cst_289 {dimension_numbers = #tpu.dot_dimension_numbers<[1], [0], [0], [1], [0, 0, 1, 1], [], []>} : vector<8x32xf32>, vector<32x32xf32>, vector<8x32xf32> -> vector<8x32xf32>
    %654 = vector.broadcast %583 : vector<1x32xf32> to vector<8x32xf32>
    %655 = arith.addf %653, %654 : vector<8x32xf32>
    %656 = arith.addf %569, %655 : vector<8x32xf32>
    %c1_290 = arith.constant 1 : index
    %c0_291 = arith.constant 0 : index
    %c0_292 = arith.constant 0 : index
    %657 = vector.load %arg19[%c1_290, %c0_291, %c0_292] : memref<2x1x32xf32, #tpu.memory_space<vmem>>, vector<1x1x32xf32>
    %658 = vector.shape_cast %657 : vector<1x1x32xf32> to vector<1x32xf32>
    %c1_293 = arith.constant 1 : index
    %c0_294 = arith.constant 0 : index
    %c0_295 = arith.constant 0 : index
    %659 = vector.load %arg20[%c1_293, %c0_294, %c0_295] : memref<2x1x32xf32, #tpu.memory_space<vmem>>, vector<1x1x32xf32>
    %660 = vector.shape_cast %659 : vector<1x1x32xf32> to vector<1x32xf32>
    %cst_296 = arith.constant dense<0.000000e+00> : vector<8xf32>
    %661 = vector.multi_reduction <add>, %656, %cst_296 [1] : vector<8x32xf32> to vector<8xf32>
    %662 = vector.shape_cast %661 : vector<8xf32> to vector<8x1xf32>
    %cst_297 = arith.constant 3.200000e+01 : f32
    %663 = vector.broadcast %cst_297 : f32 to vector<8x1xf32>
    %664 = arith.divf %662, %663 : vector<8x1xf32>
    %665 = vector.broadcast %664 : vector<8x1xf32> to vector<8x32xf32>
    %666 = arith.subf %656, %665 : vector<8x32xf32>
    %667 = arith.mulf %666, %666 : vector<8x32xf32>
    %cst_298 = arith.constant dense<0.000000e+00> : vector<8xf32>
    %668 = vector.multi_reduction <add>, %667, %cst_298 [1] : vector<8x32xf32> to vector<8xf32>
    %669 = vector.shape_cast %668 : vector<8xf32> to vector<8x1xf32>
    %cst_299 = arith.constant 3.200000e+01 : f32
    %670 = vector.broadcast %cst_299 : f32 to vector<8x1xf32>
    %671 = arith.divf %669, %670 : vector<8x1xf32>
    %672 = vector.broadcast %664 : vector<8x1xf32> to vector<8x32xf32>
    %673 = arith.subf %656, %672 : vector<8x32xf32>
    %cst_300 = arith.constant 1.000000e-10 : f32
    %674 = vector.broadcast %cst_300 : f32 to vector<8x1xf32>
    %675 = arith.addf %671, %674 : vector<8x1xf32>
    %676 = math.rsqrt %675 : vector<8x1xf32>
    %677 = vector.broadcast %676 : vector<8x1xf32> to vector<8x32xf32>
    %678 = arith.mulf %673, %677 : vector<8x32xf32>
    %679 = vector.broadcast %658 : vector<1x32xf32> to vector<8x32xf32>
    %680 = arith.mulf %679, %678 : vector<8x32xf32>
    %681 = vector.broadcast %660 : vector<1x32xf32> to vector<8x32xf32>
    %682 = arith.addf %680, %681 : vector<8x32xf32>
    %c1_301 = arith.constant 1 : index
    %c0_302 = arith.constant 0 : index
    %c0_303 = arith.constant 0 : index
    %683 = vector.load %arg21[%c1_301, %c0_302, %c0_303] : memref<2x32x32xf32, #tpu.memory_space<vmem>>, vector<1x32x32xf32>
    %684 = vector.shape_cast %683 : vector<1x32x32xf32> to vector<32x32xf32>
    %cst_304 = arith.constant dense<0.000000e+00> : vector<8x32xf32>
    %685 = tpu.matmul %682, %684, %cst_304 {dimension_numbers = #tpu.dot_dimension_numbers<[1], [0], [0], [1], [0, 0, 1, 1], [], []>} : vector<8x32xf32>, vector<32x32xf32>, vector<8x32xf32> -> vector<8x32xf32>
    %c1_305 = arith.constant 1 : index
    %c0_306 = arith.constant 0 : index
    %c0_307 = arith.constant 0 : index
    %686 = vector.load %arg22[%c1_305, %c0_306, %c0_307] : memref<2x1x32xf32, #tpu.memory_space<vmem>>, vector<1x1x32xf32>
    %687 = vector.shape_cast %686 : vector<1x1x32xf32> to vector<1x32xf32>
    %688 = vector.broadcast %687 : vector<1x32xf32> to vector<8x32xf32>
    %689 = arith.addf %685, %688 : vector<8x32xf32>
    %c1_308 = arith.constant 1 : index
    %c0_309 = arith.constant 0 : index
    %c0_310 = arith.constant 0 : index
    %690 = vector.load %arg23[%c1_308, %c0_309, %c0_310] : memref<2x32x64xf32, #tpu.memory_space<vmem>>, vector<1x32x64xf32>
    %691 = vector.shape_cast %690 : vector<1x32x64xf32> to vector<32x64xf32>
    %cst_311 = arith.constant dense<0.000000e+00> : vector<8x64xf32>
    %692 = tpu.matmul %299, %691, %cst_311 {dimension_numbers = #tpu.dot_dimension_numbers<[1], [0], [0], [1], [0, 0, 1, 1], [], []>} : vector<8x32xf32>, vector<32x64xf32>, vector<8x64xf32> -> vector<8x64xf32>
    %c1_312 = arith.constant 1 : index
    %c0_313 = arith.constant 0 : index
    %c0_314 = arith.constant 0 : index
    %693 = vector.load %arg24[%c1_312, %c0_313, %c0_314] : memref<2x1x64xf32, #tpu.memory_space<vmem>>, vector<1x1x64xf32>
    %694 = vector.shape_cast %693 : vector<1x1x64xf32> to vector<1x64xf32>
    %695 = vector.broadcast %694 : vector<1x64xf32> to vector<8x64xf32>
    %696 = arith.addf %692, %695 : vector<8x64xf32>
    %697 = vector.extract_strided_slice %696 {offsets = [0, 0], sizes = [8, 32], strides = [1, 1]} : vector<8x64xf32> to vector<8x32xf32>
    %698 = vector.extract_strided_slice %696 {offsets = [0, 32], sizes = [8, 32], strides = [1, 1]} : vector<8x64xf32> to vector<8x32xf32>
    %c1_315 = arith.constant 1 : index
    %c0_316 = arith.constant 0 : index
    %c0_317 = arith.constant 0 : index
    %699 = vector.load %arg25[%c1_315, %c0_316, %c0_317] : memref<2x32x32xf32, #tpu.memory_space<vmem>>, vector<1x32x32xf32>
    %700 = vector.shape_cast %699 : vector<1x32x32xf32> to vector<32x32xf32>
    %c1_318 = arith.constant 1 : index
    %c0_319 = arith.constant 0 : index
    %c0_320 = arith.constant 0 : index
    %701 = vector.load %arg26[%c1_318, %c0_319, %c0_320] : memref<2x1x32xf32, #tpu.memory_space<vmem>>, vector<1x1x32xf32>
    %702 = vector.shape_cast %701 : vector<1x1x32xf32> to vector<1x32xf32>
    %703 = vector.extract_strided_slice %689 {offsets = [0, 0], sizes = [8, 8], strides = [1, 1]} : vector<8x32xf32> to vector<8x8xf32>
    %704 = vector.extract_strided_slice %697 {offsets = [0, 0], sizes = [8, 8], strides = [1, 1]} : vector<8x32xf32> to vector<8x8xf32>
    %705 = vector.extract_strided_slice %698 {offsets = [0, 0], sizes = [8, 8], strides = [1, 1]} : vector<8x32xf32> to vector<8x8xf32>
    %cst_321 = arith.constant dense<0.000000e+00> : vector<8x8xf32>
    %706 = tpu.matmul %703, %704, %cst_321 {dimension_numbers = #tpu.dot_dimension_numbers<[1], [1], [0], [0], [0, 0, 1, 0], [], []>} : vector<8x8xf32>, vector<8x8xf32>, vector<8x8xf32> -> vector<8x8xf32>
    %cst_322 = arith.constant dense<0xFF800000> : vector<8xf32>
    %707 = vector.multi_reduction <maximumf>, %706, %cst_322 [1] : vector<8x8xf32> to vector<8xf32>
    %708 = vector.shape_cast %707 : vector<8xf32> to vector<8x1xf32>
    %709 = vector.broadcast %708 : vector<8x1xf32> to vector<8x8xf32>
    %710 = arith.subf %706, %709 : vector<8x8xf32>
    %711 = math.exp %710 : vector<8x8xf32>
    %cst_323 = arith.constant dense<0.000000e+00> : vector<8xf32>
    %712 = vector.multi_reduction <add>, %711, %cst_323 [1] : vector<8x8xf32> to vector<8xf32>
    %713 = vector.shape_cast %712 : vector<8xf32> to vector<8x1xf32>
    %714 = tpu.reciprocal %713 {approx = true} : vector<8x1xf32> -> vector<8x1xf32>
    %715 = vector.broadcast %714 : vector<8x1xf32> to vector<8x8xf32>
    %716 = arith.mulf %711, %715 : vector<8x8xf32>
    %cst_324 = arith.constant dense<0.000000e+00> : vector<8x8xf32>
    %717 = tpu.matmul %716, %705, %cst_324 {dimension_numbers = #tpu.dot_dimension_numbers<[1], [0], [0], [1], [0, 0, 1, 1], [], []>} : vector<8x8xf32>, vector<8x8xf32>, vector<8x8xf32> -> vector<8x8xf32>
    %718 = vector.extract_strided_slice %689 {offsets = [0, 8], sizes = [8, 8], strides = [1, 1]} : vector<8x32xf32> to vector<8x8xf32>
    %719 = vector.extract_strided_slice %697 {offsets = [0, 8], sizes = [8, 8], strides = [1, 1]} : vector<8x32xf32> to vector<8x8xf32>
    %720 = vector.extract_strided_slice %698 {offsets = [0, 8], sizes = [8, 8], strides = [1, 1]} : vector<8x32xf32> to vector<8x8xf32>
    %cst_325 = arith.constant dense<0.000000e+00> : vector<8x8xf32>
    %721 = tpu.matmul %718, %719, %cst_325 {dimension_numbers = #tpu.dot_dimension_numbers<[1], [1], [0], [0], [0, 0, 1, 0], [], []>} : vector<8x8xf32>, vector<8x8xf32>, vector<8x8xf32> -> vector<8x8xf32>
    %cst_326 = arith.constant dense<0xFF800000> : vector<8xf32>
    %722 = vector.multi_reduction <maximumf>, %721, %cst_326 [1] : vector<8x8xf32> to vector<8xf32>
    %723 = vector.shape_cast %722 : vector<8xf32> to vector<8x1xf32>
    %724 = vector.broadcast %723 : vector<8x1xf32> to vector<8x8xf32>
    %725 = arith.subf %721, %724 : vector<8x8xf32>
    %726 = math.exp %725 : vector<8x8xf32>
    %cst_327 = arith.constant dense<0.000000e+00> : vector<8xf32>
    %727 = vector.multi_reduction <add>, %726, %cst_327 [1] : vector<8x8xf32> to vector<8xf32>
    %728 = vector.shape_cast %727 : vector<8xf32> to vector<8x1xf32>
    %729 = tpu.reciprocal %728 {approx = true} : vector<8x1xf32> -> vector<8x1xf32>
    %730 = vector.broadcast %729 : vector<8x1xf32> to vector<8x8xf32>
    %731 = arith.mulf %726, %730 : vector<8x8xf32>
    %cst_328 = arith.constant dense<0.000000e+00> : vector<8x8xf32>
    %732 = tpu.matmul %731, %720, %cst_328 {dimension_numbers = #tpu.dot_dimension_numbers<[1], [0], [0], [1], [0, 0, 1, 1], [], []>} : vector<8x8xf32>, vector<8x8xf32>, vector<8x8xf32> -> vector<8x8xf32>
    %733 = vector.extract_strided_slice %689 {offsets = [0, 16], sizes = [8, 8], strides = [1, 1]} : vector<8x32xf32> to vector<8x8xf32>
    %734 = vector.extract_strided_slice %697 {offsets = [0, 16], sizes = [8, 8], strides = [1, 1]} : vector<8x32xf32> to vector<8x8xf32>
    %735 = vector.extract_strided_slice %698 {offsets = [0, 16], sizes = [8, 8], strides = [1, 1]} : vector<8x32xf32> to vector<8x8xf32>
    %cst_329 = arith.constant dense<0.000000e+00> : vector<8x8xf32>
    %736 = tpu.matmul %733, %734, %cst_329 {dimension_numbers = #tpu.dot_dimension_numbers<[1], [1], [0], [0], [0, 0, 1, 0], [], []>} : vector<8x8xf32>, vector<8x8xf32>, vector<8x8xf32> -> vector<8x8xf32>
    %cst_330 = arith.constant dense<0xFF800000> : vector<8xf32>
    %737 = vector.multi_reduction <maximumf>, %736, %cst_330 [1] : vector<8x8xf32> to vector<8xf32>
    %738 = vector.shape_cast %737 : vector<8xf32> to vector<8x1xf32>
    %739 = vector.broadcast %738 : vector<8x1xf32> to vector<8x8xf32>
    %740 = arith.subf %736, %739 : vector<8x8xf32>
    %741 = math.exp %740 : vector<8x8xf32>
    %cst_331 = arith.constant dense<0.000000e+00> : vector<8xf32>
    %742 = vector.multi_reduction <add>, %741, %cst_331 [1] : vector<8x8xf32> to vector<8xf32>
    %743 = vector.shape_cast %742 : vector<8xf32> to vector<8x1xf32>
    %744 = tpu.reciprocal %743 {approx = true} : vector<8x1xf32> -> vector<8x1xf32>
    %745 = vector.broadcast %744 : vector<8x1xf32> to vector<8x8xf32>
    %746 = arith.mulf %741, %745 : vector<8x8xf32>
    %cst_332 = arith.constant dense<0.000000e+00> : vector<8x8xf32>
    %747 = tpu.matmul %746, %735, %cst_332 {dimension_numbers = #tpu.dot_dimension_numbers<[1], [0], [0], [1], [0, 0, 1, 1], [], []>} : vector<8x8xf32>, vector<8x8xf32>, vector<8x8xf32> -> vector<8x8xf32>
    %748 = vector.extract_strided_slice %689 {offsets = [0, 24], sizes = [8, 8], strides = [1, 1]} : vector<8x32xf32> to vector<8x8xf32>
    %749 = vector.extract_strided_slice %697 {offsets = [0, 24], sizes = [8, 8], strides = [1, 1]} : vector<8x32xf32> to vector<8x8xf32>
    %750 = vector.extract_strided_slice %698 {offsets = [0, 24], sizes = [8, 8], strides = [1, 1]} : vector<8x32xf32> to vector<8x8xf32>
    %cst_333 = arith.constant dense<0.000000e+00> : vector<8x8xf32>
    %751 = tpu.matmul %748, %749, %cst_333 {dimension_numbers = #tpu.dot_dimension_numbers<[1], [1], [0], [0], [0, 0, 1, 0], [], []>} : vector<8x8xf32>, vector<8x8xf32>, vector<8x8xf32> -> vector<8x8xf32>
    %cst_334 = arith.constant dense<0xFF800000> : vector<8xf32>
    %752 = vector.multi_reduction <maximumf>, %751, %cst_334 [1] : vector<8x8xf32> to vector<8xf32>
    %753 = vector.shape_cast %752 : vector<8xf32> to vector<8x1xf32>
    %754 = vector.broadcast %753 : vector<8x1xf32> to vector<8x8xf32>
    %755 = arith.subf %751, %754 : vector<8x8xf32>
    %756 = math.exp %755 : vector<8x8xf32>
    %cst_335 = arith.constant dense<0.000000e+00> : vector<8xf32>
    %757 = vector.multi_reduction <add>, %756, %cst_335 [1] : vector<8x8xf32> to vector<8xf32>
    %758 = vector.shape_cast %757 : vector<8xf32> to vector<8x1xf32>
    %759 = tpu.reciprocal %758 {approx = true} : vector<8x1xf32> -> vector<8x1xf32>
    %760 = vector.broadcast %759 : vector<8x1xf32> to vector<8x8xf32>
    %761 = arith.mulf %756, %760 : vector<8x8xf32>
    %cst_336 = arith.constant dense<0.000000e+00> : vector<8x8xf32>
    %762 = tpu.matmul %761, %750, %cst_336 {dimension_numbers = #tpu.dot_dimension_numbers<[1], [0], [0], [1], [0, 0, 1, 1], [], []>} : vector<8x8xf32>, vector<8x8xf32>, vector<8x8xf32> -> vector<8x8xf32>
    %763 = tpu.concatenate %717, %732, %747, %762 in 1 : vector<8x8xf32>, vector<8x8xf32>, vector<8x8xf32>, vector<8x8xf32> -> vector<8x32xf32>
    %cst_337 = arith.constant dense<0.000000e+00> : vector<8x32xf32>
    %764 = tpu.matmul %763, %700, %cst_337 {dimension_numbers = #tpu.dot_dimension_numbers<[1], [0], [0], [1], [0, 0, 1, 1], [], []>} : vector<8x32xf32>, vector<32x32xf32>, vector<8x32xf32> -> vector<8x32xf32>
    %765 = vector.broadcast %702 : vector<1x32xf32> to vector<8x32xf32>
    %766 = arith.addf %764, %765 : vector<8x32xf32>
    %767 = arith.addf %682, %766 : vector<8x32xf32>
    %c1_338 = arith.constant 1 : index
    %c0_339 = arith.constant 0 : index
    %c0_340 = arith.constant 0 : index
    %768 = vector.load %arg27[%c1_338, %c0_339, %c0_340] : memref<2x1x32xf32, #tpu.memory_space<vmem>>, vector<1x1x32xf32>
    %769 = vector.shape_cast %768 : vector<1x1x32xf32> to vector<1x32xf32>
    %c1_341 = arith.constant 1 : index
    %c0_342 = arith.constant 0 : index
    %c0_343 = arith.constant 0 : index
    %770 = vector.load %arg28[%c1_341, %c0_342, %c0_343] : memref<2x1x32xf32, #tpu.memory_space<vmem>>, vector<1x1x32xf32>
    %771 = vector.shape_cast %770 : vector<1x1x32xf32> to vector<1x32xf32>
    %cst_344 = arith.constant dense<0.000000e+00> : vector<8xf32>
    %772 = vector.multi_reduction <add>, %767, %cst_344 [1] : vector<8x32xf32> to vector<8xf32>
    %773 = vector.shape_cast %772 : vector<8xf32> to vector<8x1xf32>
    %cst_345 = arith.constant 3.200000e+01 : f32
    %774 = vector.broadcast %cst_345 : f32 to vector<8x1xf32>
    %775 = arith.divf %773, %774 : vector<8x1xf32>
    %776 = vector.broadcast %775 : vector<8x1xf32> to vector<8x32xf32>
    %777 = arith.subf %767, %776 : vector<8x32xf32>
    %778 = arith.mulf %777, %777 : vector<8x32xf32>
    %cst_346 = arith.constant dense<0.000000e+00> : vector<8xf32>
    %779 = vector.multi_reduction <add>, %778, %cst_346 [1] : vector<8x32xf32> to vector<8xf32>
    %780 = vector.shape_cast %779 : vector<8xf32> to vector<8x1xf32>
    %cst_347 = arith.constant 3.200000e+01 : f32
    %781 = vector.broadcast %cst_347 : f32 to vector<8x1xf32>
    %782 = arith.divf %780, %781 : vector<8x1xf32>
    %783 = vector.broadcast %775 : vector<8x1xf32> to vector<8x32xf32>
    %784 = arith.subf %767, %783 : vector<8x32xf32>
    %cst_348 = arith.constant 1.000000e-10 : f32
    %785 = vector.broadcast %cst_348 : f32 to vector<8x1xf32>
    %786 = arith.addf %782, %785 : vector<8x1xf32>
    %787 = math.rsqrt %786 : vector<8x1xf32>
    %788 = vector.broadcast %787 : vector<8x1xf32> to vector<8x32xf32>
    %789 = arith.mulf %784, %788 : vector<8x32xf32>
    %790 = vector.broadcast %769 : vector<1x32xf32> to vector<8x32xf32>
    %791 = arith.mulf %790, %789 : vector<8x32xf32>
    %792 = vector.broadcast %771 : vector<1x32xf32> to vector<8x32xf32>
    %793 = arith.addf %791, %792 : vector<8x32xf32>
    %c1_349 = arith.constant 1 : index
    %c0_350 = arith.constant 0 : index
    %c0_351 = arith.constant 0 : index
    %794 = vector.load %arg29[%c1_349, %c0_350, %c0_351] : memref<2x32x64xf32, #tpu.memory_space<vmem>>, vector<1x32x64xf32>
    %795 = vector.shape_cast %794 : vector<1x32x64xf32> to vector<32x64xf32>
    %c1_352 = arith.constant 1 : index
    %c0_353 = arith.constant 0 : index
    %c0_354 = arith.constant 0 : index
    %796 = vector.load %arg30[%c1_352, %c0_353, %c0_354] : memref<2x1x64xf32, #tpu.memory_space<vmem>>, vector<1x1x64xf32>
    %797 = vector.shape_cast %796 : vector<1x1x64xf32> to vector<1x64xf32>
    %c1_355 = arith.constant 1 : index
    %c0_356 = arith.constant 0 : index
    %c0_357 = arith.constant 0 : index
    %798 = vector.load %arg31[%c1_355, %c0_356, %c0_357] : memref<2x64x32xf32, #tpu.memory_space<vmem>>, vector<1x64x32xf32>
    %799 = vector.shape_cast %798 : vector<1x64x32xf32> to vector<64x32xf32>
    %c1_358 = arith.constant 1 : index
    %c0_359 = arith.constant 0 : index
    %c0_360 = arith.constant 0 : index
    %800 = vector.load %arg32[%c1_358, %c0_359, %c0_360] : memref<2x1x32xf32, #tpu.memory_space<vmem>>, vector<1x1x32xf32>
    %801 = vector.shape_cast %800 : vector<1x1x32xf32> to vector<1x32xf32>
    %cst_361 = arith.constant dense<0.000000e+00> : vector<8x64xf32>
    %802 = tpu.matmul %793, %795, %cst_361 {dimension_numbers = #tpu.dot_dimension_numbers<[1], [0], [0], [1], [0, 0, 1, 1], [], []>} : vector<8x32xf32>, vector<32x64xf32>, vector<8x64xf32> -> vector<8x64xf32>
    %803 = vector.broadcast %797 : vector<1x64xf32> to vector<8x64xf32>
    %804 = arith.addf %802, %803 : vector<8x64xf32>
    %cst_362 = arith.constant 0.000000e+00 : f32
    %805 = vector.broadcast %cst_362 : f32 to vector<8x64xf32>
    %806 = arith.maximumf %804, %805 : vector<8x64xf32>
    %cst_363 = arith.constant dense<0.000000e+00> : vector<8x32xf32>
    %807 = tpu.matmul %806, %799, %cst_363 {dimension_numbers = #tpu.dot_dimension_numbers<[1], [0], [0], [1], [0, 0, 1, 1], [], []>} : vector<8x64xf32>, vector<64x32xf32>, vector<8x32xf32> -> vector<8x32xf32>
    %808 = vector.broadcast %801 : vector<1x32xf32> to vector<8x32xf32>
    %809 = arith.addf %807, %808 : vector<8x32xf32>
    %810 = arith.addf %793, %809 : vector<8x32xf32>
    %c1_364 = arith.constant 1 : index
    %c0_365 = arith.constant 0 : index
    %c0_366 = arith.constant 0 : index
    %811 = vector.load %arg33[%c1_364, %c0_365, %c0_366] : memref<2x1x32xf32, #tpu.memory_space<vmem>>, vector<1x1x32xf32>
    %812 = vector.shape_cast %811 : vector<1x1x32xf32> to vector<1x32xf32>
    %c1_367 = arith.constant 1 : index
    %c0_368 = arith.constant 0 : index
    %c0_369 = arith.constant 0 : index
    %813 = vector.load %arg34[%c1_367, %c0_368, %c0_369] : memref<2x1x32xf32, #tpu.memory_space<vmem>>, vector<1x1x32xf32>
    %814 = vector.shape_cast %813 : vector<1x1x32xf32> to vector<1x32xf32>
    %cst_370 = arith.constant dense<0.000000e+00> : vector<8xf32>
    %815 = vector.multi_reduction <add>, %810, %cst_370 [1] : vector<8x32xf32> to vector<8xf32>
    %816 = vector.shape_cast %815 : vector<8xf32> to vector<8x1xf32>
    %cst_371 = arith.constant 3.200000e+01 : f32
    %817 = vector.broadcast %cst_371 : f32 to vector<8x1xf32>
    %818 = arith.divf %816, %817 : vector<8x1xf32>
    %819 = vector.broadcast %818 : vector<8x1xf32> to vector<8x32xf32>
    %820 = arith.subf %810, %819 : vector<8x32xf32>
    %821 = arith.mulf %820, %820 : vector<8x32xf32>
    %cst_372 = arith.constant dense<0.000000e+00> : vector<8xf32>
    %822 = vector.multi_reduction <add>, %821, %cst_372 [1] : vector<8x32xf32> to vector<8xf32>
    %823 = vector.shape_cast %822 : vector<8xf32> to vector<8x1xf32>
    %cst_373 = arith.constant 3.200000e+01 : f32
    %824 = vector.broadcast %cst_373 : f32 to vector<8x1xf32>
    %825 = arith.divf %823, %824 : vector<8x1xf32>
    %826 = vector.broadcast %818 : vector<8x1xf32> to vector<8x32xf32>
    %827 = arith.subf %810, %826 : vector<8x32xf32>
    %cst_374 = arith.constant 1.000000e-10 : f32
    %828 = vector.broadcast %cst_374 : f32 to vector<8x1xf32>
    %829 = arith.addf %825, %828 : vector<8x1xf32>
    %830 = math.rsqrt %829 : vector<8x1xf32>
    %831 = vector.broadcast %830 : vector<8x1xf32> to vector<8x32xf32>
    %832 = arith.mulf %827, %831 : vector<8x32xf32>
    %833 = vector.broadcast %812 : vector<1x32xf32> to vector<8x32xf32>
    %834 = arith.mulf %833, %832 : vector<8x32xf32>
    %835 = vector.broadcast %814 : vector<1x32xf32> to vector<8x32xf32>
    %836 = arith.addf %834, %835 : vector<8x32xf32>
    %c0_375 = arith.constant 0 : index
    %c0_376 = arith.constant 0 : index
    %837 = vector.load %arg35[%c0_375, %c0_376] : memref<32x128xf32, #tpu.memory_space<vmem>>, vector<32x128xf32>
    %cst_377 = arith.constant dense<0.000000e+00> : vector<8x128xf32>
    %838 = tpu.matmul %836, %837, %cst_377 {dimension_numbers = #tpu.dot_dimension_numbers<[1], [0], [0], [1], [0, 0, 1, 1], [], []>} : vector<8x32xf32>, vector<32x128xf32>, vector<8x128xf32> -> vector<8x128xf32>
    %c0_378 = arith.constant 0 : index
    %c0_379 = arith.constant 0 : index
    %839 = vector.load %arg36[%c0_378, %c0_379] : memref<1x128xf32, #tpu.memory_space<vmem>>, vector<1x128xf32>
    %840 = vector.broadcast %839 : vector<1x128xf32> to vector<8x128xf32>
    %841 = arith.addf %838, %840 : vector<8x128xf32>
    %c0_380 = arith.constant 0 : index
    %c0_381 = arith.constant 0 : index
    %c0_382 = arith.constant 0 : index
    %842 = vector.load %arg37[%c0_380, %c0_381, %c0_382] : memref<1x8x128xf32, #tpu.memory_space<vmem>>, vector<1x8x128xf32>
    %843 = vector.shape_cast %842 : vector<1x8x128xf32> to vector<8x128xf32>
    %844 = vector.shape_cast %841 : vector<8x128xf32> to vector<1x8x128xf32>
    tpu.vector_store %arg37[%c0_380, %c0_381, %c0_382], %844 {strides = array<i32>} : memref<1x8x128xf32, #tpu.memory_space<vmem>>, vector<1x8x128xf32>,
    return
  }
  func.func @transform_0(%arg0: i32) -> (i32, i32, i32) {
    %c0_i32 = arith.constant 0 : i32
    %c0_i32_0 = arith.constant 0 : i32
    %c0_i32_1 = arith.constant 0 : i32
    return %arg0, %c0_i32, %c0_i32_0 : i32, i32, i32
  }
  func.func @transform_1(%arg0: i32) -> (i32, i32, i32) {
    %c0_i32 = arith.constant 0 : i32
    %c0_i32_0 = arith.constant 0 : i32
    %c0_i32_1 = arith.constant 0 : i32
    return %arg0, %c0_i32, %c0_i32_0 : i32, i32, i32
  }
  func.func @transform_2(%arg0: i32) -> (i32, i32, i32) {
    %c0_i32 = arith.constant 0 : i32
    %c0_i32_0 = arith.constant 0 : i32
    %c0_i32_1 = arith.constant 0 : i32
    %c0_i32_2 = arith.constant 0 : i32
    return %c0_i32, %c0_i32_0, %c0_i32_1 : i32, i32, i32
  }
  func.func @transform_3(%arg0: i32) -> (i32, i32, i32) {
    %c0_i32 = arith.constant 0 : i32
    %c0_i32_0 = arith.constant 0 : i32
    %c0_i32_1 = arith.constant 0 : i32
    %c0_i32_2 = arith.constant 0 : i32
    return %c0_i32, %c0_i32_0, %c0_i32_1 : i32, i32, i32
  }
  func.func @transform_4(%arg0: i32) -> (i32, i32, i32) {
    %c0_i32 = arith.constant 0 : i32
    %c0_i32_0 = arith.constant 0 : i32
    %c0_i32_1 = arith.constant 0 : i32
    %c0_i32_2 = arith.constant 0 : i32
    return %c0_i32, %c0_i32_0, %c0_i32_1 : i32, i32, i32
  }
  func.func @transform_5(%arg0: i32) -> (i32, i32, i32) {
    %c0_i32 = arith.constant 0 : i32
    %c0_i32_0 = arith.constant 0 : i32
    %c0_i32_1 = arith.constant 0 : i32
    %c0_i32_2 = arith.constant 0 : i32
    return %c0_i32, %c0_i32_0, %c0_i32_1 : i32, i32, i32
  }
  func.func @transform_6(%arg0: i32) -> (i32, i32, i32) {
    %c0_i32 = arith.constant 0 : i32
    %c0_i32_0 = arith.constant 0 : i32
    %c0_i32_1 = arith.constant 0 : i32
    %c0_i32_2 = arith.constant 0 : i32
    return %c0_i32, %c0_i32_0, %c0_i32_1 : i32, i32, i32
  }
  func.func @transform_7(%arg0: i32) -> (i32, i32, i32) {
    %c0_i32 = arith.constant 0 : i32
    %c0_i32_0 = arith.constant 0 : i32
    %c0_i32_1 = arith.constant 0 : i32
    %c0_i32_2 = arith.constant 0 : i32
    return %c0_i32, %c0_i32_0, %c0_i32_1 : i32, i32, i32
  }
  func.func @transform_8(%arg0: i32) -> (i32, i32, i32) {
    %c0_i32 = arith.constant 0 : i32
    %c0_i32_0 = arith.constant 0 : i32
    %c0_i32_1 = arith.constant 0 : i32
    %c0_i32_2 = arith.constant 0 : i32
    return %c0_i32, %c0_i32_0, %c0_i32_1 : i32, i32, i32
  }
  func.func @transform_9(%arg0: i32) -> (i32, i32, i32) {
    %c0_i32 = arith.constant 0 : i32
    %c0_i32_0 = arith.constant 0 : i32
    %c0_i32_1 = arith.constant 0 : i32
    %c0_i32_2 = arith.constant 0 : i32
    return %c0_i32, %c0_i32_0, %c0_i32_1 : i32, i32, i32
  }
  func.func @transform_10(%arg0: i32) -> (i32, i32, i32) {
    %c0_i32 = arith.constant 0 : i32
    %c0_i32_0 = arith.constant 0 : i32
    %c0_i32_1 = arith.constant 0 : i32
    %c0_i32_2 = arith.constant 0 : i32
    return %c0_i32, %c0_i32_0, %c0_i32_1 : i32, i32, i32
  }
  func.func @transform_11(%arg0: i32) -> (i32, i32, i32) {
    %c0_i32 = arith.constant 0 : i32
    %c0_i32_0 = arith.constant 0 : i32
    %c0_i32_1 = arith.constant 0 : i32
    %c0_i32_2 = arith.constant 0 : i32
    return %c0_i32, %c0_i32_0, %c0_i32_1 : i32, i32, i32
  }
  func.func @transform_12(%arg0: i32) -> (i32, i32, i32) {
    %c0_i32 = arith.constant 0 : i32
    %c0_i32_0 = arith.constant 0 : i32
    %c0_i32_1 = arith.constant 0 : i32
    %c0_i32_2 = arith.constant 0 : i32
    return %c0_i32, %c0_i32_0, %c0_i32_1 : i32, i32, i32
  }
  func.func @transform_13(%arg0: i32) -> (i32, i32, i32) {
    %c0_i32 = arith.constant 0 : i32
    %c0_i32_0 = arith.constant 0 : i32
    %c0_i32_1 = arith.constant 0 : i32
    %c0_i32_2 = arith.constant 0 : i32
    return %c0_i32, %c0_i32_0, %c0_i32_1 : i32, i32, i32
  }
  func.func @transform_14(%arg0: i32) -> (i32, i32, i32) {
    %c0_i32 = arith.constant 0 : i32
    %c0_i32_0 = arith.constant 0 : i32
    %c0_i32_1 = arith.constant 0 : i32
    %c0_i32_2 = arith.constant 0 : i32
    return %c0_i32, %c0_i32_0, %c0_i32_1 : i32, i32, i32
  }
  func.func @transform_15(%arg0: i32) -> (i32, i32, i32) {
    %c0_i32 = arith.constant 0 : i32
    %c0_i32_0 = arith.constant 0 : i32
    %c0_i32_1 = arith.constant 0 : i32
    %c0_i32_2 = arith.constant 0 : i32
    return %c0_i32, %c0_i32_0, %c0_i32_1 : i32, i32, i32
  }
  func.func @transform_16(%arg0: i32) -> (i32, i32, i32) {
    %c0_i32 = arith.constant 0 : i32
    %c0_i32_0 = arith.constant 0 : i32
    %c0_i32_1 = arith.constant 0 : i32
    %c0_i32_2 = arith.constant 0 : i32
    return %c0_i32, %c0_i32_0, %c0_i32_1 : i32, i32, i32
  }
  func.func @transform_17(%arg0: i32) -> (i32, i32, i32) {
    %c0_i32 = arith.constant 0 : i32
    %c0_i32_0 = arith.constant 0 : i32
    %c0_i32_1 = arith.constant 0 : i32
    %c0_i32_2 = arith.constant 0 : i32
    return %c0_i32, %c0_i32_0, %c0_i32_1 : i32, i32, i32
  }
  func.func @transform_18(%arg0: i32) -> (i32, i32, i32) {
    %c0_i32 = arith.constant 0 : i32
    %c0_i32_0 = arith.constant 0 : i32
    %c0_i32_1 = arith.constant 0 : i32
    %c0_i32_2 = arith.constant 0 : i32
    return %c0_i32, %c0_i32_0, %c0_i32_1 : i32, i32, i32
  }
  func.func @transform_19(%arg0: i32) -> (i32, i32, i32) {
    %c0_i32 = arith.constant 0 : i32
    %c0_i32_0 = arith.constant 0 : i32
    %c0_i32_1 = arith.constant 0 : i32
    %c0_i32_2 = arith.constant 0 : i32
    return %c0_i32, %c0_i32_0, %c0_i32_1 : i32, i32, i32
  }
  func.func @transform_20(%arg0: i32) -> (i32, i32, i32) {
    %c0_i32 = arith.constant 0 : i32
    %c0_i32_0 = arith.constant 0 : i32
    %c0_i32_1 = arith.constant 0 : i32
    %c0_i32_2 = arith.constant 0 : i32
    return %c0_i32, %c0_i32_0, %c0_i32_1 : i32, i32, i32
  }
  func.func @transform_21(%arg0: i32) -> (i32, i32, i32) {
    %c0_i32 = arith.constant 0 : i32
    %c0_i32_0 = arith.constant 0 : i32
    %c0_i32_1 = arith.constant 0 : i32
    %c0_i32_2 = arith.constant 0 : i32
    return %c0_i32, %c0_i32_0, %c0_i32_1 : i32, i32, i32
  }
  func.func @transform_22(%arg0: i32) -> (i32, i32, i32) {
    %c0_i32 = arith.constant 0 : i32
    %c0_i32_0 = arith.constant 0 : i32
    %c0_i32_1 = arith.constant 0 : i32
    %c0_i32_2 = arith.constant 0 : i32
    return %c0_i32, %c0_i32_0, %c0_i32_1 : i32, i32, i32
  }
  func.func @transform_23(%arg0: i32) -> (i32, i32, i32) {
    %c0_i32 = arith.constant 0 : i32
    %c0_i32_0 = arith.constant 0 : i32
    %c0_i32_1 = arith.constant 0 : i32
    %c0_i32_2 = arith.constant 0 : i32
    return %c0_i32, %c0_i32_0, %c0_i32_1 : i32, i32, i32
  }
  func.func @transform_24(%arg0: i32) -> (i32, i32, i32) {
    %c0_i32 = arith.constant 0 : i32
    %c0_i32_0 = arith.constant 0 : i32
    %c0_i32_1 = arith.constant 0 : i32
    %c0_i32_2 = arith.constant 0 : i32
    return %c0_i32, %c0_i32_0, %c0_i32_1 : i32, i32, i32
  }
  func.func @transform_25(%arg0: i32) -> (i32, i32, i32) {
    %c0_i32 = arith.constant 0 : i32
    %c0_i32_0 = arith.constant 0 : i32
    %c0_i32_1 = arith.constant 0 : i32
    %c0_i32_2 = arith.constant 0 : i32
    return %c0_i32, %c0_i32_0, %c0_i32_1 : i32, i32, i32
  }
  func.func @transform_26(%arg0: i32) -> (i32, i32, i32) {
    %c0_i32 = arith.constant 0 : i32
    %c0_i32_0 = arith.constant 0 : i32
    %c0_i32_1 = arith.constant 0 : i32
    %c0_i32_2 = arith.constant 0 : i32
    return %c0_i32, %c0_i32_0, %c0_i32_1 : i32, i32, i32
  }
  func.func @transform_27(%arg0: i32) -> (i32, i32, i32) {
    %c0_i32 = arith.constant 0 : i32
    %c0_i32_0 = arith.constant 0 : i32
    %c0_i32_1 = arith.constant 0 : i32
    %c0_i32_2 = arith.constant 0 : i32
    return %c0_i32, %c0_i32_0, %c0_i32_1 : i32, i32, i32
  }
  func.func @transform_28(%arg0: i32) -> (i32, i32, i32) {
    %c0_i32 = arith.constant 0 : i32
    %c0_i32_0 = arith.constant 0 : i32
    %c0_i32_1 = arith.constant 0 : i32
    %c0_i32_2 = arith.constant 0 : i32
    return %c0_i32, %c0_i32_0, %c0_i32_1 : i32, i32, i32
  }
  func.func @transform_29(%arg0: i32) -> (i32, i32, i32) {
    %c0_i32 = arith.constant 0 : i32
    %c0_i32_0 = arith.constant 0 : i32
    %c0_i32_1 = arith.constant 0 : i32
    %c0_i32_2 = arith.constant 0 : i32
    return %c0_i32, %c0_i32_0, %c0_i32_1 : i32, i32, i32
  }
  func.func @transform_30(%arg0: i32) -> (i32, i32, i32) {
    %c0_i32 = arith.constant 0 : i32
    %c0_i32_0 = arith.constant 0 : i32
    %c0_i32_1 = arith.constant 0 : i32
    %c0_i32_2 = arith.constant 0 : i32
    return %c0_i32, %c0_i32_0, %c0_i32_1 : i32, i32, i32
  }
  func.func @transform_31(%arg0: i32) -> (i32, i32, i32) {
    %c0_i32 = arith.constant 0 : i32
    %c0_i32_0 = arith.constant 0 : i32
    %c0_i32_1 = arith.constant 0 : i32
    %c0_i32_2 = arith.constant 0 : i32
    return %c0_i32, %c0_i32_0, %c0_i32_1 : i32, i32, i32
  }
  func.func @transform_32(%arg0: i32) -> (i32, i32, i32) {
    %c0_i32 = arith.constant 0 : i32
    %c0_i32_0 = arith.constant 0 : i32
    %c0_i32_1 = arith.constant 0 : i32
    %c0_i32_2 = arith.constant 0 : i32
    return %c0_i32, %c0_i32_0, %c0_i32_1 : i32, i32, i32
  }
  func.func @transform_33(%arg0: i32) -> (i32, i32, i32) {
    %c0_i32 = arith.constant 0 : i32
    %c0_i32_0 = arith.constant 0 : i32
    %c0_i32_1 = arith.constant 0 : i32
    %c0_i32_2 = arith.constant 0 : i32
    return %c0_i32, %c0_i32_0, %c0_i32_1 : i32, i32, i32
  }
  func.func @transform_34(%arg0: i32) -> (i32, i32) {
    %c0_i32 = arith.constant 0 : i32
    %c0_i32_0 = arith.constant 0 : i32
    %c0_i32_1 = arith.constant 0 : i32
    return %c0_i32, %c0_i32_0 : i32, i32
  }
  func.func @transform_35(%arg0: i32) -> (i32, i32) {
    %c0_i32 = arith.constant 0 : i32
    %c0_i32_0 = arith.constant 0 : i32
    %c0_i32_1 = arith.constant 0 : i32
    return %c0_i32, %c0_i32_0 : i32, i32
  }
  func.func @transform_36(%arg0: i32) -> (i32, i32, i32) {
    %c0_i32 = arith.constant 0 : i32
    %c0_i32_0 = arith.constant 0 : i32
    %c0_i32_1 = arith.constant 0 : i32
    return %arg0, %c0_i32, %c0_i32_0 : i32, i32, i32
  }
}

</mosaic_0001>

<llo_original>
// kernel: tpu_custom_call.1
$region0: #{tpu_custom_call.1}
  #allocation0 [shape = 'u32[]', space=smem, size = 0x4, offset = 0x4, fixed_abs, tag = 'smem constant byte address 0x4 - core index']
  #allocation1 [shape = 'u32[144,128]{1,0:T(1,128)}', space=vmem, size = 0x12000, scoped, tag = 'internal scratch']
  %s0 = inlined_call_operand.smem [shape: u32[37], index: -1, kind: input, shape index: {}]
  %s1 = sld [smem:[%s0]]
  %s2 = scalar_lea.smem %s0, 1
  %s3 = sld [smem:[%s2]]
  %s4 = scalar_lea.smem %s0, 2
  %s5 = sld [smem:[%s4]]
  %s6 = scalar_lea.smem %s0, 3
  %s7 = sld [smem:[%s6]]
  %s8 = scalar_lea.smem %s0, 4
  %s9 = sld [smem:[%s8]]
  %s10 = scalar_lea.smem %s0, 5
  %s11 = sld [smem:[%s10]]
  %s12 = scalar_lea.smem %s0, 6
  %s13 = sld [smem:[%s12]]
  %s14 = scalar_lea.smem %s0, 7
  %s15 = sld [smem:[%s14]]
  %s16 = scalar_lea.smem %s0, 8
  %s17 = sld [smem:[%s16]]
  %s18 = scalar_lea.smem %s0, 9
  %s19 = sld [smem:[%s18]]
  %s20 = scalar_lea.smem %s0, 10
  %s21 = sld [smem:[%s20]]
  %s22 = scalar_lea.smem %s0, 11
  %s23 = sld [smem:[%s22]]
  %s24 = scalar_lea.smem %s0, 12
  %s25 = sld [smem:[%s24]]
  %s26 = scalar_lea.smem %s0, 13
  %s27 = sld [smem:[%s26]]
  %s28 = scalar_lea.smem %s0, 14
  %s29 = sld [smem:[%s28]]
  %s30 = scalar_lea.smem %s0, 15
  %s31 = sld [smem:[%s30]]
  %s32 = scalar_lea.smem %s0, 16
  %s33 = sld [smem:[%s32]]
  %s34 = scalar_lea.smem %s0, 17
  %s35 = sld [smem:[%s34]]
  %s36 = scalar_lea.smem %s0, 18
  %s37 = sld [smem:[%s36]]
  %s38 = scalar_lea.smem %s0, 19
  %s39 = sld [smem:[%s38]]
  %s40 = scalar_lea.smem %s0, 20
  %s41 = sld [smem:[%s40]]
  %s42 = scalar_lea.smem %s0, 21
  %s43 = sld [smem:[%s42]]
  %s44 = scalar_lea.smem %s0, 22
  %s45 = sld [smem:[%s44]]
  %s46 = scalar_lea.smem %s0, 23
  %s47 = sld [smem:[%s46]]
  %s48 = scalar_lea.smem %s0, 24
  %s49 = sld [smem:[%s48]]
  %s50 = scalar_lea.smem %s0, 25
  %s51 = sld [smem:[%s50]]
  %s52 = scalar_lea.smem %s0, 26
  %s53 = sld [smem:[%s52]]
  %s54 = scalar_lea.smem %s0, 27
  %s55 = sld [smem:[%s54]]
  %s56 = scalar_lea.smem %s0, 28
  %s57 = sld [smem:[%s56]]
  %s58 = scalar_lea.smem %s0, 29
  %s59 = sld [smem:[%s58]]
  %s60 = scalar_lea.smem %s0, 30
  %s61 = sld [smem:[%s60]]
  %s62 = scalar_lea.smem %s0, 31
  %s63 = sld [smem:[%s62]]
  %s64 = scalar_lea.smem %s0, 32
  %s65 = sld [smem:[%s64]]
  %s66 = scalar_lea.smem %s0, 33
  %s67 = sld [smem:[%s66]]
  %s68 = scalar_lea.smem %s0, 34
  %s69 = sld [smem:[%s68]]
  %s70 = scalar_lea.smem %s0, 35
  %s71 = sld [smem:[%s70]]
  %s72 = scalar_lea.smem %s0, 36
  %s73 = sld [smem:[%s72]]
  %s74 = sld [smem:[#allocation0]]
  $region261: #{tpu_custom_call.1} parent=0
    _
  %s76 = ssub.s32 1, %s74
  %s77 = scalar_select 0, %s76, %s74
  $region1: #{tpu_custom_call.1} parent=0
    #allocation2 [shape = 'u8[8192]{0}', space=vmem, size = 0x2000, scoped, tag = 'input window, operand 0']
    #allocation3 [shape = 's32[2]{0}', space=sflag, size = 0x8, scoped, tag = 'scoped memory for tpu_custom_call.1']
    #allocation4 [shape = 's32[2]{0}', space=sflag, size = 0x8, scoped, tag = 'scoped memory for tpu_custom_call.1']
    #allocation5 [shape = 'u8[8192]{0}', space=vmem, size = 0x2000, scoped, tag = 'input window, operand 1']
    #allocation6 [shape = 's32[2]{0}', space=sflag, size = 0x8, scoped, tag = 'scoped memory for tpu_custom_call.1']
    #allocation7 [shape = 'u8[1024]{0}', space=vmem, size = 0x400, scoped, tag = 'input window, operand 5, single buffered']
    #allocation8 [shape = 'u8[1024]{0}', space=vmem, size = 0x400, scoped, tag = 'input window, operand 6, single buffered']
    #allocation9 [shape = 's32[1]{0}', space=sflag, size = 0x4, scoped, tag = 'scoped memory for tpu_custom_call.1']
    #allocation10 [shape = 'u8[1024]{0}', space=vmem, size = 0x400, scoped, tag = 'input window, operand 7, single buffered']
    #allocation11 [shape = 'u8[1024]{0}', space=vmem, size = 0x400, scoped, tag = 'input window, operand 9, single buffered']
    #allocation12 [shape = 's32[1]{0}', space=sflag, size = 0x4, scoped, tag = 'scoped memory for tpu_custom_call.1']
    #allocation13 [shape = 'u8[1024]{0}', space=vmem, size = 0x400, scoped, tag = 'input window, operand 11, single buffered']
    #allocation14 [shape = 'u8[1024]{0}', space=vmem, size = 0x400, scoped, tag = 'input window, operand 12, single buffered']
    #allocation15 [shape = 's32[1]{0}', space=sflag, size = 0x4, scoped, tag = 'scoped memory for tpu_custom_call.1']
    #allocation16 [shape = 'u8[1024]{0}', space=vmem, size = 0x400, scoped, tag = 'input window, operand 13, single buffered']
    #allocation17 [shape = 'u8[1024]{0}', space=vmem, size = 0x400, scoped, tag = 'input window, operand 15, single buffered']
    #allocation18 [shape = 's32[1]{0}', space=sflag, size = 0x4, scoped, tag = 'scoped memory for tpu_custom_call.1']
    #allocation19 [shape = 'u8[1024]{0}', space=vmem, size = 0x400, scoped, tag = 'input window, operand 17, single buffered']
    #allocation20 [shape = 'u8[1024]{0}', space=vmem, size = 0x400, scoped, tag = 'input window, operand 18, single buffered']
    #allocation21 [shape = 's32[1]{0}', space=sflag, size = 0x4, scoped, tag = 'scoped memory for tpu_custom_call.1']
    #allocation22 [shape = 'u8[1024]{0}', space=vmem, size = 0x400, scoped, tag = 'input window, operand 19, single buffered']
    #allocation23 [shape = 'u8[1024]{0}', space=vmem, size = 0x400, scoped, tag = 'input window, operand 21, single buffered']
    #allocation24 [shape = 's32[1]{0}', space=sflag, size = 0x4, scoped, tag = 'scoped memory for tpu_custom_call.1']
    #allocation25 [shape = 'u8[32768]{0}', space=vmem, size = 0x8000, scoped, tag = 'input window, operand 22, single buffered']
    #allocation26 [shape = 'u8[1024]{0}', space=vmem, size = 0x400, scoped, tag = 'input window, operand 23, single buffered']
    #allocation27 [shape = 's32[1]{0}', space=sflag, size = 0x4, scoped, tag = 'scoped memory for tpu_custom_call.1']
    #allocation28 [shape = 'u8[32768]{0}', space=vmem, size = 0x8000, scoped, tag = 'input window, operand 24, single buffered']
    #allocation29 [shape = 'u8[1024]{0}', space=vmem, size = 0x400, scoped, tag = 'input window, operand 25, single buffered']
    #allocation30 [shape = 's32[1]{0}', space=sflag, size = 0x4, scoped, tag = 'scoped memory for tpu_custom_call.1']
    #allocation31 [shape = 'u8[1024]{0}', space=vmem, size = 0x400, scoped, tag = 'input window, operand 26, single buffered']
    #allocation32 [shape = 'u8[1024]{0}', space=vmem, size = 0x400, scoped, tag = 'input window, operand 27, single buffered']
    #allocation33 [shape = 's32[1]{0}', space=sflag, size = 0x4, scoped, tag = 'scoped memory for tpu_custom_call.1']
    #allocation34 [shape = 'u8[32768]{0}', space=vmem, size = 0x8000, scoped, tag = 'input window, operand 28, single buffered']
    #allocation35 [shape = 'u8[8192]{0}', space=vmem, size = 0x2000, scoped, tag = 'output window, operand 0']
    %78 = vsyncpa [#allocation3], 0
    %s79 = scalar_lea.sflag [#allocation3], 1
    %80 = vsyncpa %s79, 0
    %81 = vsyncpa [#allocation6], 0
    %s82 = scalar_lea.sflag [#allocation6], 1
    %83 = vsyncpa %s82, 0
    %84 = vsyncpa [#allocation9], 0
    %85 = vsyncpa [#allocation12], 0
    %86 = vsyncpa [#allocation15], 0
    %87 = vsyncpa [#allocation18], 0
    %88 = vsyncpa [#allocation21], 0
    %89 = vsyncpa [#allocation24], 0
    %90 = vsyncpa [#allocation27], 0
    %91 = vsyncpa [#allocation30], 0
    %92 = vsyncpa [#allocation33], 0
    %93 = vsyncpa [#allocation4], 0
    %s94 = scalar_lea.sflag [#allocation4], 1
    %95 = vsyncpa %s94, 0
    loop: start=0, step=1, limit=4
    $region2: #{tpu_custom_call.1} parent=1 // loop_pre_header
      _
    $region3: #{tpu_custom_call.1} parent=1 // loop_header
      %s97 = sphi 0, %s101
      %p98 = scmp.ge.s32.totalorder %s97, 4
      %s107 = sphi 0, %s109
      %s110 = sphi 0, %s107
      %s111 = sphi 0, %s110
      %s127 = sphi 0, %s111
      %s133 = sphi 0, %s135
      %s136 = sphi 0, %s133
      %s137 = sphi 0, %s136
      %s153 = sphi 0, %s137
      %s157 = sphi 0, %s157
      %s159 = sphi 0, %s157
      %s160 = sphi 0, %s159
      %s174 = sphi 0, %s160
      %s178 = sphi 0, %s178
      %s180 = sphi 0, %s178
      %s181 = sphi 0, %s180
      %s195 = sphi 0, %s181
      %s199 = sphi 0, %s199
      %s201 = sphi 0, %s199
      %s202 = sphi 0, %s201
      %s216 = sphi 0, %s202
      %s220 = sphi 0, %s220
      %s222 = sphi 0, %s220
      %s223 = sphi 0, %s222
      %s237 = sphi 0, %s223
      %s241 = sphi 0, %s241
      %s243 = sphi 0, %s241
      %s244 = sphi 0, %s243
      %s258 = sphi 0, %s244
      %s262 = sphi 0, %s262
      %s264 = sphi 0, %s262
      %s265 = sphi 0, %s264
      %s279 = sphi 0, %s265
      %s283 = sphi 0, %s283
      %s285 = sphi 0, %s283
      %s286 = sphi 0, %s285
      %s300 = sphi 0, %s286
      %s304 = sphi 0, %s304
      %s306 = sphi 0, %s304
      %s307 = sphi 0, %s306
      %s321 = sphi 0, %s307
      %s325 = sphi 0, %s325
      %s327 = sphi 0, %s325
      %s328 = sphi 0, %s327
      %s342 = sphi 0, %s328
      %s346 = sphi 0, %s346
      %s348 = sphi 0, %s346
      %s349 = sphi 0, %s348
      %s363 = sphi 0, %s349
      %s367 = sphi 0, %s367
      %s369 = sphi 0, %s367
      %s370 = sphi 0, %s369
      %s384 = sphi 0, %s370
      %s388 = sphi 0, %s388
      %s390 = sphi 0, %s388
      %s391 = sphi 0, %s390
      %s405 = sphi 0, %s391
      %s409 = sphi 0, %s409
      %s411 = sphi 0, %s409
      %s412 = sphi 0, %s411
      %s426 = sphi 0, %s412
      %s430 = sphi 0, %s430
      %s432 = sphi 0, %s430
      %s433 = sphi 0, %s432
      %s447 = sphi 0, %s433
      %s451 = sphi 0, %s451
      %s453 = sphi 0, %s451
      %s454 = sphi 0, %s453
      %s468 = sphi 0, %s454
      %s472 = sphi 0, %s472
      %s474 = sphi 0, %s472
      %s475 = sphi 0, %s474
      %s489 = sphi 0, %s475
      %s493 = sphi 0, %s493
      %s495 = sphi 0, %s493
      %s496 = sphi 0, %s495
      %s510 = sphi 0, %s496
      %s514 = sphi 0, %s514
      %s516 = sphi 0, %s514
      %s517 = sphi 0, %s516
      %s531 = sphi 0, %s517
      %s535 = sphi 0, %s535
      %s537 = sphi 0, %s535
      %s538 = sphi 0, %s537
      %s552 = sphi 0, %s538
      %s556 = sphi 0, %s556
      %s558 = sphi 0, %s556
      %s559 = sphi 0, %s558
      %s573 = sphi 0, %s559
      %s577 = sphi 0, %s577
      %s579 = sphi 0, %s577
      %s580 = sphi 0, %s579
      %s594 = sphi 0, %s580
      %s598 = sphi 0, %s598
      %s600 = sphi 0, %s598
      %s601 = sphi 0, %s600
      %s615 = sphi 0, %s601
      %s619 = sphi 0, %s619
      %s621 = sphi 0, %s619
      %s622 = sphi 0, %s621
      %s636 = sphi 0, %s622
      %s640 = sphi 0, %s640
      %s642 = sphi 0, %s640
      %s643 = sphi 0, %s642
      %s657 = sphi 0, %s643
      %s661 = sphi 0, %s661
      %s663 = sphi 0, %s661
      %s664 = sphi 0, %s663
      %s678 = sphi 0, %s664
      %s682 = sphi 0, %s682
      %s684 = sphi 0, %s682
      %s685 = sphi 0, %s684
      %s699 = sphi 0, %s685
      %s703 = sphi 0, %s703
      %s705 = sphi 0, %s703
      %s706 = sphi 0, %s705
      %s720 = sphi 0, %s706
      %s724 = sphi 0, %s724
      %s726 = sphi 0, %s724
      %s727 = sphi 0, %s726
      %s741 = sphi 0, %s727
      %s745 = sphi 0, %s745
      %s747 = sphi 0, %s745
      %s748 = sphi 0, %s747
      %s762 = sphi 0, %s748
      %s766 = sphi 0, %s766
      %s768 = sphi 0, %s766
      %s769 = sphi 0, %s768
      %s783 = sphi 0, %s769
      %s787 = sphi 0, %s787
      %s789 = sphi 0, %s787
      %s790 = sphi 0, %s789
      %s804 = sphi 0, %s790
      %s808 = sphi 0, %s808
      %s810 = sphi 0, %s808
      %s811 = sphi 0, %s810
      %s825 = sphi 0, %s811
      %s829 = sphi 0, %s829
      %s831 = sphi 0, %s829
      %s832 = sphi 0, %s831
      %s846 = sphi 0, %s832
      %s850 = sphi 0, %s850
      %s852 = sphi 0, %s850
      %s853 = sphi 0, %s852
      %s867 = sphi 0, %s853
      %s873 = sphi 0, %s875
      %s876 = sphi 0, %s873
      %s877 = sphi 0, %s876
      %s893 = sphi 0, %s877
    $region4: #{tpu_custom_call.1} parent=1 // loop_header_branch
      %100 = sbr.rel (%p98) target = $region8
    $region5: #{tpu_custom_call.1} parent=1 // loop_body
      %s102 = ssub.s32 %s97, 1
      %s103 = ssub.s32 %s97, 2
      %s104 = sadd.s32 %s97, 1
      %s105 = ssub.s32 %s97, %s104
      %p106 = scmp.eq.s32.totalorder %s105, 0
      %s108 = sadd.s32 %s107, 1
      %s109 = scalar_select %p106, %s107, %s108
      %p112 = pneg %p106
      %p113 = scmp.eq.s32.totalorder %s97, 1
      %p114 = por %p112, %p113
      %p115 = scmp.ne.s32.totalorder %s107, %s110
      %p116 = scmp.eq.s32.totalorder %s97, 0
      %p117 = por %p115, %p116
      %p118 = scmp.ne.s32.totalorder %s107, %s110
      %p119 = scmp.eq.s32.totalorder %s102, 1
      %p120 = por %p118, %p119
      %p121 = scmp.ne.s32.totalorder %s110, %s111
      %p122 = scmp.eq.s32.totalorder %s102, 0
      %p123 = por %p121, %p122
      %p124 = scmp.ne.s32.totalorder %s110, %s111
      %p125 = scmp.eq.s32.totalorder %s103, 1
      %p126 = por %p124, %p125
      %p128 = scmp.ne.s32.totalorder %s111, %s127
      %p129 = scmp.eq.s32.totalorder %s103, 0
      %p130 = por %p128, %p129
      %s131 = ssub.s32 %s97, %s104
      %p132 = scmp.eq.s32.totalorder %s131, 0
      %s134 = sadd.s32 %s133, 1
      %s135 = scalar_select %p132, %s133, %s134
      %p138 = pneg %p132
      %p139 = scmp.eq.s32.totalorder %s97, 1
      %p140 = por %p138, %p139
      %p141 = scmp.ne.s32.totalorder %s133, %s136
      %p142 = scmp.eq.s32.totalorder %s97, 0
      %p143 = por %p141, %p142
      %p144 = scmp.ne.s32.totalorder %s133, %s136
      %p145 = scmp.eq.s32.totalorder %s102, 1
      %p146 = por %p144, %p145
      %p147 = scmp.ne.s32.totalorder %s136, %s137
      %p148 = scmp.eq.s32.totalorder %s102, 0
      %p149 = por %p147, %p148
      %p150 = scmp.ne.s32.totalorder %s136, %s137
      %p151 = scmp.eq.s32.totalorder %s103, 1
      %p152 = por %p150, %p151
      %p154 = scmp.ne.s32.totalorder %s137, %s153
      %p155 = scmp.eq.s32.totalorder %s103, 0
      %p156 = por %p154, %p155
      %s158 = sadd.s32 %s157, 1
      %p161 = scmp.eq.s32.totalorder %s97, 1
      %p162 = scmp.ne.s32.totalorder %s157, %s159
      %p163 = scmp.eq.s32.totalorder %s97, 0
      %p164 = por %p162, %p163
      %p165 = scmp.ne.s32.totalorder %s157, %s159
      %p166 = scmp.eq.s32.totalorder %s102, 1
      %p167 = por %p165, %p166
      %p168 = scmp.ne.s32.totalorder %s159, %s160
      %p169 = scmp.eq.s32.totalorder %s102, 0
      %p170 = por %p168, %p169
      %p171 = scmp.ne.s32.totalorder %s159, %s160
      %p172 = scmp.eq.s32.totalorder %s103, 1
      %p173 = por %p171, %p172
      %p175 = scmp.ne.s32.totalorder %s160, %s174
      %p176 = scmp.eq.s32.totalorder %s103, 0
      %p177 = por %p175, %p176
      %s179 = sadd.s32 %s178, 1
      %p182 = scmp.eq.s32.totalorder %s97, 1
      %p183 = scmp.ne.s32.totalorder %s178, %s180
      %p184 = scmp.eq.s32.totalorder %s97, 0
      %p185 = por %p183, %p184
      %p186 = scmp.ne.s32.totalorder %s178, %s180
      %p187 = scmp.eq.s32.totalorder %s102, 1
      %p188 = por %p186, %p187
      %p189 = scmp.ne.s32.totalorder %s180, %s181
      %p190 = scmp.eq.s32.totalorder %s102, 0
      %p191 = por %p189, %p190
      %p192 = scmp.ne.s32.totalorder %s180, %s181
      %p193 = scmp.eq.s32.totalorder %s103, 1
      %p194 = por %p192, %p193
      %p196 = scmp.ne.s32.totalorder %s181, %s195
      %p197 = scmp.eq.s32.totalorder %s103, 0
      %p198 = por %p196, %p197
      %s200 = sadd.s32 %s199, 1
      %p203 = scmp.eq.s32.totalorder %s97, 1
      %p204 = scmp.ne.s32.totalorder %s199, %s201
      %p205 = scmp.eq.s32.totalorder %s97, 0
      %p206 = por %p204, %p205
      %p207 = scmp.ne.s32.totalorder %s199, %s201
      %p208 = scmp.eq.s32.totalorder %s102, 1
      %p209 = por %p207, %p208
      %p210 = scmp.ne.s32.totalorder %s201, %s202
      %p211 = scmp.eq.s32.totalorder %s102, 0
      %p212 = por %p210, %p211
      %p213 = scmp.ne.s32.totalorder %s201, %s202
      %p214 = scmp.eq.s32.totalorder %s103, 1
      %p215 = por %p213, %p214
      %p217 = scmp.ne.s32.totalorder %s202, %s216
      %p218 = scmp.eq.s32.totalorder %s103, 0
      %p219 = por %p217, %p218
      %s221 = sadd.s32 %s220, 1
      %p224 = scmp.eq.s32.totalorder %s97, 1
      %p225 = scmp.ne.s32.totalorder %s220, %s222
      %p226 = scmp.eq.s32.totalorder %s97, 0
      %p227 = por %p225, %p226
      %p228 = scmp.ne.s32.totalorder %s220, %s222
      %p229 = scmp.eq.s32.totalorder %s102, 1
      %p230 = por %p228, %p229
      %p231 = scmp.ne.s32.totalorder %s222, %s223
      %p232 = scmp.eq.s32.totalorder %s102, 0
      %p233 = por %p231, %p232
      %p234 = scmp.ne.s32.totalorder %s222, %s223
      %p235 = scmp.eq.s32.totalorder %s103, 1
      %p236 = por %p234, %p235
      %p238 = scmp.ne.s32.totalorder %s223, %s237
      %p239 = scmp.eq.s32.totalorder %s103, 0
      %p240 = por %p238, %p239
      %s242 = sadd.s32 %s241, 1
      %p245 = scmp.eq.s32.totalorder %s97, 1
      %p246 = scmp.ne.s32.totalorder %s241, %s243
      %p247 = scmp.eq.s32.totalorder %s97, 0
      %p248 = por %p246, %p247
      %p249 = scmp.ne.s32.totalorder %s241, %s243
      %p250 = scmp.eq.s32.totalorder %s102, 1
      %p251 = por %p249, %p250
      %p252 = scmp.ne.s32.totalorder %s243, %s244
      %p253 = scmp.eq.s32.totalorder %s102, 0
      %p254 = por %p252, %p253
      %p255 = scmp.ne.s32.totalorder %s243, %s244
      %p256 = scmp.eq.s32.totalorder %s103, 1
      %p257 = por %p255, %p256
      %p259 = scmp.ne.s32.totalorder %s244, %s258
      %p260 = scmp.eq.s32.totalorder %s103, 0
      %p261 = por %p259, %p260
      %s263 = sadd.s32 %s262, 1
      %p266 = scmp.eq.s32.totalorder %s97, 1
      %p267 = scmp.ne.s32.totalorder %s262, %s264
      %p268 = scmp.eq.s32.totalorder %s97, 0
      %p269 = por %p267, %p268
      %p270 = scmp.ne.s32.totalorder %s262, %s264
      %p271 = scmp.eq.s32.totalorder %s102, 1
      %p272 = por %p270, %p271
      %p273 = scmp.ne.s32.totalorder %s264, %s265
      %p274 = scmp.eq.s32.totalorder %s102, 0
      %p275 = por %p273, %p274
      %p276 = scmp.ne.s32.totalorder %s264, %s265
      %p277 = scmp.eq.s32.totalorder %s103, 1
      %p278 = por %p276, %p277
      %p280 = scmp.ne.s32.totalorder %s265, %s279
      %p281 = scmp.eq.s32.totalorder %s103, 0
      %p282 = por %p280, %p281
      %s284 = sadd.s32 %s283, 1
      %p287 = scmp.eq.s32.totalorder %s97, 1
      %p288 = scmp.ne.s32.totalorder %s283, %s285
      %p289 = scmp.eq.s32.totalorder %s97, 0
      %p290 = por %p288, %p289
      %p291 = scmp.ne.s32.totalorder %s283, %s285
      %p292 = scmp.eq.s32.totalorder %s102, 1
      %p293 = por %p291, %p292
      %p294 = scmp.ne.s32.totalorder %s285, %s286
      %p295 = scmp.eq.s32.totalorder %s102, 0
      %p296 = por %p294, %p295
      %p297 = scmp.ne.s32.totalorder %s285, %s286
      %p298 = scmp.eq.s32.totalorder %s103, 1
      %p299 = por %p297, %p298
      %p301 = scmp.ne.s32.totalorder %s286, %s300
      %p302 = scmp.eq.s32.totalorder %s103, 0
      %p303 = por %p301, %p302
      %s305 = sadd.s32 %s304, 1
      %p308 = scmp.eq.s32.totalorder %s97, 1
      %p309 = scmp.ne.s32.totalorder %s304, %s306
      %p310 = scmp.eq.s32.totalorder %s97, 0
      %p311 = por %p309, %p310
      %p312 = scmp.ne.s32.totalorder %s304, %s306
      %p313 = scmp.eq.s32.totalorder %s102, 1
      %p314 = por %p312, %p313
      %p315 = scmp.ne.s32.totalorder %s306, %s307
      %p316 = scmp.eq.s32.totalorder %s102, 0
      %p317 = por %p315, %p316
      %p318 = scmp.ne.s32.totalorder %s306, %s307
      %p319 = scmp.eq.s32.totalorder %s103, 1
      %p320 = por %p318, %p319
      %p322 = scmp.ne.s32.totalorder %s307, %s321
      %p323 = scmp.eq.s32.totalorder %s103, 0
      %p324 = por %p322, %p323
      %s326 = sadd.s32 %s325, 1
      %p329 = scmp.eq.s32.totalorder %s97, 1
      %p330 = scmp.ne.s32.totalorder %s325, %s327
      %p331 = scmp.eq.s32.totalorder %s97, 0
      %p332 = por %p330, %p331
      %p333 = scmp.ne.s32.totalorder %s325, %s327
      %p334 = scmp.eq.s32.totalorder %s102, 1
      %p335 = por %p333, %p334
      %p336 = scmp.ne.s32.totalorder %s327, %s328
      %p337 = scmp.eq.s32.totalorder %s102, 0
      %p338 = por %p336, %p337
      %p339 = scmp.ne.s32.totalorder %s327, %s328
      %p340 = scmp.eq.s32.totalorder %s103, 1
      %p341 = por %p339, %p340
      %p343 = scmp.ne.s32.totalorder %s328, %s342
      %p344 = scmp.eq.s32.totalorder %s103, 0
      %p345 = por %p343, %p344
      %s347 = sadd.s32 %s346, 1
      %p350 = scmp.eq.s32.totalorder %s97, 1
      %p351 = scmp.ne.s32.totalorder %s346, %s348
      %p352 = scmp.eq.s32.totalorder %s97, 0
      %p353 = por %p351, %p352
      %p354 = scmp.ne.s32.totalorder %s346, %s348
      %p355 = scmp.eq.s32.totalorder %s102, 1
      %p356 = por %p354, %p355
      %p357 = scmp.ne.s32.totalorder %s348, %s349
      %p358 = scmp.eq.s32.totalorder %s102, 0
      %p359 = por %p357, %p358
      %p360 = scmp.ne.s32.totalorder %s348, %s349
      %p361 = scmp.eq.s32.totalorder %s103, 1
      %p362 = por %p360, %p361
      %p364 = scmp.ne.s32.totalorder %s349, %s363
      %p365 = scmp.eq.s32.totalorder %s103, 0
      %p366 = por %p364, %p365
      %s368 = sadd.s32 %s367, 1
      %p371 = scmp.eq.s32.totalorder %s97, 1
      %p372 = scmp.ne.s32.totalorder %s367, %s369
      %p373 = scmp.eq.s32.totalorder %s97, 0
      %p374 = por %p372, %p373
      %p375 = scmp.ne.s32.totalorder %s367, %s369
      %p376 = scmp.eq.s32.totalorder %s102, 1
      %p377 = por %p375, %p376
      %p378 = scmp.ne.s32.totalorder %s369, %s370
      %p379 = scmp.eq.s32.totalorder %s102, 0
      %p380 = por %p378, %p379
      %p381 = scmp.ne.s32.totalorder %s369, %s370
      %p382 = scmp.eq.s32.totalorder %s103, 1
      %p383 = por %p381, %p382
      %p385 = scmp.ne.s32.totalorder %s370, %s384
      %p386 = scmp.eq.s32.totalorder %s103, 0
      %p387 = por %p385, %p386
      %s389 = sadd.s32 %s388, 1
      %p392 = scmp.eq.s32.totalorder %s97, 1
      %p393 = scmp.ne.s32.totalorder %s388, %s390
      %p394 = scmp.eq.s32.totalorder %s97, 0
      %p395 = por %p393, %p394
      %p396 = scmp.ne.s32.totalorder %s388, %s390
      %p397 = scmp.eq.s32.totalorder %s102, 1
      %p398 = por %p396, %p397
      %p399 = scmp.ne.s32.totalorder %s390, %s391
      %p400 = scmp.eq.s32.totalorder %s102, 0
      %p401 = por %p399, %p400
      %p402 = scmp.ne.s32.totalorder %s390, %s391
      %p403 = scmp.eq.s32.totalorder %s103, 1
      %p404 = por %p402, %p403
      %p406 = scmp.ne.s32.totalorder %s391, %s405
      %p407 = scmp.eq.s32.totalorder %s103, 0
      %p408 = por %p406, %p407
      %s410 = sadd.s32 %s409, 1
      %p413 = scmp.eq.s32.totalorder %s97, 1
      %p414 = scmp.ne.s32.totalorder %s409, %s411
      %p415 = scmp.eq.s32.totalorder %s97, 0
      %p416 = por %p414, %p415
      %p417 = scmp.ne.s32.totalorder %s409, %s411
      %p418 = scmp.eq.s32.totalorder %s102, 1
      %p419 = por %p417, %p418
      %p420 = scmp.ne.s32.totalorder %s411, %s412
      %p421 = scmp.eq.s32.totalorder %s102, 0
      %p422 = por %p420, %p421
      %p423 = scmp.ne.s32.totalorder %s411, %s412
      %p424 = scmp.eq.s32.totalorder %s103, 1
      %p425 = por %p423, %p424
      %p427 = scmp.ne.s32.totalorder %s412, %s426
      %p428 = scmp.eq.s32.totalorder %s103, 0
      %p429 = por %p427, %p428
      %s431 = sadd.s32 %s430, 1
      %p434 = scmp.eq.s32.totalorder %s97, 1
      %p435 = scmp.ne.s32.totalorder %s430, %s432
      %p436 = scmp.eq.s32.totalorder %s97, 0
      %p437 = por %p435, %p436
      %p438 = scmp.ne.s32.totalorder %s430, %s432
      %p439 = scmp.eq.s32.totalorder %s102, 1
      %p440 = por %p438, %p439
      %p441 = scmp.ne.s32.totalorder %s432, %s433
      %p442 = scmp.eq.s32.totalorder %s102, 0
      %p443 = por %p441, %p442
      %p444 = scmp.ne.s32.totalorder %s432, %s433
      %p445 = scmp.eq.s32.totalorder %s103, 1
      %p446 = por %p444, %p445
      %p448 = scmp.ne.s32.totalorder %s433, %s447
      %p449 = scmp.eq.s32.totalorder %s103, 0
      %p450 = por %p448, %p449
      %s452 = sadd.s32 %s451, 1
      %p455 = scmp.eq.s32.totalorder %s97, 1
      %p456 = scmp.ne.s32.totalorder %s451, %s453
      %p457 = scmp.eq.s32.totalorder %s97, 0
      %p458 = por %p456, %p457
      %p459 = scmp.ne.s32.totalorder %s451, %s453
      %p460 = scmp.eq.s32.totalorder %s102, 1
      %p461 = por %p459, %p460
      %p462 = scmp.ne.s32.totalorder %s453, %s454
      %p463 = scmp.eq.s32.totalorder %s102, 0
      %p464 = por %p462, %p463
      %p465 = scmp.ne.s32.totalorder %s453, %s454
      %p466 = scmp.eq.s32.totalorder %s103, 1
      %p467 = por %p465, %p466
      %p469 = scmp.ne.s32.totalorder %s454, %s468
      %p470 = scmp.eq.s32.totalorder %s103, 0
      %p471 = por %p469, %p470
      %s473 = sadd.s32 %s472, 1
      %p476 = scmp.eq.s32.totalorder %s97, 1
      %p477 = scmp.ne.s32.totalorder %s472, %s474
      %p478 = scmp.eq.s32.totalorder %s97, 0
      %p479 = por %p477, %p478
      %p480 = scmp.ne.s32.totalorder %s472, %s474
      %p481 = scmp.eq.s32.totalorder %s102, 1
      %p482 = por %p480, %p481
      %p483 = scmp.ne.s32.totalorder %s474, %s475
      %p484 = scmp.eq.s32.totalorder %s102, 0
      %p485 = por %p483, %p484
      %p486 = scmp.ne.s32.totalorder %s474, %s475
      %p487 = scmp.eq.s32.totalorder %s103, 1
      %p488 = por %p486, %p487
      %p490 = scmp.ne.s32.totalorder %s475, %s489
      %p491 = scmp.eq.s32.totalorder %s103, 0
      %p492 = por %p490, %p491
      %s494 = sadd.s32 %s493, 1
      %p497 = scmp.eq.s32.totalorder %s97, 1
      %p498 = scmp.ne.s32.totalorder %s493, %s495
      %p499 = scmp.eq.s32.totalorder %s97, 0
      %p500 = por %p498, %p499
      %p501 = scmp.ne.s32.totalorder %s493, %s495
      %p502 = scmp.eq.s32.totalorder %s102, 1
      %p503 = por %p501, %p502
      %p504 = scmp.ne.s32.totalorder %s495, %s496
      %p505 = scmp.eq.s32.totalorder %s102, 0
      %p506 = por %p504, %p505
      %p507 = scmp.ne.s32.totalorder %s495, %s496
      %p508 = scmp.eq.s32.totalorder %s103, 1
      %p509 = por %p507, %p508
      %p511 = scmp.ne.s32.totalorder %s496, %s510
      %p512 = scmp.eq.s32.totalorder %s103, 0
      %p513 = por %p511, %p512
      %s515 = sadd.s32 %s514, 1
      %p518 = scmp.eq.s32.totalorder %s97, 1
      %p519 = scmp.ne.s32.totalorder %s514, %s516
      %p520 = scmp.eq.s32.totalorder %s97, 0
      %p521 = por %p519, %p520
      %p522 = scmp.ne.s32.totalorder %s514, %s516
      %p523 = scmp.eq.s32.totalorder %s102, 1
      %p524 = por %p522, %p523
      %p525 = scmp.ne.s32.totalorder %s516, %s517
      %p526 = scmp.eq.s32.totalorder %s102, 0
      %p527 = por %p525, %p526
      %p528 = scmp.ne.s32.totalorder %s516, %s517
      %p529 = scmp.eq.s32.totalorder %s103, 1
      %p530 = por %p528, %p529
      %p532 = scmp.ne.s32.totalorder %s517, %s531
      %p533 = scmp.eq.s32.totalorder %s103, 0
      %p534 = por %p532, %p533
      %s536 = sadd.s32 %s535, 1
      %p539 = scmp.eq.s32.totalorder %s97, 1
      %p540 = scmp.ne.s32.totalorder %s535, %s537
      %p541 = scmp.eq.s32.totalorder %s97, 0
      %p542 = por %p540, %p541
      %p543 = scmp.ne.s32.totalorder %s535, %s537
      %p544 = scmp.eq.s32.totalorder %s102, 1
      %p545 = por %p543, %p544
      %p546 = scmp.ne.s32.totalorder %s537, %s538
      %p547 = scmp.eq.s32.totalorder %s102, 0
      %p548 = por %p546, %p547
      %p549 = scmp.ne.s32.totalorder %s537, %s538
      %p550 = scmp.eq.s32.totalorder %s103, 1
      %p551 = por %p549, %p550
      %p553 = scmp.ne.s32.totalorder %s538, %s552
      %p554 = scmp.eq.s32.totalorder %s103, 0
      %p555 = por %p553, %p554
      %s557 = sadd.s32 %s556, 1
      %p560 = scmp.eq.s32.totalorder %s97, 1
      %p561 = scmp.ne.s32.totalorder %s556, %s558
      %p562 = scmp.eq.s32.totalorder %s97, 0
      %p563 = por %p561, %p562
      %p564 = scmp.ne.s32.totalorder %s556, %s558
      %p565 = scmp.eq.s32.totalorder %s102, 1
      %p566 = por %p564, %p565
      %p567 = scmp.ne.s32.totalorder %s558, %s559
      %p568 = scmp.eq.s32.totalorder %s102, 0
      %p569 = por %p567, %p568
      %p570 = scmp.ne.s32.totalorder %s558, %s559
      %p571 = scmp.eq.s32.totalorder %s103, 1
      %p572 = por %p570, %p571
      %p574 = scmp.ne.s32.totalorder %s559, %s573
      %p575 = scmp.eq.s32.totalorder %s103, 0
      %p576 = por %p574, %p575
      %s578 = sadd.s32 %s577, 1
      %p581 = scmp.eq.s32.totalorder %s97, 1
      %p582 = scmp.ne.s32.totalorder %s577, %s579
      %p583 = scmp.eq.s32.totalorder %s97, 0
      %p584 = por %p582, %p583
      %p585 = scmp.ne.s32.totalorder %s577, %s579
      %p586 = scmp.eq.s32.totalorder %s102, 1
      %p587 = por %p585, %p586
      %p588 = scmp.ne.s32.totalorder %s579, %s580
      %p589 = scmp.eq.s32.totalorder %s102, 0
      %p590 = por %p588, %p589
      %p591 = scmp.ne.s32.totalorder %s579, %s580
      %p592 = scmp.eq.s32.totalorder %s103, 1
      %p593 = por %p591, %p592
      %p595 = scmp.ne.s32.totalorder %s580, %s594
      %p596 = scmp.eq.s32.totalorder %s103, 0
      %p597 = por %p595, %p596
      %s599 = sadd.s32 %s598, 1
      %p602 = scmp.eq.s32.totalorder %s97, 1
      %p603 = scmp.ne.s32.totalorder %s598, %s600
      %p604 = scmp.eq.s32.totalorder %s97, 0
      %p605 = por %p603, %p604
      %p606 = scmp.ne.s32.totalorder %s598, %s600
      %p607 = scmp.eq.s32.totalorder %s102, 1
      %p608 = por %p606, %p607
      %p609 = scmp.ne.s32.totalorder %s600, %s601
      %p610 = scmp.eq.s32.totalorder %s102, 0
      %p611 = por %p609, %p610
      %p612 = scmp.ne.s32.totalorder %s600, %s601
      %p613 = scmp.eq.s32.totalorder %s103, 1
      %p614 = por %p612, %p613
      %p616 = scmp.ne.s32.totalorder %s601, %s615
      %p617 = scmp.eq.s32.totalorder %s103, 0
      %p618 = por %p616, %p617
      %s620 = sadd.s32 %s619, 1
      %p623 = scmp.eq.s32.totalorder %s97, 1
      %p624 = scmp.ne.s32.totalorder %s619, %s621
      %p625 = scmp.eq.s32.totalorder %s97, 0
      %p626 = por %p624, %p625
      %p627 = scmp.ne.s32.totalorder %s619, %s621
      %p628 = scmp.eq.s32.totalorder %s102, 1
      %p629 = por %p627, %p628
      %p630 = scmp.ne.s32.totalorder %s621, %s622
      %p631 = scmp.eq.s32.totalorder %s102, 0
      %p632 = por %p630, %p631
      %p633 = scmp.ne.s32.totalorder %s621, %s622
      %p634 = scmp.eq.s32.totalorder %s103, 1
      %p635 = por %p633, %p634
      %p637 = scmp.ne.s32.totalorder %s622, %s636
      %p638 = scmp.eq.s32.totalorder %s103, 0
      %p639 = por %p637, %p638
      %s641 = sadd.s32 %s640, 1
      %p644 = scmp.eq.s32.totalorder %s97, 1
      %p645 = scmp.ne.s32.totalorder %s640, %s642
      %p646 = scmp.eq.s32.totalorder %s97, 0
      %p647 = por %p645, %p646
      %p648 = scmp.ne.s32.totalorder %s640, %s642
      %p649 = scmp.eq.s32.totalorder %s102, 1
      %p650 = por %p648, %p649
      %p651 = scmp.ne.s32.totalorder %s642, %s643
      %p652 = scmp.eq.s32.totalorder %s102, 0
      %p653 = por %p651, %p652
      %p654 = scmp.ne.s32.totalorder %s642, %s643
      %p655 = scmp.eq.s32.totalorder %s103, 1
      %p656 = por %p654, %p655
      %p658 = scmp.ne.s32.totalorder %s643, %s657
      %p659 = scmp.eq.s32.totalorder %s103, 0
      %p660 = por %p658, %p659
      %s662 = sadd.s32 %s661, 1
      %p665 = scmp.eq.s32.totalorder %s97, 1
      %p666 = scmp.ne.s32.totalorder %s661, %s663
      %p667 = scmp.eq.s32.totalorder %s97, 0
      %p668 = por %p666, %p667
      %p669 = scmp.ne.s32.totalorder %s661, %s663
      %p670 = scmp.eq.s32.totalorder %s102, 1
      %p671 = por %p669, %p670
      %p672 = scmp.ne.s32.totalorder %s663, %s664
      %p673 = scmp.eq.s32.totalorder %s102, 0
      %p674 = por %p672, %p673
      %p675 = scmp.ne.s32.totalorder %s663, %s664
      %p676 = scmp.eq.s32.totalorder %s103, 1
      %p677 = por %p675, %p676
      %p679 = scmp.ne.s32.totalorder %s664, %s678
      %p680 = scmp.eq.s32.totalorder %s103, 0
      %p681 = por %p679, %p680
      %s683 = sadd.s32 %s682, 1
      %p686 = scmp.eq.s32.totalorder %s97, 1
      %p687 = scmp.ne.s32.totalorder %s682, %s684
      %p688 = scmp.eq.s32.totalorder %s97, 0
      %p689 = por %p687, %p688
      %p690 = scmp.ne.s32.totalorder %s682, %s684
      %p691 = scmp.eq.s32.totalorder %s102, 1
      %p692 = por %p690, %p691
      %p693 = scmp.ne.s32.totalorder %s684, %s685
      %p694 = scmp.eq.s32.totalorder %s102, 0
      %p695 = por %p693, %p694
      %p696 = scmp.ne.s32.totalorder %s684, %s685
      %p697 = scmp.eq.s32.totalorder %s103, 1
      %p698 = por %p696, %p697
      %p700 = scmp.ne.s32.totalorder %s685, %s699
      %p701 = scmp.eq.s32.totalorder %s103, 0
      %p702 = por %p700, %p701
      %s704 = sadd.s32 %s703, 1
      %p707 = scmp.eq.s32.totalorder %s97, 1
      %p708 = scmp.ne.s32.totalorder %s703, %s705
      %p709 = scmp.eq.s32.totalorder %s97, 0
      %p710 = por %p708, %p709
      %p711 = scmp.ne.s32.totalorder %s703, %s705
      %p712 = scmp.eq.s32.totalorder %s102, 1
      %p713 = por %p711, %p712
      %p714 = scmp.ne.s32.totalorder %s705, %s706
      %p715 = scmp.eq.s32.totalorder %s102, 0
      %p716 = por %p714, %p715
      %p717 = scmp.ne.s32.totalorder %s705, %s706
      %p718 = scmp.eq.s32.totalorder %s103, 1
      %p719 = por %p717, %p718
      %p721 = scmp.ne.s32.totalorder %s706, %s720
      %p722 = scmp.eq.s32.totalorder %s103, 0
      %p723 = por %p721, %p722
      %s725 = sadd.s32 %s724, 1
      %p728 = scmp.eq.s32.totalorder %s97, 1
      %p729 = scmp.ne.s32.totalorder %s724, %s726
      %p730 = scmp.eq.s32.totalorder %s97, 0
      %p731 = por %p729, %p730
      %p732 = scmp.ne.s32.totalorder %s724, %s726
      %p733 = scmp.eq.s32.totalorder %s102, 1
      %p734 = por %p732, %p733
      %p735 = scmp.ne.s32.totalorder %s726, %s727
      %p736 = scmp.eq.s32.totalorder %s102, 0
      %p737 = por %p735, %p736
      %p738 = scmp.ne.s32.totalorder %s726, %s727
      %p739 = scmp.eq.s32.totalorder %s103, 1
      %p740 = por %p738, %p739
      %p742 = scmp.ne.s32.totalorder %s727, %s741
      %p743 = scmp.eq.s32.totalorder %s103, 0
      %p744 = por %p742, %p743
      %s746 = sadd.s32 %s745, 1
      %p749 = scmp.eq.s32.totalorder %s97, 1
      %p750 = scmp.ne.s32.totalorder %s745, %s747
      %p751 = scmp.eq.s32.totalorder %s97, 0
      %p752 = por %p750, %p751
      %p753 = scmp.ne.s32.totalorder %s745, %s747
      %p754 = scmp.eq.s32.totalorder %s102, 1
      %p755 = por %p753, %p754
      %p756 = scmp.ne.s32.totalorder %s747, %s748
      %p757 = scmp.eq.s32.totalorder %s102, 0
      %p758 = por %p756, %p757
      %p759 = scmp.ne.s32.totalorder %s747, %s748
      %p760 = scmp.eq.s32.totalorder %s103, 1
      %p761 = por %p759, %p760
      %p763 = scmp.ne.s32.totalorder %s748, %s762
      %p764 = scmp.eq.s32.totalorder %s103, 0
      %p765 = por %p763, %p764
      %s767 = sadd.s32 %s766, 1
      %p770 = scmp.eq.s32.totalorder %s97, 1
      %p771 = scmp.ne.s32.totalorder %s766, %s768
      %p772 = scmp.eq.s32.totalorder %s97, 0
      %p773 = por %p771, %p772
      %p774 = scmp.ne.s32.totalorder %s766, %s768
      %p775 = scmp.eq.s32.totalorder %s102, 1
      %p776 = por %p774, %p775
      %p777 = scmp.ne.s32.totalorder %s768, %s769
      %p778 = scmp.eq.s32.totalorder %s102, 0
      %p779 = por %p777, %p778
      %p780 = scmp.ne.s32.totalorder %s768, %s769
      %p781 = scmp.eq.s32.totalorder %s103, 1
      %p782 = por %p780, %p781
      %p784 = scmp.ne.s32.totalorder %s769, %s783
      %p785 = scmp.eq.s32.totalorder %s103, 0
      %p786 = por %p784, %p785
      %s788 = sadd.s32 %s787, 1
      %p791 = scmp.eq.s32.totalorder %s97, 1
      %p792 = scmp.ne.s32.totalorder %s787, %s789
      %p793 = scmp.eq.s32.totalorder %s97, 0
      %p794 = por %p792, %p793
      %p795 = scmp.ne.s32.totalorder %s787, %s789
      %p796 = scmp.eq.s32.totalorder %s102, 1
      %p797 = por %p795, %p796
      %p798 = scmp.ne.s32.totalorder %s789, %s790
      %p799 = scmp.eq.s32.totalorder %s102, 0
      %p800 = por %p798, %p799
      %p801 = scmp.ne.s32.totalorder %s789, %s790
      %p802 = scmp.eq.s32.totalorder %s103, 1
      %p803 = por %p801, %p802
      %p805 = scmp.ne.s32.totalorder %s790, %s804
      %p806 = scmp.eq.s32.totalorder %s103, 0
      %p807 = por %p805, %p806
      %s809 = sadd.s32 %s808, 1
      %p812 = scmp.eq.s32.totalorder %s97, 1
      %p813 = scmp.ne.s32.totalorder %s808, %s810
      %p814 = scmp.eq.s32.totalorder %s97, 0
      %p815 = por %p813, %p814
      %p816 = scmp.ne.s32.totalorder %s808, %s810
      %p817 = scmp.eq.s32.totalorder %s102, 1
      %p818 = por %p816, %p817
      %p819 = scmp.ne.s32.totalorder %s810, %s811
      %p820 = scmp.eq.s32.totalorder %s102, 0
      %p821 = por %p819, %p820
      %p822 = scmp.ne.s32.totalorder %s810, %s811
      %p823 = scmp.eq.s32.totalorder %s103, 1
      %p824 = por %p822, %p823
      %p826 = scmp.ne.s32.totalorder %s811, %s825
      %p827 = scmp.eq.s32.totalorder %s103, 0
      %p828 = por %p826, %p827
      %s830 = sadd.s32 %s829, 1
      %p833 = scmp.eq.s32.totalorder %s97, 1
      %p834 = scmp.ne.s32.totalorder %s829, %s831
      %p835 = scmp.eq.s32.totalorder %s97, 0
      %p836 = por %p834, %p835
      %p837 = scmp.ne.s32.totalorder %s829, %s831
      %p838 = scmp.eq.s32.totalorder %s102, 1
      %p839 = por %p837, %p838
      %p840 = scmp.ne.s32.totalorder %s831, %s832
      %p841 = scmp.eq.s32.totalorder %s102, 0
      %p842 = por %p840, %p841
      %p843 = scmp.ne.s32.totalorder %s831, %s832
      %p844 = scmp.eq.s32.totalorder %s103, 1
      %p845 = por %p843, %p844
      %p847 = scmp.ne.s32.totalorder %s832, %s846
      %p848 = scmp.eq.s32.totalorder %s103, 0
      %p849 = por %p847, %p848
      %s851 = sadd.s32 %s850, 1
      %p854 = scmp.eq.s32.totalorder %s97, 1
      %p855 = scmp.ne.s32.totalorder %s850, %s852
      %p856 = scmp.eq.s32.totalorder %s97, 0
      %p857 = por %p855, %p856
      %p858 = scmp.ne.s32.totalorder %s850, %s852
      %p859 = scmp.eq.s32.totalorder %s102, 1
      %p860 = por %p858, %p859
      %p861 = scmp.ne.s32.totalorder %s852, %s853
      %p862 = scmp.eq.s32.totalorder %s102, 0
      %p863 = por %p861, %p862
      %p864 = scmp.ne.s32.totalorder %s852, %s853
      %p865 = scmp.eq.s32.totalorder %s103, 1
      %p866 = por %p864, %p865
      %p868 = scmp.ne.s32.totalorder %s853, %s867
      %p869 = scmp.eq.s32.totalorder %s103, 0
      %p870 = por %p868, %p869
      %s871 = ssub.s32 %s97, %s104
      %p872 = scmp.eq.s32.totalorder %s871, 0
      %s874 = sadd.s32 %s873, 1
      %s875 = scalar_select %p872, %s873, %s874
      %p878 = pneg %p872
      %p879 = scmp.eq.s32.totalorder %s97, 1
      %p880 = por %p878, %p879
      %p881 = scmp.ne.s32.totalorder %s873, %s876
      %p882 = scmp.eq.s32.totalorder %s97, 0
      %p883 = por %p881, %p882
      %p884 = scmp.ne.s32.totalorder %s873, %s876
      %p885 = scmp.eq.s32.totalorder %s102, 1
      %p886 = por %p884, %p885
      %p887 = scmp.ne.s32.totalorder %s876, %s877
      %p888 = scmp.eq.s32.totalorder %s102, 0
      %p889 = por %p887, %p888
      %p890 = scmp.ne.s32.totalorder %s876, %s877
      %p891 = scmp.eq.s32.totalorder %s103, 1
      %p892 = por %p890, %p891
      %p894 = scmp.ne.s32.totalorder %s877, %s893
      %p895 = scmp.eq.s32.totalorder %s103, 0
      %p896 = por %p894, %p895
      %p897 = scmp.le.s32.totalorder 1, %s97
      %p898 = scmp.lt.s32.totalorder %s97, 3
      %p899 = pnand %p897, %p898
      %p900 = pneg %p899
      // Predicated region
      $region9: #{tpu_custom_call.1} parent=5 // pred_check
        _
      $region10: #{tpu_custom_call.1} parent=5 // pred_check_branch
        %902 = sbr.rel (%p899) target = $region12
      $region11: #{tpu_custom_call.1} parent=5 // pred_region
        %s903 = ssub.s32 %s97, 1
        // Predicated region
        $region13: #{tpu_custom_call.1} parent=11 // pred_check
          %p904 = pneg %p170
        $region14: #{tpu_custom_call.1} parent=11 // pred_check_branch
          %906 = sbr.rel (%p904) target = $region16
        $region15: #{tpu_custom_call.1} parent=11 // pred_region
          _
        $region16: #{tpu_custom_call.1} parent=11 // pred_fallthru
          _
        // Predicated region
        $region17: #{tpu_custom_call.1} parent=11 // pred_check
          %p907 = pneg %p191
        $region18: #{tpu_custom_call.1} parent=11 // pred_check_branch
          %909 = sbr.rel (%p907) target = $region20
        $region19: #{tpu_custom_call.1} parent=11 // pred_region
          _
        $region20: #{tpu_custom_call.1} parent=11 // pred_fallthru
          _
        // Predicated region
        $region21: #{tpu_custom_call.1} parent=11 // pred_check
          %p910 = pneg %p212
        $region22: #{tpu_custom_call.1} parent=11 // pred_check_branch
          %912 = sbr.rel (%p910) target = $region24
        $region23: #{tpu_custom_call.1} parent=11 // pred_region
          _
        $region24: #{tpu_custom_call.1} parent=11 // pred_fallthru
          _
        // Predicated region
        $region25: #{tpu_custom_call.1} parent=11 // pred_check
          %p913 = pneg %p233
        $region26: #{tpu_custom_call.1} parent=11 // pred_check_branch
          %915 = sbr.rel (%p913) target = $region28
        $region27: #{tpu_custom_call.1} parent=11 // pred_region
          %s917 = ssub.s32 32, 32
          %918 = vsyncadd [#allocation6], %s917
          %s919 = sshll.u32 [#allocation7], 4
          %s920 = int_to_ptr.vmem [resolvable:$true] %s919
          %925 = dma.hbm_to_vmem [thread:$0]  %s11, 32, %s920, [#allocation6], 16, 16, 1
        $region28: #{tpu_custom_call.1} parent=11 // pred_fallthru
          _
        // Predicated region
        $region29: #{tpu_custom_call.1} parent=11 // pred_check
          %p926 = pneg %p254
        $region30: #{tpu_custom_call.1} parent=11 // pred_check_branch
          %928 = sbr.rel (%p926) target = $region32
        $region31: #{tpu_custom_call.1} parent=11 // pred_region
          %s930 = ssub.s32 32, 32
          %931 = vsyncadd [#allocation9], %s930
          %s932 = sshll.u32 [#allocation8], 4
          %s933 = int_to_ptr.vmem [resolvable:$true] %s932
          %938 = dma.hbm_to_vmem [thread:$0]  %s13, 32, %s933, [#allocation9], 16, 16, 1
        $region32: #{tpu_custom_call.1} parent=11 // pred_fallthru
          _
        // Predicated region
        $region33: #{tpu_custom_call.1} parent=11 // pred_check
          %p939 = pneg %p275
        $region34: #{tpu_custom_call.1} parent=11 // pred_check_branch
          %941 = sbr.rel (%p939) target = $region36
        $region35: #{tpu_custom_call.1} parent=11 // pred_region
          %s943 = ssub.s32 32, 32
          %944 = vsyncadd [#allocation9], %s943
          %s945 = sshll.u32 [#allocation10], 4
          %s946 = int_to_ptr.vmem [resolvable:$true] %s945
          %951 = dma.hbm_to_vmem [thread:$0]  %s15, 32, %s946, [#allocation9], 16, 16, 1
        $region36: #{tpu_custom_call.1} parent=11 // pred_fallthru
          _
        // Predicated region
        $region37: #{tpu_custom_call.1} parent=11 // pred_check
          %p952 = pneg %p296
        $region38: #{tpu_custom_call.1} parent=11 // pred_check_branch
          %954 = sbr.rel (%p952) target = $region40
        $region39: #{tpu_custom_call.1} parent=11 // pred_region
          _
        $region40: #{tpu_custom_call.1} parent=11 // pred_fallthru
          _
        // Predicated region
        $region41: #{tpu_custom_call.1} parent=11 // pred_check
          %p955 = pneg %p317
        $region42: #{tpu_custom_call.1} parent=11 // pred_check_branch
          %957 = sbr.rel (%p955) target = $region44
        $region43: #{tpu_custom_call.1} parent=11 // pred_region
          %s959 = ssub.s32 32, 32
          %960 = vsyncadd [#allocation12], %s959
          %s961 = sshll.u32 [#allocation11], 4
          %s962 = int_to_ptr.vmem [resolvable:$true] %s961
          %967 = dma.hbm_to_vmem [thread:$0]  %s19, 32, %s962, [#allocation12], 16, 16, 1
        $region44: #{tpu_custom_call.1} parent=11 // pred_fallthru
          _
        // Predicated region
        $region45: #{tpu_custom_call.1} parent=11 // pred_check
          %p968 = pneg %p338
        $region46: #{tpu_custom_call.1} parent=11 // pred_check_branch
          %970 = sbr.rel (%p968) target = $region48
        $region47: #{tpu_custom_call.1} parent=11 // pred_region
          _
        $region48: #{tpu_custom_call.1} parent=11 // pred_fallthru
          _
        // Predicated region
        $region49: #{tpu_custom_call.1} parent=11 // pred_check
          %p971 = pneg %p359
        $region50: #{tpu_custom_call.1} parent=11 // pred_check_branch
          %973 = sbr.rel (%p971) target = $region52
        $region51: #{tpu_custom_call.1} parent=11 // pred_region
          %s975 = ssub.s32 32, 32
          %976 = vsyncadd [#allocation12], %s975
          %s977 = sshll.u32 [#allocation13], 4
          %s978 = int_to_ptr.vmem [resolvable:$true] %s977
          %983 = dma.hbm_to_vmem [thread:$0]  %s23, 32, %s978, [#allocation12], 16, 16, 1
        $region52: #{tpu_custom_call.1} parent=11 // pred_fallthru
          _
        // Predicated region
        $region53: #{tpu_custom_call.1} parent=11 // pred_check
          %p984 = pneg %p380
        $region54: #{tpu_custom_call.1} parent=11 // pred_check_branch
          %986 = sbr.rel (%p984) target = $region56
        $region55: #{tpu_custom_call.1} parent=11 // pred_region
          %s988 = ssub.s32 32, 32
          %989 = vsyncadd [#allocation15], %s988
          %s990 = sshll.u32 [#allocation14], 4
          %s991 = int_to_ptr.vmem [resolvable:$true] %s990
          %996 = dma.hbm_to_vmem [thread:$0]  %s25, 32, %s991, [#allocation15], 16, 16, 1
        $region56: #{tpu_custom_call.1} parent=11 // pred_fallthru
          _
        // Predicated region
        $region57: #{tpu_custom_call.1} parent=11 // pred_check
          %p997 = pneg %p401
        $region58: #{tpu_custom_call.1} parent=11 // pred_check_branch
          %999 = sbr.rel (%p997) target = $region60
        $region59: #{tpu_custom_call.1} parent=11 // pred_region
          %s1001 = ssub.s32 32, 32
          %1002 = vsyncadd [#allocation15], %s1001
          %s1003 = sshll.u32 [#allocation16], 4
          %s1004 = int_to_ptr.vmem [resolvable:$true] %s1003
          %1009 = dma.hbm_to_vmem [thread:$0]  %s27, 32, %s1004, [#allocation15], 16, 16, 1
        $region60: #{tpu_custom_call.1} parent=11 // pred_fallthru
          _
        // Predicated region
        $region61: #{tpu_custom_call.1} parent=11 // pred_check
          %p1010 = pneg %p422
        $region62: #{tpu_custom_call.1} parent=11 // pred_check_branch
          %1012 = sbr.rel (%p1010) target = $region64
        $region63: #{tpu_custom_call.1} parent=11 // pred_region
          _
        $region64: #{tpu_custom_call.1} parent=11 // pred_fallthru
          _
        // Predicated region
        $region65: #{tpu_custom_call.1} parent=11 // pred_check
          %p1013 = pneg %p443
        $region66: #{tpu_custom_call.1} parent=11 // pred_check_branch
          %1015 = sbr.rel (%p1013) target = $region68
        $region67: #{tpu_custom_call.1} parent=11 // pred_region
          %s1017 = ssub.s32 32, 32
          %1018 = vsyncadd [#allocation18], %s1017
          %s1019 = sshll.u32 [#allocation17], 4
          %s1020 = int_to_ptr.vmem [resolvable:$true] %s1019
          %1025 = dma.hbm_to_vmem [thread:$0]  %s31, 32, %s1020, [#allocation18], 16, 16, 1
        $region68: #{tpu_custom_call.1} parent=11 // pred_fallthru
          _
        // Predicated region
        $region69: #{tpu_custom_call.1} parent=11 // pred_check
          %p1026 = pneg %p464
        $region70: #{tpu_custom_call.1} parent=11 // pred_check_branch
          %1028 = sbr.rel (%p1026) target = $region72
        $region71: #{tpu_custom_call.1} parent=11 // pred_region
          _
        $region72: #{tpu_custom_call.1} parent=11 // pred_fallthru
          _
        // Predicated region
        $region73: #{tpu_custom_call.1} parent=11 // pred_check
          %p1029 = pneg %p485
        $region74: #{tpu_custom_call.1} parent=11 // pred_check_branch
          %1031 = sbr.rel (%p1029) target = $region76
        $region75: #{tpu_custom_call.1} parent=11 // pred_region
          %s1033 = ssub.s32 32, 32
          %1034 = vsyncadd [#allocation18], %s1033
          %s1035 = sshll.u32 [#allocation19], 4
          %s1036 = int_to_ptr.vmem [resolvable:$true] %s1035
          %1041 = dma.hbm_to_vmem [thread:$0]  %s35, 32, %s1036, [#allocation18], 16, 16, 1
        $region76: #{tpu_custom_call.1} parent=11 // pred_fallthru
          _
        // Predicated region
        $region77: #{tpu_custom_call.1} parent=11 // pred_check
          %p1042 = pneg %p506
        $region78: #{tpu_custom_call.1} parent=11 // pred_check_branch
          %1044 = sbr.rel (%p1042) target = $region80
        $region79: #{tpu_custom_call.1} parent=11 // pred_region
          %s1046 = ssub.s32 32, 32
          %1047 = vsyncadd [#allocation21], %s1046
          %s1048 = sshll.u32 [#allocation20], 4
          %s1049 = int_to_ptr.vmem [resolvable:$true] %s1048
          %1054 = dma.hbm_to_vmem [thread:$0]  %s37, 32, %s1049, [#allocation21], 16, 16, 1
        $region80: #{tpu_custom_call.1} parent=11 // pred_fallthru
          _
        // Predicated region
        $region81: #{tpu_custom_call.1} parent=11 // pred_check
          %p1055 = pneg %p527
        $region82: #{tpu_custom_call.1} parent=11 // pred_check_branch
          %1057 = sbr.rel (%p1055) target = $region84
        $region83: #{tpu_custom_call.1} parent=11 // pred_region
          %s1059 = ssub.s32 32, 32
          %1060 = vsyncadd [#allocation21], %s1059
          %s1061 = sshll.u32 [#allocation22], 4
          %s1062 = int_to_ptr.vmem [resolvable:$true] %s1061
          %1067 = dma.hbm_to_vmem [thread:$0]  %s39, 32, %s1062, [#allocation21], 16, 16, 1
        $region84: #{tpu_custom_call.1} parent=11 // pred_fallthru
          _
        // Predicated region
        $region85: #{tpu_custom_call.1} parent=11 // pred_check
          %p1068 = pneg %p548
        $region86: #{tpu_custom_call.1} parent=11 // pred_check_branch
          %1070 = sbr.rel (%p1068) target = $region88
        $region87: #{tpu_custom_call.1} parent=11 // pred_region
          _
        $region88: #{tpu_custom_call.1} parent=11 // pred_fallthru
          _
        // Predicated region
        $region89: #{tpu_custom_call.1} parent=11 // pred_check
          %p1071 = pneg %p569
        $region90: #{tpu_custom_call.1} parent=11 // pred_check_branch
          %1073 = sbr.rel (%p1071) target = $region92
        $region91: #{tpu_custom_call.1} parent=11 // pred_region
          %s1075 = ssub.s32 32, 32
          %1076 = vsyncadd [#allocation24], %s1075
          %s1077 = sshll.u32 [#allocation23], 4
          %s1078 = int_to_ptr.vmem [resolvable:$true] %s1077
          %1083 = dma.hbm_to_vmem [thread:$0]  %s43, 32, %s1078, [#allocation24], 16, 16, 1
        $region92: #{tpu_custom_call.1} parent=11 // pred_fallthru
          _
        // Predicated region
        $region93: #{tpu_custom_call.1} parent=11 // pred_check
          %p1084 = pneg %p590
        $region94: #{tpu_custom_call.1} parent=11 // pred_check_branch
          %1086 = sbr.rel (%p1084) target = $region96
        $region95: #{tpu_custom_call.1} parent=11 // pred_region
          %s1088 = ssub.s32 1024, 1024
          %1089 = vsyncadd [#allocation24], %s1088
          %s1090 = sshll.u32 [#allocation25], 4
          %s1091 = int_to_ptr.vmem [resolvable:$true] %s1090
          %1096 = dma.hbm_to_vmem [thread:$0]  %s45, 1024, %s1091, [#allocation24], 128, 128, 8
        $region96: #{tpu_custom_call.1} parent=11 // pred_fallthru
          _
        // Predicated region
        $region97: #{tpu_custom_call.1} parent=11 // pred_check
          %p1097 = pneg %p611
        $region98: #{tpu_custom_call.1} parent=11 // pred_check_branch
          %1099 = sbr.rel (%p1097) target = $region100
        $region99: #{tpu_custom_call.1} parent=11 // pred_region
          %s1101 = ssub.s32 32, 32
          %1102 = vsyncadd [#allocation27], %s1101
          %s1103 = sshll.u32 [#allocation26], 4
          %s1104 = int_to_ptr.vmem [resolvable:$true] %s1103
          %1109 = dma.hbm_to_vmem [thread:$0]  %s47, 32, %s1104, [#allocation27], 16, 16, 1
        $region100: #{tpu_custom_call.1} parent=11 // pred_fallthru
          _
        // Predicated region
        $region101: #{tpu_custom_call.1} parent=11 // pred_check
          %p1110 = pneg %p632
        $region102: #{tpu_custom_call.1} parent=11 // pred_check_branch
          %1112 = sbr.rel (%p1110) target = $region104
        $region103: #{tpu_custom_call.1} parent=11 // pred_region
          %s1114 = ssub.s32 1024, 1024
          %1115 = vsyncadd [#allocation27], %s1114
          %s1116 = sshll.u32 [#allocation28], 4
          %s1117 = int_to_ptr.vmem [resolvable:$true] %s1116
          %1122 = dma.hbm_to_vmem [thread:$0]  %s49, 1024, %s1117, [#allocation27], 128, 128, 8
        $region104: #{tpu_custom_call.1} parent=11 // pred_fallthru
          _
        // Predicated region
        $region105: #{tpu_custom_call.1} parent=11 // pred_check
          %p1123 = pneg %p653
        $region106: #{tpu_custom_call.1} parent=11 // pred_check_branch
          %1125 = sbr.rel (%p1123) target = $region108
        $region107: #{tpu_custom_call.1} parent=11 // pred_region
          %s1127 = ssub.s32 32, 32
          %1128 = vsyncadd [#allocation30], %s1127
          %s1129 = sshll.u32 [#allocation29], 4
          %s1130 = int_to_ptr.vmem [resolvable:$true] %s1129
          %1135 = dma.hbm_to_vmem [thread:$0]  %s51, 32, %s1130, [#allocation30], 16, 16, 1
        $region108: #{tpu_custom_call.1} parent=11 // pred_fallthru
          _
        // Predicated region
        $region109: #{tpu_custom_call.1} parent=11 // pred_check
          %p1136 = pneg %p674
        $region110: #{tpu_custom_call.1} parent=11 // pred_check_branch
          %1138 = sbr.rel (%p1136) target = $region112
        $region111: #{tpu_custom_call.1} parent=11 // pred_region
          %s1140 = ssub.s32 32, 32
          %1141 = vsyncadd [#allocation30], %s1140
          %s1142 = sshll.u32 [#allocation31], 4
          %s1143 = int_to_ptr.vmem [resolvable:$true] %s1142
          %1148 = dma.hbm_to_vmem [thread:$0]  %s53, 32, %s1143, [#allocation30], 16, 16, 1
        $region112: #{tpu_custom_call.1} parent=11 // pred_fallthru
          _
        // Predicated region
        $region113: #{tpu_custom_call.1} parent=11 // pred_check
          %p1149 = pneg %p695
        $region114: #{tpu_custom_call.1} parent=11 // pred_check_branch
          %1151 = sbr.rel (%p1149) target = $region116
        $region115: #{tpu_custom_call.1} parent=11 // pred_region
          %s1153 = ssub.s32 32, 32
          %1154 = vsyncadd [#allocation33], %s1153
          %s1155 = sshll.u32 [#allocation32], 4
          %s1156 = int_to_ptr.vmem [resolvable:$true] %s1155
          %1161 = dma.hbm_to_vmem [thread:$0]  %s55, 32, %s1156, [#allocation33], 16, 16, 1
        $region116: #{tpu_custom_call.1} parent=11 // pred_fallthru
          _
        // Predicated region
        $region117: #{tpu_custom_call.1} parent=11 // pred_check
          %p1162 = pneg %p716
        $region118: #{tpu_custom_call.1} parent=11 // pred_check_branch
          %1164 = sbr.rel (%p1162) target = $region120
        $region119: #{tpu_custom_call.1} parent=11 // pred_region
          %s1166 = ssub.s32 1024, 1024
          %1167 = vsyncadd [#allocation33], %s1166
          %s1168 = sshll.u32 [#allocation34], 4
          %s1169 = int_to_ptr.vmem [resolvable:$true] %s1168
          %1174 = dma.hbm_to_vmem [thread:$0]  %s57, 1024, %s1169, [#allocation33], 128, 128, 8
        $region120: #{tpu_custom_call.1} parent=11 // pred_fallthru
          _
        // Predicated region
        $region121: #{tpu_custom_call.1} parent=11 // pred_check
          %p1175 = pneg %p737
        $region122: #{tpu_custom_call.1} parent=11 // pred_check_branch
          %1177 = sbr.rel (%p1175) target = $region124
        $region123: #{tpu_custom_call.1} parent=11 // pred_region
          _
        $region124: #{tpu_custom_call.1} parent=11 // pred_fallthru
          _
        // Predicated region
        $region125: #{tpu_custom_call.1} parent=11 // pred_check
          %p1178 = pneg %p758
        $region126: #{tpu_custom_call.1} parent=11 // pred_check_branch
          %1180 = sbr.rel (%p1178) target = $region128
        $region127: #{tpu_custom_call.1} parent=11 // pred_region
          _
        $region128: #{tpu_custom_call.1} parent=11 // pred_fallthru
          _
        // Predicated region
        $region129: #{tpu_custom_call.1} parent=11 // pred_check
          %p1181 = pneg %p779
        $region130: #{tpu_custom_call.1} parent=11 // pred_check_branch
          %1183 = sbr.rel (%p1181) target = $region132
        $region131: #{tpu_custom_call.1} parent=11 // pred_region
          _
        $region132: #{tpu_custom_call.1} parent=11 // pred_fallthru
          _
        // Predicated region
        $region133: #{tpu_custom_call.1} parent=11 // pred_check
          %p1184 = pneg %p800
        $region134: #{tpu_custom_call.1} parent=11 // pred_check_branch
          %1186 = sbr.rel (%p1184) target = $region136
        $region135: #{tpu_custom_call.1} parent=11 // pred_region
          _
        $region136: #{tpu_custom_call.1} parent=11 // pred_fallthru
          _
        // Predicated region
        $region137: #{tpu_custom_call.1} parent=11 // pred_check
          %p1187 = pneg %p821
        $region138: #{tpu_custom_call.1} parent=11 // pred_check_branch
          %1189 = sbr.rel (%p1187) target = $region140
        $region139: #{tpu_custom_call.1} parent=11 // pred_region
          _
        $region140: #{tpu_custom_call.1} parent=11 // pred_fallthru
          _
        // Predicated region
        $region141: #{tpu_custom_call.1} parent=11 // pred_check
          %p1190 = pneg %p842
        $region142: #{tpu_custom_call.1} parent=11 // pred_check_branch
          %1192 = sbr.rel (%p1190) target = $region144
        $region143: #{tpu_custom_call.1} parent=11 // pred_region
          _
        $region144: #{tpu_custom_call.1} parent=11 // pred_fallthru
          _
        // Predicated region
        $region145: #{tpu_custom_call.1} parent=11 // pred_check
          %p1193 = pneg %p863
        $region146: #{tpu_custom_call.1} parent=11 // pred_check_branch
          %1195 = sbr.rel (%p1193) target = $region148
        $region147: #{tpu_custom_call.1} parent=11 // pred_region
          _
        $region148: #{tpu_custom_call.1} parent=11 // pred_fallthru
          _
      $region12: #{tpu_custom_call.1} parent=5 // pred_fallthru
        _
      %p1196 = scmp.lt.s32.totalorder %s97, 2
      // Predicated region
      $region149: #{tpu_custom_call.1} parent=5 // pred_check
        %p1197 = pneg %p1196
      $region150: #{tpu_custom_call.1} parent=5 // pred_check_branch
        %1199 = sbr.rel (%p1197) target = $region152
      $region151: #{tpu_custom_call.1} parent=5 // pred_region
        // Predicated region
        $region153: #{tpu_custom_call.1} parent=151 // pred_check
          %p1200 = pneg %p117
        $region154: #{tpu_custom_call.1} parent=151 // pred_check_branch
          %1202 = sbr.rel (%p1200) target = $region156
        $region155: #{tpu_custom_call.1} parent=151 // pred_region
          %s1203 = sand.u32 %s107, 1
          %s1204 = scalar_lea.sflag [#allocation3], %s1203
          %s1205 = sand.u32 %s107, 1
          %s1206 = smul.addr %s1205, 8
          %s1207 = scalar_lea.vmem [#allocation2], %s1206
          %s1209 = ssub.s32 128, 128
          %1210 = vsyncadd %s1204, %s1209
          %s1211 = smul.addr %s97, 128
          %s1212 = scalar_lea.hbm %s1, %s1211
          %s1214 = sshll.u32 %s1207, 4
          %s1215 = int_to_ptr.vmem [resolvable:$true] %s1214
          %1217 = dma.hbm_to_vmem [thread:$0]  %s1212, 128, %s1215, %s1204
        $region156: #{tpu_custom_call.1} parent=151 // pred_fallthru
          _
        // Predicated region
        $region157: #{tpu_custom_call.1} parent=151 // pred_check
          %p1218 = pneg %p143
        $region158: #{tpu_custom_call.1} parent=151 // pred_check_branch
          %1220 = sbr.rel (%p1218) target = $region160
        $region159: #{tpu_custom_call.1} parent=151 // pred_region
          %s1221 = sand.u32 %s97, 1
          %s1222 = scalar_lea.sflag [#allocation6], %s1221
          %s1223 = sand.u32 %s133, 1
          %s1224 = smul.addr %s1223, 8
          %s1225 = scalar_lea.vmem [#allocation5], %s1224
          %s1227 = ssub.s32 128, 128
          %1228 = vsyncadd %s1222, %s1227
          %s1229 = smul.addr %s97, 128
          %s1230 = scalar_lea.hbm %s3, %s1229
          %s1232 = sshll.u32 %s1225, 4
          %s1233 = int_to_ptr.vmem [resolvable:$true] %s1232
          %1235 = dma.hbm_to_vmem [thread:$0]  %s1230, 128, %s1233, %s1222
        $region160: #{tpu_custom_call.1} parent=151 // pred_fallthru
          _
      $region152: #{tpu_custom_call.1} parent=5 // pred_fallthru
        _
      %p1236 = scmp.le.s32.totalorder 1, %s97
      %p1237 = scmp.lt.s32.totalorder %s97, 3
      %p1238 = pnand %p1236, %p1237
      %p1239 = pneg %p1238
      // Predicated region
      $region161: #{tpu_custom_call.1} parent=5 // pred_check
        _
      $region162: #{tpu_custom_call.1} parent=5 // pred_check_branch
        %1241 = sbr.rel (%p1238) target = $region164
      $region163: #{tpu_custom_call.1} parent=5 // pred_region
        %s1242 = ssub.s32 %s97, 1
        %s1243 = sand.u32 %s110, 1
        %s1244 = scalar_lea.sflag [#allocation3], %s1243
        %s1245 = sand.u32 %s110, 1
        %s1246 = smul.addr %s1245, 8
        %s1247 = scalar_lea.vmem [#allocation2], %s1246
        // Predicated region
        $region165: #{tpu_custom_call.1} parent=163 // pred_check
          %p1248 = pneg %p123
        $region166: #{tpu_custom_call.1} parent=163 // pred_check_branch
          %1250 = sbr.rel (%p1248) target = $region168
        $region167: #{tpu_custom_call.1} parent=163 // pred_region
          %1251 = dma.done %s1244, 128
        $region168: #{tpu_custom_call.1} parent=163 // pred_fallthru
          _
        %s1252 = sand.u32 %s102, 1
        %s1253 = scalar_lea.sflag [#allocation6], %s1252
        %s1254 = sand.u32 %s136, 1
        %s1255 = smul.addr %s1254, 8
        %s1256 = scalar_lea.vmem [#allocation5], %s1255
        // Predicated region
        $region169: #{tpu_custom_call.1} parent=163 // pred_check
          %p1257 = pneg %p149
        $region170: #{tpu_custom_call.1} parent=163 // pred_check_branch
          %1259 = sbr.rel (%p1257) target = $region172
        $region171: #{tpu_custom_call.1} parent=163 // pred_region
          %1260 = dma.done %s1253, 128
        $region172: #{tpu_custom_call.1} parent=163 // pred_fallthru
          _
        // Predicated region
        $region173: #{tpu_custom_call.1} parent=163 // pred_check
          %p1261 = pneg %p233
        $region174: #{tpu_custom_call.1} parent=163 // pred_check_branch
          %1263 = sbr.rel (%p1261) target = $region176
        $region175: #{tpu_custom_call.1} parent=163 // pred_region
          %1264 = dma.done [#allocation6], 32
        $region176: #{tpu_custom_call.1} parent=163 // pred_fallthru
          _
        // Predicated region
        $region177: #{tpu_custom_call.1} parent=163 // pred_check
          %p1265 = pneg %p254
        $region178: #{tpu_custom_call.1} parent=163 // pred_check_branch
          %1267 = sbr.rel (%p1265) target = $region180
        $region179: #{tpu_custom_call.1} parent=163 // pred_region
          %1268 = dma.done [#allocation9], 32
        $region180: #{tpu_custom_call.1} parent=163 // pred_fallthru
          _
        // Predicated region
        $region181: #{tpu_custom_call.1} parent=163 // pred_check
          %p1269 = pneg %p275
        $region182: #{tpu_custom_call.1} parent=163 // pred_check_branch
          %1271 = sbr.rel (%p1269) target = $region184
        $region183: #{tpu_custom_call.1} parent=163 // pred_region
          %1272 = dma.done [#allocation9], 32
        $region184: #{tpu_custom_call.1} parent=163 // pred_fallthru
          _
        // Predicated region
        $region185: #{tpu_custom_call.1} parent=163 // pred_check
          %p1273 = pneg %p317
        $region186: #{tpu_custom_call.1} parent=163 // pred_check_branch
          %1275 = sbr.rel (%p1273) target = $region188
        $region187: #{tpu_custom_call.1} parent=163 // pred_region
          %1276 = dma.done [#allocation12], 32
        $region188: #{tpu_custom_call.1} parent=163 // pred_fallthru
          _
        // Predicated region
        $region189: #{tpu_custom_call.1} parent=163 // pred_check
          %p1277 = pneg %p359
        $region190: #{tpu_custom_call.1} parent=163 // pred_check_branch
          %1279 = sbr.rel (%p1277) target = $region192
        $region191: #{tpu_custom_call.1} parent=163 // pred_region
          %1280 = dma.done [#allocation12], 32
        $region192: #{tpu_custom_call.1} parent=163 // pred_fallthru
          _
        // Predicated region
        $region193: #{tpu_custom_call.1} parent=163 // pred_check
          %p1281 = pneg %p380
        $region194: #{tpu_custom_call.1} parent=163 // pred_check_branch
          %1283 = sbr.rel (%p1281) target = $region196
        $region195: #{tpu_custom_call.1} parent=163 // pred_region
          %1284 = dma.done [#allocation15], 32
        $region196: #{tpu_custom_call.1} parent=163 // pred_fallthru
          _
        // Predicated region
        $region197: #{tpu_custom_call.1} parent=163 // pred_check
          %p1285 = pneg %p401
        $region198: #{tpu_custom_call.1} parent=163 // pred_check_branch
          %1287 = sbr.rel (%p1285) target = $region200
        $region199: #{tpu_custom_call.1} parent=163 // pred_region
          %1288 = dma.done [#allocation15], 32
        $region200: #{tpu_custom_call.1} parent=163 // pred_fallthru
          _
        // Predicated region
        $region201: #{tpu_custom_call.1} parent=163 // pred_check
          %p1289 = pneg %p443
        $region202: #{tpu_custom_call.1} parent=163 // pred_check_branch
          %1291 = sbr.rel (%p1289) target = $region204
        $region203: #{tpu_custom_call.1} parent=163 // pred_region
          %1292 = dma.done [#allocation18], 32
        $region204: #{tpu_custom_call.1} parent=163 // pred_fallthru
          _
        // Predicated region
        $region205: #{tpu_custom_call.1} parent=163 // pred_check
          %p1293 = pneg %p485
        $region206: #{tpu_custom_call.1} parent=163 // pred_check_branch
          %1295 = sbr.rel (%p1293) target = $region208
        $region207: #{tpu_custom_call.1} parent=163 // pred_region
          %1296 = dma.done [#allocation18], 32
        $region208: #{tpu_custom_call.1} parent=163 // pred_fallthru
          _
        // Predicated region
        $region209: #{tpu_custom_call.1} parent=163 // pred_check
          %p1297 = pneg %p506
        $region210: #{tpu_custom_call.1} parent=163 // pred_check_branch
          %1299 = sbr.rel (%p1297) target = $region212
        $region211: #{tpu_custom_call.1} parent=163 // pred_region
          %1300 = dma.done [#allocation21], 32
        $region212: #{tpu_custom_call.1} parent=163 // pred_fallthru
          _
        // Predicated region
        $region213: #{tpu_custom_call.1} parent=163 // pred_check
          %p1301 = pneg %p527
        $region214: #{tpu_custom_call.1} parent=163 // pred_check_branch
          %1303 = sbr.rel (%p1301) target = $region216
        $region215: #{tpu_custom_call.1} parent=163 // pred_region
          %1304 = dma.done [#allocation21], 32
        $region216: #{tpu_custom_call.1} parent=163 // pred_fallthru
          _
        // Predicated region
        $region217: #{tpu_custom_call.1} parent=163 // pred_check
          %p1305 = pneg %p569
        $region218: #{tpu_custom_call.1} parent=163 // pred_check_branch
          %1307 = sbr.rel (%p1305) target = $region220
        $region219: #{tpu_custom_call.1} parent=163 // pred_region
          %1308 = dma.done [#allocation24], 32
        $region220: #{tpu_custom_call.1} parent=163 // pred_fallthru
          _
        // Predicated region
        $region221: #{tpu_custom_call.1} parent=163 // pred_check
          %p1309 = pneg %p590
        $region222: #{tpu_custom_call.1} parent=163 // pred_check_branch
          %1311 = sbr.rel (%p1309) target = $region224
        $region223: #{tpu_custom_call.1} parent=163 // pred_region
          %1312 = dma.done [#allocation24], 1024
        $region224: #{tpu_custom_call.1} parent=163 // pred_fallthru
          _
        // Predicated region
        $region225: #{tpu_custom_call.1} parent=163 // pred_check
          %p1313 = pneg %p611
        $region226: #{tpu_custom_call.1} parent=163 // pred_check_branch
          %1315 = sbr.rel (%p1313) target = $region228
        $region227: #{tpu_custom_call.1} parent=163 // pred_region
          %1316 = dma.done [#allocation27], 32
        $region228: #{tpu_custom_call.1} parent=163 // pred_fallthru
          _
        // Predicated region
        $region229: #{tpu_custom_call.1} parent=163 // pred_check
          %p1317 = pneg %p632
        $region230: #{tpu_custom_call.1} parent=163 // pred_check_branch
          %1319 = sbr.rel (%p1317) target = $region232
        $region231: #{tpu_custom_call.1} parent=163 // pred_region
          %1320 = dma.done [#allocation27], 1024
        $region232: #{tpu_custom_call.1} parent=163 // pred_fallthru
          _
        // Predicated region
        $region233: #{tpu_custom_call.1} parent=163 // pred_check
          %p1321 = pneg %p653
        $region234: #{tpu_custom_call.1} parent=163 // pred_check_branch
          %1323 = sbr.rel (%p1321) target = $region236
        $region235: #{tpu_custom_call.1} parent=163 // pred_region
          %1324 = dma.done [#allocation30], 32
        $region236: #{tpu_custom_call.1} parent=163 // pred_fallthru
          _
        // Predicated region
        $region237: #{tpu_custom_call.1} parent=163 // pred_check
          %p1325 = pneg %p674
        $region238: #{tpu_custom_call.1} parent=163 // pred_check_branch
          %1327 = sbr.rel (%p1325) target = $region240
        $region239: #{tpu_custom_call.1} parent=163 // pred_region
          %1328 = dma.done [#allocation30], 32
        $region240: #{tpu_custom_call.1} parent=163 // pred_fallthru
          _
        // Predicated region
        $region241: #{tpu_custom_call.1} parent=163 // pred_check
          %p1329 = pneg %p695
        $region242: #{tpu_custom_call.1} parent=163 // pred_check_branch
          %1331 = sbr.rel (%p1329) target = $region244
        $region243: #{tpu_custom_call.1} parent=163 // pred_region
          %1332 = dma.done [#allocation33], 32
        $region244: #{tpu_custom_call.1} parent=163 // pred_fallthru
          _
        // Predicated region
        $region245: #{tpu_custom_call.1} parent=163 // pred_check
          %p1333 = pneg %p716
        $region246: #{tpu_custom_call.1} parent=163 // pred_check_branch
          %1335 = sbr.rel (%p1333) target = $region248
        $region247: #{tpu_custom_call.1} parent=163 // pred_region
          %1336 = dma.done [#allocation33], 1024
        $region248: #{tpu_custom_call.1} parent=163 // pred_fallthru
          _
        %s1337 = sand.u32 %s110, 1
        %s1338 = scalar_lea.sflag [#allocation3], %s1337
        %s1339 = sand.u32 %s110, 1
        %s1340 = smul.addr %s1339, 8
        %s1341 = scalar_lea.vmem [#allocation2], %s1340
        %p1342 = pneg %p123
        %p1343 = pneg %p120
        %s1344 = sand.u32 %s102, 1
        %s1345 = scalar_lea.sflag [#allocation6], %s1344
        %s1346 = sand.u32 %s136, 1
        %s1347 = smul.addr %s1346, 8
        %s1348 = scalar_lea.vmem [#allocation5], %s1347
        %p1349 = pneg %p149
        %p1350 = pneg %p146
        %p1351 = pneg %p170
        %p1352 = pneg %p167
        %p1353 = pneg %p191
        %p1354 = pneg %p188
        %p1355 = pneg %p212
        %p1356 = pneg %p209
        %p1357 = pneg %p233
        %p1358 = pneg %p230
        %p1359 = pneg %p254
        %p1360 = pneg %p251
        %p1361 = pneg %p275
        %p1362 = pneg %p272
        %p1363 = pneg %p296
        %p1364 = pneg %p293
        %p1365 = pneg %p317
        %p1366 = pneg %p314
        %p1367 = pneg %p338
        %p1368 = pneg %p335
        %p1369 = pneg %p359
        %p1370 = pneg %p356
        %p1371 = pneg %p380
        %p1372 = pneg %p377
        %p1373 = pneg %p401
        %p1374 = pneg %p398
        %p1375 = pneg %p422
        %p1376 = pneg %p419
        %p1377 = pneg %p443
        %p1378 = pneg %p440
        %p1379 = pneg %p464
        %p1380 = pneg %p461
        %p1381 = pneg %p485
        %p1382 = pneg %p482
        %p1383 = pneg %p506
        %p1384 = pneg %p503
        %p1385 = pneg %p527
        %p1386 = pneg %p524
        %p1387 = pneg %p548
        %p1388 = pneg %p545
        %p1389 = pneg %p569
        %p1390 = pneg %p566
        %p1391 = pneg %p590
        %p1392 = pneg %p587
        %p1393 = pneg %p611
        %p1394 = pneg %p608
        %p1395 = pneg %p632
        %p1396 = pneg %p629
        %p1397 = pneg %p653
        %p1398 = pneg %p650
        %p1399 = pneg %p674
        %p1400 = pneg %p671
        %p1401 = pneg %p695
        %p1402 = pneg %p692
        %p1403 = pneg %p716
        %p1404 = pneg %p713
        %p1405 = pneg %p737
        %p1406 = pneg %p734
        %p1407 = pneg %p758
        %p1408 = pneg %p755
        %p1409 = pneg %p779
        %p1410 = pneg %p776
        %p1411 = pneg %p800
        %p1412 = pneg %p797
        %p1413 = pneg %p821
        %p1414 = pneg %p818
        %p1415 = pneg %p842
        %p1416 = pneg %p839
        %p1417 = pneg %p863
        %p1418 = pneg %p860
        %p1419 = pneg %p889
        %p1420 = pneg %p886
        %s1421 = sand.u32 %s876, 1
        %s1422 = scalar_lea.sflag [#allocation4], %s1421
        %s1423 = sand.u32 %s876, 1
        %s1424 = smul.addr %s1423, 8
        %s1425 = scalar_lea.vmem [#allocation35], %s1424
        %v1426 = vld [vmem:[%s1247] sm:$0xff]
        %v1427 = vld [vmem:[%s1256] sm:$0xff]
        %v1428 = vld [vmem:[%s5] sm:$0xff]
        %v1429 = vld [vmem:[%s5 + $0x8] sm:$0xff]
        %v1430 = vld [vmem:[%s5 + $0x10] sm:$0xff]
        %v1431 = vld [vmem:[%s5 + $0x18] sm:$0xff]
        %v1432 = vld [vmem:[%s7] sm:$0x1]
        %v1434 = vlaneseq
        %v1435 = vshrl.u32 %v1434, 7
        %v1436 = vsub.s32 0, %v1435
        %v1437 = vrot.slane %v1432, %v1436
        %vm1439 = vcmask 261120
        %v1441 = vsel %vm1439, %v1426, 0
        %1443 = vmatprep.subr.mxu0 0.0
        %1444 = vmatpush1.msra.mxu0 %v1428
        %1445 = vmatprep.subr.mxu0 0.0
        %1446 = vmatpush1.msra.mxu0 %v1429
        %1447 = vmatprep.subr.mxu0 0.0
        %1448 = vmatpush1.msra.mxu0 %v1430
        %1449 = vmatprep.subr.mxu0 0.0
        %1450 = vmatpush1.msra.mxu0 %v1431
        %1451 = vmatprep.subr.mxu0 0.0
        %1452 = vmatpush1.msra.mxu0 0.0
        %1453 = vmatprep.subr.mxu0 0.0
        %1454 = vmatpush1.msra.mxu0 0.0
        %1455 = vmatprep.subr.mxu0 0.0
        %1456 = vmatpush1.msra.mxu0 0.0
        %1457 = vmatprep.subr.mxu0 0.0
        %1458 = vmatpush1.msra.mxu0 0.0
        %1459 = vmatprep.subr.mxu0 0.0
        %1460 = vmatpush1.msra.mxu0 0.0
        %1461 = vmatprep.subr.mxu0 0.0
        %1462 = vmatpush1.msra.mxu0 0.0
        %1463 = vmatprep.subr.mxu0 0.0
        %1464 = vmatpush1.msra.mxu0 0.0
        %1465 = vmatprep.subr.mxu0 0.0
        %1466 = vmatpush1.msra.mxu0 0.0
        %1467 = vmatprep.subr.mxu0 0.0
        %1468 = vmatpush1.msra.mxu0 0.0
        %1469 = vmatprep.subr.mxu0 0.0
        %1470 = vmatpush1.msra.mxu0 0.0
        %1471 = vmatprep.subr.mxu0 0.0
        %1472 = vmatpush1.msra.mxu0 0.0
        %1473 = vmatprep.subr.mxu0 0.0
        %1474 = vmatpush1.msra.mxu0 0.0
        %1475 = vmatprep.subr.mxu0 0.0
        %1476 = vmatpush1.msra.mxu0 0.0
        %1477 = vmatprep.subr.mxu0 0.0
        %1478 = vmatpush1.msra.mxu0 0.0
        %1479 = vmatprep.subr.mxu0 0.0
        %1480 = vmatpush1.msra.mxu0 0.0
        %1481 = vmatprep.subr.mxu0 0.0
        %1482 = vmatpush1.msra.mxu0 0.0
        %1483 = vmatprep.subr.mxu0 0.0
        %1484 = vmatpush1.msra.mxu0 0.0
        %1485 = vmatprep.subr.mxu0 0.0
        %1486 = vmatpush1.msra.mxu0 0.0
        %1487 = vmatprep.subr.mxu0 0.0
        %1488 = vmatpush1.msra.mxu0 0.0
        %1489 = vmatprep.subr.mxu0 0.0
        %1490 = vmatpush1.msra.mxu0 0.0
        %1491 = vmatprep.subr.mxu0 0.0
        %1492 = vmatpush1.msra.mxu0 0.0
        %1493 = vmatprep.subr.mxu0 0.0
        %1494 = vmatpush1.msra.mxu0 0.0
        %1495 = vmatprep.subr.mxu0 0.0
        %1496 = vmatpush1.msra.mxu0 0.0
        %1497 = vmatprep.subr.mxu0 0.0
        %1498 = vmatpush1.msra.mxu0 0.0
        %1499 = vmatprep.subr.mxu0 0.0
        %1500 = vmatpush1.msra.mxu0 0.0
        %1501 = vmatprep.subr.mxu0 0.0
        %1502 = vmatpush1.msra.mxu0 0.0
        %1503 = vmatprep.subr.mxu0 0.0
        %1504 = vmatpush1.msra.mxu0 0.0
        %1505 = vmatprep.subr.mxu0 0.0
        %1506 = vmatpush1.msra.mxu0 0.0
        %1507 = vmatprep.mubr.f32.mxu0 0.0
        %1508 = vmatmul.mubr.f32.gmra.mrb[0].mxu0 %v1441
        %v1509 = vpop.f32.mrb[0].mxu0
        %v1510 = vadd.f32 %v1437, %v1509
        %v1511 = vpop.f32.mrb[0].mxu0
        %1512 = vdwg.mxu0
        %v1513 = vld [vmem:[%s9] sm:$0xff]
        %v1514 = vld [vmem:[%s9 + $0x8] sm:$0xff]
        %v1515 = vld [vmem:[%s9 + $0x10] sm:$0xff]
        %v1516 = vld [vmem:[%s9 + $0x18] sm:$0xff]
        %v1517 = vld [vmem:[#allocation7] sm:$0x1]
        %1519 = vrot.lane.b32.xlu0 %v1510, 96
        %v1520 = vpop.permute.xlu0 %1519
        %vm1521 = vcmask 64512
        %v1522 = vsel %vm1521, %v1510, 0
        %v1524 = vsel %vm1521, %v1520, 0
        %1526 = vmatprep.subr.mxu0 0.0
        %1527 = vmatpush1.xpose.msra.mxu0 %v1524
        %1528 = vmatprep.subr.mxu0 0.0
        %1529 = vmatpush1.xpose.msra.mxu0 0.0
        %1530 = vmatprep.subr.mxu0 0.0
        %1531 = vmatpush1.xpose.msra.mxu0 0.0
        %1532 = vmatprep.subr.mxu0 0.0
        %1533 = vmatpush1.xpose.msra.mxu0 0.0
        %1534 = vmatprep.subr.mxu0 0.0
        %1535 = vmatpush1.xpose.msra.mxu0 0.0
        %1536 = vmatprep.subr.mxu0 0.0
        %1537 = vmatpush1.xpose.msra.mxu0 0.0
        %1538 = vmatprep.subr.mxu0 0.0
        %1539 = vmatpush1.xpose.msra.mxu0 0.0
        %1540 = vmatprep.subr.mxu0 0.0
        %1541 = vmatpush1.xpose.msra.mxu0 0.0
        %1542 = vmatprep.subr.mxu0 0.0
        %1543 = vmatpush1.xpose.msra.mxu0 0.0
        %1544 = vmatprep.subr.mxu0 0.0
        %1545 = vmatpush1.xpose.msra.mxu0 0.0
        %1546 = vmatprep.subr.mxu0 0.0
        %1547 = vmatpush1.xpose.msra.mxu0 0.0
        %1548 = vmatprep.subr.mxu0 0.0
        %1549 = vmatpush1.xpose.msra.mxu0 0.0
        %1550 = vmatprep.subr.mxu0 0.0
        %1551 = vmatpush1.xpose.msra.mxu0 0.0
        %1552 = vmatprep.subr.mxu0 0.0
        %1553 = vmatpush1.xpose.msra.mxu0 0.0
        %1554 = vmatprep.subr.mxu0 0.0
        %1555 = vmatpush1.xpose.msra.mxu0 0.0
        %1556 = vmatprep.subr.mxu0 0.0
        %1557 = vmatpush1.xpose.msra.mxu0 0.0
        %1558 = vmatprep.subr.mxu0 0.0
        %1559 = vmatpush1.xpose.msra.mxu0 0.0
        %1560 = vmatprep.subr.mxu0 0.0
        %1561 = vmatpush1.xpose.msra.mxu0 0.0
        %1562 = vmatprep.subr.mxu0 0.0
        %1563 = vmatpush1.xpose.msra.mxu0 0.0
        %1564 = vmatprep.subr.mxu0 0.0
        %1565 = vmatpush1.xpose.msra.mxu0 0.0
        %1566 = vmatprep.subr.mxu0 0.0
        %1567 = vmatpush1.xpose.msra.mxu0 0.0
        %1568 = vmatprep.subr.mxu0 0.0
        %1569 = vmatpush1.xpose.msra.mxu0 0.0
        %1570 = vmatprep.subr.mxu0 0.0
        %1571 = vmatpush1.xpose.msra.mxu0 0.0
        %1572 = vmatprep.subr.mxu0 0.0
        %1573 = vmatpush1.xpose.msra.mxu0 0.0
        %1574 = vmatprep.subr.mxu0 0.0
        %1575 = vmatpush1.xpose.msra.mxu0 0.0
        %1576 = vmatprep.subr.mxu0 0.0
        %1577 = vmatpush1.xpose.msra.mxu0 0.0
        %1578 = vmatprep.subr.mxu0 0.0
        %1579 = vmatpush1.xpose.msra.mxu0 0.0
        %1580 = vmatprep.subr.mxu0 0.0
        %1581 = vmatpush1.xpose.msra.mxu0 0.0
        %1582 = vmatprep.subr.mxu0 0.0
        %1583 = vmatpush1.xpose.msra.mxu0 0.0
        %1584 = vmatprep.subr.mxu0 0.0
        %1585 = vmatpush1.xpose.msra.mxu0 0.0
        %1586 = vmatprep.subr.mxu0 0.0
        %1587 = vmatpush1.xpose.msra.mxu0 0.0
        %1588 = vmatprep.subr.mxu0 0.0
        %1589 = vmatpush1.xpose.msra.mxu0 0.0
        %1590 = vmatprep.mubr.f32.mxu0 0.0
        %1591 = vmatmul.mubr.f32.gmra.mrb[0].mxu0 %v1522
        %v1592 = vpop.f32.mrb[0].mxu0
        %v1593 = vadd.f32 0.0, %v1592
        %v1594 = vpop.f32.mrb[0].mxu0
        %1595 = vdwg.mxu0
        %v1596 = vsel %vm1521, %v1593, -inf
        %1597 = vmax.xlane.f32.xlu0 %v1596
        %v1598 = vpop.xlane.xlu0 %1597
        %v1599 = vsub.f32 %v1593, %v1598
        %v1600 = vmul.f32 %v1599, 1.442695
        %v1601 = vpow.pop %v1600
        %v1602 = vsel %vm1521, %v1601, 0.0
        %1603 = vadd.xlane.f32.xlu0 %v1602
        %v1604 = vpop.xlane.xlu0 %1603
        %v1605 = vrcp.pop %v1604
        %v1606 = vmul.f32 %v1601, %v1605
        %1607 = vrot.lane.b32.xlu0 %v1510, 64
        %v1608 = vpop.permute.xlu0 %1607
        %v1611 = vsel %vm1521, %v1606, 0
        %1613 = vmatprep.subr.mxu0 0.0
        %1614 = vmatpush1.msra.mxu0 %v1608
        %1615 = vmatprep.subr.mxu0 0.0
        %1616 = vmatpush1.msra.mxu0 0.0
        %1617 = vmatprep.subr.mxu0 0.0
        %1618 = vmatpush1.msra.mxu0 0.0
        %1619 = vmatprep.subr.mxu0 0.0
        %1620 = vmatpush1.msra.mxu0 0.0
        %1621 = vmatprep.subr.mxu0 0.0
        %1622 = vmatpush1.msra.mxu0 0.0
        %1623 = vmatprep.subr.mxu0 0.0
        %1624 = vmatpush1.msra.mxu0 0.0
        %1625 = vmatprep.subr.mxu0 0.0
        %1626 = vmatpush1.msra.mxu0 0.0
        %1627 = vmatprep.subr.mxu0 0.0
        %1628 = vmatpush1.msra.mxu0 0.0
        %1629 = vmatprep.subr.mxu0 0.0
        %1630 = vmatpush1.msra.mxu0 0.0
        %1631 = vmatprep.subr.mxu0 0.0
        %1632 = vmatpush1.msra.mxu0 0.0
        %1633 = vmatprep.subr.mxu0 0.0
        %1634 = vmatpush1.msra.mxu0 0.0
        %1635 = vmatprep.subr.mxu0 0.0
        %1636 = vmatpush1.msra.mxu0 0.0
        %1637 = vmatprep.subr.mxu0 0.0
        %1638 = vmatpush1.msra.mxu0 0.0
        %1639 = vmatprep.subr.mxu0 0.0
        %1640 = vmatpush1.msra.mxu0 0.0
        %1641 = vmatprep.subr.mxu0 0.0
        %1642 = vmatpush1.msra.mxu0 0.0
        %1643 = vmatprep.subr.mxu0 0.0
        %1644 = vmatpush1.msra.mxu0 0.0
        %1645 = vmatprep.subr.mxu0 0.0
        %1646 = vmatpush1.msra.mxu0 0.0
        %1647 = vmatprep.subr.mxu0 0.0
        %1648 = vmatpush1.msra.mxu0 0.0
        %1649 = vmatprep.subr.mxu0 0.0
        %1650 = vmatpush1.msra.mxu0 0.0
        %1651 = vmatprep.subr.mxu0 0.0
        %1652 = vmatpush1.msra.mxu0 0.0
        %1653 = vmatprep.subr.mxu0 0.0
        %1654 = vmatpush1.msra.mxu0 0.0
        %1655 = vmatprep.subr.mxu0 0.0
        %1656 = vmatpush1.msra.mxu0 0.0
        %1657 = vmatprep.subr.mxu0 0.0
        %1658 = vmatpush1.msra.mxu0 0.0
        %1659 = vmatprep.subr.mxu0 0.0
        %1660 = vmatpush1.msra.mxu0 0.0
        %1661 = vmatprep.subr.mxu0 0.0
        %1662 = vmatpush1.msra.mxu0 0.0
        %1663 = vmatprep.subr.mxu0 0.0
        %1664 = vmatpush1.msra.mxu0 0.0
        %1665 = vmatprep.subr.mxu0 0.0
        %1666 = vmatpush1.msra.mxu0 0.0
        %1667 = vmatprep.subr.mxu0 0.0
        %1668 = vmatpush1.msra.mxu0 0.0
        %1669 = vmatprep.subr.mxu0 0.0
        %1670 = vmatpush1.msra.mxu0 0.0
        %1671 = vmatprep.subr.mxu0 0.0
        %1672 = vmatpush1.msra.mxu0 0.0
        %1673 = vmatprep.subr.mxu0 0.0
        %1674 = vmatpush1.msra.mxu0 0.0
        %1675 = vmatprep.subr.mxu0 0.0
        %1676 = vmatpush1.msra.mxu0 0.0
        %1677 = vmatprep.mubr.f32.mxu0 0.0
        %1678 = vmatmul.mubr.f32.gmra.mrb[0].mxu0 %v1611
        %v1679 = vpop.f32.mrb[0].mxu0
        %v1680 = vadd.f32 0.0, %v1679
        %v1681 = vpop.f32.mrb[0].mxu0
        %1682 = vdwg.mxu0
        %1683 = vrot.lane.b32.xlu0 %v1510, 120
        %v1684 = vpop.permute.xlu0 %1683
        %1685 = vrot.lane.b32.xlu0 %v1510, 88
        %v1686 = vpop.permute.xlu0 %1685
        %v1687 = vsel %vm1521, %v1684, 0
        %v1689 = vsel %vm1521, %v1686, 0
        %1691 = vmatprep.subr.mxu0 0.0
        %1692 = vmatpush1.xpose.msra.mxu0 %v1689
        %1693 = vmatprep.subr.mxu0 0.0
        %1694 = vmatpush1.xpose.msra.mxu0 0.0
        %1695 = vmatprep.subr.mxu0 0.0
        %1696 = vmatpush1.xpose.msra.mxu0 0.0
        %1697 = vmatprep.subr.mxu0 0.0
        %1698 = vmatpush1.xpose.msra.mxu0 0.0
        %1699 = vmatprep.subr.mxu0 0.0
        %1700 = vmatpush1.xpose.msra.mxu0 0.0
        %1701 = vmatprep.subr.mxu0 0.0
        %1702 = vmatpush1.xpose.msra.mxu0 0.0
        %1703 = vmatprep.subr.mxu0 0.0
        %1704 = vmatpush1.xpose.msra.mxu0 0.0
        %1705 = vmatprep.subr.mxu0 0.0
        %1706 = vmatpush1.xpose.msra.mxu0 0.0
        %1707 = vmatprep.subr.mxu0 0.0
        %1708 = vmatpush1.xpose.msra.mxu0 0.0
        %1709 = vmatprep.subr.mxu0 0.0
        %1710 = vmatpush1.xpose.msra.mxu0 0.0
        %1711 = vmatprep.subr.mxu0 0.0
        %1712 = vmatpush1.xpose.msra.mxu0 0.0
        %1713 = vmatprep.subr.mxu0 0.0
        %1714 = vmatpush1.xpose.msra.mxu0 0.0
        %1715 = vmatprep.subr.mxu0 0.0
        %1716 = vmatpush1.xpose.msra.mxu0 0.0
        %1717 = vmatprep.subr.mxu0 0.0
        %1718 = vmatpush1.xpose.msra.mxu0 0.0
        %1719 = vmatprep.subr.mxu0 0.0
        %1720 = vmatpush1.xpose.msra.mxu0 0.0
        %1721 = vmatprep.subr.mxu0 0.0
        %1722 = vmatpush1.xpose.msra.mxu0 0.0
        %1723 = vmatprep.subr.mxu0 0.0
        %1724 = vmatpush1.xpose.msra.mxu0 0.0
        %1725 = vmatprep.subr.mxu0 0.0
        %1726 = vmatpush1.xpose.msra.mxu0 0.0
        %1727 = vmatprep.subr.mxu0 0.0
        %1728 = vmatpush1.xpose.msra.mxu0 0.0
        %1729 = vmatprep.subr.mxu0 0.0
        %1730 = vmatpush1.xpose.msra.mxu0 0.0
        %1731 = vmatprep.subr.mxu0 0.0
        %1732 = vmatpush1.xpose.msra.mxu0 0.0
        %1733 = vmatprep.subr.mxu0 0.0
        %1734 = vmatpush1.xpose.msra.mxu0 0.0
        %1735 = vmatprep.subr.mxu0 0.0
        %1736 = vmatpush1.xpose.msra.mxu0 0.0
        %1737 = vmatprep.subr.mxu0 0.0
        %1738 = vmatpush1.xpose.msra.mxu0 0.0
        %1739 = vmatprep.subr.mxu0 0.0
        %1740 = vmatpush1.xpose.msra.mxu0 0.0
        %1741 = vmatprep.subr.mxu0 0.0
        %1742 = vmatpush1.xpose.msra.mxu0 0.0
        %1743 = vmatprep.subr.mxu0 0.0
        %1744 = vmatpush1.xpose.msra.mxu0 0.0
        %1745 = vmatprep.subr.mxu0 0.0
        %1746 = vmatpush1.xpose.msra.mxu0 0.0
        %1747 = vmatprep.subr.mxu0 0.0
        %1748 = vmatpush1.xpose.msra.mxu0 0.0
        %1749 = vmatprep.subr.mxu0 0.0
        %1750 = vmatpush1.xpose.msra.mxu0 0.0
        %1751 = vmatprep.subr.mxu0 0.0
        %1752 = vmatpush1.xpose.msra.mxu0 0.0
        %1753 = vmatprep.subr.mxu0 0.0
        %1754 = vmatpush1.xpose.msra.mxu0 0.0
        %1755 = vmatprep.mubr.f32.mxu0 0.0
        %1756 = vmatmul.mubr.f32.gmra.mrb[0].mxu0 %v1687
        %v1757 = vpop.f32.mrb[0].mxu0
        %v1758 = vadd.f32 0.0, %v1757
        %v1759 = vpop.f32.mrb[0].mxu0
        %1760 = vdwg.mxu0
        %v1761 = vsel %vm1521, %v1758, -inf
        %1762 = vmax.xlane.f32.xlu0 %v1761
        %v1763 = vpop.xlane.xlu0 %1762
        %v1764 = vsub.f32 %v1758, %v1763
        %v1765 = vmul.f32 %v1764, 1.442695
        %v1766 = vpow.pop %v1765
        %v1767 = vsel %vm1521, %v1766, 0.0
        %1768 = vadd.xlane.f32.xlu0 %v1767
        %v1769 = vpop.xlane.xlu0 %1768
        %v1770 = vrcp.pop %v1769
        %v1771 = vmul.f32 %v1766, %v1770
        %1772 = vrot.lane.b32.xlu0 %v1510, 56
        %v1773 = vpop.permute.xlu0 %1772
        %v1776 = vsel %vm1521, %v1771, 0
        %1778 = vmatprep.subr.mxu0 0.0
        %1779 = vmatpush1.msra.mxu0 %v1773
        %1780 = vmatprep.subr.mxu0 0.0
        %1781 = vmatpush1.msra.mxu0 0.0
        %1782 = vmatprep.subr.mxu0 0.0
        %1783 = vmatpush1.msra.mxu0 0.0
        %1784 = vmatprep.subr.mxu0 0.0
        %1785 = vmatpush1.msra.mxu0 0.0
        %1786 = vmatprep.subr.mxu0 0.0
        %1787 = vmatpush1.msra.mxu0 0.0
        %1788 = vmatprep.subr.mxu0 0.0
        %1789 = vmatpush1.msra.mxu0 0.0
        %1790 = vmatprep.subr.mxu0 0.0
        %1791 = vmatpush1.msra.mxu0 0.0
        %1792 = vmatprep.subr.mxu0 0.0
        %1793 = vmatpush1.msra.mxu0 0.0
        %1794 = vmatprep.subr.mxu0 0.0
        %1795 = vmatpush1.msra.mxu0 0.0
        %1796 = vmatprep.subr.mxu0 0.0
        %1797 = vmatpush1.msra.mxu0 0.0
        %1798 = vmatprep.subr.mxu0 0.0
        %1799 = vmatpush1.msra.mxu0 0.0
        %1800 = vmatprep.subr.mxu0 0.0
        %1801 = vmatpush1.msra.mxu0 0.0
        %1802 = vmatprep.subr.mxu0 0.0
        %1803 = vmatpush1.msra.mxu0 0.0
        %1804 = vmatprep.subr.mxu0 0.0
        %1805 = vmatpush1.msra.mxu0 0.0
        %1806 = vmatprep.subr.mxu0 0.0
        %1807 = vmatpush1.msra.mxu0 0.0
        %1808 = vmatprep.subr.mxu0 0.0
        %1809 = vmatpush1.msra.mxu0 0.0
        %1810 = vmatprep.subr.mxu0 0.0
        %1811 = vmatpush1.msra.mxu0 0.0
        %1812 = vmatprep.subr.mxu0 0.0
        %1813 = vmatpush1.msra.mxu0 0.0
        %1814 = vmatprep.subr.mxu0 0.0
        %1815 = vmatpush1.msra.mxu0 0.0
        %1816 = vmatprep.subr.mxu0 0.0
        %1817 = vmatpush1.msra.mxu0 0.0
        %1818 = vmatprep.subr.mxu0 0.0
        %1819 = vmatpush1.msra.mxu0 0.0
        %1820 = vmatprep.subr.mxu0 0.0
        %1821 = vmatpush1.msra.mxu0 0.0
        %1822 = vmatprep.subr.mxu0 0.0
        %1823 = vmatpush1.msra.mxu0 0.0
        %1824 = vmatprep.subr.mxu0 0.0
        %1825 = vmatpush1.msra.mxu0 0.0
        %1826 = vmatprep.subr.mxu0 0.0
        %1827 = vmatpush1.msra.mxu0 0.0
        %1828 = vmatprep.subr.mxu0 0.0
        %1829 = vmatpush1.msra.mxu0 0.0
        %1830 = vmatprep.subr.mxu0 0.0
        %1831 = vmatpush1.msra.mxu0 0.0
        %1832 = vmatprep.subr.mxu0 0.0
        %1833 = vmatpush1.msra.mxu0 0.0
        %1834 = vmatprep.subr.mxu0 0.0
        %1835 = vmatpush1.msra.mxu0 0.0
        %1836 = vmatprep.subr.mxu0 0.0
        %1837 = vmatpush1.msra.mxu0 0.0
        %1838 = vmatprep.subr.mxu0 0.0
        %1839 = vmatpush1.msra.mxu0 0.0
        %1840 = vmatprep.subr.mxu0 0.0
        %1841 = vmatpush1.msra.mxu0 0.0
        %1842 = vmatprep.mubr.f32.mxu0 0.0
        %1843 = vmatmul.mubr.f32.gmra.mrb[0].mxu0 %v1776
        %v1844 = vpop.f32.mrb[0].mxu0
        %v1845 = vadd.f32 0.0, %v1844
        %v1846 = vpop.f32.mrb[0].mxu0
        %1847 = vdwg.mxu0
        %1848 = vrot.lane.b32.xlu0 %v1510, 112
        %v1849 = vpop.permute.xlu0 %1848
        %1850 = vrot.lane.b32.xlu0 %v1510, 80
        %v1851 = vpop.permute.xlu0 %1850
        %v1852 = vsel %vm1521, %v1849, 0
        %v1854 = vsel %vm1521, %v1851, 0
        %1856 = vmatprep.subr.mxu0 0.0
        %1857 = vmatpush1.xpose.msra.mxu0 %v1854
        %1858 = vmatprep.subr.mxu0 0.0
        %1859 = vmatpush1.xpose.msra.mxu0 0.0
        %1860 = vmatprep.subr.mxu0 0.0
        %1861 = vmatpush1.xpose.msra.mxu0 0.0
        %1862 = vmatprep.subr.mxu0 0.0
        %1863 = vmatpush1.xpose.msra.mxu0 0.0
        %1864 = vmatprep.subr.mxu0 0.0
        %1865 = vmatpush1.xpose.msra.mxu0 0.0
        %1866 = vmatprep.subr.mxu0 0.0
        %1867 = vmatpush1.xpose.msra.mxu0 0.0
        %1868 = vmatprep.subr.mxu0 0.0
        %1869 = vmatpush1.xpose.msra.mxu0 0.0
        %1870 = vmatprep.subr.mxu0 0.0
        %1871 = vmatpush1.xpose.msra.mxu0 0.0
        %1872 = vmatprep.subr.mxu0 0.0
        %1873 = vmatpush1.xpose.msra.mxu0 0.0
        %1874 = vmatprep.subr.mxu0 0.0
        %1875 = vmatpush1.xpose.msra.mxu0 0.0
        %1876 = vmatprep.subr.mxu0 0.0
        %1877 = vmatpush1.xpose.msra.mxu0 0.0
        %1878 = vmatprep.subr.mxu0 0.0
        %1879 = vmatpush1.xpose.msra.mxu0 0.0
        %1880 = vmatprep.subr.mxu0 0.0
        %1881 = vmatpush1.xpose.msra.mxu0 0.0
        %1882 = vmatprep.subr.mxu0 0.0
        %1883 = vmatpush1.xpose.msra.mxu0 0.0
        %1884 = vmatprep.subr.mxu0 0.0
        %1885 = vmatpush1.xpose.msra.mxu0 0.0
        %1886 = vmatprep.subr.mxu0 0.0
        %1887 = vmatpush1.xpose.msra.mxu0 0.0
        %1888 = vmatprep.subr.mxu0 0.0
        %1889 = vmatpush1.xpose.msra.mxu0 0.0
        %1890 = vmatprep.subr.mxu0 0.0
        %1891 = vmatpush1.xpose.msra.mxu0 0.0
        %1892 = vmatprep.subr.mxu0 0.0
        %1893 = vmatpush1.xpose.msra.mxu0 0.0
        %1894 = vmatprep.subr.mxu0 0.0
        %1895 = vmatpush1.xpose.msra.mxu0 0.0
        %1896 = vmatprep.subr.mxu0 0.0
        %1897 = vmatpush1.xpose.msra.mxu0 0.0
        %1898 = vmatprep.subr.mxu0 0.0
        %1899 = vmatpush1.xpose.msra.mxu0 0.0
        %1900 = vmatprep.subr.mxu0 0.0
        %1901 = vmatpush1.xpose.msra.mxu0 0.0
        %1902 = vmatprep.subr.mxu0 0.0
        %1903 = vmatpush1.xpose.msra.mxu0 0.0
        %1904 = vmatprep.subr.mxu0 0.0
        %1905 = vmatpush1.xpose.msra.mxu0 0.0
        %1906 = vmatprep.subr.mxu0 0.0
        %1907 = vmatpush1.xpose.msra.mxu0 0.0
        %1908 = vmatprep.subr.mxu0 0.0
        %1909 = vmatpush1.xpose.msra.mxu0 0.0
        %1910 = vmatprep.subr.mxu0 0.0
        %1911 = vmatpush1.xpose.msra.mxu0 0.0
        %1912 = vmatprep.subr.mxu0 0.0
        %1913 = vmatpush1.xpose.msra.mxu0 0.0
        %1914 = vmatprep.subr.mxu0 0.0
        %1915 = vmatpush1.xpose.msra.mxu0 0.0
        %1916 = vmatprep.subr.mxu0 0.0
        %1917 = vmatpush1.xpose.msra.mxu0 0.0
        %1918 = vmatprep.subr.mxu0 0.0
        %1919 = vmatpush1.xpose.msra.mxu0 0.0
        %1920 = vmatprep.mubr.f32.mxu0 0.0
        %1921 = vmatmul.mubr.f32.gmra.mrb[0].mxu0 %v1852
        %v1922 = vpop.f32.mrb[0].mxu0
        %v1923 = vadd.f32 0.0, %v1922
        %v1924 = vpop.f32.mrb[0].mxu0
        %1925 = vdwg.mxu0
        %v1926 = vsel %vm1521, %v1923, -inf
        %1927 = vmax.xlane.f32.xlu0 %v1926
        %v1928 = vpop.xlane.xlu0 %1927
        %v1929 = vsub.f32 %v1923, %v1928
        %v1930 = vmul.f32 %v1929, 1.442695
        %v1931 = vpow.pop %v1930
        %v1932 = vsel %vm1521, %v1931, 0.0
        %1933 = vadd.xlane.f32.xlu0 %v1932
        %v1934 = vpop.xlane.xlu0 %1933
        %v1935 = vrcp.pop %v1934
        %v1936 = vmul.f32 %v1931, %v1935
        %1937 = vrot.lane.b32.xlu0 %v1510, 48
        %v1938 = vpop.permute.xlu0 %1937
        %v1941 = vsel %vm1521, %v1936, 0
        %1943 = vmatprep.subr.mxu0 0.0
        %1944 = vmatpush1.msra.mxu0 %v1938
        %1945 = vmatprep.subr.mxu0 0.0
        %1946 = vmatpush1.msra.mxu0 0.0
        %1947 = vmatprep.subr.mxu0 0.0
        %1948 = vmatpush1.msra.mxu0 0.0
        %1949 = vmatprep.subr.mxu0 0.0
        %1950 = vmatpush1.msra.mxu0 0.0
        %1951 = vmatprep.subr.mxu0 0.0
        %1952 = vmatpush1.msra.mxu0 0.0
        %1953 = vmatprep.subr.mxu0 0.0
        %1954 = vmatpush1.msra.mxu0 0.0
        %1955 = vmatprep.subr.mxu0 0.0
        %1956 = vmatpush1.msra.mxu0 0.0
        %1957 = vmatprep.subr.mxu0 0.0
        %1958 = vmatpush1.msra.mxu0 0.0
        %1959 = vmatprep.subr.mxu0 0.0
        %1960 = vmatpush1.msra.mxu0 0.0
        %1961 = vmatprep.subr.mxu0 0.0
        %1962 = vmatpush1.msra.mxu0 0.0
        %1963 = vmatprep.subr.mxu0 0.0
        %1964 = vmatpush1.msra.mxu0 0.0
        %1965 = vmatprep.subr.mxu0 0.0
        %1966 = vmatpush1.msra.mxu0 0.0
        %1967 = vmatprep.subr.mxu0 0.0
        %1968 = vmatpush1.msra.mxu0 0.0
        %1969 = vmatprep.subr.mxu0 0.0
        %1970 = vmatpush1.msra.mxu0 0.0
        %1971 = vmatprep.subr.mxu0 0.0
        %1972 = vmatpush1.msra.mxu0 0.0
        %1973 = vmatprep.subr.mxu0 0.0
        %1974 = vmatpush1.msra.mxu0 0.0
        %1975 = vmatprep.subr.mxu0 0.0
        %1976 = vmatpush1.msra.mxu0 0.0
        %1977 = vmatprep.subr.mxu0 0.0
        %1978 = vmatpush1.msra.mxu0 0.0
        %1979 = vmatprep.subr.mxu0 0.0
        %1980 = vmatpush1.msra.mxu0 0.0
        %1981 = vmatprep.subr.mxu0 0.0
        %1982 = vmatpush1.msra.mxu0 0.0
        %1983 = vmatprep.subr.mxu0 0.0
        %1984 = vmatpush1.msra.mxu0 0.0
        %1985 = vmatprep.subr.mxu0 0.0
        %1986 = vmatpush1.msra.mxu0 0.0
        %1987 = vmatprep.subr.mxu0 0.0
        %1988 = vmatpush1.msra.mxu0 0.0
        %1989 = vmatprep.subr.mxu0 0.0
        %1990 = vmatpush1.msra.mxu0 0.0
        %1991 = vmatprep.subr.mxu0 0.0
        %1992 = vmatpush1.msra.mxu0 0.0
        %1993 = vmatprep.subr.mxu0 0.0
        %1994 = vmatpush1.msra.mxu0 0.0
        %1995 = vmatprep.subr.mxu0 0.0
        %1996 = vmatpush1.msra.mxu0 0.0
        %1997 = vmatprep.subr.mxu0 0.0
        %1998 = vmatpush1.msra.mxu0 0.0
        %1999 = vmatprep.subr.mxu0 0.0
        %2000 = vmatpush1.msra.mxu0 0.0
        %2001 = vmatprep.subr.mxu0 0.0
        %2002 = vmatpush1.msra.mxu0 0.0
        %2003 = vmatprep.subr.mxu0 0.0
        %2004 = vmatpush1.msra.mxu0 0.0
        %2005 = vmatprep.subr.mxu0 0.0
        %2006 = vmatpush1.msra.mxu0 0.0
        %2007 = vmatprep.mubr.f32.mxu0 0.0
        %2008 = vmatmul.mubr.f32.gmra.mrb[0].mxu0 %v1941
        %v2009 = vpop.f32.mrb[0].mxu0
        %v2010 = vadd.f32 0.0, %v2009
        %v2011 = vpop.f32.mrb[0].mxu0
        %2012 = vdwg.mxu0
        %2013 = vrot.lane.b32.xlu0 %v1510, 104
        %v2014 = vpop.permute.xlu0 %2013
        %2015 = vrot.lane.b32.xlu0 %v1510, 72
        %v2016 = vpop.permute.xlu0 %2015
        %v2017 = vsel %vm1521, %v2014, 0
        %v2019 = vsel %vm1521, %v2016, 0
        %2021 = vmatprep.subr.mxu0 0.0
        %2022 = vmatpush1.xpose.msra.mxu0 %v2019
        %2023 = vmatprep.subr.mxu0 0.0
        %2024 = vmatpush1.xpose.msra.mxu0 0.0
        %2025 = vmatprep.subr.mxu0 0.0
        %2026 = vmatpush1.xpose.msra.mxu0 0.0
        %2027 = vmatprep.subr.mxu0 0.0
        %2028 = vmatpush1.xpose.msra.mxu0 0.0
        %2029 = vmatprep.subr.mxu0 0.0
        %2030 = vmatpush1.xpose.msra.mxu0 0.0
        %2031 = vmatprep.subr.mxu0 0.0
        %2032 = vmatpush1.xpose.msra.mxu0 0.0
        %2033 = vmatprep.subr.mxu0 0.0
        %2034 = vmatpush1.xpose.msra.mxu0 0.0
        %2035 = vmatprep.subr.mxu0 0.0
        %2036 = vmatpush1.xpose.msra.mxu0 0.0
        %2037 = vmatprep.subr.mxu0 0.0
        %2038 = vmatpush1.xpose.msra.mxu0 0.0
        %2039 = vmatprep.subr.mxu0 0.0
        %2040 = vmatpush1.xpose.msra.mxu0 0.0
        %2041 = vmatprep.subr.mxu0 0.0
        %2042 = vmatpush1.xpose.msra.mxu0 0.0
        %2043 = vmatprep.subr.mxu0 0.0
        %2044 = vmatpush1.xpose.msra.mxu0 0.0
        %2045 = vmatprep.subr.mxu0 0.0
        %2046 = vmatpush1.xpose.msra.mxu0 0.0
        %2047 = vmatprep.subr.mxu0 0.0
        %2048 = vmatpush1.xpose.msra.mxu0 0.0
        %2049 = vmatprep.subr.mxu0 0.0
        %2050 = vmatpush1.xpose.msra.mxu0 0.0
        %2051 = vmatprep.subr.mxu0 0.0
        %2052 = vmatpush1.xpose.msra.mxu0 0.0
        %2053 = vmatprep.subr.mxu0 0.0
        %2054 = vmatpush1.xpose.msra.mxu0 0.0
        %2055 = vmatprep.subr.mxu0 0.0
        %2056 = vmatpush1.xpose.msra.mxu0 0.0
        %2057 = vmatprep.subr.mxu0 0.0
        %2058 = vmatpush1.xpose.msra.mxu0 0.0
        %2059 = vmatprep.subr.mxu0 0.0
        %2060 = vmatpush1.xpose.msra.mxu0 0.0
        %2061 = vmatprep.subr.mxu0 0.0
        %2062 = vmatpush1.xpose.msra.mxu0 0.0
        %2063 = vmatprep.subr.mxu0 0.0
        %2064 = vmatpush1.xpose.msra.mxu0 0.0
        %2065 = vmatprep.subr.mxu0 0.0
        %2066 = vmatpush1.xpose.msra.mxu0 0.0
        %2067 = vmatprep.subr.mxu0 0.0
        %2068 = vmatpush1.xpose.msra.mxu0 0.0
        %2069 = vmatprep.subr.mxu0 0.0
        %2070 = vmatpush1.xpose.msra.mxu0 0.0
        %2071 = vmatprep.subr.mxu0 0.0
        %2072 = vmatpush1.xpose.msra.mxu0 0.0
        %2073 = vmatprep.subr.mxu0 0.0
        %2074 = vmatpush1.xpose.msra.mxu0 0.0
        %2075 = vmatprep.subr.mxu0 0.0
        %2076 = vmatpush1.xpose.msra.mxu0 0.0
        %2077 = vmatprep.subr.mxu0 0.0
        %2078 = vmatpush1.xpose.msra.mxu0 0.0
        %2079 = vmatprep.subr.mxu0 0.0
        %2080 = vmatpush1.xpose.msra.mxu0 0.0
        %2081 = vmatprep.subr.mxu0 0.0
        %2082 = vmatpush1.xpose.msra.mxu0 0.0
        %2083 = vmatprep.subr.mxu0 0.0
        %2084 = vmatpush1.xpose.msra.mxu0 0.0
        %2085 = vmatprep.mubr.f32.mxu0 0.0
        %2086 = vmatmul.mubr.f32.gmra.mrb[0].mxu0 %v2017
        %v2087 = vpop.f32.mrb[0].mxu0
        %v2088 = vadd.f32 0.0, %v2087
        %v2089 = vpop.f32.mrb[0].mxu0
        %2090 = vdwg.mxu0
        %v2091 = vsel %vm1521, %v2088, -inf
        %2092 = vmax.xlane.f32.xlu0 %v2091
        %v2093 = vpop.xlane.xlu0 %2092
        %v2094 = vsub.f32 %v2088, %v2093
        %v2095 = vmul.f32 %v2094, 1.442695
        %v2096 = vpow.pop %v2095
        %v2097 = vsel %vm1521, %v2096, 0.0
        %2098 = vadd.xlane.f32.xlu0 %v2097
        %v2099 = vpop.xlane.xlu0 %2098
        %v2100 = vrcp.pop %v2099
        %v2101 = vmul.f32 %v2096, %v2100
        %2102 = vrot.lane.b32.xlu0 %v1510, 40
        %v2103 = vpop.permute.xlu0 %2102
        %v2106 = vsel %vm1521, %v2101, 0
        %2108 = vmatprep.subr.mxu0 0.0
        %2109 = vmatpush1.msra.mxu0 %v2103
        %2110 = vmatprep.subr.mxu0 0.0
        %2111 = vmatpush1.msra.mxu0 0.0
        %2112 = vmatprep.subr.mxu0 0.0
        %2113 = vmatpush1.msra.mxu0 0.0
        %2114 = vmatprep.subr.mxu0 0.0
        %2115 = vmatpush1.msra.mxu0 0.0
        %2116 = vmatprep.subr.mxu0 0.0
        %2117 = vmatpush1.msra.mxu0 0.0
        %2118 = vmatprep.subr.mxu0 0.0
        %2119 = vmatpush1.msra.mxu0 0.0
        %2120 = vmatprep.subr.mxu0 0.0
        %2121 = vmatpush1.msra.mxu0 0.0
        %2122 = vmatprep.subr.mxu0 0.0
        %2123 = vmatpush1.msra.mxu0 0.0
        %2124 = vmatprep.subr.mxu0 0.0
        %2125 = vmatpush1.msra.mxu0 0.0
        %2126 = vmatprep.subr.mxu0 0.0
        %2127 = vmatpush1.msra.mxu0 0.0
        %2128 = vmatprep.subr.mxu0 0.0
        %2129 = vmatpush1.msra.mxu0 0.0
        %2130 = vmatprep.subr.mxu0 0.0
        %2131 = vmatpush1.msra.mxu0 0.0
        %2132 = vmatprep.subr.mxu0 0.0
        %2133 = vmatpush1.msra.mxu0 0.0
        %2134 = vmatprep.subr.mxu0 0.0
        %2135 = vmatpush1.msra.mxu0 0.0
        %2136 = vmatprep.subr.mxu0 0.0
        %2137 = vmatpush1.msra.mxu0 0.0
        %2138 = vmatprep.subr.mxu0 0.0
        %2139 = vmatpush1.msra.mxu0 0.0
        %2140 = vmatprep.subr.mxu0 0.0
        %2141 = vmatpush1.msra.mxu0 0.0
        %2142 = vmatprep.subr.mxu0 0.0
        %2143 = vmatpush1.msra.mxu0 0.0
        %2144 = vmatprep.subr.mxu0 0.0
        %2145 = vmatpush1.msra.mxu0 0.0
        %2146 = vmatprep.subr.mxu0 0.0
        %2147 = vmatpush1.msra.mxu0 0.0
        %2148 = vmatprep.subr.mxu0 0.0
        %2149 = vmatpush1.msra.mxu0 0.0
        %2150 = vmatprep.subr.mxu0 0.0
        %2151 = vmatpush1.msra.mxu0 0.0
        %2152 = vmatprep.subr.mxu0 0.0
        %2153 = vmatpush1.msra.mxu0 0.0
        %2154 = vmatprep.subr.mxu0 0.0
        %2155 = vmatpush1.msra.mxu0 0.0
        %2156 = vmatprep.subr.mxu0 0.0
        %2157 = vmatpush1.msra.mxu0 0.0
        %2158 = vmatprep.subr.mxu0 0.0
        %2159 = vmatpush1.msra.mxu0 0.0
        %2160 = vmatprep.subr.mxu0 0.0
        %2161 = vmatpush1.msra.mxu0 0.0
        %2162 = vmatprep.subr.mxu0 0.0
        %2163 = vmatpush1.msra.mxu0 0.0
        %2164 = vmatprep.subr.mxu0 0.0
        %2165 = vmatpush1.msra.mxu0 0.0
        %2166 = vmatprep.subr.mxu0 0.0
        %2167 = vmatpush1.msra.mxu0 0.0
        %2168 = vmatprep.subr.mxu0 0.0
        %2169 = vmatpush1.msra.mxu0 0.0
        %2170 = vmatprep.subr.mxu0 0.0
        %2171 = vmatpush1.msra.mxu0 0.0
        %2172 = vmatprep.mubr.f32.mxu0 0.0
        %2173 = vmatmul.mubr.f32.gmra.mrb[0].mxu0 %v2106
        %v2174 = vpop.f32.mrb[0].mxu0
        %v2175 = vadd.f32 0.0, %v2174
        %v2176 = vpop.f32.mrb[0].mxu0
        %2177 = vdwg.mxu0
        %2179 = vrot.lane.b32.xlu0 %v1845, 8
        %v2180 = vpop.permute.xlu0 %2179
        %2183 = vrot.lane.b32.xlu0 %v2010, 16
        %v2184 = vpop.permute.xlu0 %2183
        %2187 = vrot.lane.b32.xlu0 %v2175, 24
        %v2188 = vpop.permute.xlu0 %2187
        %v2190 = vsel %vm1521, %v1680, %v2180
        %vm2191 = vcmask 130048
        %v2192 = vsel %vm2191, %v2190, %v2184
        %vm2193 = vcmask 195584
        %v2194 = vsel %vm2193, %v2192, %v2188
        %v2196 = vlaneseq
        %v2197 = vshrl.u32 %v2196, 7
        %v2198 = vsub.s32 0, %v2197
        %v2199 = vrot.slane %v1517, %v2198
        %v2202 = vsel %vm1439, %v2194, 0
        %2204 = vmatprep.subr.mxu0 0.0
        %2205 = vmatpush1.msra.mxu0 %v1513
        %2206 = vmatprep.subr.mxu0 0.0
        %2207 = vmatpush1.msra.mxu0 %v1514
        %2208 = vmatprep.subr.mxu0 0.0
        %2209 = vmatpush1.msra.mxu0 %v1515
        %2210 = vmatprep.subr.mxu0 0.0
        %2211 = vmatpush1.msra.mxu0 %v1516
        %2212 = vmatprep.subr.mxu0 0.0
        %2213 = vmatpush1.msra.mxu0 0.0
        %2214 = vmatprep.subr.mxu0 0.0
        %2215 = vmatpush1.msra.mxu0 0.0
        %2216 = vmatprep.subr.mxu0 0.0
        %2217 = vmatpush1.msra.mxu0 0.0
        %2218 = vmatprep.subr.mxu0 0.0
        %2219 = vmatpush1.msra.mxu0 0.0
        %2220 = vmatprep.subr.mxu0 0.0
        %2221 = vmatpush1.msra.mxu0 0.0
        %2222 = vmatprep.subr.mxu0 0.0
        %2223 = vmatpush1.msra.mxu0 0.0
        %2224 = vmatprep.subr.mxu0 0.0
        %2225 = vmatpush1.msra.mxu0 0.0
        %2226 = vmatprep.subr.mxu0 0.0
        %2227 = vmatpush1.msra.mxu0 0.0
        %2228 = vmatprep.subr.mxu0 0.0
        %2229 = vmatpush1.msra.mxu0 0.0
        %2230 = vmatprep.subr.mxu0 0.0
        %2231 = vmatpush1.msra.mxu0 0.0
        %2232 = vmatprep.subr.mxu0 0.0
        %2233 = vmatpush1.msra.mxu0 0.0
        %2234 = vmatprep.subr.mxu0 0.0
        %2235 = vmatpush1.msra.mxu0 0.0
        %2236 = vmatprep.subr.mxu0 0.0
        %2237 = vmatpush1.msra.mxu0 0.0
        %2238 = vmatprep.subr.mxu0 0.0
        %2239 = vmatpush1.msra.mxu0 0.0
        %2240 = vmatprep.subr.mxu0 0.0
        %2241 = vmatpush1.msra.mxu0 0.0
        %2242 = vmatprep.subr.mxu0 0.0
        %2243 = vmatpush1.msra.mxu0 0.0
        %2244 = vmatprep.subr.mxu0 0.0
        %2245 = vmatpush1.msra.mxu0 0.0
        %2246 = vmatprep.subr.mxu0 0.0
        %2247 = vmatpush1.msra.mxu0 0.0
        %2248 = vmatprep.subr.mxu0 0.0
        %2249 = vmatpush1.msra.mxu0 0.0
        %2250 = vmatprep.subr.mxu0 0.0
        %2251 = vmatpush1.msra.mxu0 0.0
        %2252 = vmatprep.subr.mxu0 0.0
        %2253 = vmatpush1.msra.mxu0 0.0
        %2254 = vmatprep.subr.mxu0 0.0
        %2255 = vmatpush1.msra.mxu0 0.0
        %2256 = vmatprep.subr.mxu0 0.0
        %2257 = vmatpush1.msra.mxu0 0.0
        %2258 = vmatprep.subr.mxu0 0.0
        %2259 = vmatpush1.msra.mxu0 0.0
        %2260 = vmatprep.subr.mxu0 0.0
        %2261 = vmatpush1.msra.mxu0 0.0
        %2262 = vmatprep.subr.mxu0 0.0
        %2263 = vmatpush1.msra.mxu0 0.0
        %2264 = vmatprep.subr.mxu0 0.0
        %2265 = vmatpush1.msra.mxu0 0.0
        %2266 = vmatprep.subr.mxu0 0.0
        %2267 = vmatpush1.msra.mxu0 0.0
        %2268 = vmatprep.mubr.f32.mxu0 0.0
        %2269 = vmatmul.mubr.f32.gmra.mrb[0].mxu0 %v2202
        %v2270 = vpop.f32.mrb[0].mxu0
        %v2271 = vadd.f32 %v2199, %v2270
        %v2272 = vpop.f32.mrb[0].mxu0
        %2273 = vdwg.mxu0
        %v2274 = vadd.f32 %v1426, %v2271
        %v2275 = vld [vmem:[#allocation8] sm:$0x1]
        %v2276 = vld [vmem:[#allocation10] sm:$0x1]
        %v2277 = vsel %vm1439, %v2274, 0.0
        %2278 = vadd.xlane.f32.xlu0 %v2277
        %v2279 = vpop.xlane.xlu0 %2278
        %v2280 = vrcp.pop 32.0
        %v2281 = vmul.f32 %v2279, %v2280
        %v2282 = vsub.f32 %v2274, %v2281
        %v2283 = vmul.f32 %v2282, %v2282
        %v2284 = vsel %vm1439, %v2283, 0.0
        %2285 = vadd.xlane.f32.xlu0 %v2284
        %v2286 = vpop.xlane.xlu0 %2285
        %v2287 = vmul.f32 %v2286, %v2280
        %v2288 = vadd.f32 %v2287, 1e-10
        %v2289 = vrsqrt.pop %v2288
        %v2290 = vmul.f32 %v2282, %v2289
        %v2292 = vlaneseq
        %v2293 = vshrl.u32 %v2292, 7
        %v2294 = vsub.s32 0, %v2293
        %v2295 = vrot.slane %v2275, %v2294
        %v2297 = vmul.f32 %v2295, %v2290
        %v2299 = vlaneseq
        %v2300 = vshrl.u32 %v2299, 7
        %v2301 = vsub.s32 0, %v2300
        %v2302 = vrot.slane %v2276, %v2301
        %v2304 = vadd.f32 %v2297, %v2302
        %v2305 = vld [vmem:[%s17] sm:$0xff]
        %v2306 = vld [vmem:[%s17 + $0x8] sm:$0xff]
        %v2307 = vld [vmem:[%s17 + $0x10] sm:$0xff]
        %v2308 = vld [vmem:[%s17 + $0x18] sm:$0xff]
        %v2309 = vld [vmem:[#allocation11] sm:$0x1]
        %v2310 = vld [vmem:[%s21] sm:$0xff]
        %v2311 = vld [vmem:[%s21 + $0x8] sm:$0xff]
        %v2312 = vld [vmem:[%s21 + $0x10] sm:$0xff]
        %v2313 = vld [vmem:[%s21 + $0x18] sm:$0xff]
        %v2314 = vld [vmem:[%s21 + $0x20] sm:$0xff]
        %v2315 = vld [vmem:[%s21 + $0x28] sm:$0xff]
        %v2316 = vld [vmem:[%s21 + $0x30] sm:$0xff]
        %v2317 = vld [vmem:[%s21 + $0x38] sm:$0xff]
        %v2318 = vld [vmem:[#allocation13] sm:$0x1]
        %v2320 = vlaneseq
        %v2321 = vshrl.u32 %v2320, 7
        %v2322 = vsub.s32 0, %v2321
        %v2323 = vrot.slane %v2309, %v2322
        %v2326 = vsel %vm1439, %v2304, 0
        %2328 = vmatprep.subr.mxu0 0.0
        %2329 = vmatpush1.msra.mxu0 %v2305
        %2330 = vmatprep.subr.mxu0 0.0
        %2331 = vmatpush1.msra.mxu0 %v2306
        %2332 = vmatprep.subr.mxu0 0.0
        %2333 = vmatpush1.msra.mxu0 %v2307
        %2334 = vmatprep.subr.mxu0 0.0
        %2335 = vmatpush1.msra.mxu0 %v2308
        %2336 = vmatprep.subr.mxu0 0.0
        %2337 = vmatpush1.msra.mxu0 0.0
        %2338 = vmatprep.subr.mxu0 0.0
        %2339 = vmatpush1.msra.mxu0 0.0
        %2340 = vmatprep.subr.mxu0 0.0
        %2341 = vmatpush1.msra.mxu0 0.0
        %2342 = vmatprep.subr.mxu0 0.0
        %2343 = vmatpush1.msra.mxu0 0.0
        %2344 = vmatprep.subr.mxu0 0.0
        %2345 = vmatpush1.msra.mxu0 0.0
        %2346 = vmatprep.subr.mxu0 0.0
        %2347 = vmatpush1.msra.mxu0 0.0
        %2348 = vmatprep.subr.mxu0 0.0
        %2349 = vmatpush1.msra.mxu0 0.0
        %2350 = vmatprep.subr.mxu0 0.0
        %2351 = vmatpush1.msra.mxu0 0.0
        %2352 = vmatprep.subr.mxu0 0.0
        %2353 = vmatpush1.msra.mxu0 0.0
        %2354 = vmatprep.subr.mxu0 0.0
        %2355 = vmatpush1.msra.mxu0 0.0
        %2356 = vmatprep.subr.mxu0 0.0
        %2357 = vmatpush1.msra.mxu0 0.0
        %2358 = vmatprep.subr.mxu0 0.0
        %2359 = vmatpush1.msra.mxu0 0.0
        %2360 = vmatprep.subr.mxu0 0.0
        %2361 = vmatpush1.msra.mxu0 0.0
        %2362 = vmatprep.subr.mxu0 0.0
        %2363 = vmatpush1.msra.mxu0 0.0
        %2364 = vmatprep.subr.mxu0 0.0
        %2365 = vmatpush1.msra.mxu0 0.0
        %2366 = vmatprep.subr.mxu0 0.0
        %2367 = vmatpush1.msra.mxu0 0.0
        %2368 = vmatprep.subr.mxu0 0.0
        %2369 = vmatpush1.msra.mxu0 0.0
        %2370 = vmatprep.subr.mxu0 0.0
        %2371 = vmatpush1.msra.mxu0 0.0
        %2372 = vmatprep.subr.mxu0 0.0
        %2373 = vmatpush1.msra.mxu0 0.0
        %2374 = vmatprep.subr.mxu0 0.0
        %2375 = vmatpush1.msra.mxu0 0.0
        %2376 = vmatprep.subr.mxu0 0.0
        %2377 = vmatpush1.msra.mxu0 0.0
        %2378 = vmatprep.subr.mxu0 0.0
        %2379 = vmatpush1.msra.mxu0 0.0
        %2380 = vmatprep.subr.mxu0 0.0
        %2381 = vmatpush1.msra.mxu0 0.0
        %2382 = vmatprep.subr.mxu0 0.0
        %2383 = vmatpush1.msra.mxu0 0.0
        %2384 = vmatprep.subr.mxu0 0.0
        %2385 = vmatpush1.msra.mxu0 0.0
        %2386 = vmatprep.subr.mxu0 0.0
        %2387 = vmatpush1.msra.mxu0 0.0
        %2388 = vmatprep.subr.mxu0 0.0
        %2389 = vmatpush1.msra.mxu0 0.0
        %2390 = vmatprep.subr.mxu0 0.0
        %2391 = vmatpush1.msra.mxu0 0.0
        %2392 = vmatprep.mubr.f32.mxu0 0.0
        %2393 = vmatmul.mubr.f32.gmra.mrb[0].mxu0 %v2326
        %v2394 = vpop.f32.mrb[0].mxu0
        %v2395 = vadd.f32 %v2323, %v2394
        %v2396 = vpop.f32.mrb[0].mxu0
        %2397 = vdwg.mxu0
        %v2398 = vmax.f32 %v2395, 0.0
        %v2400 = vlaneseq
        %v2401 = vshrl.u32 %v2400, 7
        %v2402 = vsub.s32 0, %v2401
        %v2403 = vrot.slane %v2318, %v2402
        %vm2405 = vcmask 523264
        %v2407 = vsel %vm2405, %v2398, 0
        %2409 = vmatprep.subr.mxu0 0.0
        %2410 = vmatpush1.msra.mxu0 %v2310
        %2411 = vmatprep.subr.mxu0 0.0
        %2412 = vmatpush1.msra.mxu0 %v2311
        %2413 = vmatprep.subr.mxu0 0.0
        %2414 = vmatpush1.msra.mxu0 %v2312
        %2415 = vmatprep.subr.mxu0 0.0
        %2416 = vmatpush1.msra.mxu0 %v2313
        %2417 = vmatprep.subr.mxu0 0.0
        %2418 = vmatpush1.msra.mxu0 %v2314
        %2419 = vmatprep.subr.mxu0 0.0
        %2420 = vmatpush1.msra.mxu0 %v2315
        %2421 = vmatprep.subr.mxu0 0.0
        %2422 = vmatpush1.msra.mxu0 %v2316
        %2423 = vmatprep.subr.mxu0 0.0
        %2424 = vmatpush1.msra.mxu0 %v2317
        %2425 = vmatprep.subr.mxu0 0.0
        %2426 = vmatpush1.msra.mxu0 0.0
        %2427 = vmatprep.subr.mxu0 0.0
        %2428 = vmatpush1.msra.mxu0 0.0
        %2429 = vmatprep.subr.mxu0 0.0
        %2430 = vmatpush1.msra.mxu0 0.0
        %2431 = vmatprep.subr.mxu0 0.0
        %2432 = vmatpush1.msra.mxu0 0.0
        %2433 = vmatprep.subr.mxu0 0.0
        %2434 = vmatpush1.msra.mxu0 0.0
        %2435 = vmatprep.subr.mxu0 0.0
        %2436 = vmatpush1.msra.mxu0 0.0
        %2437 = vmatprep.subr.mxu0 0.0
        %2438 = vmatpush1.msra.mxu0 0.0
        %2439 = vmatprep.subr.mxu0 0.0
        %2440 = vmatpush1.msra.mxu0 0.0
        %2441 = vmatprep.subr.mxu0 0.0
        %2442 = vmatpush1.msra.mxu0 0.0
        %2443 = vmatprep.subr.mxu0 0.0
        %2444 = vmatpush1.msra.mxu0 0.0
        %2445 = vmatprep.subr.mxu0 0.0
        %2446 = vmatpush1.msra.mxu0 0.0
        %2447 = vmatprep.subr.mxu0 0.0
        %2448 = vmatpush1.msra.mxu0 0.0
        %2449 = vmatprep.subr.mxu0 0.0
        %2450 = vmatpush1.msra.mxu0 0.0
        %2451 = vmatprep.subr.mxu0 0.0
        %2452 = vmatpush1.msra.mxu0 0.0
        %2453 = vmatprep.subr.mxu0 0.0
        %2454 = vmatpush1.msra.mxu0 0.0
        %2455 = vmatprep.subr.mxu0 0.0
        %2456 = vmatpush1.msra.mxu0 0.0
        %2457 = vmatprep.subr.mxu0 0.0
        %2458 = vmatpush1.msra.mxu0 0.0
        %2459 = vmatprep.subr.mxu0 0.0
        %2460 = vmatpush1.msra.mxu0 0.0
        %2461 = vmatprep.subr.mxu0 0.0
        %2462 = vmatpush1.msra.mxu0 0.0
        %2463 = vmatprep.subr.mxu0 0.0
        %2464 = vmatpush1.msra.mxu0 0.0
        %2465 = vmatprep.subr.mxu0 0.0
        %2466 = vmatpush1.msra.mxu0 0.0
        %2467 = vmatprep.subr.mxu0 0.0
        %2468 = vmatpush1.msra.mxu0 0.0
        %2469 = vmatprep.subr.mxu0 0.0
        %2470 = vmatpush1.msra.mxu0 0.0
        %2471 = vmatprep.subr.mxu0 0.0
        %2472 = vmatpush1.msra.mxu0 0.0
        %2473 = vmatprep.mubr.f32.mxu0 0.0
        %2474 = vmatmul.mubr.f32.gmra.mrb[0].mxu0 %v2407
        %v2475 = vpop.f32.mrb[0].mxu0
        %v2476 = vadd.f32 %v2403, %v2475
        %v2477 = vpop.f32.mrb[0].mxu0
        %2478 = vdwg.mxu0
        %v2479 = vadd.f32 %v2304, %v2476
        %v2480 = vld [vmem:[#allocation14] sm:$0x1]
        %v2481 = vld [vmem:[#allocation16] sm:$0x1]
        %v2482 = vsel %vm1439, %v2479, 0.0
        %2483 = vadd.xlane.f32.xlu0 %v2482
        %v2484 = vpop.xlane.xlu0 %2483
        %v2485 = vmul.f32 %v2484, %v2280
        %v2486 = vsub.f32 %v2479, %v2485
        %v2487 = vmul.f32 %v2486, %v2486
        %v2488 = vsel %vm1439, %v2487, 0.0
        %2489 = vadd.xlane.f32.xlu0 %v2488
        %v2490 = vpop.xlane.xlu0 %2489
        %v2491 = vmul.f32 %v2490, %v2280
        %v2492 = vadd.f32 %v2491, 1e-10
        %v2493 = vrsqrt.pop %v2492
        %v2494 = vmul.f32 %v2486, %v2493
        %v2496 = vlaneseq
        %v2497 = vshrl.u32 %v2496, 7
        %v2498 = vsub.s32 0, %v2497
        %v2499 = vrot.slane %v2480, %v2498
        %v2501 = vmul.f32 %v2499, %v2494
        %v2503 = vlaneseq
        %v2504 = vshrl.u32 %v2503, 7
        %v2505 = vsub.s32 0, %v2504
        %v2506 = vrot.slane %v2481, %v2505
        %v2508 = vadd.f32 %v2501, %v2506
        %s2509 = scalar_lea.vmem %s5, 32
        %v2510 = vld [vmem:[%s2509] sm:$0xff]
        %v2511 = vld [vmem:[%s2509 + $0x8] sm:$0xff]
        %v2512 = vld [vmem:[%s2509 + $0x10] sm:$0xff]
        %v2513 = vld [vmem:[%s2509 + $0x18] sm:$0xff]
        %s2514 = scalar_lea.vmem %s7, 1
        %v2515 = vld [vmem:[%s2514] sm:$0x1]
        %v2517 = vlaneseq
        %v2518 = vshrl.u32 %v2517, 7
        %v2519 = vsub.s32 0, %v2518
        %v2520 = vrot.slane %v2515, %v2519
        %v2523 = vsel %vm1439, %v2508, 0
        %2525 = vmatprep.subr.mxu0 0.0
        %2526 = vmatpush1.msra.mxu0 %v2510
        %2527 = vmatprep.subr.mxu0 0.0
        %2528 = vmatpush1.msra.mxu0 %v2511
        %2529 = vmatprep.subr.mxu0 0.0
        %2530 = vmatpush1.msra.mxu0 %v2512
        %2531 = vmatprep.subr.mxu0 0.0
        %2532 = vmatpush1.msra.mxu0 %v2513
        %2533 = vmatprep.subr.mxu0 0.0
        %2534 = vmatpush1.msra.mxu0 0.0
        %2535 = vmatprep.subr.mxu0 0.0
        %2536 = vmatpush1.msra.mxu0 0.0
        %2537 = vmatprep.subr.mxu0 0.0
        %2538 = vmatpush1.msra.mxu0 0.0
        %2539 = vmatprep.subr.mxu0 0.0
        %2540 = vmatpush1.msra.mxu0 0.0
        %2541 = vmatprep.subr.mxu0 0.0
        %2542 = vmatpush1.msra.mxu0 0.0
        %2543 = vmatprep.subr.mxu0 0.0
        %2544 = vmatpush1.msra.mxu0 0.0
        %2545 = vmatprep.subr.mxu0 0.0
        %2546 = vmatpush1.msra.mxu0 0.0
        %2547 = vmatprep.subr.mxu0 0.0
        %2548 = vmatpush1.msra.mxu0 0.0
        %2549 = vmatprep.subr.mxu0 0.0
        %2550 = vmatpush1.msra.mxu0 0.0
        %2551 = vmatprep.subr.mxu0 0.0
        %2552 = vmatpush1.msra.mxu0 0.0
        %2553 = vmatprep.subr.mxu0 0.0
        %2554 = vmatpush1.msra.mxu0 0.0
        %2555 = vmatprep.subr.mxu0 0.0
        %2556 = vmatpush1.msra.mxu0 0.0
        %2557 = vmatprep.subr.mxu0 0.0
        %2558 = vmatpush1.msra.mxu0 0.0
        %2559 = vmatprep.subr.mxu0 0.0
        %2560 = vmatpush1.msra.mxu0 0.0
        %2561 = vmatprep.subr.mxu0 0.0
        %2562 = vmatpush1.msra.mxu0 0.0
        %2563 = vmatprep.subr.mxu0 0.0
        %2564 = vmatpush1.msra.mxu0 0.0
        %2565 = vmatprep.subr.mxu0 0.0
        %2566 = vmatpush1.msra.mxu0 0.0
        %2567 = vmatprep.subr.mxu0 0.0
        %2568 = vmatpush1.msra.mxu0 0.0
        %2569 = vmatprep.subr.mxu0 0.0
        %2570 = vmatpush1.msra.mxu0 0.0
        %2571 = vmatprep.subr.mxu0 0.0
        %2572 = vmatpush1.msra.mxu0 0.0
        %2573 = vmatprep.subr.mxu0 0.0
        %2574 = vmatpush1.msra.mxu0 0.0
        %2575 = vmatprep.subr.mxu0 0.0
        %2576 = vmatpush1.msra.mxu0 0.0
        %2577 = vmatprep.subr.mxu0 0.0
        %2578 = vmatpush1.msra.mxu0 0.0
        %2579 = vmatprep.subr.mxu0 0.0
        %2580 = vmatpush1.msra.mxu0 0.0
        %2581 = vmatprep.subr.mxu0 0.0
        %2582 = vmatpush1.msra.mxu0 0.0
        %2583 = vmatprep.subr.mxu0 0.0
        %2584 = vmatpush1.msra.mxu0 0.0
        %2585 = vmatprep.subr.mxu0 0.0
        %2586 = vmatpush1.msra.mxu0 0.0
        %2587 = vmatprep.subr.mxu0 0.0
        %2588 = vmatpush1.msra.mxu0 0.0
        %2589 = vmatprep.mubr.f32.mxu0 0.0
        %2590 = vmatmul.mubr.f32.gmra.mrb[0].mxu0 %v2523
        %v2591 = vpop.f32.mrb[0].mxu0
        %v2592 = vadd.f32 %v2520, %v2591
        %v2593 = vpop.f32.mrb[0].mxu0
        %2594 = vdwg.mxu0
        %s2595 = scalar_lea.vmem %s9, 32
        %v2596 = vld [vmem:[%s2595] sm:$0xff]
        %v2597 = vld [vmem:[%s2595 + $0x8] sm:$0xff]
        %v2598 = vld [vmem:[%s2595 + $0x10] sm:$0xff]
        %v2599 = vld [vmem:[%s2595 + $0x18] sm:$0xff]
        %s2600 = scalar_lea.vmem [#allocation7], 1
        %v2601 = vld [vmem:[%s2600] sm:$0x1]
        %2603 = vrot.lane.b32.xlu0 %v2592, 96
        %v2604 = vpop.permute.xlu0 %2603
        %v2605 = vsel %vm1521, %v2592, 0
        %v2607 = vsel %vm1521, %v2604, 0
        %2609 = vmatprep.subr.mxu0 0.0
        %2610 = vmatpush1.xpose.msra.mxu0 %v2607
        %2611 = vmatprep.subr.mxu0 0.0
        %2612 = vmatpush1.xpose.msra.mxu0 0.0
        %2613 = vmatprep.subr.mxu0 0.0
        %2614 = vmatpush1.xpose.msra.mxu0 0.0
        %2615 = vmatprep.subr.mxu0 0.0
        %2616 = vmatpush1.xpose.msra.mxu0 0.0
        %2617 = vmatprep.subr.mxu0 0.0
        %2618 = vmatpush1.xpose.msra.mxu0 0.0
        %2619 = vmatprep.subr.mxu0 0.0
        %2620 = vmatpush1.xpose.msra.mxu0 0.0
        %2621 = vmatprep.subr.mxu0 0.0
        %2622 = vmatpush1.xpose.msra.mxu0 0.0
        %2623 = vmatprep.subr.mxu0 0.0
        %2624 = vmatpush1.xpose.msra.mxu0 0.0
        %2625 = vmatprep.subr.mxu0 0.0
        %2626 = vmatpush1.xpose.msra.mxu0 0.0
        %2627 = vmatprep.subr.mxu0 0.0
        %2628 = vmatpush1.xpose.msra.mxu0 0.0
        %2629 = vmatprep.subr.mxu0 0.0
        %2630 = vmatpush1.xpose.msra.mxu0 0.0
        %2631 = vmatprep.subr.mxu0 0.0
        %2632 = vmatpush1.xpose.msra.mxu0 0.0
        %2633 = vmatprep.subr.mxu0 0.0
        %2634 = vmatpush1.xpose.msra.mxu0 0.0
        %2635 = vmatprep.subr.mxu0 0.0
        %2636 = vmatpush1.xpose.msra.mxu0 0.0
        %2637 = vmatprep.subr.mxu0 0.0
        %2638 = vmatpush1.xpose.msra.mxu0 0.0
        %2639 = vmatprep.subr.mxu0 0.0
        %2640 = vmatpush1.xpose.msra.mxu0 0.0
        %2641 = vmatprep.subr.mxu0 0.0
        %2642 = vmatpush1.xpose.msra.mxu0 0.0
        %2643 = vmatprep.subr.mxu0 0.0
        %2644 = vmatpush1.xpose.msra.mxu0 0.0
        %2645 = vmatprep.subr.mxu0 0.0
        %2646 = vmatpush1.xpose.msra.mxu0 0.0
        %2647 = vmatprep.subr.mxu0 0.0
        %2648 = vmatpush1.xpose.msra.mxu0 0.0
        %2649 = vmatprep.subr.mxu0 0.0
        %2650 = vmatpush1.xpose.msra.mxu0 0.0
        %2651 = vmatprep.subr.mxu0 0.0
        %2652 = vmatpush1.xpose.msra.mxu0 0.0
        %2653 = vmatprep.subr.mxu0 0.0
        %2654 = vmatpush1.xpose.msra.mxu0 0.0
        %2655 = vmatprep.subr.mxu0 0.0
        %2656 = vmatpush1.xpose.msra.mxu0 0.0
        %2657 = vmatprep.subr.mxu0 0.0
        %2658 = vmatpush1.xpose.msra.mxu0 0.0
        %2659 = vmatprep.subr.mxu0 0.0
        %2660 = vmatpush1.xpose.msra.mxu0 0.0
        %2661 = vmatprep.subr.mxu0 0.0
        %2662 = vmatpush1.xpose.msra.mxu0 0.0
        %2663 = vmatprep.subr.mxu0 0.0
        %2664 = vmatpush1.xpose.msra.mxu0 0.0
        %2665 = vmatprep.subr.mxu0 0.0
        %2666 = vmatpush1.xpose.msra.mxu0 0.0
        %2667 = vmatprep.subr.mxu0 0.0
        %2668 = vmatpush1.xpose.msra.mxu0 0.0
        %2669 = vmatprep.subr.mxu0 0.0
        %2670 = vmatpush1.xpose.msra.mxu0 0.0
        %2671 = vmatprep.subr.mxu0 0.0
        %2672 = vmatpush1.xpose.msra.mxu0 0.0
        %2673 = vmatprep.mubr.f32.mxu0 0.0
        %2674 = vmatmul.mubr.f32.gmra.mrb[0].mxu0 %v2605
        %v2675 = vpop.f32.mrb[0].mxu0
        %v2676 = vadd.f32 0.0, %v2675
        %v2677 = vpop.f32.mrb[0].mxu0
        %2678 = vdwg.mxu0
        %v2679 = vsel %vm1521, %v2676, -inf
        %2680 = vmax.xlane.f32.xlu0 %v2679
        %v2681 = vpop.xlane.xlu0 %2680
        %v2682 = vsub.f32 %v2676, %v2681
        %v2683 = vmul.f32 %v2682, 1.442695
        %v2684 = vpow.pop %v2683
        %v2685 = vsel %vm1521, %v2684, 0.0
        %2686 = vadd.xlane.f32.xlu0 %v2685
        %v2687 = vpop.xlane.xlu0 %2686
        %v2688 = vrcp.pop %v2687
        %v2689 = vmul.f32 %v2684, %v2688
        %2690 = vrot.lane.b32.xlu0 %v2592, 64
        %v2691 = vpop.permute.xlu0 %2690
        %v2694 = vsel %vm1521, %v2689, 0
        %2696 = vmatprep.subr.mxu0 0.0
        %2697 = vmatpush1.msra.mxu0 %v2691
        %2698 = vmatprep.subr.mxu0 0.0
        %2699 = vmatpush1.msra.mxu0 0.0
        %2700 = vmatprep.subr.mxu0 0.0
        %2701 = vmatpush1.msra.mxu0 0.0
        %2702 = vmatprep.subr.mxu0 0.0
        %2703 = vmatpush1.msra.mxu0 0.0
        %2704 = vmatprep.subr.mxu0 0.0
        %2705 = vmatpush1.msra.mxu0 0.0
        %2706 = vmatprep.subr.mxu0 0.0
        %2707 = vmatpush1.msra.mxu0 0.0
        %2708 = vmatprep.subr.mxu0 0.0
        %2709 = vmatpush1.msra.mxu0 0.0
        %2710 = vmatprep.subr.mxu0 0.0
        %2711 = vmatpush1.msra.mxu0 0.0
        %2712 = vmatprep.subr.mxu0 0.0
        %2713 = vmatpush1.msra.mxu0 0.0
        %2714 = vmatprep.subr.mxu0 0.0
        %2715 = vmatpush1.msra.mxu0 0.0
        %2716 = vmatprep.subr.mxu0 0.0
        %2717 = vmatpush1.msra.mxu0 0.0
        %2718 = vmatprep.subr.mxu0 0.0
        %2719 = vmatpush1.msra.mxu0 0.0
        %2720 = vmatprep.subr.mxu0 0.0
        %2721 = vmatpush1.msra.mxu0 0.0
        %2722 = vmatprep.subr.mxu0 0.0
        %2723 = vmatpush1.msra.mxu0 0.0
        %2724 = vmatprep.subr.mxu0 0.0
        %2725 = vmatpush1.msra.mxu0 0.0
        %2726 = vmatprep.subr.mxu0 0.0
        %2727 = vmatpush1.msra.mxu0 0.0
        %2728 = vmatprep.subr.mxu0 0.0
        %2729 = vmatpush1.msra.mxu0 0.0
        %2730 = vmatprep.subr.mxu0 0.0
        %2731 = vmatpush1.msra.mxu0 0.0
        %2732 = vmatprep.subr.mxu0 0.0
        %2733 = vmatpush1.msra.mxu0 0.0
        %2734 = vmatprep.subr.mxu0 0.0
        %2735 = vmatpush1.msra.mxu0 0.0
        %2736 = vmatprep.subr.mxu0 0.0
        %2737 = vmatpush1.msra.mxu0 0.0
        %2738 = vmatprep.subr.mxu0 0.0
        %2739 = vmatpush1.msra.mxu0 0.0
        %2740 = vmatprep.subr.mxu0 0.0
        %2741 = vmatpush1.msra.mxu0 0.0
        %2742 = vmatprep.subr.mxu0 0.0
        %2743 = vmatpush1.msra.mxu0 0.0
        %2744 = vmatprep.subr.mxu0 0.0
        %2745 = vmatpush1.msra.mxu0 0.0
        %2746 = vmatprep.subr.mxu0 0.0
        %2747 = vmatpush1.msra.mxu0 0.0
        %2748 = vmatprep.subr.mxu0 0.0
        %2749 = vmatpush1.msra.mxu0 0.0
        %2750 = vmatprep.subr.mxu0 0.0
        %2751 = vmatpush1.msra.mxu0 0.0
        %2752 = vmatprep.subr.mxu0 0.0
        %2753 = vmatpush1.msra.mxu0 0.0
        %2754 = vmatprep.subr.mxu0 0.0
        %2755 = vmatpush1.msra.mxu0 0.0
        %2756 = vmatprep.subr.mxu0 0.0
        %2757 = vmatpush1.msra.mxu0 0.0
        %2758 = vmatprep.subr.mxu0 0.0
        %2759 = vmatpush1.msra.mxu0 0.0
        %2760 = vmatprep.mubr.f32.mxu0 0.0
        %2761 = vmatmul.mubr.f32.gmra.mrb[0].mxu0 %v2694
        %v2762 = vpop.f32.mrb[0].mxu0
        %v2763 = vadd.f32 0.0, %v2762
        %v2764 = vpop.f32.mrb[0].mxu0
        %2765 = vdwg.mxu0
        %2766 = vrot.lane.b32.xlu0 %v2592, 120
        %v2767 = vpop.permute.xlu0 %2766
        %2768 = vrot.lane.b32.xlu0 %v2592, 88
        %v2769 = vpop.permute.xlu0 %2768
        %v2770 = vsel %vm1521, %v2767, 0
        %v2772 = vsel %vm1521, %v2769, 0
        %2774 = vmatprep.subr.mxu0 0.0
        %2775 = vmatpush1.xpose.msra.mxu0 %v2772
        %2776 = vmatprep.subr.mxu0 0.0
        %2777 = vmatpush1.xpose.msra.mxu0 0.0
        %2778 = vmatprep.subr.mxu0 0.0
        %2779 = vmatpush1.xpose.msra.mxu0 0.0
        %2780 = vmatprep.subr.mxu0 0.0
        %2781 = vmatpush1.xpose.msra.mxu0 0.0
        %2782 = vmatprep.subr.mxu0 0.0
        %2783 = vmatpush1.xpose.msra.mxu0 0.0
        %2784 = vmatprep.subr.mxu0 0.0
        %2785 = vmatpush1.xpose.msra.mxu0 0.0
        %2786 = vmatprep.subr.mxu0 0.0
        %2787 = vmatpush1.xpose.msra.mxu0 0.0
        %2788 = vmatprep.subr.mxu0 0.0
        %2789 = vmatpush1.xpose.msra.mxu0 0.0
        %2790 = vmatprep.subr.mxu0 0.0
        %2791 = vmatpush1.xpose.msra.mxu0 0.0
        %2792 = vmatprep.subr.mxu0 0.0
        %2793 = vmatpush1.xpose.msra.mxu0 0.0
        %2794 = vmatprep.subr.mxu0 0.0
        %2795 = vmatpush1.xpose.msra.mxu0 0.0
        %2796 = vmatprep.subr.mxu0 0.0
        %2797 = vmatpush1.xpose.msra.mxu0 0.0
        %2798 = vmatprep.subr.mxu0 0.0
        %2799 = vmatpush1.xpose.msra.mxu0 0.0
        %2800 = vmatprep.subr.mxu0 0.0
        %2801 = vmatpush1.xpose.msra.mxu0 0.0
        %2802 = vmatprep.subr.mxu0 0.0
        %2803 = vmatpush1.xpose.msra.mxu0 0.0
        %2804 = vmatprep.subr.mxu0 0.0
        %2805 = vmatpush1.xpose.msra.mxu0 0.0
        %2806 = vmatprep.subr.mxu0 0.0
        %2807 = vmatpush1.xpose.msra.mxu0 0.0
        %2808 = vmatprep.subr.mxu0 0.0
        %2809 = vmatpush1.xpose.msra.mxu0 0.0
        %2810 = vmatprep.subr.mxu0 0.0
        %2811 = vmatpush1.xpose.msra.mxu0 0.0
        %2812 = vmatprep.subr.mxu0 0.0
        %2813 = vmatpush1.xpose.msra.mxu0 0.0
        %2814 = vmatprep.subr.mxu0 0.0
        %2815 = vmatpush1.xpose.msra.mxu0 0.0
        %2816 = vmatprep.subr.mxu0 0.0
        %2817 = vmatpush1.xpose.msra.mxu0 0.0
        %2818 = vmatprep.subr.mxu0 0.0
        %2819 = vmatpush1.xpose.msra.mxu0 0.0
        %2820 = vmatprep.subr.mxu0 0.0
        %2821 = vmatpush1.xpose.msra.mxu0 0.0
        %2822 = vmatprep.subr.mxu0 0.0
        %2823 = vmatpush1.xpose.msra.mxu0 0.0
        %2824 = vmatprep.subr.mxu0 0.0
        %2825 = vmatpush1.xpose.msra.mxu0 0.0
        %2826 = vmatprep.subr.mxu0 0.0
        %2827 = vmatpush1.xpose.msra.mxu0 0.0
        %2828 = vmatprep.subr.mxu0 0.0
        %2829 = vmatpush1.xpose.msra.mxu0 0.0
        %2830 = vmatprep.subr.mxu0 0.0
        %2831 = vmatpush1.xpose.msra.mxu0 0.0
        %2832 = vmatprep.subr.mxu0 0.0
        %2833 = vmatpush1.xpose.msra.mxu0 0.0
        %2834 = vmatprep.subr.mxu0 0.0
        %2835 = vmatpush1.xpose.msra.mxu0 0.0
        %2836 = vmatprep.subr.mxu0 0.0
        %2837 = vmatpush1.xpose.msra.mxu0 0.0
        %2838 = vmatprep.mubr.f32.mxu0 0.0
        %2839 = vmatmul.mubr.f32.gmra.mrb[0].mxu0 %v2770
        %v2840 = vpop.f32.mrb[0].mxu0
        %v2841 = vadd.f32 0.0, %v2840
        %v2842 = vpop.f32.mrb[0].mxu0
        %2843 = vdwg.mxu0
        %v2844 = vsel %vm1521, %v2841, -inf
        %2845 = vmax.xlane.f32.xlu0 %v2844
        %v2846 = vpop.xlane.xlu0 %2845
        %v2847 = vsub.f32 %v2841, %v2846
        %v2848 = vmul.f32 %v2847, 1.442695
        %v2849 = vpow.pop %v2848
        %v2850 = vsel %vm1521, %v2849, 0.0
        %2851 = vadd.xlane.f32.xlu0 %v2850
        %v2852 = vpop.xlane.xlu0 %2851
        %v2853 = vrcp.pop %v2852
        %v2854 = vmul.f32 %v2849, %v2853
        %2855 = vrot.lane.b32.xlu0 %v2592, 56
        %v2856 = vpop.permute.xlu0 %2855
        %v2859 = vsel %vm1521, %v2854, 0
        %2861 = vmatprep.subr.mxu0 0.0
        %2862 = vmatpush1.msra.mxu0 %v2856
        %2863 = vmatprep.subr.mxu0 0.0
        %2864 = vmatpush1.msra.mxu0 0.0
        %2865 = vmatprep.subr.mxu0 0.0
        %2866 = vmatpush1.msra.mxu0 0.0
        %2867 = vmatprep.subr.mxu0 0.0
        %2868 = vmatpush1.msra.mxu0 0.0
        %2869 = vmatprep.subr.mxu0 0.0
        %2870 = vmatpush1.msra.mxu0 0.0
        %2871 = vmatprep.subr.mxu0 0.0
        %2872 = vmatpush1.msra.mxu0 0.0
        %2873 = vmatprep.subr.mxu0 0.0
        %2874 = vmatpush1.msra.mxu0 0.0
        %2875 = vmatprep.subr.mxu0 0.0
        %2876 = vmatpush1.msra.mxu0 0.0
        %2877 = vmatprep.subr.mxu0 0.0
        %2878 = vmatpush1.msra.mxu0 0.0
        %2879 = vmatprep.subr.mxu0 0.0
        %2880 = vmatpush1.msra.mxu0 0.0
        %2881 = vmatprep.subr.mxu0 0.0
        %2882 = vmatpush1.msra.mxu0 0.0
        %2883 = vmatprep.subr.mxu0 0.0
        %2884 = vmatpush1.msra.mxu0 0.0
        %2885 = vmatprep.subr.mxu0 0.0
        %2886 = vmatpush1.msra.mxu0 0.0
        %2887 = vmatprep.subr.mxu0 0.0
        %2888 = vmatpush1.msra.mxu0 0.0
        %2889 = vmatprep.subr.mxu0 0.0
        %2890 = vmatpush1.msra.mxu0 0.0
        %2891 = vmatprep.subr.mxu0 0.0
        %2892 = vmatpush1.msra.mxu0 0.0
        %2893 = vmatprep.subr.mxu0 0.0
        %2894 = vmatpush1.msra.mxu0 0.0
        %2895 = vmatprep.subr.mxu0 0.0
        %2896 = vmatpush1.msra.mxu0 0.0
        %2897 = vmatprep.subr.mxu0 0.0
        %2898 = vmatpush1.msra.mxu0 0.0
        %2899 = vmatprep.subr.mxu0 0.0
        %2900 = vmatpush1.msra.mxu0 0.0
        %2901 = vmatprep.subr.mxu0 0.0
        %2902 = vmatpush1.msra.mxu0 0.0
        %2903 = vmatprep.subr.mxu0 0.0
        %2904 = vmatpush1.msra.mxu0 0.0
        %2905 = vmatprep.subr.mxu0 0.0
        %2906 = vmatpush1.msra.mxu0 0.0
        %2907 = vmatprep.subr.mxu0 0.0
        %2908 = vmatpush1.msra.mxu0 0.0
        %2909 = vmatprep.subr.mxu0 0.0
        %2910 = vmatpush1.msra.mxu0 0.0
        %2911 = vmatprep.subr.mxu0 0.0
        %2912 = vmatpush1.msra.mxu0 0.0
        %2913 = vmatprep.subr.mxu0 0.0
        %2914 = vmatpush1.msra.mxu0 0.0
        %2915 = vmatprep.subr.mxu0 0.0
        %2916 = vmatpush1.msra.mxu0 0.0
        %2917 = vmatprep.subr.mxu0 0.0
        %2918 = vmatpush1.msra.mxu0 0.0
        %2919 = vmatprep.subr.mxu0 0.0
        %2920 = vmatpush1.msra.mxu0 0.0
        %2921 = vmatprep.subr.mxu0 0.0
        %2922 = vmatpush1.msra.mxu0 0.0
        %2923 = vmatprep.subr.mxu0 0.0
        %2924 = vmatpush1.msra.mxu0 0.0
        %2925 = vmatprep.mubr.f32.mxu0 0.0
        %2926 = vmatmul.mubr.f32.gmra.mrb[0].mxu0 %v2859
        %v2927 = vpop.f32.mrb[0].mxu0
        %v2928 = vadd.f32 0.0, %v2927
        %v2929 = vpop.f32.mrb[0].mxu0
        %2930 = vdwg.mxu0
        %2931 = vrot.lane.b32.xlu0 %v2592, 112
        %v2932 = vpop.permute.xlu0 %2931
        %2933 = vrot.lane.b32.xlu0 %v2592, 80
        %v2934 = vpop.permute.xlu0 %2933
        %v2935 = vsel %vm1521, %v2932, 0
        %v2937 = vsel %vm1521, %v2934, 0
        %2939 = vmatprep.subr.mxu0 0.0
        %2940 = vmatpush1.xpose.msra.mxu0 %v2937
        %2941 = vmatprep.subr.mxu0 0.0
        %2942 = vmatpush1.xpose.msra.mxu0 0.0
        %2943 = vmatprep.subr.mxu0 0.0
        %2944 = vmatpush1.xpose.msra.mxu0 0.0
        %2945 = vmatprep.subr.mxu0 0.0
        %2946 = vmatpush1.xpose.msra.mxu0 0.0
        %2947 = vmatprep.subr.mxu0 0.0
        %2948 = vmatpush1.xpose.msra.mxu0 0.0
        %2949 = vmatprep.subr.mxu0 0.0
        %2950 = vmatpush1.xpose.msra.mxu0 0.0
        %2951 = vmatprep.subr.mxu0 0.0
        %2952 = vmatpush1.xpose.msra.mxu0 0.0
        %2953 = vmatprep.subr.mxu0 0.0
        %2954 = vmatpush1.xpose.msra.mxu0 0.0
        %2955 = vmatprep.subr.mxu0 0.0
        %2956 = vmatpush1.xpose.msra.mxu0 0.0
        %2957 = vmatprep.subr.mxu0 0.0
        %2958 = vmatpush1.xpose.msra.mxu0 0.0
        %2959 = vmatprep.subr.mxu0 0.0
        %2960 = vmatpush1.xpose.msra.mxu0 0.0
        %2961 = vmatprep.subr.mxu0 0.0
        %2962 = vmatpush1.xpose.msra.mxu0 0.0
        %2963 = vmatprep.subr.mxu0 0.0
        %2964 = vmatpush1.xpose.msra.mxu0 0.0
        %2965 = vmatprep.subr.mxu0 0.0
        %2966 = vmatpush1.xpose.msra.mxu0 0.0
        %2967 = vmatprep.subr.mxu0 0.0
        %2968 = vmatpush1.xpose.msra.mxu0 0.0
        %2969 = vmatprep.subr.mxu0 0.0
        %2970 = vmatpush1.xpose.msra.mxu0 0.0
        %2971 = vmatprep.subr.mxu0 0.0
        %2972 = vmatpush1.xpose.msra.mxu0 0.0
        %2973 = vmatprep.subr.mxu0 0.0
        %2974 = vmatpush1.xpose.msra.mxu0 0.0
        %2975 = vmatprep.subr.mxu0 0.0
        %2976 = vmatpush1.xpose.msra.mxu0 0.0
        %2977 = vmatprep.subr.mxu0 0.0
        %2978 = vmatpush1.xpose.msra.mxu0 0.0
        %2979 = vmatprep.subr.mxu0 0.0
        %2980 = vmatpush1.xpose.msra.mxu0 0.0
        %2981 = vmatprep.subr.mxu0 0.0
        %2982 = vmatpush1.xpose.msra.mxu0 0.0
        %2983 = vmatprep.subr.mxu0 0.0
        %2984 = vmatpush1.xpose.msra.mxu0 0.0
        %2985 = vmatprep.subr.mxu0 0.0
        %2986 = vmatpush1.xpose.msra.mxu0 0.0
        %2987 = vmatprep.subr.mxu0 0.0
        %2988 = vmatpush1.xpose.msra.mxu0 0.0
        %2989 = vmatprep.subr.mxu0 0.0
        %2990 = vmatpush1.xpose.msra.mxu0 0.0
        %2991 = vmatprep.subr.mxu0 0.0
        %2992 = vmatpush1.xpose.msra.mxu0 0.0
        %2993 = vmatprep.subr.mxu0 0.0
        %2994 = vmatpush1.xpose.msra.mxu0 0.0
        %2995 = vmatprep.subr.mxu0 0.0
        %2996 = vmatpush1.xpose.msra.mxu0 0.0
        %2997 = vmatprep.subr.mxu0 0.0
        %2998 = vmatpush1.xpose.msra.mxu0 0.0
        %2999 = vmatprep.subr.mxu0 0.0
        %3000 = vmatpush1.xpose.msra.mxu0 0.0
        %3001 = vmatprep.subr.mxu0 0.0
        %3002 = vmatpush1.xpose.msra.mxu0 0.0
        %3003 = vmatprep.mubr.f32.mxu0 0.0
        %3004 = vmatmul.mubr.f32.gmra.mrb[0].mxu0 %v2935
        %v3005 = vpop.f32.mrb[0].mxu0
        %v3006 = vadd.f32 0.0, %v3005
        %v3007 = vpop.f32.mrb[0].mxu0
        %3008 = vdwg.mxu0
        %v3009 = vsel %vm1521, %v3006, -inf
        %3010 = vmax.xlane.f32.xlu0 %v3009
        %v3011 = vpop.xlane.xlu0 %3010
        %v3012 = vsub.f32 %v3006, %v3011
        %v3013 = vmul.f32 %v3012, 1.442695
        %v3014 = vpow.pop %v3013
        %v3015 = vsel %vm1521, %v3014, 0.0
        %3016 = vadd.xlane.f32.xlu0 %v3015
        %v3017 = vpop.xlane.xlu0 %3016
        %v3018 = vrcp.pop %v3017
        %v3019 = vmul.f32 %v3014, %v3018
        %3020 = vrot.lane.b32.xlu0 %v2592, 48
        %v3021 = vpop.permute.xlu0 %3020
        %v3024 = vsel %vm1521, %v3019, 0
        %3026 = vmatprep.subr.mxu0 0.0
        %3027 = vmatpush1.msra.mxu0 %v3021
        %3028 = vmatprep.subr.mxu0 0.0
        %3029 = vmatpush1.msra.mxu0 0.0
        %3030 = vmatprep.subr.mxu0 0.0
        %3031 = vmatpush1.msra.mxu0 0.0
        %3032 = vmatprep.subr.mxu0 0.0
        %3033 = vmatpush1.msra.mxu0 0.0
        %3034 = vmatprep.subr.mxu0 0.0
        %3035 = vmatpush1.msra.mxu0 0.0
        %3036 = vmatprep.subr.mxu0 0.0
        %3037 = vmatpush1.msra.mxu0 0.0
        %3038 = vmatprep.subr.mxu0 0.0
        %3039 = vmatpush1.msra.mxu0 0.0
        %3040 = vmatprep.subr.mxu0 0.0
        %3041 = vmatpush1.msra.mxu0 0.0
        %3042 = vmatprep.subr.mxu0 0.0
        %3043 = vmatpush1.msra.mxu0 0.0
        %3044 = vmatprep.subr.mxu0 0.0
        %3045 = vmatpush1.msra.mxu0 0.0
        %3046 = vmatprep.subr.mxu0 0.0
        %3047 = vmatpush1.msra.mxu0 0.0
        %3048 = vmatprep.subr.mxu0 0.0
        %3049 = vmatpush1.msra.mxu0 0.0
        %3050 = vmatprep.subr.mxu0 0.0
        %3051 = vmatpush1.msra.mxu0 0.0
        %3052 = vmatprep.subr.mxu0 0.0
        %3053 = vmatpush1.msra.mxu0 0.0
        %3054 = vmatprep.subr.mxu0 0.0
        %3055 = vmatpush1.msra.mxu0 0.0
        %3056 = vmatprep.subr.mxu0 0.0
        %3057 = vmatpush1.msra.mxu0 0.0
        %3058 = vmatprep.subr.mxu0 0.0
        %3059 = vmatpush1.msra.mxu0 0.0
        %3060 = vmatprep.subr.mxu0 0.0
        %3061 = vmatpush1.msra.mxu0 0.0
        %3062 = vmatprep.subr.mxu0 0.0
        %3063 = vmatpush1.msra.mxu0 0.0
        %3064 = vmatprep.subr.mxu0 0.0
        %3065 = vmatpush1.msra.mxu0 0.0
        %3066 = vmatprep.subr.mxu0 0.0
        %3067 = vmatpush1.msra.mxu0 0.0
        %3068 = vmatprep.subr.mxu0 0.0
        %3069 = vmatpush1.msra.mxu0 0.0
        %3070 = vmatprep.subr.mxu0 0.0
        %3071 = vmatpush1.msra.mxu0 0.0
        %3072 = vmatprep.subr.mxu0 0.0
        %3073 = vmatpush1.msra.mxu0 0.0
        %3074 = vmatprep.subr.mxu0 0.0
        %3075 = vmatpush1.msra.mxu0 0.0
        %3076 = vmatprep.subr.mxu0 0.0
        %3077 = vmatpush1.msra.mxu0 0.0
        %3078 = vmatprep.subr.mxu0 0.0
        %3079 = vmatpush1.msra.mxu0 0.0
        %3080 = vmatprep.subr.mxu0 0.0
        %3081 = vmatpush1.msra.mxu0 0.0
        %3082 = vmatprep.subr.mxu0 0.0
        %3083 = vmatpush1.msra.mxu0 0.0
        %3084 = vmatprep.subr.mxu0 0.0
        %3085 = vmatpush1.msra.mxu0 0.0
        %3086 = vmatprep.subr.mxu0 0.0
        %3087 = vmatpush1.msra.mxu0 0.0
        %3088 = vmatprep.subr.mxu0 0.0
        %3089 = vmatpush1.msra.mxu0 0.0
        %3090 = vmatprep.mubr.f32.mxu0 0.0
        %3091 = vmatmul.mubr.f32.gmra.mrb[0].mxu0 %v3024
        %v3092 = vpop.f32.mrb[0].mxu0
        %v3093 = vadd.f32 0.0, %v3092
        %v3094 = vpop.f32.mrb[0].mxu0
        %3095 = vdwg.mxu0
        %3096 = vrot.lane.b32.xlu0 %v2592, 104
        %v3097 = vpop.permute.xlu0 %3096
        %3098 = vrot.lane.b32.xlu0 %v2592, 72
        %v3099 = vpop.permute.xlu0 %3098
        %v3100 = vsel %vm1521, %v3097, 0
        %v3102 = vsel %vm1521, %v3099, 0
        %3104 = vmatprep.subr.mxu0 0.0
        %3105 = vmatpush1.xpose.msra.mxu0 %v3102
        %3106 = vmatprep.subr.mxu0 0.0
        %3107 = vmatpush1.xpose.msra.mxu0 0.0
        %3108 = vmatprep.subr.mxu0 0.0
        %3109 = vmatpush1.xpose.msra.mxu0 0.0
        %3110 = vmatprep.subr.mxu0 0.0
        %3111 = vmatpush1.xpose.msra.mxu0 0.0
        %3112 = vmatprep.subr.mxu0 0.0
        %3113 = vmatpush1.xpose.msra.mxu0 0.0
        %3114 = vmatprep.subr.mxu0 0.0
        %3115 = vmatpush1.xpose.msra.mxu0 0.0
        %3116 = vmatprep.subr.mxu0 0.0
        %3117 = vmatpush1.xpose.msra.mxu0 0.0
        %3118 = vmatprep.subr.mxu0 0.0
        %3119 = vmatpush1.xpose.msra.mxu0 0.0
        %3120 = vmatprep.subr.mxu0 0.0
        %3121 = vmatpush1.xpose.msra.mxu0 0.0
        %3122 = vmatprep.subr.mxu0 0.0
        %3123 = vmatpush1.xpose.msra.mxu0 0.0
        %3124 = vmatprep.subr.mxu0 0.0
        %3125 = vmatpush1.xpose.msra.mxu0 0.0
        %3126 = vmatprep.subr.mxu0 0.0
        %3127 = vmatpush1.xpose.msra.mxu0 0.0
        %3128 = vmatprep.subr.mxu0 0.0
        %3129 = vmatpush1.xpose.msra.mxu0 0.0
        %3130 = vmatprep.subr.mxu0 0.0
        %3131 = vmatpush1.xpose.msra.mxu0 0.0
        %3132 = vmatprep.subr.mxu0 0.0
        %3133 = vmatpush1.xpose.msra.mxu0 0.0
        %3134 = vmatprep.subr.mxu0 0.0
        %3135 = vmatpush1.xpose.msra.mxu0 0.0
        %3136 = vmatprep.subr.mxu0 0.0
        %3137 = vmatpush1.xpose.msra.mxu0 0.0
        %3138 = vmatprep.subr.mxu0 0.0
        %3139 = vmatpush1.xpose.msra.mxu0 0.0
        %3140 = vmatprep.subr.mxu0 0.0
        %3141 = vmatpush1.xpose.msra.mxu0 0.0
        %3142 = vmatprep.subr.mxu0 0.0
        %3143 = vmatpush1.xpose.msra.mxu0 0.0
        %3144 = vmatprep.subr.mxu0 0.0
        %3145 = vmatpush1.xpose.msra.mxu0 0.0
        %3146 = vmatprep.subr.mxu0 0.0
        %3147 = vmatpush1.xpose.msra.mxu0 0.0
        %3148 = vmatprep.subr.mxu0 0.0
        %3149 = vmatpush1.xpose.msra.mxu0 0.0
        %3150 = vmatprep.subr.mxu0 0.0
        %3151 = vmatpush1.xpose.msra.mxu0 0.0
        %3152 = vmatprep.subr.mxu0 0.0
        %3153 = vmatpush1.xpose.msra.mxu0 0.0
        %3154 = vmatprep.subr.mxu0 0.0
        %3155 = vmatpush1.xpose.msra.mxu0 0.0
        %3156 = vmatprep.subr.mxu0 0.0
        %3157 = vmatpush1.xpose.msra.mxu0 0.0
        %3158 = vmatprep.subr.mxu0 0.0
        %3159 = vmatpush1.xpose.msra.mxu0 0.0
        %3160 = vmatprep.subr.mxu0 0.0
        %3161 = vmatpush1.xpose.msra.mxu0 0.0
        %3162 = vmatprep.subr.mxu0 0.0
        %3163 = vmatpush1.xpose.msra.mxu0 0.0
        %3164 = vmatprep.subr.mxu0 0.0
        %3165 = vmatpush1.xpose.msra.mxu0 0.0
        %3166 = vmatprep.subr.mxu0 0.0
        %3167 = vmatpush1.xpose.msra.mxu0 0.0
        %3168 = vmatprep.mubr.f32.mxu0 0.0
        %3169 = vmatmul.mubr.f32.gmra.mrb[0].mxu0 %v3100
        %v3170 = vpop.f32.mrb[0].mxu0
        %v3171 = vadd.f32 0.0, %v3170
        %v3172 = vpop.f32.mrb[0].mxu0
        %3173 = vdwg.mxu0
        %v3174 = vsel %vm1521, %v3171, -inf
        %3175 = vmax.xlane.f32.xlu0 %v3174
        %v3176 = vpop.xlane.xlu0 %3175
        %v3177 = vsub.f32 %v3171, %v3176
        %v3178 = vmul.f32 %v3177, 1.442695
        %v3179 = vpow.pop %v3178
        %v3180 = vsel %vm1521, %v3179, 0.0
        %3181 = vadd.xlane.f32.xlu0 %v3180
        %v3182 = vpop.xlane.xlu0 %3181
        %v3183 = vrcp.pop %v3182
        %v3184 = vmul.f32 %v3179, %v3183
        %3185 = vrot.lane.b32.xlu0 %v2592, 40
        %v3186 = vpop.permute.xlu0 %3185
        %v3189 = vsel %vm1521, %v3184, 0
        %3191 = vmatprep.subr.mxu0 0.0
        %3192 = vmatpush1.msra.mxu0 %v3186
        %3193 = vmatprep.subr.mxu0 0.0
        %3194 = vmatpush1.msra.mxu0 0.0
        %3195 = vmatprep.subr.mxu0 0.0
        %3196 = vmatpush1.msra.mxu0 0.0
        %3197 = vmatprep.subr.mxu0 0.0
        %3198 = vmatpush1.msra.mxu0 0.0
        %3199 = vmatprep.subr.mxu0 0.0
        %3200 = vmatpush1.msra.mxu0 0.0
        %3201 = vmatprep.subr.mxu0 0.0
        %3202 = vmatpush1.msra.mxu0 0.0
        %3203 = vmatprep.subr.mxu0 0.0
        %3204 = vmatpush1.msra.mxu0 0.0
        %3205 = vmatprep.subr.mxu0 0.0
        %3206 = vmatpush1.msra.mxu0 0.0
        %3207 = vmatprep.subr.mxu0 0.0
        %3208 = vmatpush1.msra.mxu0 0.0
        %3209 = vmatprep.subr.mxu0 0.0
        %3210 = vmatpush1.msra.mxu0 0.0
        %3211 = vmatprep.subr.mxu0 0.0
        %3212 = vmatpush1.msra.mxu0 0.0
        %3213 = vmatprep.subr.mxu0 0.0
        %3214 = vmatpush1.msra.mxu0 0.0
        %3215 = vmatprep.subr.mxu0 0.0
        %3216 = vmatpush1.msra.mxu0 0.0
        %3217 = vmatprep.subr.mxu0 0.0
        %3218 = vmatpush1.msra.mxu0 0.0
        %3219 = vmatprep.subr.mxu0 0.0
        %3220 = vmatpush1.msra.mxu0 0.0
        %3221 = vmatprep.subr.mxu0 0.0
        %3222 = vmatpush1.msra.mxu0 0.0
        %3223 = vmatprep.subr.mxu0 0.0
        %3224 = vmatpush1.msra.mxu0 0.0
        %3225 = vmatprep.subr.mxu0 0.0
        %3226 = vmatpush1.msra.mxu0 0.0
        %3227 = vmatprep.subr.mxu0 0.0
        %3228 = vmatpush1.msra.mxu0 0.0
        %3229 = vmatprep.subr.mxu0 0.0
        %3230 = vmatpush1.msra.mxu0 0.0
        %3231 = vmatprep.subr.mxu0 0.0
        %3232 = vmatpush1.msra.mxu0 0.0
        %3233 = vmatprep.subr.mxu0 0.0
        %3234 = vmatpush1.msra.mxu0 0.0
        %3235 = vmatprep.subr.mxu0 0.0
        %3236 = vmatpush1.msra.mxu0 0.0
        %3237 = vmatprep.subr.mxu0 0.0
        %3238 = vmatpush1.msra.mxu0 0.0
        %3239 = vmatprep.subr.mxu0 0.0
        %3240 = vmatpush1.msra.mxu0 0.0
        %3241 = vmatprep.subr.mxu0 0.0
        %3242 = vmatpush1.msra.mxu0 0.0
        %3243 = vmatprep.subr.mxu0 0.0
        %3244 = vmatpush1.msra.mxu0 0.0
        %3245 = vmatprep.subr.mxu0 0.0
        %3246 = vmatpush1.msra.mxu0 0.0
        %3247 = vmatprep.subr.mxu0 0.0
        %3248 = vmatpush1.msra.mxu0 0.0
        %3249 = vmatprep.subr.mxu0 0.0
        %3250 = vmatpush1.msra.mxu0 0.0
        %3251 = vmatprep.subr.mxu0 0.0
        %3252 = vmatpush1.msra.mxu0 0.0
        %3253 = vmatprep.subr.mxu0 0.0
        %3254 = vmatpush1.msra.mxu0 0.0
        %3255 = vmatprep.mubr.f32.mxu0 0.0
        %3256 = vmatmul.mubr.f32.gmra.mrb[0].mxu0 %v3189
        %v3257 = vpop.f32.mrb[0].mxu0
        %v3258 = vadd.f32 0.0, %v3257
        %v3259 = vpop.f32.mrb[0].mxu0
        %3260 = vdwg.mxu0
        %3262 = vrot.lane.b32.xlu0 %v2928, 8
        %v3263 = vpop.permute.xlu0 %3262
        %3266 = vrot.lane.b32.xlu0 %v3093, 16
        %v3267 = vpop.permute.xlu0 %3266
        %3270 = vrot.lane.b32.xlu0 %v3258, 24
        %v3271 = vpop.permute.xlu0 %3270
        %v3273 = vsel %vm1521, %v2763, %v3263
        %v3274 = vsel %vm2191, %v3273, %v3267
        %v3275 = vsel %vm2193, %v3274, %v3271
        %v3277 = vlaneseq
        %v3278 = vshrl.u32 %v3277, 7
        %v3279 = vsub.s32 0, %v3278
        %v3280 = vrot.slane %v2601, %v3279
        %v3283 = vsel %vm1439, %v3275, 0
        %3285 = vmatprep.subr.mxu0 0.0
        %3286 = vmatpush1.msra.mxu0 %v2596
        %3287 = vmatprep.subr.mxu0 0.0
        %3288 = vmatpush1.msra.mxu0 %v2597
        %3289 = vmatprep.subr.mxu0 0.0
        %3290 = vmatpush1.msra.mxu0 %v2598
        %3291 = vmatprep.subr.mxu0 0.0
        %3292 = vmatpush1.msra.mxu0 %v2599
        %3293 = vmatprep.subr.mxu0 0.0
        %3294 = vmatpush1.msra.mxu0 0.0
        %3295 = vmatprep.subr.mxu0 0.0
        %3296 = vmatpush1.msra.mxu0 0.0
        %3297 = vmatprep.subr.mxu0 0.0
        %3298 = vmatpush1.msra.mxu0 0.0
        %3299 = vmatprep.subr.mxu0 0.0
        %3300 = vmatpush1.msra.mxu0 0.0
        %3301 = vmatprep.subr.mxu0 0.0
        %3302 = vmatpush1.msra.mxu0 0.0
        %3303 = vmatprep.subr.mxu0 0.0
        %3304 = vmatpush1.msra.mxu0 0.0
        %3305 = vmatprep.subr.mxu0 0.0
        %3306 = vmatpush1.msra.mxu0 0.0
        %3307 = vmatprep.subr.mxu0 0.0
        %3308 = vmatpush1.msra.mxu0 0.0
        %3309 = vmatprep.subr.mxu0 0.0
        %3310 = vmatpush1.msra.mxu0 0.0
        %3311 = vmatprep.subr.mxu0 0.0
        %3312 = vmatpush1.msra.mxu0 0.0
        %3313 = vmatprep.subr.mxu0 0.0
        %3314 = vmatpush1.msra.mxu0 0.0
        %3315 = vmatprep.subr.mxu0 0.0
        %3316 = vmatpush1.msra.mxu0 0.0
        %3317 = vmatprep.subr.mxu0 0.0
        %3318 = vmatpush1.msra.mxu0 0.0
        %3319 = vmatprep.subr.mxu0 0.0
        %3320 = vmatpush1.msra.mxu0 0.0
        %3321 = vmatprep.subr.mxu0 0.0
        %3322 = vmatpush1.msra.mxu0 0.0
        %3323 = vmatprep.subr.mxu0 0.0
        %3324 = vmatpush1.msra.mxu0 0.0
        %3325 = vmatprep.subr.mxu0 0.0
        %3326 = vmatpush1.msra.mxu0 0.0
        %3327 = vmatprep.subr.mxu0 0.0
        %3328 = vmatpush1.msra.mxu0 0.0
        %3329 = vmatprep.subr.mxu0 0.0
        %3330 = vmatpush1.msra.mxu0 0.0
        %3331 = vmatprep.subr.mxu0 0.0
        %3332 = vmatpush1.msra.mxu0 0.0
        %3333 = vmatprep.subr.mxu0 0.0
        %3334 = vmatpush1.msra.mxu0 0.0
        %3335 = vmatprep.subr.mxu0 0.0
        %3336 = vmatpush1.msra.mxu0 0.0
        %3337 = vmatprep.subr.mxu0 0.0
        %3338 = vmatpush1.msra.mxu0 0.0
        %3339 = vmatprep.subr.mxu0 0.0
        %3340 = vmatpush1.msra.mxu0 0.0
        %3341 = vmatprep.subr.mxu0 0.0
        %3342 = vmatpush1.msra.mxu0 0.0
        %3343 = vmatprep.subr.mxu0 0.0
        %3344 = vmatpush1.msra.mxu0 0.0
        %3345 = vmatprep.subr.mxu0 0.0
        %3346 = vmatpush1.msra.mxu0 0.0
        %3347 = vmatprep.subr.mxu0 0.0
        %3348 = vmatpush1.msra.mxu0 0.0
        %3349 = vmatprep.mubr.f32.mxu0 0.0
        %3350 = vmatmul.mubr.f32.gmra.mrb[0].mxu0 %v3283
        %v3351 = vpop.f32.mrb[0].mxu0
        %v3352 = vadd.f32 %v3280, %v3351
        %v3353 = vpop.f32.mrb[0].mxu0
        %3354 = vdwg.mxu0
        %v3355 = vadd.f32 %v2508, %v3352
        %s3356 = scalar_lea.vmem [#allocation8], 1
        %v3357 = vld [vmem:[%s3356] sm:$0x1]
        %s3358 = scalar_lea.vmem [#allocation10], 1
        %v3359 = vld [vmem:[%s3358] sm:$0x1]
        %v3360 = vsel %vm1439, %v3355, 0.0
        %3361 = vadd.xlane.f32.xlu0 %v3360
        %v3362 = vpop.xlane.xlu0 %3361
        %v3363 = vmul.f32 %v3362, %v2280
        %v3364 = vsub.f32 %v3355, %v3363
        %v3365 = vmul.f32 %v3364, %v3364
        %v3366 = vsel %vm1439, %v3365, 0.0
        %3367 = vadd.xlane.f32.xlu0 %v3366
        %v3368 = vpop.xlane.xlu0 %3367
        %v3369 = vmul.f32 %v3368, %v2280
        %v3370 = vadd.f32 %v3369, 1e-10
        %v3371 = vrsqrt.pop %v3370
        %v3372 = vmul.f32 %v3364, %v3371
        %v3374 = vlaneseq
        %v3375 = vshrl.u32 %v3374, 7
        %v3376 = vsub.s32 0, %v3375
        %v3377 = vrot.slane %v3357, %v3376
        %v3379 = vmul.f32 %v3377, %v3372
        %v3381 = vlaneseq
        %v3382 = vshrl.u32 %v3381, 7
        %v3383 = vsub.s32 0, %v3382
        %v3384 = vrot.slane %v3359, %v3383
        %v3386 = vadd.f32 %v3379, %v3384
        %s3387 = scalar_lea.vmem %s17, 32
        %v3388 = vld [vmem:[%s3387] sm:$0xff]
        %v3389 = vld [vmem:[%s3387 + $0x8] sm:$0xff]
        %v3390 = vld [vmem:[%s3387 + $0x10] sm:$0xff]
        %v3391 = vld [vmem:[%s3387 + $0x18] sm:$0xff]
        %s3392 = scalar_lea.vmem [#allocation11], 1
        %v3393 = vld [vmem:[%s3392] sm:$0x1]
        %s3394 = scalar_lea.vmem %s21, 64
        %v3395 = vld [vmem:[%s3394] sm:$0xff]
        %v3396 = vld [vmem:[%s3394 + $0x8] sm:$0xff]
        %v3397 = vld [vmem:[%s3394 + $0x10] sm:$0xff]
        %v3398 = vld [vmem:[%s3394 + $0x18] sm:$0xff]
        %v3399 = vld [vmem:[%s3394 + $0x20] sm:$0xff]
        %v3400 = vld [vmem:[%s3394 + $0x28] sm:$0xff]
        %v3401 = vld [vmem:[%s3394 + $0x30] sm:$0xff]
        %v3402 = vld [vmem:[%s3394 + $0x38] sm:$0xff]
        %s3403 = scalar_lea.vmem [#allocation13], 1
        %v3404 = vld [vmem:[%s3403] sm:$0x1]
        %v3406 = vlaneseq
        %v3407 = vshrl.u32 %v3406, 7
        %v3408 = vsub.s32 0, %v3407
        %v3409 = vrot.slane %v3393, %v3408
        %v3412 = vsel %vm1439, %v3386, 0
        %3414 = vmatprep.subr.mxu0 0.0
        %3415 = vmatpush1.msra.mxu0 %v3388
        %3416 = vmatprep.subr.mxu0 0.0
        %3417 = vmatpush1.msra.mxu0 %v3389
        %3418 = vmatprep.subr.mxu0 0.0
        %3419 = vmatpush1.msra.mxu0 %v3390
        %3420 = vmatprep.subr.mxu0 0.0
        %3421 = vmatpush1.msra.mxu0 %v3391
        %3422 = vmatprep.subr.mxu0 0.0
        %3423 = vmatpush1.msra.mxu0 0.0
        %3424 = vmatprep.subr.mxu0 0.0
        %3425 = vmatpush1.msra.mxu0 0.0
        %3426 = vmatprep.subr.mxu0 0.0
        %3427 = vmatpush1.msra.mxu0 0.0
        %3428 = vmatprep.subr.mxu0 0.0
        %3429 = vmatpush1.msra.mxu0 0.0
        %3430 = vmatprep.subr.mxu0 0.0
        %3431 = vmatpush1.msra.mxu0 0.0
        %3432 = vmatprep.subr.mxu0 0.0
        %3433 = vmatpush1.msra.mxu0 0.0
        %3434 = vmatprep.subr.mxu0 0.0
        %3435 = vmatpush1.msra.mxu0 0.0
        %3436 = vmatprep.subr.mxu0 0.0
        %3437 = vmatpush1.msra.mxu0 0.0
        %3438 = vmatprep.subr.mxu0 0.0
        %3439 = vmatpush1.msra.mxu0 0.0
        %3440 = vmatprep.subr.mxu0 0.0
        %3441 = vmatpush1.msra.mxu0 0.0
        %3442 = vmatprep.subr.mxu0 0.0
        %3443 = vmatpush1.msra.mxu0 0.0
        %3444 = vmatprep.subr.mxu0 0.0
        %3445 = vmatpush1.msra.mxu0 0.0
        %3446 = vmatprep.subr.mxu0 0.0
        %3447 = vmatpush1.msra.mxu0 0.0
        %3448 = vmatprep.subr.mxu0 0.0
        %3449 = vmatpush1.msra.mxu0 0.0
        %3450 = vmatprep.subr.mxu0 0.0
        %3451 = vmatpush1.msra.mxu0 0.0
        %3452 = vmatprep.subr.mxu0 0.0
        %3453 = vmatpush1.msra.mxu0 0.0
        %3454 = vmatprep.subr.mxu0 0.0
        %3455 = vmatpush1.msra.mxu0 0.0
        %3456 = vmatprep.subr.mxu0 0.0
        %3457 = vmatpush1.msra.mxu0 0.0
        %3458 = vmatprep.subr.mxu0 0.0
        %3459 = vmatpush1.msra.mxu0 0.0
        %3460 = vmatprep.subr.mxu0 0.0
        %3461 = vmatpush1.msra.mxu0 0.0
        %3462 = vmatprep.subr.mxu0 0.0
        %3463 = vmatpush1.msra.mxu0 0.0
        %3464 = vmatprep.subr.mxu0 0.0
        %3465 = vmatpush1.msra.mxu0 0.0
        %3466 = vmatprep.subr.mxu0 0.0
        %3467 = vmatpush1.msra.mxu0 0.0
        %3468 = vmatprep.subr.mxu0 0.0
        %3469 = vmatpush1.msra.mxu0 0.0
        %3470 = vmatprep.subr.mxu0 0.0
        %3471 = vmatpush1.msra.mxu0 0.0
        %3472 = vmatprep.subr.mxu0 0.0
        %3473 = vmatpush1.msra.mxu0 0.0
        %3474 = vmatprep.subr.mxu0 0.0
        %3475 = vmatpush1.msra.mxu0 0.0
        %3476 = vmatprep.subr.mxu0 0.0
        %3477 = vmatpush1.msra.mxu0 0.0
        %3478 = vmatprep.mubr.f32.mxu0 0.0
        %3479 = vmatmul.mubr.f32.gmra.mrb[0].mxu0 %v3412
        %v3480 = vpop.f32.mrb[0].mxu0
        %v3481 = vadd.f32 %v3409, %v3480
        %v3482 = vpop.f32.mrb[0].mxu0
        %3483 = vdwg.mxu0
        %v3484 = vmax.f32 %v3481, 0.0
        %v3486 = vlaneseq
        %v3487 = vshrl.u32 %v3486, 7
        %v3488 = vsub.s32 0, %v3487
        %v3489 = vrot.slane %v3404, %v3488
        %v3492 = vsel %vm2405, %v3484, 0
        %3494 = vmatprep.subr.mxu0 0.0
        %3495 = vmatpush1.msra.mxu0 %v3395
        %3496 = vmatprep.subr.mxu0 0.0
        %3497 = vmatpush1.msra.mxu0 %v3396
        %3498 = vmatprep.subr.mxu0 0.0
        %3499 = vmatpush1.msra.mxu0 %v3397
        %3500 = vmatprep.subr.mxu0 0.0
        %3501 = vmatpush1.msra.mxu0 %v3398
        %3502 = vmatprep.subr.mxu0 0.0
        %3503 = vmatpush1.msra.mxu0 %v3399
        %3504 = vmatprep.subr.mxu0 0.0
        %3505 = vmatpush1.msra.mxu0 %v3400
        %3506 = vmatprep.subr.mxu0 0.0
        %3507 = vmatpush1.msra.mxu0 %v3401
        %3508 = vmatprep.subr.mxu0 0.0
        %3509 = vmatpush1.msra.mxu0 %v3402
        %3510 = vmatprep.subr.mxu0 0.0
        %3511 = vmatpush1.msra.mxu0 0.0
        %3512 = vmatprep.subr.mxu0 0.0
        %3513 = vmatpush1.msra.mxu0 0.0
        %3514 = vmatprep.subr.mxu0 0.0
        %3515 = vmatpush1.msra.mxu0 0.0
        %3516 = vmatprep.subr.mxu0 0.0
        %3517 = vmatpush1.msra.mxu0 0.0
        %3518 = vmatprep.subr.mxu0 0.0
        %3519 = vmatpush1.msra.mxu0 0.0
        %3520 = vmatprep.subr.mxu0 0.0
        %3521 = vmatpush1.msra.mxu0 0.0
        %3522 = vmatprep.subr.mxu0 0.0
        %3523 = vmatpush1.msra.mxu0 0.0
        %3524 = vmatprep.subr.mxu0 0.0
        %3525 = vmatpush1.msra.mxu0 0.0
        %3526 = vmatprep.subr.mxu0 0.0
        %3527 = vmatpush1.msra.mxu0 0.0
        %3528 = vmatprep.subr.mxu0 0.0
        %3529 = vmatpush1.msra.mxu0 0.0
        %3530 = vmatprep.subr.mxu0 0.0
        %3531 = vmatpush1.msra.mxu0 0.0
        %3532 = vmatprep.subr.mxu0 0.0
        %3533 = vmatpush1.msra.mxu0 0.0
        %3534 = vmatprep.subr.mxu0 0.0
        %3535 = vmatpush1.msra.mxu0 0.0
        %3536 = vmatprep.subr.mxu0 0.0
        %3537 = vmatpush1.msra.mxu0 0.0
        %3538 = vmatprep.subr.mxu0 0.0
        %3539 = vmatpush1.msra.mxu0 0.0
        %3540 = vmatprep.subr.mxu0 0.0
        %3541 = vmatpush1.msra.mxu0 0.0
        %3542 = vmatprep.subr.mxu0 0.0
        %3543 = vmatpush1.msra.mxu0 0.0
        %3544 = vmatprep.subr.mxu0 0.0
        %3545 = vmatpush1.msra.mxu0 0.0
        %3546 = vmatprep.subr.mxu0 0.0
        %3547 = vmatpush1.msra.mxu0 0.0
        %3548 = vmatprep.subr.mxu0 0.0
        %3549 = vmatpush1.msra.mxu0 0.0
        %3550 = vmatprep.subr.mxu0 0.0
        %3551 = vmatpush1.msra.mxu0 0.0
        %3552 = vmatprep.subr.mxu0 0.0
        %3553 = vmatpush1.msra.mxu0 0.0
        %3554 = vmatprep.subr.mxu0 0.0
        %3555 = vmatpush1.msra.mxu0 0.0
        %3556 = vmatprep.subr.mxu0 0.0
        %3557 = vmatpush1.msra.mxu0 0.0
        %3558 = vmatprep.mubr.f32.mxu0 0.0
        %3559 = vmatmul.mubr.f32.gmra.mrb[0].mxu0 %v3492
        %v3560 = vpop.f32.mrb[0].mxu0
        %v3561 = vadd.f32 %v3489, %v3560
        %v3562 = vpop.f32.mrb[0].mxu0
        %3563 = vdwg.mxu0
        %v3564 = vadd.f32 %v3386, %v3561
        %s3565 = scalar_lea.vmem [#allocation14], 1
        %v3566 = vld [vmem:[%s3565] sm:$0x1]
        %s3567 = scalar_lea.vmem [#allocation16], 1
        %v3568 = vld [vmem:[%s3567] sm:$0x1]
        %v3569 = vsel %vm1439, %v3564, 0.0
        %3570 = vadd.xlane.f32.xlu0 %v3569
        %v3571 = vpop.xlane.xlu0 %3570
        %v3572 = vmul.f32 %v3571, %v2280
        %v3573 = vsub.f32 %v3564, %v3572
        %v3574 = vmul.f32 %v3573, %v3573
        %v3575 = vsel %vm1439, %v3574, 0.0
        %3576 = vadd.xlane.f32.xlu0 %v3575
        %v3577 = vpop.xlane.xlu0 %3576
        %v3578 = vmul.f32 %v3577, %v2280
        %v3579 = vadd.f32 %v3578, 1e-10
        %v3580 = vrsqrt.pop %v3579
        %v3581 = vmul.f32 %v3573, %v3580
        %v3583 = vlaneseq
        %v3584 = vshrl.u32 %v3583, 7
        %v3585 = vsub.s32 0, %v3584
        %v3586 = vrot.slane %v3566, %v3585
        %v3588 = vmul.f32 %v3586, %v3581
        %v3590 = vlaneseq
        %v3591 = vshrl.u32 %v3590, 7
        %v3592 = vsub.s32 0, %v3591
        %v3593 = vrot.slane %v3568, %v3592
        %v3595 = vadd.f32 %v3588, %v3593
        %v3596 = vlaneseq
        %v3597 = vshrl.u32 %v3596, 7
        %v3598 = vlaneseq
        %v3599 = vand.u32 %v3598, 127
        %vm3600 = vcmp.gt.s32.totalorder %v3599, %v3597
        %v3601 = vld [vmem:[%s29] sm:$0xff]
        %v3602 = vld [vmem:[%s29 + $0x8] sm:$0xff]
        %v3603 = vld [vmem:[%s29 + $0x10] sm:$0xff]
        %v3604 = vld [vmem:[%s29 + $0x18] sm:$0xff]
        %v3605 = vld [vmem:[#allocation17] sm:$0x1]
        %v3607 = vlaneseq
        %v3608 = vshrl.u32 %v3607, 7
        %v3609 = vsub.s32 0, %v3608
        %v3610 = vrot.slane %v3605, %v3609
        %v3613 = vsel %vm1439, %v1427, 0
        %3615 = vmatprep.subr.mxu0 0.0
        %3616 = vmatpush1.msra.mxu0 %v3601
        %3617 = vmatprep.subr.mxu0 0.0
        %3618 = vmatpush1.msra.mxu0 %v3602
        %3619 = vmatprep.subr.mxu0 0.0
        %3620 = vmatpush1.msra.mxu0 %v3603
        %3621 = vmatprep.subr.mxu0 0.0
        %3622 = vmatpush1.msra.mxu0 %v3604
        %3623 = vmatprep.subr.mxu0 0.0
        %3624 = vmatpush1.msra.mxu0 0.0
        %3625 = vmatprep.subr.mxu0 0.0
        %3626 = vmatpush1.msra.mxu0 0.0
        %3627 = vmatprep.subr.mxu0 0.0
        %3628 = vmatpush1.msra.mxu0 0.0
        %3629 = vmatprep.subr.mxu0 0.0
        %3630 = vmatpush1.msra.mxu0 0.0
        %3631 = vmatprep.subr.mxu0 0.0
        %3632 = vmatpush1.msra.mxu0 0.0
        %3633 = vmatprep.subr.mxu0 0.0
        %3634 = vmatpush1.msra.mxu0 0.0
        %3635 = vmatprep.subr.mxu0 0.0
        %3636 = vmatpush1.msra.mxu0 0.0
        %3637 = vmatprep.subr.mxu0 0.0
        %3638 = vmatpush1.msra.mxu0 0.0
        %3639 = vmatprep.subr.mxu0 0.0
        %3640 = vmatpush1.msra.mxu0 0.0
        %3641 = vmatprep.subr.mxu0 0.0
        %3642 = vmatpush1.msra.mxu0 0.0
        %3643 = vmatprep.subr.mxu0 0.0
        %3644 = vmatpush1.msra.mxu0 0.0
        %3645 = vmatprep.subr.mxu0 0.0
        %3646 = vmatpush1.msra.mxu0 0.0
        %3647 = vmatprep.subr.mxu0 0.0
        %3648 = vmatpush1.msra.mxu0 0.0
        %3649 = vmatprep.subr.mxu0 0.0
        %3650 = vmatpush1.msra.mxu0 0.0
        %3651 = vmatprep.subr.mxu0 0.0
        %3652 = vmatpush1.msra.mxu0 0.0
        %3653 = vmatprep.subr.mxu0 0.0
        %3654 = vmatpush1.msra.mxu0 0.0
        %3655 = vmatprep.subr.mxu0 0.0
        %3656 = vmatpush1.msra.mxu0 0.0
        %3657 = vmatprep.subr.mxu0 0.0
        %3658 = vmatpush1.msra.mxu0 0.0
        %3659 = vmatprep.subr.mxu0 0.0
        %3660 = vmatpush1.msra.mxu0 0.0
        %3661 = vmatprep.subr.mxu0 0.0
        %3662 = vmatpush1.msra.mxu0 0.0
        %3663 = vmatprep.subr.mxu0 0.0
        %3664 = vmatpush1.msra.mxu0 0.0
        %3665 = vmatprep.subr.mxu0 0.0
        %3666 = vmatpush1.msra.mxu0 0.0
        %3667 = vmatprep.subr.mxu0 0.0
        %3668 = vmatpush1.msra.mxu0 0.0
        %3669 = vmatprep.subr.mxu0 0.0
        %3670 = vmatpush1.msra.mxu0 0.0
        %3671 = vmatprep.subr.mxu0 0.0
        %3672 = vmatpush1.msra.mxu0 0.0
        %3673 = vmatprep.subr.mxu0 0.0
        %3674 = vmatpush1.msra.mxu0 0.0
        %3675 = vmatprep.subr.mxu0 0.0
        %3676 = vmatpush1.msra.mxu0 0.0
        %3677 = vmatprep.subr.mxu0 0.0
        %3678 = vmatpush1.msra.mxu0 0.0
        %3679 = vmatprep.mubr.f32.mxu0 0.0
        %3680 = vmatmul.mubr.f32.gmra.mrb[0].mxu0 %v3613
        %v3681 = vpop.f32.mrb[0].mxu0
        %v3682 = vadd.f32 %v3610, %v3681
        %v3683 = vpop.f32.mrb[0].mxu0
        %3684 = vdwg.mxu0
        %v3685 = vld [vmem:[%s33] sm:$0xff]
        %v3686 = vld [vmem:[%s33 + $0x8] sm:$0xff]
        %v3687 = vld [vmem:[%s33 + $0x10] sm:$0xff]
        %v3688 = vld [vmem:[%s33 + $0x18] sm:$0xff]
        %v3689 = vld [vmem:[#allocation19] sm:$0x1]
        %3691 = vrot.lane.b32.xlu0 %v3682, 96
        %v3692 = vpop.permute.xlu0 %3691
        %v3693 = vsel %vm1521, %v3682, 0
        %v3695 = vsel %vm1521, %v3692, 0
        %3697 = vmatprep.subr.mxu0 0.0
        %3698 = vmatpush1.xpose.msra.mxu0 %v3695
        %3699 = vmatprep.subr.mxu0 0.0
        %3700 = vmatpush1.xpose.msra.mxu0 0.0
        %3701 = vmatprep.subr.mxu0 0.0
        %3702 = vmatpush1.xpose.msra.mxu0 0.0
        %3703 = vmatprep.subr.mxu0 0.0
        %3704 = vmatpush1.xpose.msra.mxu0 0.0
        %3705 = vmatprep.subr.mxu0 0.0
        %3706 = vmatpush1.xpose.msra.mxu0 0.0
        %3707 = vmatprep.subr.mxu0 0.0
        %3708 = vmatpush1.xpose.msra.mxu0 0.0
        %3709 = vmatprep.subr.mxu0 0.0
        %3710 = vmatpush1.xpose.msra.mxu0 0.0
        %3711 = vmatprep.subr.mxu0 0.0
        %3712 = vmatpush1.xpose.msra.mxu0 0.0
        %3713 = vmatprep.subr.mxu0 0.0
        %3714 = vmatpush1.xpose.msra.mxu0 0.0
        %3715 = vmatprep.subr.mxu0 0.0
        %3716 = vmatpush1.xpose.msra.mxu0 0.0
        %3717 = vmatprep.subr.mxu0 0.0
        %3718 = vmatpush1.xpose.msra.mxu0 0.0
        %3719 = vmatprep.subr.mxu0 0.0
        %3720 = vmatpush1.xpose.msra.mxu0 0.0
        %3721 = vmatprep.subr.mxu0 0.0
        %3722 = vmatpush1.xpose.msra.mxu0 0.0
        %3723 = vmatprep.subr.mxu0 0.0
        %3724 = vmatpush1.xpose.msra.mxu0 0.0
        %3725 = vmatprep.subr.mxu0 0.0
        %3726 = vmatpush1.xpose.msra.mxu0 0.0
        %3727 = vmatprep.subr.mxu0 0.0
        %3728 = vmatpush1.xpose.msra.mxu0 0.0
        %3729 = vmatprep.subr.mxu0 0.0
        %3730 = vmatpush1.xpose.msra.mxu0 0.0
        %3731 = vmatprep.subr.mxu0 0.0
        %3732 = vmatpush1.xpose.msra.mxu0 0.0
        %3733 = vmatprep.subr.mxu0 0.0
        %3734 = vmatpush1.xpose.msra.mxu0 0.0
        %3735 = vmatprep.subr.mxu0 0.0
        %3736 = vmatpush1.xpose.msra.mxu0 0.0
        %3737 = vmatprep.subr.mxu0 0.0
        %3738 = vmatpush1.xpose.msra.mxu0 0.0
        %3739 = vmatprep.subr.mxu0 0.0
        %3740 = vmatpush1.xpose.msra.mxu0 0.0
        %3741 = vmatprep.subr.mxu0 0.0
        %3742 = vmatpush1.xpose.msra.mxu0 0.0
        %3743 = vmatprep.subr.mxu0 0.0
        %3744 = vmatpush1.xpose.msra.mxu0 0.0
        %3745 = vmatprep.subr.mxu0 0.0
        %3746 = vmatpush1.xpose.msra.mxu0 0.0
        %3747 = vmatprep.subr.mxu0 0.0
        %3748 = vmatpush1.xpose.msra.mxu0 0.0
        %3749 = vmatprep.subr.mxu0 0.0
        %3750 = vmatpush1.xpose.msra.mxu0 0.0
        %3751 = vmatprep.subr.mxu0 0.0
        %3752 = vmatpush1.xpose.msra.mxu0 0.0
        %3753 = vmatprep.subr.mxu0 0.0
        %3754 = vmatpush1.xpose.msra.mxu0 0.0
        %3755 = vmatprep.subr.mxu0 0.0
        %3756 = vmatpush1.xpose.msra.mxu0 0.0
        %3757 = vmatprep.subr.mxu0 0.0
        %3758 = vmatpush1.xpose.msra.mxu0 0.0
        %3759 = vmatprep.subr.mxu0 0.0
        %3760 = vmatpush1.xpose.msra.mxu0 0.0
        %3761 = vmatprep.mubr.f32.mxu0 0.0
        %3762 = vmatmul.mubr.f32.gmra.mrb[0].mxu0 %v3693
        %v3763 = vpop.f32.mrb[0].mxu0
        %v3764 = vadd.f32 0.0, %v3763
        %v3765 = vpop.f32.mrb[0].mxu0
        %3766 = vdwg.mxu0
        %v3767 = vsel %vm3600, -1e+09, %v3764
        %v3768 = vsel %vm1521, %v3767, -inf
        %3769 = vmax.xlane.f32.xlu0 %v3768
        %v3770 = vpop.xlane.xlu0 %3769
        %v3771 = vsub.f32 %v3767, %v3770
        %v3772 = vmul.f32 %v3771, 1.442695
        %v3773 = vpow.pop %v3772
        %v3774 = vsel %vm1521, %v3773, 0.0
        %3775 = vadd.xlane.f32.xlu0 %v3774
        %v3776 = vpop.xlane.xlu0 %3775
        %v3777 = vrcp.pop %v3776
        %v3778 = vmul.f32 %v3773, %v3777
        %3779 = vrot.lane.b32.xlu0 %v3682, 64
        %v3780 = vpop.permute.xlu0 %3779
        %v3783 = vsel %vm1521, %v3778, 0
        %3785 = vmatprep.subr.mxu0 0.0
        %3786 = vmatpush1.msra.mxu0 %v3780
        %3787 = vmatprep.subr.mxu0 0.0
        %3788 = vmatpush1.msra.mxu0 0.0
        %3789 = vmatprep.subr.mxu0 0.0
        %3790 = vmatpush1.msra.mxu0 0.0
        %3791 = vmatprep.subr.mxu0 0.0
        %3792 = vmatpush1.msra.mxu0 0.0
        %3793 = vmatprep.subr.mxu0 0.0
        %3794 = vmatpush1.msra.mxu0 0.0
        %3795 = vmatprep.subr.mxu0 0.0
        %3796 = vmatpush1.msra.mxu0 0.0
        %3797 = vmatprep.subr.mxu0 0.0
        %3798 = vmatpush1.msra.mxu0 0.0
        %3799 = vmatprep.subr.mxu0 0.0
        %3800 = vmatpush1.msra.mxu0 0.0
        %3801 = vmatprep.subr.mxu0 0.0
        %3802 = vmatpush1.msra.mxu0 0.0
        %3803 = vmatprep.subr.mxu0 0.0
        %3804 = vmatpush1.msra.mxu0 0.0
        %3805 = vmatprep.subr.mxu0 0.0
        %3806 = vmatpush1.msra.mxu0 0.0
        %3807 = vmatprep.subr.mxu0 0.0
        %3808 = vmatpush1.msra.mxu0 0.0
        %3809 = vmatprep.subr.mxu0 0.0
        %3810 = vmatpush1.msra.mxu0 0.0
        %3811 = vmatprep.subr.mxu0 0.0
        %3812 = vmatpush1.msra.mxu0 0.0
        %3813 = vmatprep.subr.mxu0 0.0
        %3814 = vmatpush1.msra.mxu0 0.0
        %3815 = vmatprep.subr.mxu0 0.0
        %3816 = vmatpush1.msra.mxu0 0.0
        %3817 = vmatprep.subr.mxu0 0.0
        %3818 = vmatpush1.msra.mxu0 0.0
        %3819 = vmatprep.subr.mxu0 0.0
        %3820 = vmatpush1.msra.mxu0 0.0
        %3821 = vmatprep.subr.mxu0 0.0
        %3822 = vmatpush1.msra.mxu0 0.0
        %3823 = vmatprep.subr.mxu0 0.0
        %3824 = vmatpush1.msra.mxu0 0.0
        %3825 = vmatprep.subr.mxu0 0.0
        %3826 = vmatpush1.msra.mxu0 0.0
        %3827 = vmatprep.subr.mxu0 0.0
        %3828 = vmatpush1.msra.mxu0 0.0
        %3829 = vmatprep.subr.mxu0 0.0
        %3830 = vmatpush1.msra.mxu0 0.0
        %3831 = vmatprep.subr.mxu0 0.0
        %3832 = vmatpush1.msra.mxu0 0.0
        %3833 = vmatprep.subr.mxu0 0.0
        %3834 = vmatpush1.msra.mxu0 0.0
        %3835 = vmatprep.subr.mxu0 0.0
        %3836 = vmatpush1.msra.mxu0 0.0
        %3837 = vmatprep.subr.mxu0 0.0
        %3838 = vmatpush1.msra.mxu0 0.0
        %3839 = vmatprep.subr.mxu0 0.0
        %3840 = vmatpush1.msra.mxu0 0.0
        %3841 = vmatprep.subr.mxu0 0.0
        %3842 = vmatpush1.msra.mxu0 0.0
        %3843 = vmatprep.subr.mxu0 0.0
        %3844 = vmatpush1.msra.mxu0 0.0
        %3845 = vmatprep.subr.mxu0 0.0
        %3846 = vmatpush1.msra.mxu0 0.0
        %3847 = vmatprep.subr.mxu0 0.0
        %3848 = vmatpush1.msra.mxu0 0.0
        %3849 = vmatprep.mubr.f32.mxu0 0.0
        %3850 = vmatmul.mubr.f32.gmra.mrb[0].mxu0 %v3783
        %v3851 = vpop.f32.mrb[0].mxu0
        %v3852 = vadd.f32 0.0, %v3851
        %v3853 = vpop.f32.mrb[0].mxu0
        %3854 = vdwg.mxu0
        %3855 = vrot.lane.b32.xlu0 %v3682, 120
        %v3856 = vpop.permute.xlu0 %3855
        %3857 = vrot.lane.b32.xlu0 %v3682, 88
        %v3858 = vpop.permute.xlu0 %3857
        %v3859 = vsel %vm1521, %v3856, 0
        %v3861 = vsel %vm1521, %v3858, 0
        %3863 = vmatprep.subr.mxu0 0.0
        %3864 = vmatpush1.xpose.msra.mxu0 %v3861
        %3865 = vmatprep.subr.mxu0 0.0
        %3866 = vmatpush1.xpose.msra.mxu0 0.0
        %3867 = vmatprep.subr.mxu0 0.0
        %3868 = vmatpush1.xpose.msra.mxu0 0.0
        %3869 = vmatprep.subr.mxu0 0.0
        %3870 = vmatpush1.xpose.msra.mxu0 0.0
        %3871 = vmatprep.subr.mxu0 0.0
        %3872 = vmatpush1.xpose.msra.mxu0 0.0
        %3873 = vmatprep.subr.mxu0 0.0
        %3874 = vmatpush1.xpose.msra.mxu0 0.0
        %3875 = vmatprep.subr.mxu0 0.0
        %3876 = vmatpush1.xpose.msra.mxu0 0.0
        %3877 = vmatprep.subr.mxu0 0.0
        %3878 = vmatpush1.xpose.msra.mxu0 0.0
        %3879 = vmatprep.subr.mxu0 0.0
        %3880 = vmatpush1.xpose.msra.mxu0 0.0
        %3881 = vmatprep.subr.mxu0 0.0
        %3882 = vmatpush1.xpose.msra.mxu0 0.0
        %3883 = vmatprep.subr.mxu0 0.0
        %3884 = vmatpush1.xpose.msra.mxu0 0.0
        %3885 = vmatprep.subr.mxu0 0.0
        %3886 = vmatpush1.xpose.msra.mxu0 0.0
        %3887 = vmatprep.subr.mxu0 0.0
        %3888 = vmatpush1.xpose.msra.mxu0 0.0
        %3889 = vmatprep.subr.mxu0 0.0
        %3890 = vmatpush1.xpose.msra.mxu0 0.0
        %3891 = vmatprep.subr.mxu0 0.0
        %3892 = vmatpush1.xpose.msra.mxu0 0.0
        %3893 = vmatprep.subr.mxu0 0.0
        %3894 = vmatpush1.xpose.msra.mxu0 0.0
        %3895 = vmatprep.subr.mxu0 0.0
        %3896 = vmatpush1.xpose.msra.mxu0 0.0
        %3897 = vmatprep.subr.mxu0 0.0
        %3898 = vmatpush1.xpose.msra.mxu0 0.0
        %3899 = vmatprep.subr.mxu0 0.0
        %3900 = vmatpush1.xpose.msra.mxu0 0.0
        %3901 = vmatprep.subr.mxu0 0.0
        %3902 = vmatpush1.xpose.msra.mxu0 0.0
        %3903 = vmatprep.subr.mxu0 0.0
        %3904 = vmatpush1.xpose.msra.mxu0 0.0
        %3905 = vmatprep.subr.mxu0 0.0
        %3906 = vmatpush1.xpose.msra.mxu0 0.0
        %3907 = vmatprep.subr.mxu0 0.0
        %3908 = vmatpush1.xpose.msra.mxu0 0.0
        %3909 = vmatprep.subr.mxu0 0.0
        %3910 = vmatpush1.xpose.msra.mxu0 0.0
        %3911 = vmatprep.subr.mxu0 0.0
        %3912 = vmatpush1.xpose.msra.mxu0 0.0
        %3913 = vmatprep.subr.mxu0 0.0
        %3914 = vmatpush1.xpose.msra.mxu0 0.0
        %3915 = vmatprep.subr.mxu0 0.0
        %3916 = vmatpush1.xpose.msra.mxu0 0.0
        %3917 = vmatprep.subr.mxu0 0.0
        %3918 = vmatpush1.xpose.msra.mxu0 0.0
        %3919 = vmatprep.subr.mxu0 0.0
        %3920 = vmatpush1.xpose.msra.mxu0 0.0
        %3921 = vmatprep.subr.mxu0 0.0
        %3922 = vmatpush1.xpose.msra.mxu0 0.0
        %3923 = vmatprep.subr.mxu0 0.0
        %3924 = vmatpush1.xpose.msra.mxu0 0.0
        %3925 = vmatprep.subr.mxu0 0.0
        %3926 = vmatpush1.xpose.msra.mxu0 0.0
        %3927 = vmatprep.mubr.f32.mxu0 0.0
        %3928 = vmatmul.mubr.f32.gmra.mrb[0].mxu0 %v3859
        %v3929 = vpop.f32.mrb[0].mxu0
        %v3930 = vadd.f32 0.0, %v3929
        %v3931 = vpop.f32.mrb[0].mxu0
        %3932 = vdwg.mxu0
        %v3933 = vsel %vm3600, -1e+09, %v3930
        %v3934 = vsel %vm1521, %v3933, -inf
        %3935 = vmax.xlane.f32.xlu0 %v3934
        %v3936 = vpop.xlane.xlu0 %3935
        %v3937 = vsub.f32 %v3933, %v3936
        %v3938 = vmul.f32 %v3937, 1.442695
        %v3939 = vpow.pop %v3938
        %v3940 = vsel %vm1521, %v3939, 0.0
        %3941 = vadd.xlane.f32.xlu0 %v3940
        %v3942 = vpop.xlane.xlu0 %3941
        %v3943 = vrcp.pop %v3942
        %v3944 = vmul.f32 %v3939, %v3943
        %3945 = vrot.lane.b32.xlu0 %v3682, 56
        %v3946 = vpop.permute.xlu0 %3945
        %v3949 = vsel %vm1521, %v3944, 0
        %3951 = vmatprep.subr.mxu0 0.0
        %3952 = vmatpush1.msra.mxu0 %v3946
        %3953 = vmatprep.subr.mxu0 0.0
        %3954 = vmatpush1.msra.mxu0 0.0
        %3955 = vmatprep.subr.mxu0 0.0
        %3956 = vmatpush1.msra.mxu0 0.0
        %3957 = vmatprep.subr.mxu0 0.0
        %3958 = vmatpush1.msra.mxu0 0.0
        %3959 = vmatprep.subr.mxu0 0.0
        %3960 = vmatpush1.msra.mxu0 0.0
        %3961 = vmatprep.subr.mxu0 0.0
        %3962 = vmatpush1.msra.mxu0 0.0
        %3963 = vmatprep.subr.mxu0 0.0
        %3964 = vmatpush1.msra.mxu0 0.0
        %3965 = vmatprep.subr.mxu0 0.0
        %3966 = vmatpush1.msra.mxu0 0.0
        %3967 = vmatprep.subr.mxu0 0.0
        %3968 = vmatpush1.msra.mxu0 0.0
        %3969 = vmatprep.subr.mxu0 0.0
        %3970 = vmatpush1.msra.mxu0 0.0
        %3971 = vmatprep.subr.mxu0 0.0
        %3972 = vmatpush1.msra.mxu0 0.0
        %3973 = vmatprep.subr.mxu0 0.0
        %3974 = vmatpush1.msra.mxu0 0.0
        %3975 = vmatprep.subr.mxu0 0.0
        %3976 = vmatpush1.msra.mxu0 0.0
        %3977 = vmatprep.subr.mxu0 0.0
        %3978 = vmatpush1.msra.mxu0 0.0
        %3979 = vmatprep.subr.mxu0 0.0
        %3980 = vmatpush1.msra.mxu0 0.0
        %3981 = vmatprep.subr.mxu0 0.0
        %3982 = vmatpush1.msra.mxu0 0.0
        %3983 = vmatprep.subr.mxu0 0.0
        %3984 = vmatpush1.msra.mxu0 0.0
        %3985 = vmatprep.subr.mxu0 0.0
        %3986 = vmatpush1.msra.mxu0 0.0
        %3987 = vmatprep.subr.mxu0 0.0
        %3988 = vmatpush1.msra.mxu0 0.0
        %3989 = vmatprep.subr.mxu0 0.0
        %3990 = vmatpush1.msra.mxu0 0.0
        %3991 = vmatprep.subr.mxu0 0.0
        %3992 = vmatpush1.msra.mxu0 0.0
        %3993 = vmatprep.subr.mxu0 0.0
        %3994 = vmatpush1.msra.mxu0 0.0
        %3995 = vmatprep.subr.mxu0 0.0
        %3996 = vmatpush1.msra.mxu0 0.0
        %3997 = vmatprep.subr.mxu0 0.0
        %3998 = vmatpush1.msra.mxu0 0.0
        %3999 = vmatprep.subr.mxu0 0.0
        %4000 = vmatpush1.msra.mxu0 0.0
        %4001 = vmatprep.subr.mxu0 0.0
        %4002 = vmatpush1.msra.mxu0 0.0
        %4003 = vmatprep.subr.mxu0 0.0
        %4004 = vmatpush1.msra.mxu0 0.0
        %4005 = vmatprep.subr.mxu0 0.0
        %4006 = vmatpush1.msra.mxu0 0.0
        %4007 = vmatprep.subr.mxu0 0.0
        %4008 = vmatpush1.msra.mxu0 0.0
        %4009 = vmatprep.subr.mxu0 0.0
        %4010 = vmatpush1.msra.mxu0 0.0
        %4011 = vmatprep.subr.mxu0 0.0
        %4012 = vmatpush1.msra.mxu0 0.0
        %4013 = vmatprep.subr.mxu0 0.0
        %4014 = vmatpush1.msra.mxu0 0.0
        %4015 = vmatprep.mubr.f32.mxu0 0.0
        %4016 = vmatmul.mubr.f32.gmra.mrb[0].mxu0 %v3949
        %v4017 = vpop.f32.mrb[0].mxu0
        %v4018 = vadd.f32 0.0, %v4017
        %v4019 = vpop.f32.mrb[0].mxu0
        %4020 = vdwg.mxu0
        %4021 = vrot.lane.b32.xlu0 %v3682, 112
        %v4022 = vpop.permute.xlu0 %4021
        %4023 = vrot.lane.b32.xlu0 %v3682, 80
        %v4024 = vpop.permute.xlu0 %4023
        %v4025 = vsel %vm1521, %v4022, 0
        %v4027 = vsel %vm1521, %v4024, 0
        %4029 = vmatprep.subr.mxu0 0.0
        %4030 = vmatpush1.xpose.msra.mxu0 %v4027
        %4031 = vmatprep.subr.mxu0 0.0
        %4032 = vmatpush1.xpose.msra.mxu0 0.0
        %4033 = vmatprep.subr.mxu0 0.0
        %4034 = vmatpush1.xpose.msra.mxu0 0.0
        %4035 = vmatprep.subr.mxu0 0.0
        %4036 = vmatpush1.xpose.msra.mxu0 0.0
        %4037 = vmatprep.subr.mxu0 0.0
        %4038 = vmatpush1.xpose.msra.mxu0 0.0
        %4039 = vmatprep.subr.mxu0 0.0
        %4040 = vmatpush1.xpose.msra.mxu0 0.0
        %4041 = vmatprep.subr.mxu0 0.0
        %4042 = vmatpush1.xpose.msra.mxu0 0.0
        %4043 = vmatprep.subr.mxu0 0.0
        %4044 = vmatpush1.xpose.msra.mxu0 0.0
        %4045 = vmatprep.subr.mxu0 0.0
        %4046 = vmatpush1.xpose.msra.mxu0 0.0
        %4047 = vmatprep.subr.mxu0 0.0
        %4048 = vmatpush1.xpose.msra.mxu0 0.0
        %4049 = vmatprep.subr.mxu0 0.0
        %4050 = vmatpush1.xpose.msra.mxu0 0.0
        %4051 = vmatprep.subr.mxu0 0.0
        %4052 = vmatpush1.xpose.msra.mxu0 0.0
        %4053 = vmatprep.subr.mxu0 0.0
        %4054 = vmatpush1.xpose.msra.mxu0 0.0
        %4055 = vmatprep.subr.mxu0 0.0
        %4056 = vmatpush1.xpose.msra.mxu0 0.0
        %4057 = vmatprep.subr.mxu0 0.0
        %4058 = vmatpush1.xpose.msra.mxu0 0.0
        %4059 = vmatprep.subr.mxu0 0.0
        %4060 = vmatpush1.xpose.msra.mxu0 0.0
        %4061 = vmatprep.subr.mxu0 0.0
        %4062 = vmatpush1.xpose.msra.mxu0 0.0
        %4063 = vmatprep.subr.mxu0 0.0
        %4064 = vmatpush1.xpose.msra.mxu0 0.0
        %4065 = vmatprep.subr.mxu0 0.0
        %4066 = vmatpush1.xpose.msra.mxu0 0.0
        %4067 = vmatprep.subr.mxu0 0.0
        %4068 = vmatpush1.xpose.msra.mxu0 0.0
        %4069 = vmatprep.subr.mxu0 0.0
        %4070 = vmatpush1.xpose.msra.mxu0 0.0
        %4071 = vmatprep.subr.mxu0 0.0
        %4072 = vmatpush1.xpose.msra.mxu0 0.0
        %4073 = vmatprep.subr.mxu0 0.0
        %4074 = vmatpush1.xpose.msra.mxu0 0.0
        %4075 = vmatprep.subr.mxu0 0.0
        %4076 = vmatpush1.xpose.msra.mxu0 0.0
        %4077 = vmatprep.subr.mxu0 0.0
        %4078 = vmatpush1.xpose.msra.mxu0 0.0
        %4079 = vmatprep.subr.mxu0 0.0
        %4080 = vmatpush1.xpose.msra.mxu0 0.0
        %4081 = vmatprep.subr.mxu0 0.0
        %4082 = vmatpush1.xpose.msra.mxu0 0.0
        %4083 = vmatprep.subr.mxu0 0.0
        %4084 = vmatpush1.xpose.msra.mxu0 0.0
        %4085 = vmatprep.subr.mxu0 0.0
        %4086 = vmatpush1.xpose.msra.mxu0 0.0
        %4087 = vmatprep.subr.mxu0 0.0
        %4088 = vmatpush1.xpose.msra.mxu0 0.0
        %4089 = vmatprep.subr.mxu0 0.0
        %4090 = vmatpush1.xpose.msra.mxu0 0.0
        %4091 = vmatprep.subr.mxu0 0.0
        %4092 = vmatpush1.xpose.msra.mxu0 0.0
        %4093 = vmatprep.mubr.f32.mxu0 0.0
        %4094 = vmatmul.mubr.f32.gmra.mrb[0].mxu0 %v4025
        %v4095 = vpop.f32.mrb[0].mxu0
        %v4096 = vadd.f32 0.0, %v4095
        %v4097 = vpop.f32.mrb[0].mxu0
        %4098 = vdwg.mxu0
        %v4099 = vsel %vm3600, -1e+09, %v4096
        %v4100 = vsel %vm1521, %v4099, -inf
        %4101 = vmax.xlane.f32.xlu0 %v4100
        %v4102 = vpop.xlane.xlu0 %4101
        %v4103 = vsub.f32 %v4099, %v4102
        %v4104 = vmul.f32 %v4103, 1.442695
        %v4105 = vpow.pop %v4104
        %v4106 = vsel %vm1521, %v4105, 0.0
        %4107 = vadd.xlane.f32.xlu0 %v4106
        %v4108 = vpop.xlane.xlu0 %4107
        %v4109 = vrcp.pop %v4108
        %v4110 = vmul.f32 %v4105, %v4109
        %4111 = vrot.lane.b32.xlu0 %v3682, 48
        %v4112 = vpop.permute.xlu0 %4111
        %v4115 = vsel %vm1521, %v4110, 0
        %4117 = vmatprep.subr.mxu0 0.0
        %4118 = vmatpush1.msra.mxu0 %v4112
        %4119 = vmatprep.subr.mxu0 0.0
        %4120 = vmatpush1.msra.mxu0 0.0
        %4121 = vmatprep.subr.mxu0 0.0
        %4122 = vmatpush1.msra.mxu0 0.0
        %4123 = vmatprep.subr.mxu0 0.0
        %4124 = vmatpush1.msra.mxu0 0.0
        %4125 = vmatprep.subr.mxu0 0.0
        %4126 = vmatpush1.msra.mxu0 0.0
        %4127 = vmatprep.subr.mxu0 0.0
        %4128 = vmatpush1.msra.mxu0 0.0
        %4129 = vmatprep.subr.mxu0 0.0
        %4130 = vmatpush1.msra.mxu0 0.0
        %4131 = vmatprep.subr.mxu0 0.0
        %4132 = vmatpush1.msra.mxu0 0.0
        %4133 = vmatprep.subr.mxu0 0.0
        %4134 = vmatpush1.msra.mxu0 0.0
        %4135 = vmatprep.subr.mxu0 0.0
        %4136 = vmatpush1.msra.mxu0 0.0
        %4137 = vmatprep.subr.mxu0 0.0
        %4138 = vmatpush1.msra.mxu0 0.0
        %4139 = vmatprep.subr.mxu0 0.0
        %4140 = vmatpush1.msra.mxu0 0.0
        %4141 = vmatprep.subr.mxu0 0.0
        %4142 = vmatpush1.msra.mxu0 0.0
        %4143 = vmatprep.subr.mxu0 0.0
        %4144 = vmatpush1.msra.mxu0 0.0
        %4145 = vmatprep.subr.mxu0 0.0
        %4146 = vmatpush1.msra.mxu0 0.0
        %4147 = vmatprep.subr.mxu0 0.0
        %4148 = vmatpush1.msra.mxu0 0.0
        %4149 = vmatprep.subr.mxu0 0.0
        %4150 = vmatpush1.msra.mxu0 0.0
        %4151 = vmatprep.subr.mxu0 0.0
        %4152 = vmatpush1.msra.mxu0 0.0
        %4153 = vmatprep.subr.mxu0 0.0
        %4154 = vmatpush1.msra.mxu0 0.0
        %4155 = vmatprep.subr.mxu0 0.0
        %4156 = vmatpush1.msra.mxu0 0.0
        %4157 = vmatprep.subr.mxu0 0.0
        %4158 = vmatpush1.msra.mxu0 0.0
        %4159 = vmatprep.subr.mxu0 0.0
        %4160 = vmatpush1.msra.mxu0 0.0
        %4161 = vmatprep.subr.mxu0 0.0
        %4162 = vmatpush1.msra.mxu0 0.0
        %4163 = vmatprep.subr.mxu0 0.0
        %4164 = vmatpush1.msra.mxu0 0.0
        %4165 = vmatprep.subr.mxu0 0.0
        %4166 = vmatpush1.msra.mxu0 0.0
        %4167 = vmatprep.subr.mxu0 0.0
        %4168 = vmatpush1.msra.mxu0 0.0
        %4169 = vmatprep.subr.mxu0 0.0
        %4170 = vmatpush1.msra.mxu0 0.0
        %4171 = vmatprep.subr.mxu0 0.0
        %4172 = vmatpush1.msra.mxu0 0.0
        %4173 = vmatprep.subr.mxu0 0.0
        %4174 = vmatpush1.msra.mxu0 0.0
        %4175 = vmatprep.subr.mxu0 0.0
        %4176 = vmatpush1.msra.mxu0 0.0
        %4177 = vmatprep.subr.mxu0 0.0
        %4178 = vmatpush1.msra.mxu0 0.0
        %4179 = vmatprep.subr.mxu0 0.0
        %4180 = vmatpush1.msra.mxu0 0.0
        %4181 = vmatprep.mubr.f32.mxu0 0.0
        %4182 = vmatmul.mubr.f32.gmra.mrb[0].mxu0 %v4115
        %v4183 = vpop.f32.mrb[0].mxu0
        %v4184 = vadd.f32 0.0, %v4183
        %v4185 = vpop.f32.mrb[0].mxu0
        %4186 = vdwg.mxu0
        %4187 = vrot.lane.b32.xlu0 %v3682, 104
        %v4188 = vpop.permute.xlu0 %4187
        %4189 = vrot.lane.b32.xlu0 %v3682, 72
        %v4190 = vpop.permute.xlu0 %4189
        %v4191 = vsel %vm1521, %v4188, 0
        %v4193 = vsel %vm1521, %v4190, 0
        %4195 = vmatprep.subr.mxu0 0.0
        %4196 = vmatpush1.xpose.msra.mxu0 %v4193
        %4197 = vmatprep.subr.mxu0 0.0
        %4198 = vmatpush1.xpose.msra.mxu0 0.0
        %4199 = vmatprep.subr.mxu0 0.0
        %4200 = vmatpush1.xpose.msra.mxu0 0.0
        %4201 = vmatprep.subr.mxu0 0.0
        %4202 = vmatpush1.xpose.msra.mxu0 0.0
        %4203 = vmatprep.subr.mxu0 0.0
        %4204 = vmatpush1.xpose.msra.mxu0 0.0
        %4205 = vmatprep.subr.mxu0 0.0
        %4206 = vmatpush1.xpose.msra.mxu0 0.0
        %4207 = vmatprep.subr.mxu0 0.0
        %4208 = vmatpush1.xpose.msra.mxu0 0.0
        %4209 = vmatprep.subr.mxu0 0.0
        %4210 = vmatpush1.xpose.msra.mxu0 0.0
        %4211 = vmatprep.subr.mxu0 0.0
        %4212 = vmatpush1.xpose.msra.mxu0 0.0
        %4213 = vmatprep.subr.mxu0 0.0
        %4214 = vmatpush1.xpose.msra.mxu0 0.0
        %4215 = vmatprep.subr.mxu0 0.0
        %4216 = vmatpush1.xpose.msra.mxu0 0.0
        %4217 = vmatprep.subr.mxu0 0.0
        %4218 = vmatpush1.xpose.msra.mxu0 0.0
        %4219 = vmatprep.subr.mxu0 0.0
        %4220 = vmatpush1.xpose.msra.mxu0 0.0
        %4221 = vmatprep.subr.mxu0 0.0
        %4222 = vmatpush1.xpose.msra.mxu0 0.0
        %4223 = vmatprep.subr.mxu0 0.0
        %4224 = vmatpush1.xpose.msra.mxu0 0.0
        %4225 = vmatprep.subr.mxu0 0.0
        %4226 = vmatpush1.xpose.msra.mxu0 0.0
        %4227 = vmatprep.subr.mxu0 0.0
        %4228 = vmatpush1.xpose.msra.mxu0 0.0
        %4229 = vmatprep.subr.mxu0 0.0
        %4230 = vmatpush1.xpose.msra.mxu0 0.0
        %4231 = vmatprep.subr.mxu0 0.0
        %4232 = vmatpush1.xpose.msra.mxu0 0.0
        %4233 = vmatprep.subr.mxu0 0.0
        %4234 = vmatpush1.xpose.msra.mxu0 0.0
        %4235 = vmatprep.subr.mxu0 0.0
        %4236 = vmatpush1.xpose.msra.mxu0 0.0
        %4237 = vmatprep.subr.mxu0 0.0
        %4238 = vmatpush1.xpose.msra.mxu0 0.0
        %4239 = vmatprep.subr.mxu0 0.0
        %4240 = vmatpush1.xpose.msra.mxu0 0.0
        %4241 = vmatprep.subr.mxu0 0.0
        %4242 = vmatpush1.xpose.msra.mxu0 0.0
        %4243 = vmatprep.subr.mxu0 0.0
        %4244 = vmatpush1.xpose.msra.mxu0 0.0
        %4245 = vmatprep.subr.mxu0 0.0
        %4246 = vmatpush1.xpose.msra.mxu0 0.0
        %4247 = vmatprep.subr.mxu0 0.0
        %4248 = vmatpush1.xpose.msra.mxu0 0.0
        %4249 = vmatprep.subr.mxu0 0.0
        %4250 = vmatpush1.xpose.msra.mxu0 0.0
        %4251 = vmatprep.subr.mxu0 0.0
        %4252 = vmatpush1.xpose.msra.mxu0 0.0
        %4253 = vmatprep.subr.mxu0 0.0
        %4254 = vmatpush1.xpose.msra.mxu0 0.0
        %4255 = vmatprep.subr.mxu0 0.0
        %4256 = vmatpush1.xpose.msra.mxu0 0.0
        %4257 = vmatprep.subr.mxu0 0.0
        %4258 = vmatpush1.xpose.msra.mxu0 0.0
        %4259 = vmatprep.mubr.f32.mxu0 0.0
        %4260 = vmatmul.mubr.f32.gmra.mrb[0].mxu0 %v4191
        %v4261 = vpop.f32.mrb[0].mxu0
        %v4262 = vadd.f32 0.0, %v4261
        %v4263 = vpop.f32.mrb[0].mxu0
        %4264 = vdwg.mxu0
        %v4265 = vsel %vm3600, -1e+09, %v4262
        %v4266 = vsel %vm1521, %v4265, -inf
        %4267 = vmax.xlane.f32.xlu0 %v4266
        %v4268 = vpop.xlane.xlu0 %4267
        %v4269 = vsub.f32 %v4265, %v4268
        %v4270 = vmul.f32 %v4269, 1.442695
        %v4271 = vpow.pop %v4270
        %v4272 = vsel %vm1521, %v4271, 0.0
        %4273 = vadd.xlane.f32.xlu0 %v4272
        %v4274 = vpop.xlane.xlu0 %4273
        %v4275 = vrcp.pop %v4274
        %v4276 = vmul.f32 %v4271, %v4275
        %4277 = vrot.lane.b32.xlu0 %v3682, 40
        %v4278 = vpop.permute.xlu0 %4277
        %v4281 = vsel %vm1521, %v4276, 0
        %4283 = vmatprep.subr.mxu0 0.0
        %4284 = vmatpush1.msra.mxu0 %v4278
        %4285 = vmatprep.subr.mxu0 0.0
        %4286 = vmatpush1.msra.mxu0 0.0
        %4287 = vmatprep.subr.mxu0 0.0
        %4288 = vmatpush1.msra.mxu0 0.0
        %4289 = vmatprep.subr.mxu0 0.0
        %4290 = vmatpush1.msra.mxu0 0.0
        %4291 = vmatprep.subr.mxu0 0.0
        %4292 = vmatpush1.msra.mxu0 0.0
        %4293 = vmatprep.subr.mxu0 0.0
        %4294 = vmatpush1.msra.mxu0 0.0
        %4295 = vmatprep.subr.mxu0 0.0
        %4296 = vmatpush1.msra.mxu0 0.0
        %4297 = vmatprep.subr.mxu0 0.0
        %4298 = vmatpush1.msra.mxu0 0.0
        %4299 = vmatprep.subr.mxu0 0.0
        %4300 = vmatpush1.msra.mxu0 0.0
        %4301 = vmatprep.subr.mxu0 0.0
        %4302 = vmatpush1.msra.mxu0 0.0
        %4303 = vmatprep.subr.mxu0 0.0
        %4304 = vmatpush1.msra.mxu0 0.0
        %4305 = vmatprep.subr.mxu0 0.0
        %4306 = vmatpush1.msra.mxu0 0.0
        %4307 = vmatprep.subr.mxu0 0.0
        %4308 = vmatpush1.msra.mxu0 0.0
        %4309 = vmatprep.subr.mxu0 0.0
        %4310 = vmatpush1.msra.mxu0 0.0
        %4311 = vmatprep.subr.mxu0 0.0
        %4312 = vmatpush1.msra.mxu0 0.0
        %4313 = vmatprep.subr.mxu0 0.0
        %4314 = vmatpush1.msra.mxu0 0.0
        %4315 = vmatprep.subr.mxu0 0.0
        %4316 = vmatpush1.msra.mxu0 0.0
        %4317 = vmatprep.subr.mxu0 0.0
        %4318 = vmatpush1.msra.mxu0 0.0
        %4319 = vmatprep.subr.mxu0 0.0
        %4320 = vmatpush1.msra.mxu0 0.0
        %4321 = vmatprep.subr.mxu0 0.0
        %4322 = vmatpush1.msra.mxu0 0.0
        %4323 = vmatprep.subr.mxu0 0.0
        %4324 = vmatpush1.msra.mxu0 0.0
        %4325 = vmatprep.subr.mxu0 0.0
        %4326 = vmatpush1.msra.mxu0 0.0
        %4327 = vmatprep.subr.mxu0 0.0
        %4328 = vmatpush1.msra.mxu0 0.0
        %4329 = vmatprep.subr.mxu0 0.0
        %4330 = vmatpush1.msra.mxu0 0.0
        %4331 = vmatprep.subr.mxu0 0.0
        %4332 = vmatpush1.msra.mxu0 0.0
        %4333 = vmatprep.subr.mxu0 0.0
        %4334 = vmatpush1.msra.mxu0 0.0
        %4335 = vmatprep.subr.mxu0 0.0
        %4336 = vmatpush1.msra.mxu0 0.0
        %4337 = vmatprep.subr.mxu0 0.0
        %4338 = vmatpush1.msra.mxu0 0.0
        %4339 = vmatprep.subr.mxu0 0.0
        %4340 = vmatpush1.msra.mxu0 0.0
        %4341 = vmatprep.subr.mxu0 0.0
        %4342 = vmatpush1.msra.mxu0 0.0
        %4343 = vmatprep.subr.mxu0 0.0
        %4344 = vmatpush1.msra.mxu0 0.0
        %4345 = vmatprep.subr.mxu0 0.0
        %4346 = vmatpush1.msra.mxu0 0.0
        %4347 = vmatprep.mubr.f32.mxu0 0.0
        %4348 = vmatmul.mubr.f32.gmra.mrb[0].mxu0 %v4281
        %v4349 = vpop.f32.mrb[0].mxu0
        %v4350 = vadd.f32 0.0, %v4349
        %v4351 = vpop.f32.mrb[0].mxu0
        %4352 = vdwg.mxu0
        %4354 = vrot.lane.b32.xlu0 %v4018, 8
        %v4355 = vpop.permute.xlu0 %4354
        %4358 = vrot.lane.b32.xlu0 %v4184, 16
        %v4359 = vpop.permute.xlu0 %4358
        %4362 = vrot.lane.b32.xlu0 %v4350, 24
        %v4363 = vpop.permute.xlu0 %4362
        %v4365 = vsel %vm1521, %v3852, %v4355
        %v4366 = vsel %vm2191, %v4365, %v4359
        %v4367 = vsel %vm2193, %v4366, %v4363
        %v4369 = vlaneseq
        %v4370 = vshrl.u32 %v4369, 7
        %v4371 = vsub.s32 0, %v4370
        %v4372 = vrot.slane %v3689, %v4371
        %v4375 = vsel %vm1439, %v4367, 0
        %4377 = vmatprep.subr.mxu0 0.0
        %4378 = vmatpush1.msra.mxu0 %v3685
        %4379 = vmatprep.subr.mxu0 0.0
        %4380 = vmatpush1.msra.mxu0 %v3686
        %4381 = vmatprep.subr.mxu0 0.0
        %4382 = vmatpush1.msra.mxu0 %v3687
        %4383 = vmatprep.subr.mxu0 0.0
        %4384 = vmatpush1.msra.mxu0 %v3688
        %4385 = vmatprep.subr.mxu0 0.0
        %4386 = vmatpush1.msra.mxu0 0.0
        %4387 = vmatprep.subr.mxu0 0.0
        %4388 = vmatpush1.msra.mxu0 0.0
        %4389 = vmatprep.subr.mxu0 0.0
        %4390 = vmatpush1.msra.mxu0 0.0
        %4391 = vmatprep.subr.mxu0 0.0
        %4392 = vmatpush1.msra.mxu0 0.0
        %4393 = vmatprep.subr.mxu0 0.0
        %4394 = vmatpush1.msra.mxu0 0.0
        %4395 = vmatprep.subr.mxu0 0.0
        %4396 = vmatpush1.msra.mxu0 0.0
        %4397 = vmatprep.subr.mxu0 0.0
        %4398 = vmatpush1.msra.mxu0 0.0
        %4399 = vmatprep.subr.mxu0 0.0
        %4400 = vmatpush1.msra.mxu0 0.0
        %4401 = vmatprep.subr.mxu0 0.0
        %4402 = vmatpush1.msra.mxu0 0.0
        %4403 = vmatprep.subr.mxu0 0.0
        %4404 = vmatpush1.msra.mxu0 0.0
        %4405 = vmatprep.subr.mxu0 0.0
        %4406 = vmatpush1.msra.mxu0 0.0
        %4407 = vmatprep.subr.mxu0 0.0
        %4408 = vmatpush1.msra.mxu0 0.0
        %4409 = vmatprep.subr.mxu0 0.0
        %4410 = vmatpush1.msra.mxu0 0.0
        %4411 = vmatprep.subr.mxu0 0.0
        %4412 = vmatpush1.msra.mxu0 0.0
        %4413 = vmatprep.subr.mxu0 0.0
        %4414 = vmatpush1.msra.mxu0 0.0
        %4415 = vmatprep.subr.mxu0 0.0
        %4416 = vmatpush1.msra.mxu0 0.0
        %4417 = vmatprep.subr.mxu0 0.0
        %4418 = vmatpush1.msra.mxu0 0.0
        %4419 = vmatprep.subr.mxu0 0.0
        %4420 = vmatpush1.msra.mxu0 0.0
        %4421 = vmatprep.subr.mxu0 0.0
        %4422 = vmatpush1.msra.mxu0 0.0
        %4423 = vmatprep.subr.mxu0 0.0
        %4424 = vmatpush1.msra.mxu0 0.0
        %4425 = vmatprep.subr.mxu0 0.0
        %4426 = vmatpush1.msra.mxu0 0.0
        %4427 = vmatprep.subr.mxu0 0.0
        %4428 = vmatpush1.msra.mxu0 0.0
        %4429 = vmatprep.subr.mxu0 0.0
        %4430 = vmatpush1.msra.mxu0 0.0
        %4431 = vmatprep.subr.mxu0 0.0
        %4432 = vmatpush1.msra.mxu0 0.0
        %4433 = vmatprep.subr.mxu0 0.0
        %4434 = vmatpush1.msra.mxu0 0.0
        %4435 = vmatprep.subr.mxu0 0.0
        %4436 = vmatpush1.msra.mxu0 0.0
        %4437 = vmatprep.subr.mxu0 0.0
        %4438 = vmatpush1.msra.mxu0 0.0
        %4439 = vmatprep.subr.mxu0 0.0
        %4440 = vmatpush1.msra.mxu0 0.0
        %4441 = vmatprep.mubr.f32.mxu0 0.0
        %4442 = vmatmul.mubr.f32.gmra.mrb[0].mxu0 %v4375
        %v4443 = vpop.f32.mrb[0].mxu0
        %v4444 = vadd.f32 %v4372, %v4443
        %v4445 = vpop.f32.mrb[0].mxu0
        %4446 = vdwg.mxu0
        %v4447 = vadd.f32 %v1427, %v4444
        %v4448 = vld [vmem:[#allocation20] sm:$0x1]
        %v4449 = vld [vmem:[#allocation22] sm:$0x1]
        %v4450 = vsel %vm1439, %v4447, 0.0
        %4451 = vadd.xlane.f32.xlu0 %v4450
        %v4452 = vpop.xlane.xlu0 %4451
        %v4453 = vmul.f32 %v4452, %v2280
        %v4454 = vsub.f32 %v4447, %v4453
        %v4455 = vmul.f32 %v4454, %v4454
        %v4456 = vsel %vm1439, %v4455, 0.0
        %4457 = vadd.xlane.f32.xlu0 %v4456
        %v4458 = vpop.xlane.xlu0 %4457
        %v4459 = vmul.f32 %v4458, %v2280
        %v4460 = vadd.f32 %v4459, 1e-10
        %v4461 = vrsqrt.pop %v4460
        %v4462 = vmul.f32 %v4454, %v4461
        %v4464 = vlaneseq
        %v4465 = vshrl.u32 %v4464, 7
        %v4466 = vsub.s32 0, %v4465
        %v4467 = vrot.slane %v4448, %v4466
        %v4469 = vmul.f32 %v4467, %v4462
        %v4471 = vlaneseq
        %v4472 = vshrl.u32 %v4471, 7
        %v4473 = vsub.s32 0, %v4472
        %v4474 = vrot.slane %v4449, %v4473
        %v4476 = vadd.f32 %v4469, %v4474
        %v4477 = vld [vmem:[%s41] sm:$0xff]
        %v4478 = vld [vmem:[%s41 + $0x8] sm:$0xff]
        %v4479 = vld [vmem:[%s41 + $0x10] sm:$0xff]
        %v4480 = vld [vmem:[%s41 + $0x18] sm:$0xff]
        %v4481 = vld [vmem:[#allocation23] sm:$0x1]
        %v4483 = vlaneseq
        %v4484 = vshrl.u32 %v4483, 7
        %v4485 = vsub.s32 0, %v4484
        %v4486 = vrot.slane %v4481, %v4485
        %v4489 = vsel %vm1439, %v4476, 0
        %4491 = vmatprep.subr.mxu0 0.0
        %4492 = vmatpush1.msra.mxu0 %v4477
        %4493 = vmatprep.subr.mxu0 0.0
        %4494 = vmatpush1.msra.mxu0 %v4478
        %4495 = vmatprep.subr.mxu0 0.0
        %4496 = vmatpush1.msra.mxu0 %v4479
        %4497 = vmatprep.subr.mxu0 0.0
        %4498 = vmatpush1.msra.mxu0 %v4480
        %4499 = vmatprep.subr.mxu0 0.0
        %4500 = vmatpush1.msra.mxu0 0.0
        %4501 = vmatprep.subr.mxu0 0.0
        %4502 = vmatpush1.msra.mxu0 0.0
        %4503 = vmatprep.subr.mxu0 0.0
        %4504 = vmatpush1.msra.mxu0 0.0
        %4505 = vmatprep.subr.mxu0 0.0
        %4506 = vmatpush1.msra.mxu0 0.0
        %4507 = vmatprep.subr.mxu0 0.0
        %4508 = vmatpush1.msra.mxu0 0.0
        %4509 = vmatprep.subr.mxu0 0.0
        %4510 = vmatpush1.msra.mxu0 0.0
        %4511 = vmatprep.subr.mxu0 0.0
        %4512 = vmatpush1.msra.mxu0 0.0
        %4513 = vmatprep.subr.mxu0 0.0
        %4514 = vmatpush1.msra.mxu0 0.0
        %4515 = vmatprep.subr.mxu0 0.0
        %4516 = vmatpush1.msra.mxu0 0.0
        %4517 = vmatprep.subr.mxu0 0.0
        %4518 = vmatpush1.msra.mxu0 0.0
        %4519 = vmatprep.subr.mxu0 0.0
        %4520 = vmatpush1.msra.mxu0 0.0
        %4521 = vmatprep.subr.mxu0 0.0
        %4522 = vmatpush1.msra.mxu0 0.0
        %4523 = vmatprep.subr.mxu0 0.0
        %4524 = vmatpush1.msra.mxu0 0.0
        %4525 = vmatprep.subr.mxu0 0.0
        %4526 = vmatpush1.msra.mxu0 0.0
        %4527 = vmatprep.subr.mxu0 0.0
        %4528 = vmatpush1.msra.mxu0 0.0
        %4529 = vmatprep.subr.mxu0 0.0
        %4530 = vmatpush1.msra.mxu0 0.0
        %4531 = vmatprep.subr.mxu0 0.0
        %4532 = vmatpush1.msra.mxu0 0.0
        %4533 = vmatprep.subr.mxu0 0.0
        %4534 = vmatpush1.msra.mxu0 0.0
        %4535 = vmatprep.subr.mxu0 0.0
        %4536 = vmatpush1.msra.mxu0 0.0
        %4537 = vmatprep.subr.mxu0 0.0
        %4538 = vmatpush1.msra.mxu0 0.0
        %4539 = vmatprep.subr.mxu0 0.0
        %4540 = vmatpush1.msra.mxu0 0.0
        %4541 = vmatprep.subr.mxu0 0.0
        %4542 = vmatpush1.msra.mxu0 0.0
        %4543 = vmatprep.subr.mxu0 0.0
        %4544 = vmatpush1.msra.mxu0 0.0
        %4545 = vmatprep.subr.mxu0 0.0
        %4546 = vmatpush1.msra.mxu0 0.0
        %4547 = vmatprep.subr.mxu0 0.0
        %4548 = vmatpush1.msra.mxu0 0.0
        %4549 = vmatprep.subr.mxu0 0.0
        %4550 = vmatpush1.msra.mxu0 0.0
        %4551 = vmatprep.subr.mxu0 0.0
        %4552 = vmatpush1.msra.mxu0 0.0
        %4553 = vmatprep.subr.mxu0 0.0
        %4554 = vmatpush1.msra.mxu0 0.0
        %4555 = vmatprep.mubr.f32.mxu0 0.0
        %4556 = vmatmul.mubr.f32.gmra.mrb[0].mxu0 %v4489
        %v4557 = vpop.f32.mrb[0].mxu0
        %v4558 = vadd.f32 %v4486, %v4557
        %v4559 = vpop.f32.mrb[0].mxu0
        %4560 = vdwg.mxu0
        %v4561 = vld [vmem:[#allocation25] sm:$0xff]
        %v4562 = vld [vmem:[#allocation25 + $0x8] sm:$0xff]
        %v4563 = vld [vmem:[#allocation25 + $0x10] sm:$0xff]
        %v4564 = vld [vmem:[#allocation25 + $0x18] sm:$0xff]
        %v4565 = vld [vmem:[#allocation26] sm:$0x1]
        %v4567 = vlaneseq
        %v4568 = vshrl.u32 %v4567, 7
        %v4569 = vsub.s32 0, %v4568
        %v4570 = vrot.slane %v4565, %v4569
        %v4573 = vsel %vm1439, %v3595, 0
        %4575 = vmatprep.subr.mxu0 0.0
        %4576 = vmatpush1.msra.mxu0 %v4561
        %4577 = vmatprep.subr.mxu0 0.0
        %4578 = vmatpush1.msra.mxu0 %v4562
        %4579 = vmatprep.subr.mxu0 0.0
        %4580 = vmatpush1.msra.mxu0 %v4563
        %4581 = vmatprep.subr.mxu0 0.0
        %4582 = vmatpush1.msra.mxu0 %v4564
        %4583 = vmatprep.subr.mxu0 0.0
        %4584 = vmatpush1.msra.mxu0 0.0
        %4585 = vmatprep.subr.mxu0 0.0
        %4586 = vmatpush1.msra.mxu0 0.0
        %4587 = vmatprep.subr.mxu0 0.0
        %4588 = vmatpush1.msra.mxu0 0.0
        %4589 = vmatprep.subr.mxu0 0.0
        %4590 = vmatpush1.msra.mxu0 0.0
        %4591 = vmatprep.subr.mxu0 0.0
        %4592 = vmatpush1.msra.mxu0 0.0
        %4593 = vmatprep.subr.mxu0 0.0
        %4594 = vmatpush1.msra.mxu0 0.0
        %4595 = vmatprep.subr.mxu0 0.0
        %4596 = vmatpush1.msra.mxu0 0.0
        %4597 = vmatprep.subr.mxu0 0.0
        %4598 = vmatpush1.msra.mxu0 0.0
        %4599 = vmatprep.subr.mxu0 0.0
        %4600 = vmatpush1.msra.mxu0 0.0
        %4601 = vmatprep.subr.mxu0 0.0
        %4602 = vmatpush1.msra.mxu0 0.0
        %4603 = vmatprep.subr.mxu0 0.0
        %4604 = vmatpush1.msra.mxu0 0.0
        %4605 = vmatprep.subr.mxu0 0.0
        %4606 = vmatpush1.msra.mxu0 0.0
        %4607 = vmatprep.subr.mxu0 0.0
        %4608 = vmatpush1.msra.mxu0 0.0
        %4609 = vmatprep.subr.mxu0 0.0
        %4610 = vmatpush1.msra.mxu0 0.0
        %4611 = vmatprep.subr.mxu0 0.0
        %4612 = vmatpush1.msra.mxu0 0.0
        %4613 = vmatprep.subr.mxu0 0.0
        %4614 = vmatpush1.msra.mxu0 0.0
        %4615 = vmatprep.subr.mxu0 0.0
        %4616 = vmatpush1.msra.mxu0 0.0
        %4617 = vmatprep.subr.mxu0 0.0
        %4618 = vmatpush1.msra.mxu0 0.0
        %4619 = vmatprep.subr.mxu0 0.0
        %4620 = vmatpush1.msra.mxu0 0.0
        %4621 = vmatprep.subr.mxu0 0.0
        %4622 = vmatpush1.msra.mxu0 0.0
        %4623 = vmatprep.subr.mxu0 0.0
        %4624 = vmatpush1.msra.mxu0 0.0
        %4625 = vmatprep.subr.mxu0 0.0
        %4626 = vmatpush1.msra.mxu0 0.0
        %4627 = vmatprep.subr.mxu0 0.0
        %4628 = vmatpush1.msra.mxu0 0.0
        %4629 = vmatprep.subr.mxu0 0.0
        %4630 = vmatpush1.msra.mxu0 0.0
        %4631 = vmatprep.subr.mxu0 0.0
        %4632 = vmatpush1.msra.mxu0 0.0
        %4633 = vmatprep.subr.mxu0 0.0
        %4634 = vmatpush1.msra.mxu0 0.0
        %4635 = vmatprep.subr.mxu0 0.0
        %4636 = vmatpush1.msra.mxu0 0.0
        %4637 = vmatprep.subr.mxu0 0.0
        %4638 = vmatpush1.msra.mxu0 0.0
        %4639 = vmatprep.mubr.f32.mxu0 0.0
        %4640 = vmatmul.mubr.f32.gmra.mrb[0].mxu0 %v4573
        %v4641 = vpop.f32.mrb[0].mxu0
        %v4642 = vadd.f32 %v4570, %v4641
        %v4643 = vpop.f32.mrb[0].mxu0
        %4644 = vdwg.mxu0
        %v4645 = vld [vmem:[#allocation28] sm:$0xff]
        %v4646 = vld [vmem:[#allocation28 + $0x8] sm:$0xff]
        %v4647 = vld [vmem:[#allocation28 + $0x10] sm:$0xff]
        %v4648 = vld [vmem:[#allocation28 + $0x18] sm:$0xff]
        %v4649 = vld [vmem:[#allocation29] sm:$0x1]
        %v4651 = vsel %vm1521, %v4558, 0
        %v4654 = vsel %vm1521, %v4642, 0
        %4656 = vmatprep.subr.mxu0 0.0
        %4657 = vmatpush1.xpose.msra.mxu0 %v4654
        %4658 = vmatprep.subr.mxu0 0.0
        %4659 = vmatpush1.xpose.msra.mxu0 0.0
        %4660 = vmatprep.subr.mxu0 0.0
        %4661 = vmatpush1.xpose.msra.mxu0 0.0
        %4662 = vmatprep.subr.mxu0 0.0
        %4663 = vmatpush1.xpose.msra.mxu0 0.0
        %4664 = vmatprep.subr.mxu0 0.0
        %4665 = vmatpush1.xpose.msra.mxu0 0.0
        %4666 = vmatprep.subr.mxu0 0.0
        %4667 = vmatpush1.xpose.msra.mxu0 0.0
        %4668 = vmatprep.subr.mxu0 0.0
        %4669 = vmatpush1.xpose.msra.mxu0 0.0
        %4670 = vmatprep.subr.mxu0 0.0
        %4671 = vmatpush1.xpose.msra.mxu0 0.0
        %4672 = vmatprep.subr.mxu0 0.0
        %4673 = vmatpush1.xpose.msra.mxu0 0.0
        %4674 = vmatprep.subr.mxu0 0.0
        %4675 = vmatpush1.xpose.msra.mxu0 0.0
        %4676 = vmatprep.subr.mxu0 0.0
        %4677 = vmatpush1.xpose.msra.mxu0 0.0
        %4678 = vmatprep.subr.mxu0 0.0
        %4679 = vmatpush1.xpose.msra.mxu0 0.0
        %4680 = vmatprep.subr.mxu0 0.0
        %4681 = vmatpush1.xpose.msra.mxu0 0.0
        %4682 = vmatprep.subr.mxu0 0.0
        %4683 = vmatpush1.xpose.msra.mxu0 0.0
        %4684 = vmatprep.subr.mxu0 0.0
        %4685 = vmatpush1.xpose.msra.mxu0 0.0
        %4686 = vmatprep.subr.mxu0 0.0
        %4687 = vmatpush1.xpose.msra.mxu0 0.0
        %4688 = vmatprep.subr.mxu0 0.0
        %4689 = vmatpush1.xpose.msra.mxu0 0.0
        %4690 = vmatprep.subr.mxu0 0.0
        %4691 = vmatpush1.xpose.msra.mxu0 0.0
        %4692 = vmatprep.subr.mxu0 0.0
        %4693 = vmatpush1.xpose.msra.mxu0 0.0
        %4694 = vmatprep.subr.mxu0 0.0
        %4695 = vmatpush1.xpose.msra.mxu0 0.0
        %4696 = vmatprep.subr.mxu0 0.0
        %4697 = vmatpush1.xpose.msra.mxu0 0.0
        %4698 = vmatprep.subr.mxu0 0.0
        %4699 = vmatpush1.xpose.msra.mxu0 0.0
        %4700 = vmatprep.subr.mxu0 0.0
        %4701 = vmatpush1.xpose.msra.mxu0 0.0
        %4702 = vmatprep.subr.mxu0 0.0
        %4703 = vmatpush1.xpose.msra.mxu0 0.0
        %4704 = vmatprep.subr.mxu0 0.0
        %4705 = vmatpush1.xpose.msra.mxu0 0.0
        %4706 = vmatprep.subr.mxu0 0.0
        %4707 = vmatpush1.xpose.msra.mxu0 0.0
        %4708 = vmatprep.subr.mxu0 0.0
        %4709 = vmatpush1.xpose.msra.mxu0 0.0
        %4710 = vmatprep.subr.mxu0 0.0
        %4711 = vmatpush1.xpose.msra.mxu0 0.0
        %4712 = vmatprep.subr.mxu0 0.0
        %4713 = vmatpush1.xpose.msra.mxu0 0.0
        %4714 = vmatprep.subr.mxu0 0.0
        %4715 = vmatpush1.xpose.msra.mxu0 0.0
        %4716 = vmatprep.subr.mxu0 0.0
        %4717 = vmatpush1.xpose.msra.mxu0 0.0
        %4718 = vmatprep.subr.mxu0 0.0
        %4719 = vmatpush1.xpose.msra.mxu0 0.0
        %4720 = vmatprep.mubr.f32.mxu0 0.0
        %4721 = vmatmul.mubr.f32.gmra.mrb[0].mxu0 %v4651
        %v4722 = vpop.f32.mrb[0].mxu0
        %v4723 = vadd.f32 0.0, %v4722
        %v4724 = vpop.f32.mrb[0].mxu0
        %4725 = vdwg.mxu0
        %v4726 = vsel %vm1521, %v4723, -inf
        %4727 = vmax.xlane.f32.xlu0 %v4726
        %v4728 = vpop.xlane.xlu0 %4727
        %v4729 = vsub.f32 %v4723, %v4728
        %v4730 = vmul.f32 %v4729, 1.442695
        %v4731 = vpow.pop %v4730
        %v4732 = vsel %vm1521, %v4731, 0.0
        %4733 = vadd.xlane.f32.xlu0 %v4732
        %v4734 = vpop.xlane.xlu0 %4733
        %v4735 = vrcp.pop %v4734
        %v4736 = vmul.f32 %v4731, %v4735
        %4737 = vrot.lane.b32.xlu0 %v4642, 96
        %v4738 = vpop.permute.xlu0 %4737
        %v4741 = vsel %vm1521, %v4736, 0
        %4743 = vmatprep.subr.mxu0 0.0
        %4744 = vmatpush1.msra.mxu0 %v4738
        %4745 = vmatprep.subr.mxu0 0.0
        %4746 = vmatpush1.msra.mxu0 0.0
        %4747 = vmatprep.subr.mxu0 0.0
        %4748 = vmatpush1.msra.mxu0 0.0
        %4749 = vmatprep.subr.mxu0 0.0
        %4750 = vmatpush1.msra.mxu0 0.0
        %4751 = vmatprep.subr.mxu0 0.0
        %4752 = vmatpush1.msra.mxu0 0.0
        %4753 = vmatprep.subr.mxu0 0.0
        %4754 = vmatpush1.msra.mxu0 0.0
        %4755 = vmatprep.subr.mxu0 0.0
        %4756 = vmatpush1.msra.mxu0 0.0
        %4757 = vmatprep.subr.mxu0 0.0
        %4758 = vmatpush1.msra.mxu0 0.0
        %4759 = vmatprep.subr.mxu0 0.0
        %4760 = vmatpush1.msra.mxu0 0.0
        %4761 = vmatprep.subr.mxu0 0.0
        %4762 = vmatpush1.msra.mxu0 0.0
        %4763 = vmatprep.subr.mxu0 0.0
        %4764 = vmatpush1.msra.mxu0 0.0
        %4765 = vmatprep.subr.mxu0 0.0
        %4766 = vmatpush1.msra.mxu0 0.0
        %4767 = vmatprep.subr.mxu0 0.0
        %4768 = vmatpush1.msra.mxu0 0.0
        %4769 = vmatprep.subr.mxu0 0.0
        %4770 = vmatpush1.msra.mxu0 0.0
        %4771 = vmatprep.subr.mxu0 0.0
        %4772 = vmatpush1.msra.mxu0 0.0
        %4773 = vmatprep.subr.mxu0 0.0
        %4774 = vmatpush1.msra.mxu0 0.0
        %4775 = vmatprep.subr.mxu0 0.0
        %4776 = vmatpush1.msra.mxu0 0.0
        %4777 = vmatprep.subr.mxu0 0.0
        %4778 = vmatpush1.msra.mxu0 0.0
        %4779 = vmatprep.subr.mxu0 0.0
        %4780 = vmatpush1.msra.mxu0 0.0
        %4781 = vmatprep.subr.mxu0 0.0
        %4782 = vmatpush1.msra.mxu0 0.0
        %4783 = vmatprep.subr.mxu0 0.0
        %4784 = vmatpush1.msra.mxu0 0.0
        %4785 = vmatprep.subr.mxu0 0.0
        %4786 = vmatpush1.msra.mxu0 0.0
        %4787 = vmatprep.subr.mxu0 0.0
        %4788 = vmatpush1.msra.mxu0 0.0
        %4789 = vmatprep.subr.mxu0 0.0
        %4790 = vmatpush1.msra.mxu0 0.0
        %4791 = vmatprep.subr.mxu0 0.0
        %4792 = vmatpush1.msra.mxu0 0.0
        %4793 = vmatprep.subr.mxu0 0.0
        %4794 = vmatpush1.msra.mxu0 0.0
        %4795 = vmatprep.subr.mxu0 0.0
        %4796 = vmatpush1.msra.mxu0 0.0
        %4797 = vmatprep.subr.mxu0 0.0
        %4798 = vmatpush1.msra.mxu0 0.0
        %4799 = vmatprep.subr.mxu0 0.0
        %4800 = vmatpush1.msra.mxu0 0.0
        %4801 = vmatprep.subr.mxu0 0.0
        %4802 = vmatpush1.msra.mxu0 0.0
        %4803 = vmatprep.subr.mxu0 0.0
        %4804 = vmatpush1.msra.mxu0 0.0
        %4805 = vmatprep.subr.mxu0 0.0
        %4806 = vmatpush1.msra.mxu0 0.0
        %4807 = vmatprep.mubr.f32.mxu0 0.0
        %4808 = vmatmul.mubr.f32.gmra.mrb[0].mxu0 %v4741
        %v4809 = vpop.f32.mrb[0].mxu0
        %v4810 = vadd.f32 0.0, %v4809
        %v4811 = vpop.f32.mrb[0].mxu0
        %4812 = vdwg.mxu0
        %4813 = vrot.lane.b32.xlu0 %v4558, 120
        %v4814 = vpop.permute.xlu0 %4813
        %4815 = vrot.lane.b32.xlu0 %v4642, 120
        %v4816 = vpop.permute.xlu0 %4815
        %v4817 = vsel %vm1521, %v4814, 0
        %v4819 = vsel %vm1521, %v4816, 0
        %4821 = vmatprep.subr.mxu0 0.0
        %4822 = vmatpush1.xpose.msra.mxu0 %v4819
        %4823 = vmatprep.subr.mxu0 0.0
        %4824 = vmatpush1.xpose.msra.mxu0 0.0
        %4825 = vmatprep.subr.mxu0 0.0
        %4826 = vmatpush1.xpose.msra.mxu0 0.0
        %4827 = vmatprep.subr.mxu0 0.0
        %4828 = vmatpush1.xpose.msra.mxu0 0.0
        %4829 = vmatprep.subr.mxu0 0.0
        %4830 = vmatpush1.xpose.msra.mxu0 0.0
        %4831 = vmatprep.subr.mxu0 0.0
        %4832 = vmatpush1.xpose.msra.mxu0 0.0
        %4833 = vmatprep.subr.mxu0 0.0
        %4834 = vmatpush1.xpose.msra.mxu0 0.0
        %4835 = vmatprep.subr.mxu0 0.0
        %4836 = vmatpush1.xpose.msra.mxu0 0.0
        %4837 = vmatprep.subr.mxu0 0.0
        %4838 = vmatpush1.xpose.msra.mxu0 0.0
        %4839 = vmatprep.subr.mxu0 0.0
        %4840 = vmatpush1.xpose.msra.mxu0 0.0
        %4841 = vmatprep.subr.mxu0 0.0
        %4842 = vmatpush1.xpose.msra.mxu0 0.0
        %4843 = vmatprep.subr.mxu0 0.0
        %4844 = vmatpush1.xpose.msra.mxu0 0.0
        %4845 = vmatprep.subr.mxu0 0.0
        %4846 = vmatpush1.xpose.msra.mxu0 0.0
        %4847 = vmatprep.subr.mxu0 0.0
        %4848 = vmatpush1.xpose.msra.mxu0 0.0
        %4849 = vmatprep.subr.mxu0 0.0
        %4850 = vmatpush1.xpose.msra.mxu0 0.0
        %4851 = vmatprep.subr.mxu0 0.0
        %4852 = vmatpush1.xpose.msra.mxu0 0.0
        %4853 = vmatprep.subr.mxu0 0.0
        %4854 = vmatpush1.xpose.msra.mxu0 0.0
        %4855 = vmatprep.subr.mxu0 0.0
        %4856 = vmatpush1.xpose.msra.mxu0 0.0
        %4857 = vmatprep.subr.mxu0 0.0
        %4858 = vmatpush1.xpose.msra.mxu0 0.0
        %4859 = vmatprep.subr.mxu0 0.0
        %4860 = vmatpush1.xpose.msra.mxu0 0.0
        %4861 = vmatprep.subr.mxu0 0.0
        %4862 = vmatpush1.xpose.msra.mxu0 0.0
        %4863 = vmatprep.subr.mxu0 0.0
        %4864 = vmatpush1.xpose.msra.mxu0 0.0
        %4865 = vmatprep.subr.mxu0 0.0
        %4866 = vmatpush1.xpose.msra.mxu0 0.0
        %4867 = vmatprep.subr.mxu0 0.0
        %4868 = vmatpush1.xpose.msra.mxu0 0.0
        %4869 = vmatprep.subr.mxu0 0.0
        %4870 = vmatpush1.xpose.msra.mxu0 0.0
        %4871 = vmatprep.subr.mxu0 0.0
        %4872 = vmatpush1.xpose.msra.mxu0 0.0
        %4873 = vmatprep.subr.mxu0 0.0
        %4874 = vmatpush1.xpose.msra.mxu0 0.0
        %4875 = vmatprep.subr.mxu0 0.0
        %4876 = vmatpush1.xpose.msra.mxu0 0.0
        %4877 = vmatprep.subr.mxu0 0.0
        %4878 = vmatpush1.xpose.msra.mxu0 0.0
        %4879 = vmatprep.subr.mxu0 0.0
        %4880 = vmatpush1.xpose.msra.mxu0 0.0
        %4881 = vmatprep.subr.mxu0 0.0
        %4882 = vmatpush1.xpose.msra.mxu0 0.0
        %4883 = vmatprep.subr.mxu0 0.0
        %4884 = vmatpush1.xpose.msra.mxu0 0.0
        %4885 = vmatprep.mubr.f32.mxu0 0.0
        %4886 = vmatmul.mubr.f32.gmra.mrb[0].mxu0 %v4817
        %v4887 = vpop.f32.mrb[0].mxu0
        %v4888 = vadd.f32 0.0, %v4887
        %v4889 = vpop.f32.mrb[0].mxu0
        %4890 = vdwg.mxu0
        %v4891 = vsel %vm1521, %v4888, -inf
        %4892 = vmax.xlane.f32.xlu0 %v4891
        %v4893 = vpop.xlane.xlu0 %4892
        %v4894 = vsub.f32 %v4888, %v4893
        %v4895 = vmul.f32 %v4894, 1.442695
        %v4896 = vpow.pop %v4895
        %v4897 = vsel %vm1521, %v4896, 0.0
        %4898 = vadd.xlane.f32.xlu0 %v4897
        %v4899 = vpop.xlane.xlu0 %4898
        %v4900 = vrcp.pop %v4899
        %v4901 = vmul.f32 %v4896, %v4900
        %4902 = vrot.lane.b32.xlu0 %v4642, 88
        %v4903 = vpop.permute.xlu0 %4902
        %v4906 = vsel %vm1521, %v4901, 0
        %4908 = vmatprep.subr.mxu0 0.0
        %4909 = vmatpush1.msra.mxu0 %v4903
        %4910 = vmatprep.subr.mxu0 0.0
        %4911 = vmatpush1.msra.mxu0 0.0
        %4912 = vmatprep.subr.mxu0 0.0
        %4913 = vmatpush1.msra.mxu0 0.0
        %4914 = vmatprep.subr.mxu0 0.0
        %4915 = vmatpush1.msra.mxu0 0.0
        %4916 = vmatprep.subr.mxu0 0.0
        %4917 = vmatpush1.msra.mxu0 0.0
        %4918 = vmatprep.subr.mxu0 0.0
        %4919 = vmatpush1.msra.mxu0 0.0
        %4920 = vmatprep.subr.mxu0 0.0
        %4921 = vmatpush1.msra.mxu0 0.0
        %4922 = vmatprep.subr.mxu0 0.0
        %4923 = vmatpush1.msra.mxu0 0.0
        %4924 = vmatprep.subr.mxu0 0.0
        %4925 = vmatpush1.msra.mxu0 0.0
        %4926 = vmatprep.subr.mxu0 0.0
        %4927 = vmatpush1.msra.mxu0 0.0
        %4928 = vmatprep.subr.mxu0 0.0
        %4929 = vmatpush1.msra.mxu0 0.0
        %4930 = vmatprep.subr.mxu0 0.0
        %4931 = vmatpush1.msra.mxu0 0.0
        %4932 = vmatprep.subr.mxu0 0.0
        %4933 = vmatpush1.msra.mxu0 0.0
        %4934 = vmatprep.subr.mxu0 0.0
        %4935 = vmatpush1.msra.mxu0 0.0
        %4936 = vmatprep.subr.mxu0 0.0
        %4937 = vmatpush1.msra.mxu0 0.0
        %4938 = vmatprep.subr.mxu0 0.0
        %4939 = vmatpush1.msra.mxu0 0.0
        %4940 = vmatprep.subr.mxu0 0.0
        %4941 = vmatpush1.msra.mxu0 0.0
        %4942 = vmatprep.subr.mxu0 0.0
        %4943 = vmatpush1.msra.mxu0 0.0
        %4944 = vmatprep.subr.mxu0 0.0
        %4945 = vmatpush1.msra.mxu0 0.0
        %4946 = vmatprep.subr.mxu0 0.0
        %4947 = vmatpush1.msra.mxu0 0.0
        %4948 = vmatprep.subr.mxu0 0.0
        %4949 = vmatpush1.msra.mxu0 0.0
        %4950 = vmatprep.subr.mxu0 0.0
        %4951 = vmatpush1.msra.mxu0 0.0
        %4952 = vmatprep.subr.mxu0 0.0
        %4953 = vmatpush1.msra.mxu0 0.0
        %4954 = vmatprep.subr.mxu0 0.0
        %4955 = vmatpush1.msra.mxu0 0.0
        %4956 = vmatprep.subr.mxu0 0.0
        %4957 = vmatpush1.msra.mxu0 0.0
        %4958 = vmatprep.subr.mxu0 0.0
        %4959 = vmatpush1.msra.mxu0 0.0
        %4960 = vmatprep.subr.mxu0 0.0
        %4961 = vmatpush1.msra.mxu0 0.0
        %4962 = vmatprep.subr.mxu0 0.0
        %4963 = vmatpush1.msra.mxu0 0.0
        %4964 = vmatprep.subr.mxu0 0.0
        %4965 = vmatpush1.msra.mxu0 0.0
        %4966 = vmatprep.subr.mxu0 0.0
        %4967 = vmatpush1.msra.mxu0 0.0
        %4968 = vmatprep.subr.mxu0 0.0
        %4969 = vmatpush1.msra.mxu0 0.0
        %4970 = vmatprep.subr.mxu0 0.0
        %4971 = vmatpush1.msra.mxu0 0.0
        %4972 = vmatprep.mubr.f32.mxu0 0.0
        %4973 = vmatmul.mubr.f32.gmra.mrb[0].mxu0 %v4906
        %v4974 = vpop.f32.mrb[0].mxu0
        %v4975 = vadd.f32 0.0, %v4974
        %v4976 = vpop.f32.mrb[0].mxu0
        %4977 = vdwg.mxu0
        %4978 = vrot.lane.b32.xlu0 %v4558, 112
        %v4979 = vpop.permute.xlu0 %4978
        %4980 = vrot.lane.b32.xlu0 %v4642, 112
        %v4981 = vpop.permute.xlu0 %4980
        %v4982 = vsel %vm1521, %v4979, 0
        %v4984 = vsel %vm1521, %v4981, 0
        %4986 = vmatprep.subr.mxu0 0.0
        %4987 = vmatpush1.xpose.msra.mxu0 %v4984
        %4988 = vmatprep.subr.mxu0 0.0
        %4989 = vmatpush1.xpose.msra.mxu0 0.0
        %4990 = vmatprep.subr.mxu0 0.0
        %4991 = vmatpush1.xpose.msra.mxu0 0.0
        %4992 = vmatprep.subr.mxu0 0.0
        %4993 = vmatpush1.xpose.msra.mxu0 0.0
        %4994 = vmatprep.subr.mxu0 0.0
        %4995 = vmatpush1.xpose.msra.mxu0 0.0
        %4996 = vmatprep.subr.mxu0 0.0
        %4997 = vmatpush1.xpose.msra.mxu0 0.0
        %4998 = vmatprep.subr.mxu0 0.0
        %4999 = vmatpush1.xpose.msra.mxu0 0.0
        %5000 = vmatprep.subr.mxu0 0.0
        %5001 = vmatpush1.xpose.msra.mxu0 0.0
        %5002 = vmatprep.subr.mxu0 0.0
        %5003 = vmatpush1.xpose.msra.mxu0 0.0
        %5004 = vmatprep.subr.mxu0 0.0
        %5005 = vmatpush1.xpose.msra.mxu0 0.0
        %5006 = vmatprep.subr.mxu0 0.0
        %5007 = vmatpush1.xpose.msra.mxu0 0.0
        %5008 = vmatprep.subr.mxu0 0.0
        %5009 = vmatpush1.xpose.msra.mxu0 0.0
        %5010 = vmatprep.subr.mxu0 0.0
        %5011 = vmatpush1.xpose.msra.mxu0 0.0
        %5012 = vmatprep.subr.mxu0 0.0
        %5013 = vmatpush1.xpose.msra.mxu0 0.0
        %5014 = vmatprep.subr.mxu0 0.0
        %5015 = vmatpush1.xpose.msra.mxu0 0.0
        %5016 = vmatprep.subr.mxu0 0.0
        %5017 = vmatpush1.xpose.msra.mxu0 0.0
        %5018 = vmatprep.subr.mxu0 0.0
        %5019 = vmatpush1.xpose.msra.mxu0 0.0
        %5020 = vmatprep.subr.mxu0 0.0
        %5021 = vmatpush1.xpose.msra.mxu0 0.0
        %5022 = vmatprep.subr.mxu0 0.0
        %5023 = vmatpush1.xpose.msra.mxu0 0.0
        %5024 = vmatprep.subr.mxu0 0.0
        %5025 = vmatpush1.xpose.msra.mxu0 0.0
        %5026 = vmatprep.subr.mxu0 0.0
        %5027 = vmatpush1.xpose.msra.mxu0 0.0
        %5028 = vmatprep.subr.mxu0 0.0
        %5029 = vmatpush1.xpose.msra.mxu0 0.0
        %5030 = vmatprep.subr.mxu0 0.0
        %5031 = vmatpush1.xpose.msra.mxu0 0.0
        %5032 = vmatprep.subr.mxu0 0.0
        %5033 = vmatpush1.xpose.msra.mxu0 0.0
        %5034 = vmatprep.subr.mxu0 0.0
        %5035 = vmatpush1.xpose.msra.mxu0 0.0
        %5036 = vmatprep.subr.mxu0 0.0
        %5037 = vmatpush1.xpose.msra.mxu0 0.0
        %5038 = vmatprep.subr.mxu0 0.0
        %5039 = vmatpush1.xpose.msra.mxu0 0.0
        %5040 = vmatprep.subr.mxu0 0.0
        %5041 = vmatpush1.xpose.msra.mxu0 0.0
        %5042 = vmatprep.subr.mxu0 0.0
        %5043 = vmatpush1.xpose.msra.mxu0 0.0
        %5044 = vmatprep.subr.mxu0 0.0
        %5045 = vmatpush1.xpose.msra.mxu0 0.0
        %5046 = vmatprep.subr.mxu0 0.0
        %5047 = vmatpush1.xpose.msra.mxu0 0.0
        %5048 = vmatprep.subr.mxu0 0.0
        %5049 = vmatpush1.xpose.msra.mxu0 0.0
        %5050 = vmatprep.mubr.f32.mxu0 0.0
        %5051 = vmatmul.mubr.f32.gmra.mrb[0].mxu0 %v4982
        %v5052 = vpop.f32.mrb[0].mxu0
        %v5053 = vadd.f32 0.0, %v5052
        %v5054 = vpop.f32.mrb[0].mxu0
        %5055 = vdwg.mxu0
        %v5056 = vsel %vm1521, %v5053, -inf
        %5057 = vmax.xlane.f32.xlu0 %v5056
        %v5058 = vpop.xlane.xlu0 %5057
        %v5059 = vsub.f32 %v5053, %v5058
        %v5060 = vmul.f32 %v5059, 1.442695
        %v5061 = vpow.pop %v5060
        %v5062 = vsel %vm1521, %v5061, 0.0
        %5063 = vadd.xlane.f32.xlu0 %v5062
        %v5064 = vpop.xlane.xlu0 %5063
        %v5065 = vrcp.pop %v5064
        %v5066 = vmul.f32 %v5061, %v5065
        %5067 = vrot.lane.b32.xlu0 %v4642, 80
        %v5068 = vpop.permute.xlu0 %5067
        %v5071 = vsel %vm1521, %v5066, 0
        %5073 = vmatprep.subr.mxu0 0.0
        %5074 = vmatpush1.msra.mxu0 %v5068
        %5075 = vmatprep.subr.mxu0 0.0
        %5076 = vmatpush1.msra.mxu0 0.0
        %5077 = vmatprep.subr.mxu0 0.0
        %5078 = vmatpush1.msra.mxu0 0.0
        %5079 = vmatprep.subr.mxu0 0.0
        %5080 = vmatpush1.msra.mxu0 0.0
        %5081 = vmatprep.subr.mxu0 0.0
        %5082 = vmatpush1.msra.mxu0 0.0
        %5083 = vmatprep.subr.mxu0 0.0
        %5084 = vmatpush1.msra.mxu0 0.0
        %5085 = vmatprep.subr.mxu0 0.0
        %5086 = vmatpush1.msra.mxu0 0.0
        %5087 = vmatprep.subr.mxu0 0.0
        %5088 = vmatpush1.msra.mxu0 0.0
        %5089 = vmatprep.subr.mxu0 0.0
        %5090 = vmatpush1.msra.mxu0 0.0
        %5091 = vmatprep.subr.mxu0 0.0
        %5092 = vmatpush1.msra.mxu0 0.0
        %5093 = vmatprep.subr.mxu0 0.0
        %5094 = vmatpush1.msra.mxu0 0.0
        %5095 = vmatprep.subr.mxu0 0.0
        %5096 = vmatpush1.msra.mxu0 0.0
        %5097 = vmatprep.subr.mxu0 0.0
        %5098 = vmatpush1.msra.mxu0 0.0
        %5099 = vmatprep.subr.mxu0 0.0
        %5100 = vmatpush1.msra.mxu0 0.0
        %5101 = vmatprep.subr.mxu0 0.0
        %5102 = vmatpush1.msra.mxu0 0.0
        %5103 = vmatprep.subr.mxu0 0.0
        %5104 = vmatpush1.msra.mxu0 0.0
        %5105 = vmatprep.subr.mxu0 0.0
        %5106 = vmatpush1.msra.mxu0 0.0
        %5107 = vmatprep.subr.mxu0 0.0
        %5108 = vmatpush1.msra.mxu0 0.0
        %5109 = vmatprep.subr.mxu0 0.0
        %5110 = vmatpush1.msra.mxu0 0.0
        %5111 = vmatprep.subr.mxu0 0.0
        %5112 = vmatpush1.msra.mxu0 0.0
        %5113 = vmatprep.subr.mxu0 0.0
        %5114 = vmatpush1.msra.mxu0 0.0
        %5115 = vmatprep.subr.mxu0 0.0
        %5116 = vmatpush1.msra.mxu0 0.0
        %5117 = vmatprep.subr.mxu0 0.0
        %5118 = vmatpush1.msra.mxu0 0.0
        %5119 = vmatprep.subr.mxu0 0.0
        %5120 = vmatpush1.msra.mxu0 0.0
        %5121 = vmatprep.subr.mxu0 0.0
        %5122 = vmatpush1.msra.mxu0 0.0
        %5123 = vmatprep.subr.mxu0 0.0
        %5124 = vmatpush1.msra.mxu0 0.0
        %5125 = vmatprep.subr.mxu0 0.0
        %5126 = vmatpush1.msra.mxu0 0.0
        %5127 = vmatprep.subr.mxu0 0.0
        %5128 = vmatpush1.msra.mxu0 0.0
        %5129 = vmatprep.subr.mxu0 0.0
        %5130 = vmatpush1.msra.mxu0 0.0
        %5131 = vmatprep.subr.mxu0 0.0
        %5132 = vmatpush1.msra.mxu0 0.0
        %5133 = vmatprep.subr.mxu0 0.0
        %5134 = vmatpush1.msra.mxu0 0.0
        %5135 = vmatprep.subr.mxu0 0.0
        %5136 = vmatpush1.msra.mxu0 0.0
        %5137 = vmatprep.mubr.f32.mxu0 0.0
        %5138 = vmatmul.mubr.f32.gmra.mrb[0].mxu0 %v5071
        %v5139 = vpop.f32.mrb[0].mxu0
        %v5140 = vadd.f32 0.0, %v5139
        %v5141 = vpop.f32.mrb[0].mxu0
        %5142 = vdwg.mxu0
        %5143 = vrot.lane.b32.xlu0 %v4558, 104
        %v5144 = vpop.permute.xlu0 %5143
        %5145 = vrot.lane.b32.xlu0 %v4642, 104
        %v5146 = vpop.permute.xlu0 %5145
        %v5147 = vsel %vm1521, %v5144, 0
        %v5149 = vsel %vm1521, %v5146, 0
        %5151 = vmatprep.subr.mxu0 0.0
        %5152 = vmatpush1.xpose.msra.mxu0 %v5149
        %5153 = vmatprep.subr.mxu0 0.0
        %5154 = vmatpush1.xpose.msra.mxu0 0.0
        %5155 = vmatprep.subr.mxu0 0.0
        %5156 = vmatpush1.xpose.msra.mxu0 0.0
        %5157 = vmatprep.subr.mxu0 0.0
        %5158 = vmatpush1.xpose.msra.mxu0 0.0
        %5159 = vmatprep.subr.mxu0 0.0
        %5160 = vmatpush1.xpose.msra.mxu0 0.0
        %5161 = vmatprep.subr.mxu0 0.0
        %5162 = vmatpush1.xpose.msra.mxu0 0.0
        %5163 = vmatprep.subr.mxu0 0.0
        %5164 = vmatpush1.xpose.msra.mxu0 0.0
        %5165 = vmatprep.subr.mxu0 0.0
        %5166 = vmatpush1.xpose.msra.mxu0 0.0
        %5167 = vmatprep.subr.mxu0 0.0
        %5168 = vmatpush1.xpose.msra.mxu0 0.0
        %5169 = vmatprep.subr.mxu0 0.0
        %5170 = vmatpush1.xpose.msra.mxu0 0.0
        %5171 = vmatprep.subr.mxu0 0.0
        %5172 = vmatpush1.xpose.msra.mxu0 0.0
        %5173 = vmatprep.subr.mxu0 0.0
        %5174 = vmatpush1.xpose.msra.mxu0 0.0
        %5175 = vmatprep.subr.mxu0 0.0
        %5176 = vmatpush1.xpose.msra.mxu0 0.0
        %5177 = vmatprep.subr.mxu0 0.0
        %5178 = vmatpush1.xpose.msra.mxu0 0.0
        %5179 = vmatprep.subr.mxu0 0.0
        %5180 = vmatpush1.xpose.msra.mxu0 0.0
        %5181 = vmatprep.subr.mxu0 0.0
        %5182 = vmatpush1.xpose.msra.mxu0 0.0
        %5183 = vmatprep.subr.mxu0 0.0
        %5184 = vmatpush1.xpose.msra.mxu0 0.0
        %5185 = vmatprep.subr.mxu0 0.0
        %5186 = vmatpush1.xpose.msra.mxu0 0.0
        %5187 = vmatprep.subr.mxu0 0.0
        %5188 = vmatpush1.xpose.msra.mxu0 0.0
        %5189 = vmatprep.subr.mxu0 0.0
        %5190 = vmatpush1.xpose.msra.mxu0 0.0
        %5191 = vmatprep.subr.mxu0 0.0
        %5192 = vmatpush1.xpose.msra.mxu0 0.0
        %5193 = vmatprep.subr.mxu0 0.0
        %5194 = vmatpush1.xpose.msra.mxu0 0.0
        %5195 = vmatprep.subr.mxu0 0.0
        %5196 = vmatpush1.xpose.msra.mxu0 0.0
        %5197 = vmatprep.subr.mxu0 0.0
        %5198 = vmatpush1.xpose.msra.mxu0 0.0
        %5199 = vmatprep.subr.mxu0 0.0
        %5200 = vmatpush1.xpose.msra.mxu0 0.0
        %5201 = vmatprep.subr.mxu0 0.0
        %5202 = vmatpush1.xpose.msra.mxu0 0.0
        %5203 = vmatprep.subr.mxu0 0.0
        %5204 = vmatpush1.xpose.msra.mxu0 0.0
        %5205 = vmatprep.subr.mxu0 0.0
        %5206 = vmatpush1.xpose.msra.mxu0 0.0
        %5207 = vmatprep.subr.mxu0 0.0
        %5208 = vmatpush1.xpose.msra.mxu0 0.0
        %5209 = vmatprep.subr.mxu0 0.0
        %5210 = vmatpush1.xpose.msra.mxu0 0.0
        %5211 = vmatprep.subr.mxu0 0.0
        %5212 = vmatpush1.xpose.msra.mxu0 0.0
        %5213 = vmatprep.subr.mxu0 0.0
        %5214 = vmatpush1.xpose.msra.mxu0 0.0
        %5215 = vmatprep.mubr.f32.mxu0 0.0
        %5216 = vmatmul.mubr.f32.gmra.mrb[0].mxu0 %v5147
        %v5217 = vpop.f32.mrb[0].mxu0
        %v5218 = vadd.f32 0.0, %v5217
        %v5219 = vpop.f32.mrb[0].mxu0
        %5220 = vdwg.mxu0
        %v5221 = vsel %vm1521, %v5218, -inf
        %5222 = vmax.xlane.f32.xlu0 %v5221
        %v5223 = vpop.xlane.xlu0 %5222
        %v5224 = vsub.f32 %v5218, %v5223
        %v5225 = vmul.f32 %v5224, 1.442695
        %v5226 = vpow.pop %v5225
        %v5227 = vsel %vm1521, %v5226, 0.0
        %5228 = vadd.xlane.f32.xlu0 %v5227
        %v5229 = vpop.xlane.xlu0 %5228
        %v5230 = vrcp.pop %v5229
        %v5231 = vmul.f32 %v5226, %v5230
        %5232 = vrot.lane.b32.xlu0 %v4642, 72
        %v5233 = vpop.permute.xlu0 %5232
        %v5236 = vsel %vm1521, %v5231, 0
        %5238 = vmatprep.subr.mxu0 0.0
        %5239 = vmatpush1.msra.mxu0 %v5233
        %5240 = vmatprep.subr.mxu0 0.0
        %5241 = vmatpush1.msra.mxu0 0.0
        %5242 = vmatprep.subr.mxu0 0.0
        %5243 = vmatpush1.msra.mxu0 0.0
        %5244 = vmatprep.subr.mxu0 0.0
        %5245 = vmatpush1.msra.mxu0 0.0
        %5246 = vmatprep.subr.mxu0 0.0
        %5247 = vmatpush1.msra.mxu0 0.0
        %5248 = vmatprep.subr.mxu0 0.0
        %5249 = vmatpush1.msra.mxu0 0.0
        %5250 = vmatprep.subr.mxu0 0.0
        %5251 = vmatpush1.msra.mxu0 0.0
        %5252 = vmatprep.subr.mxu0 0.0
        %5253 = vmatpush1.msra.mxu0 0.0
        %5254 = vmatprep.subr.mxu0 0.0
        %5255 = vmatpush1.msra.mxu0 0.0
        %5256 = vmatprep.subr.mxu0 0.0
        %5257 = vmatpush1.msra.mxu0 0.0
        %5258 = vmatprep.subr.mxu0 0.0
        %5259 = vmatpush1.msra.mxu0 0.0
        %5260 = vmatprep.subr.mxu0 0.0
        %5261 = vmatpush1.msra.mxu0 0.0
        %5262 = vmatprep.subr.mxu0 0.0
        %5263 = vmatpush1.msra.mxu0 0.0
        %5264 = vmatprep.subr.mxu0 0.0
        %5265 = vmatpush1.msra.mxu0 0.0
        %5266 = vmatprep.subr.mxu0 0.0
        %5267 = vmatpush1.msra.mxu0 0.0
        %5268 = vmatprep.subr.mxu0 0.0
        %5269 = vmatpush1.msra.mxu0 0.0
        %5270 = vmatprep.subr.mxu0 0.0
        %5271 = vmatpush1.msra.mxu0 0.0
        %5272 = vmatprep.subr.mxu0 0.0
        %5273 = vmatpush1.msra.mxu0 0.0
        %5274 = vmatprep.subr.mxu0 0.0
        %5275 = vmatpush1.msra.mxu0 0.0
        %5276 = vmatprep.subr.mxu0 0.0
        %5277 = vmatpush1.msra.mxu0 0.0
        %5278 = vmatprep.subr.mxu0 0.0
        %5279 = vmatpush1.msra.mxu0 0.0
        %5280 = vmatprep.subr.mxu0 0.0
        %5281 = vmatpush1.msra.mxu0 0.0
        %5282 = vmatprep.subr.mxu0 0.0
        %5283 = vmatpush1.msra.mxu0 0.0
        %5284 = vmatprep.subr.mxu0 0.0
        %5285 = vmatpush1.msra.mxu0 0.0
        %5286 = vmatprep.subr.mxu0 0.0
        %5287 = vmatpush1.msra.mxu0 0.0
        %5288 = vmatprep.subr.mxu0 0.0
        %5289 = vmatpush1.msra.mxu0 0.0
        %5290 = vmatprep.subr.mxu0 0.0
        %5291 = vmatpush1.msra.mxu0 0.0
        %5292 = vmatprep.subr.mxu0 0.0
        %5293 = vmatpush1.msra.mxu0 0.0
        %5294 = vmatprep.subr.mxu0 0.0
        %5295 = vmatpush1.msra.mxu0 0.0
        %5296 = vmatprep.subr.mxu0 0.0
        %5297 = vmatpush1.msra.mxu0 0.0
        %5298 = vmatprep.subr.mxu0 0.0
        %5299 = vmatpush1.msra.mxu0 0.0
        %5300 = vmatprep.subr.mxu0 0.0
        %5301 = vmatpush1.msra.mxu0 0.0
        %5302 = vmatprep.mubr.f32.mxu0 0.0
        %5303 = vmatmul.mubr.f32.gmra.mrb[0].mxu0 %v5236
        %v5304 = vpop.f32.mrb[0].mxu0
        %v5305 = vadd.f32 0.0, %v5304
        %v5306 = vpop.f32.mrb[0].mxu0
        %5307 = vdwg.mxu0
        %5309 = vrot.lane.b32.xlu0 %v4975, 8
        %v5310 = vpop.permute.xlu0 %5309
        %5313 = vrot.lane.b32.xlu0 %v5140, 16
        %v5314 = vpop.permute.xlu0 %5313
        %5317 = vrot.lane.b32.xlu0 %v5305, 24
        %v5318 = vpop.permute.xlu0 %5317
        %v5320 = vsel %vm1521, %v4810, %v5310
        %v5321 = vsel %vm2191, %v5320, %v5314
        %v5322 = vsel %vm2193, %v5321, %v5318
        %v5324 = vlaneseq
        %v5325 = vshrl.u32 %v5324, 7
        %v5326 = vsub.s32 0, %v5325
        %v5327 = vrot.slane %v4649, %v5326
        %v5330 = vsel %vm1439, %v5322, 0
        %5332 = vmatprep.subr.mxu0 0.0
        %5333 = vmatpush1.msra.mxu0 %v4645
        %5334 = vmatprep.subr.mxu0 0.0
        %5335 = vmatpush1.msra.mxu0 %v4646
        %5336 = vmatprep.subr.mxu0 0.0
        %5337 = vmatpush1.msra.mxu0 %v4647
        %5338 = vmatprep.subr.mxu0 0.0
        %5339 = vmatpush1.msra.mxu0 %v4648
        %5340 = vmatprep.subr.mxu0 0.0
        %5341 = vmatpush1.msra.mxu0 0.0
        %5342 = vmatprep.subr.mxu0 0.0
        %5343 = vmatpush1.msra.mxu0 0.0
        %5344 = vmatprep.subr.mxu0 0.0
        %5345 = vmatpush1.msra.mxu0 0.0
        %5346 = vmatprep.subr.mxu0 0.0
        %5347 = vmatpush1.msra.mxu0 0.0
        %5348 = vmatprep.subr.mxu0 0.0
        %5349 = vmatpush1.msra.mxu0 0.0
        %5350 = vmatprep.subr.mxu0 0.0
        %5351 = vmatpush1.msra.mxu0 0.0
        %5352 = vmatprep.subr.mxu0 0.0
        %5353 = vmatpush1.msra.mxu0 0.0
        %5354 = vmatprep.subr.mxu0 0.0
        %5355 = vmatpush1.msra.mxu0 0.0
        %5356 = vmatprep.subr.mxu0 0.0
        %5357 = vmatpush1.msra.mxu0 0.0
        %5358 = vmatprep.subr.mxu0 0.0
        %5359 = vmatpush1.msra.mxu0 0.0
        %5360 = vmatprep.subr.mxu0 0.0
        %5361 = vmatpush1.msra.mxu0 0.0
        %5362 = vmatprep.subr.mxu0 0.0
        %5363 = vmatpush1.msra.mxu0 0.0
        %5364 = vmatprep.subr.mxu0 0.0
        %5365 = vmatpush1.msra.mxu0 0.0
        %5366 = vmatprep.subr.mxu0 0.0
        %5367 = vmatpush1.msra.mxu0 0.0
        %5368 = vmatprep.subr.mxu0 0.0
        %5369 = vmatpush1.msra.mxu0 0.0
        %5370 = vmatprep.subr.mxu0 0.0
        %5371 = vmatpush1.msra.mxu0 0.0
        %5372 = vmatprep.subr.mxu0 0.0
        %5373 = vmatpush1.msra.mxu0 0.0
        %5374 = vmatprep.subr.mxu0 0.0
        %5375 = vmatpush1.msra.mxu0 0.0
        %5376 = vmatprep.subr.mxu0 0.0
        %5377 = vmatpush1.msra.mxu0 0.0
        %5378 = vmatprep.subr.mxu0 0.0
        %5379 = vmatpush1.msra.mxu0 0.0
        %5380 = vmatprep.subr.mxu0 0.0
        %5381 = vmatpush1.msra.mxu0 0.0
        %5382 = vmatprep.subr.mxu0 0.0
        %5383 = vmatpush1.msra.mxu0 0.0
        %5384 = vmatprep.subr.mxu0 0.0
        %5385 = vmatpush1.msra.mxu0 0.0
        %5386 = vmatprep.subr.mxu0 0.0
        %5387 = vmatpush1.msra.mxu0 0.0
        %5388 = vmatprep.subr.mxu0 0.0
        %5389 = vmatpush1.msra.mxu0 0.0
        %5390 = vmatprep.subr.mxu0 0.0
        %5391 = vmatpush1.msra.mxu0 0.0
        %5392 = vmatprep.subr.mxu0 0.0
        %5393 = vmatpush1.msra.mxu0 0.0
        %5394 = vmatprep.subr.mxu0 0.0
        %5395 = vmatpush1.msra.mxu0 0.0
        %5396 = vmatprep.mubr.f32.mxu0 0.0
        %5397 = vmatmul.mubr.f32.gmra.mrb[0].mxu0 %v5330
        %v5398 = vpop.f32.mrb[0].mxu0
        %v5399 = vadd.f32 %v5327, %v5398
        %v5400 = vpop.f32.mrb[0].mxu0
        %5401 = vdwg.mxu0
        %v5402 = vadd.f32 %v4476, %v5399
        %v5403 = vld [vmem:[#allocation31] sm:$0x1]
        %v5404 = vld [vmem:[#allocation32] sm:$0x1]
        %v5405 = vsel %vm1439, %v5402, 0.0
        %5406 = vadd.xlane.f32.xlu0 %v5405
        %v5407 = vpop.xlane.xlu0 %5406
        %v5408 = vmul.f32 %v5407, %v2280
        %v5409 = vsub.f32 %v5402, %v5408
        %v5410 = vmul.f32 %v5409, %v5409
        %v5411 = vsel %vm1439, %v5410, 0.0
        %5412 = vadd.xlane.f32.xlu0 %v5411
        %v5413 = vpop.xlane.xlu0 %5412
        %v5414 = vmul.f32 %v5413, %v2280
        %v5415 = vadd.f32 %v5414, 1e-10
        %v5416 = vrsqrt.pop %v5415
        %v5417 = vmul.f32 %v5409, %v5416
        %v5419 = vlaneseq
        %v5420 = vshrl.u32 %v5419, 7
        %v5421 = vsub.s32 0, %v5420
        %v5422 = vrot.slane %v5403, %v5421
        %v5424 = vmul.f32 %v5422, %v5417
        %v5426 = vlaneseq
        %v5427 = vshrl.u32 %v5426, 7
        %v5428 = vsub.s32 0, %v5427
        %v5429 = vrot.slane %v5404, %v5428
        %v5431 = vadd.f32 %v5424, %v5429
        %v5432 = vld [vmem:[#allocation34] sm:$0xff]
        %v5433 = vld [vmem:[#allocation34 + $0x8] sm:$0xff]
        %v5434 = vld [vmem:[#allocation34 + $0x10] sm:$0xff]
        %v5435 = vld [vmem:[#allocation34 + $0x18] sm:$0xff]
        %v5436 = vld [vmem:[%s59] sm:$0x1]
        %v5437 = vld [vmem:[%s61] sm:$0xff]
        %v5438 = vld [vmem:[%s61 + $0x8] sm:$0xff]
        %v5439 = vld [vmem:[%s61 + $0x10] sm:$0xff]
        %v5440 = vld [vmem:[%s61 + $0x18] sm:$0xff]
        %v5441 = vld [vmem:[%s61 + $0x20] sm:$0xff]
        %v5442 = vld [vmem:[%s61 + $0x28] sm:$0xff]
        %v5443 = vld [vmem:[%s61 + $0x30] sm:$0xff]
        %v5444 = vld [vmem:[%s61 + $0x38] sm:$0xff]
        %v5445 = vld [vmem:[%s63] sm:$0x1]
        %v5447 = vlaneseq
        %v5448 = vshrl.u32 %v5447, 7
        %v5449 = vsub.s32 0, %v5448
        %v5450 = vrot.slane %v5436, %v5449
        %v5453 = vsel %vm1439, %v5431, 0
        %5455 = vmatprep.subr.mxu0 0.0
        %5456 = vmatpush1.msra.mxu0 %v5432
        %5457 = vmatprep.subr.mxu0 0.0
        %5458 = vmatpush1.msra.mxu0 %v5433
        %5459 = vmatprep.subr.mxu0 0.0
        %5460 = vmatpush1.msra.mxu0 %v5434
        %5461 = vmatprep.subr.mxu0 0.0
        %5462 = vmatpush1.msra.mxu0 %v5435
        %5463 = vmatprep.subr.mxu0 0.0
        %5464 = vmatpush1.msra.mxu0 0.0
        %5465 = vmatprep.subr.mxu0 0.0
        %5466 = vmatpush1.msra.mxu0 0.0
        %5467 = vmatprep.subr.mxu0 0.0
        %5468 = vmatpush1.msra.mxu0 0.0
        %5469 = vmatprep.subr.mxu0 0.0
        %5470 = vmatpush1.msra.mxu0 0.0
        %5471 = vmatprep.subr.mxu0 0.0
        %5472 = vmatpush1.msra.mxu0 0.0
        %5473 = vmatprep.subr.mxu0 0.0
        %5474 = vmatpush1.msra.mxu0 0.0
        %5475 = vmatprep.subr.mxu0 0.0
        %5476 = vmatpush1.msra.mxu0 0.0
        %5477 = vmatprep.subr.mxu0 0.0
        %5478 = vmatpush1.msra.mxu0 0.0
        %5479 = vmatprep.subr.mxu0 0.0
        %5480 = vmatpush1.msra.mxu0 0.0
        %5481 = vmatprep.subr.mxu0 0.0
        %5482 = vmatpush1.msra.mxu0 0.0
        %5483 = vmatprep.subr.mxu0 0.0
        %5484 = vmatpush1.msra.mxu0 0.0
        %5485 = vmatprep.subr.mxu0 0.0
        %5486 = vmatpush1.msra.mxu0 0.0
        %5487 = vmatprep.subr.mxu0 0.0
        %5488 = vmatpush1.msra.mxu0 0.0
        %5489 = vmatprep.subr.mxu0 0.0
        %5490 = vmatpush1.msra.mxu0 0.0
        %5491 = vmatprep.subr.mxu0 0.0
        %5492 = vmatpush1.msra.mxu0 0.0
        %5493 = vmatprep.subr.mxu0 0.0
        %5494 = vmatpush1.msra.mxu0 0.0
        %5495 = vmatprep.subr.mxu0 0.0
        %5496 = vmatpush1.msra.mxu0 0.0
        %5497 = vmatprep.subr.mxu0 0.0
        %5498 = vmatpush1.msra.mxu0 0.0
        %5499 = vmatprep.subr.mxu0 0.0
        %5500 = vmatpush1.msra.mxu0 0.0
        %5501 = vmatprep.subr.mxu0 0.0
        %5502 = vmatpush1.msra.mxu0 0.0
        %5503 = vmatprep.subr.mxu0 0.0
        %5504 = vmatpush1.msra.mxu0 0.0
        %5505 = vmatprep.subr.mxu0 0.0
        %5506 = vmatpush1.msra.mxu0 0.0
        %5507 = vmatprep.subr.mxu0 0.0
        %5508 = vmatpush1.msra.mxu0 0.0
        %5509 = vmatprep.subr.mxu0 0.0
        %5510 = vmatpush1.msra.mxu0 0.0
        %5511 = vmatprep.subr.mxu0 0.0
        %5512 = vmatpush1.msra.mxu0 0.0
        %5513 = vmatprep.subr.mxu0 0.0
        %5514 = vmatpush1.msra.mxu0 0.0
        %5515 = vmatprep.subr.mxu0 0.0
        %5516 = vmatpush1.msra.mxu0 0.0
        %5517 = vmatprep.subr.mxu0 0.0
        %5518 = vmatpush1.msra.mxu0 0.0
        %5519 = vmatprep.mubr.f32.mxu0 0.0
        %5520 = vmatmul.mubr.f32.gmra.mrb[0].mxu0 %v5453
        %v5521 = vpop.f32.mrb[0].mxu0
        %v5522 = vadd.f32 %v5450, %v5521
        %v5523 = vpop.f32.mrb[0].mxu0
        %5524 = vdwg.mxu0
        %v5525 = vmax.f32 %v5522, 0.0
        %v5527 = vlaneseq
        %v5528 = vshrl.u32 %v5527, 7
        %v5529 = vsub.s32 0, %v5528
        %v5530 = vrot.slane %v5445, %v5529
        %v5533 = vsel %vm2405, %v5525, 0
        %5535 = vmatprep.subr.mxu0 0.0
        %5536 = vmatpush1.msra.mxu0 %v5437
        %5537 = vmatprep.subr.mxu0 0.0
        %5538 = vmatpush1.msra.mxu0 %v5438
        %5539 = vmatprep.subr.mxu0 0.0
        %5540 = vmatpush1.msra.mxu0 %v5439
        %5541 = vmatprep.subr.mxu0 0.0
        %5542 = vmatpush1.msra.mxu0 %v5440
        %5543 = vmatprep.subr.mxu0 0.0
        %5544 = vmatpush1.msra.mxu0 %v5441
        %5545 = vmatprep.subr.mxu0 0.0
        %5546 = vmatpush1.msra.mxu0 %v5442
        %5547 = vmatprep.subr.mxu0 0.0
        %5548 = vmatpush1.msra.mxu0 %v5443
        %5549 = vmatprep.subr.mxu0 0.0
        %5550 = vmatpush1.msra.mxu0 %v5444
        %5551 = vmatprep.subr.mxu0 0.0
        %5552 = vmatpush1.msra.mxu0 0.0
        %5553 = vmatprep.subr.mxu0 0.0
        %5554 = vmatpush1.msra.mxu0 0.0
        %5555 = vmatprep.subr.mxu0 0.0
        %5556 = vmatpush1.msra.mxu0 0.0
        %5557 = vmatprep.subr.mxu0 0.0
        %5558 = vmatpush1.msra.mxu0 0.0
        %5559 = vmatprep.subr.mxu0 0.0
        %5560 = vmatpush1.msra.mxu0 0.0
        %5561 = vmatprep.subr.mxu0 0.0
        %5562 = vmatpush1.msra.mxu0 0.0
        %5563 = vmatprep.subr.mxu0 0.0
        %5564 = vmatpush1.msra.mxu0 0.0
        %5565 = vmatprep.subr.mxu0 0.0
        %5566 = vmatpush1.msra.mxu0 0.0
        %5567 = vmatprep.subr.mxu0 0.0
        %5568 = vmatpush1.msra.mxu0 0.0
        %5569 = vmatprep.subr.mxu0 0.0
        %5570 = vmatpush1.msra.mxu0 0.0
        %5571 = vmatprep.subr.mxu0 0.0
        %5572 = vmatpush1.msra.mxu0 0.0
        %5573 = vmatprep.subr.mxu0 0.0
        %5574 = vmatpush1.msra.mxu0 0.0
        %5575 = vmatprep.subr.mxu0 0.0
        %5576 = vmatpush1.msra.mxu0 0.0
        %5577 = vmatprep.subr.mxu0 0.0
        %5578 = vmatpush1.msra.mxu0 0.0
        %5579 = vmatprep.subr.mxu0 0.0
        %5580 = vmatpush1.msra.mxu0 0.0
        %5581 = vmatprep.subr.mxu0 0.0
        %5582 = vmatpush1.msra.mxu0 0.0
        %5583 = vmatprep.subr.mxu0 0.0
        %5584 = vmatpush1.msra.mxu0 0.0
        %5585 = vmatprep.subr.mxu0 0.0
        %5586 = vmatpush1.msra.mxu0 0.0
        %5587 = vmatprep.subr.mxu0 0.0
        %5588 = vmatpush1.msra.mxu0 0.0
        %5589 = vmatprep.subr.mxu0 0.0
        %5590 = vmatpush1.msra.mxu0 0.0
        %5591 = vmatprep.subr.mxu0 0.0
        %5592 = vmatpush1.msra.mxu0 0.0
        %5593 = vmatprep.subr.mxu0 0.0
        %5594 = vmatpush1.msra.mxu0 0.0
        %5595 = vmatprep.subr.mxu0 0.0
        %5596 = vmatpush1.msra.mxu0 0.0
        %5597 = vmatprep.subr.mxu0 0.0
        %5598 = vmatpush1.msra.mxu0 0.0
        %5599 = vmatprep.mubr.f32.mxu0 0.0
        %5600 = vmatmul.mubr.f32.gmra.mrb[0].mxu0 %v5533
        %v5601 = vpop.f32.mrb[0].mxu0
        %v5602 = vadd.f32 %v5530, %v5601
        %v5603 = vpop.f32.mrb[0].mxu0
        %5604 = vdwg.mxu0
        %v5605 = vadd.f32 %v5431, %v5602
        %v5606 = vld [vmem:[%s65] sm:$0x1]
        %v5607 = vld [vmem:[%s67] sm:$0x1]
        %v5608 = vsel %vm1439, %v5605, 0.0
        %5609 = vadd.xlane.f32.xlu0 %v5608
        %v5610 = vpop.xlane.xlu0 %5609
        %v5611 = vmul.f32 %v5610, %v2280
        %v5612 = vsub.f32 %v5605, %v5611
        %v5613 = vmul.f32 %v5612, %v5612
        %v5614 = vsel %vm1439, %v5613, 0.0
        %5615 = vadd.xlane.f32.xlu0 %v5614
        %v5616 = vpop.xlane.xlu0 %5615
        %v5617 = vmul.f32 %v5616, %v2280
        %v5618 = vadd.f32 %v5617, 1e-10
        %v5619 = vrsqrt.pop %v5618
        %v5620 = vmul.f32 %v5612, %v5619
        %v5622 = vlaneseq
        %v5623 = vshrl.u32 %v5622, 7
        %v5624 = vsub.s32 0, %v5623
        %v5625 = vrot.slane %v5606, %v5624
        %v5627 = vmul.f32 %v5625, %v5620
        %v5629 = vlaneseq
        %v5630 = vshrl.u32 %v5629, 7
        %v5631 = vsub.s32 0, %v5630
        %v5632 = vrot.slane %v5607, %v5631
        %v5634 = vadd.f32 %v5627, %v5632
        %s5635 = scalar_lea.vmem %s29, 32
        %v5636 = vld [vmem:[%s5635] sm:$0xff]
        %v5637 = vld [vmem:[%s5635 + $0x8] sm:$0xff]
        %v5638 = vld [vmem:[%s5635 + $0x10] sm:$0xff]
        %v5639 = vld [vmem:[%s5635 + $0x18] sm:$0xff]
        %s5640 = scalar_lea.vmem [#allocation17], 1
        %v5641 = vld [vmem:[%s5640] sm:$0x1]
        %v5643 = vlaneseq
        %v5644 = vshrl.u32 %v5643, 7
        %v5645 = vsub.s32 0, %v5644
        %v5646 = vrot.slane %v5641, %v5645
        %v5649 = vsel %vm1439, %v5634, 0
        %5651 = vmatprep.subr.mxu0 0.0
        %5652 = vmatpush1.msra.mxu0 %v5636
        %5653 = vmatprep.subr.mxu0 0.0
        %5654 = vmatpush1.msra.mxu0 %v5637
        %5655 = vmatprep.subr.mxu0 0.0
        %5656 = vmatpush1.msra.mxu0 %v5638
        %5657 = vmatprep.subr.mxu0 0.0
        %5658 = vmatpush1.msra.mxu0 %v5639
        %5659 = vmatprep.subr.mxu0 0.0
        %5660 = vmatpush1.msra.mxu0 0.0
        %5661 = vmatprep.subr.mxu0 0.0
        %5662 = vmatpush1.msra.mxu0 0.0
        %5663 = vmatprep.subr.mxu0 0.0
        %5664 = vmatpush1.msra.mxu0 0.0
        %5665 = vmatprep.subr.mxu0 0.0
        %5666 = vmatpush1.msra.mxu0 0.0
        %5667 = vmatprep.subr.mxu0 0.0
        %5668 = vmatpush1.msra.mxu0 0.0
        %5669 = vmatprep.subr.mxu0 0.0
        %5670 = vmatpush1.msra.mxu0 0.0
        %5671 = vmatprep.subr.mxu0 0.0
        %5672 = vmatpush1.msra.mxu0 0.0
        %5673 = vmatprep.subr.mxu0 0.0
        %5674 = vmatpush1.msra.mxu0 0.0
        %5675 = vmatprep.subr.mxu0 0.0
        %5676 = vmatpush1.msra.mxu0 0.0
        %5677 = vmatprep.subr.mxu0 0.0
        %5678 = vmatpush1.msra.mxu0 0.0
        %5679 = vmatprep.subr.mxu0 0.0
        %5680 = vmatpush1.msra.mxu0 0.0
        %5681 = vmatprep.subr.mxu0 0.0
        %5682 = vmatpush1.msra.mxu0 0.0
        %5683 = vmatprep.subr.mxu0 0.0
        %5684 = vmatpush1.msra.mxu0 0.0
        %5685 = vmatprep.subr.mxu0 0.0
        %5686 = vmatpush1.msra.mxu0 0.0
        %5687 = vmatprep.subr.mxu0 0.0
        %5688 = vmatpush1.msra.mxu0 0.0
        %5689 = vmatprep.subr.mxu0 0.0
        %5690 = vmatpush1.msra.mxu0 0.0
        %5691 = vmatprep.subr.mxu0 0.0
        %5692 = vmatpush1.msra.mxu0 0.0
        %5693 = vmatprep.subr.mxu0 0.0
        %5694 = vmatpush1.msra.mxu0 0.0
        %5695 = vmatprep.subr.mxu0 0.0
        %5696 = vmatpush1.msra.mxu0 0.0
        %5697 = vmatprep.subr.mxu0 0.0
        %5698 = vmatpush1.msra.mxu0 0.0
        %5699 = vmatprep.subr.mxu0 0.0
        %5700 = vmatpush1.msra.mxu0 0.0
        %5701 = vmatprep.subr.mxu0 0.0
        %5702 = vmatpush1.msra.mxu0 0.0
        %5703 = vmatprep.subr.mxu0 0.0
        %5704 = vmatpush1.msra.mxu0 0.0
        %5705 = vmatprep.subr.mxu0 0.0
        %5706 = vmatpush1.msra.mxu0 0.0
        %5707 = vmatprep.subr.mxu0 0.0
        %5708 = vmatpush1.msra.mxu0 0.0
        %5709 = vmatprep.subr.mxu0 0.0
        %5710 = vmatpush1.msra.mxu0 0.0
        %5711 = vmatprep.subr.mxu0 0.0
        %5712 = vmatpush1.msra.mxu0 0.0
        %5713 = vmatprep.subr.mxu0 0.0
        %5714 = vmatpush1.msra.mxu0 0.0
        %5715 = vmatprep.mubr.f32.mxu0 0.0
        %5716 = vmatmul.mubr.f32.gmra.mrb[0].mxu0 %v5649
        %v5717 = vpop.f32.mrb[0].mxu0
        %v5718 = vadd.f32 %v5646, %v5717
        %v5719 = vpop.f32.mrb[0].mxu0
        %5720 = vdwg.mxu0
        %s5721 = scalar_lea.vmem %s33, 32
        %v5722 = vld [vmem:[%s5721] sm:$0xff]
        %v5723 = vld [vmem:[%s5721 + $0x8] sm:$0xff]
        %v5724 = vld [vmem:[%s5721 + $0x10] sm:$0xff]
        %v5725 = vld [vmem:[%s5721 + $0x18] sm:$0xff]
        %s5726 = scalar_lea.vmem [#allocation19], 1
        %v5727 = vld [vmem:[%s5726] sm:$0x1]
        %5729 = vrot.lane.b32.xlu0 %v5718, 96
        %v5730 = vpop.permute.xlu0 %5729
        %v5731 = vsel %vm1521, %v5718, 0
        %v5733 = vsel %vm1521, %v5730, 0
        %5735 = vmatprep.subr.mxu0 0.0
        %5736 = vmatpush1.xpose.msra.mxu0 %v5733
        %5737 = vmatprep.subr.mxu0 0.0
        %5738 = vmatpush1.xpose.msra.mxu0 0.0
        %5739 = vmatprep.subr.mxu0 0.0
        %5740 = vmatpush1.xpose.msra.mxu0 0.0
        %5741 = vmatprep.subr.mxu0 0.0
        %5742 = vmatpush1.xpose.msra.mxu0 0.0
        %5743 = vmatprep.subr.mxu0 0.0
        %5744 = vmatpush1.xpose.msra.mxu0 0.0
        %5745 = vmatprep.subr.mxu0 0.0
        %5746 = vmatpush1.xpose.msra.mxu0 0.0
        %5747 = vmatprep.subr.mxu0 0.0
        %5748 = vmatpush1.xpose.msra.mxu0 0.0
        %5749 = vmatprep.subr.mxu0 0.0
        %5750 = vmatpush1.xpose.msra.mxu0 0.0
        %5751 = vmatprep.subr.mxu0 0.0
        %5752 = vmatpush1.xpose.msra.mxu0 0.0
        %5753 = vmatprep.subr.mxu0 0.0
        %5754 = vmatpush1.xpose.msra.mxu0 0.0
        %5755 = vmatprep.subr.mxu0 0.0
        %5756 = vmatpush1.xpose.msra.mxu0 0.0
        %5757 = vmatprep.subr.mxu0 0.0
        %5758 = vmatpush1.xpose.msra.mxu0 0.0
        %5759 = vmatprep.subr.mxu0 0.0
        %5760 = vmatpush1.xpose.msra.mxu0 0.0
        %5761 = vmatprep.subr.mxu0 0.0
        %5762 = vmatpush1.xpose.msra.mxu0 0.0
        %5763 = vmatprep.subr.mxu0 0.0
        %5764 = vmatpush1.xpose.msra.mxu0 0.0
        %5765 = vmatprep.subr.mxu0 0.0
        %5766 = vmatpush1.xpose.msra.mxu0 0.0
        %5767 = vmatprep.subr.mxu0 0.0
        %5768 = vmatpush1.xpose.msra.mxu0 0.0
        %5769 = vmatprep.subr.mxu0 0.0
        %5770 = vmatpush1.xpose.msra.mxu0 0.0
        %5771 = vmatprep.subr.mxu0 0.0
        %5772 = vmatpush1.xpose.msra.mxu0 0.0
        %5773 = vmatprep.subr.mxu0 0.0
        %5774 = vmatpush1.xpose.msra.mxu0 0.0
        %5775 = vmatprep.subr.mxu0 0.0
        %5776 = vmatpush1.xpose.msra.mxu0 0.0
        %5777 = vmatprep.subr.mxu0 0.0
        %5778 = vmatpush1.xpose.msra.mxu0 0.0
        %5779 = vmatprep.subr.mxu0 0.0
        %5780 = vmatpush1.xpose.msra.mxu0 0.0
        %5781 = vmatprep.subr.mxu0 0.0
        %5782 = vmatpush1.xpose.msra.mxu0 0.0
        %5783 = vmatprep.subr.mxu0 0.0
        %5784 = vmatpush1.xpose.msra.mxu0 0.0
        %5785 = vmatprep.subr.mxu0 0.0
        %5786 = vmatpush1.xpose.msra.mxu0 0.0
        %5787 = vmatprep.subr.mxu0 0.0
        %5788 = vmatpush1.xpose.msra.mxu0 0.0
        %5789 = vmatprep.subr.mxu0 0.0
        %5790 = vmatpush1.xpose.msra.mxu0 0.0
        %5791 = vmatprep.subr.mxu0 0.0
        %5792 = vmatpush1.xpose.msra.mxu0 0.0
        %5793 = vmatprep.subr.mxu0 0.0
        %5794 = vmatpush1.xpose.msra.mxu0 0.0
        %5795 = vmatprep.subr.mxu0 0.0
        %5796 = vmatpush1.xpose.msra.mxu0 0.0
        %5797 = vmatprep.subr.mxu0 0.0
        %5798 = vmatpush1.xpose.msra.mxu0 0.0
        %5799 = vmatprep.mubr.f32.mxu0 0.0
        %5800 = vmatmul.mubr.f32.gmra.mrb[0].mxu0 %v5731
        %v5801 = vpop.f32.mrb[0].mxu0
        %v5802 = vadd.f32 0.0, %v5801
        %v5803 = vpop.f32.mrb[0].mxu0
        %5804 = vdwg.mxu0
        %v5805 = vsel %vm3600, -1e+09, %v5802
        %v5806 = vsel %vm1521, %v5805, -inf
        %5807 = vmax.xlane.f32.xlu0 %v5806
        %v5808 = vpop.xlane.xlu0 %5807
        %v5809 = vsub.f32 %v5805, %v5808
        %v5810 = vmul.f32 %v5809, 1.442695
        %v5811 = vpow.pop %v5810
        %v5812 = vsel %vm1521, %v5811, 0.0
        %5813 = vadd.xlane.f32.xlu0 %v5812
        %v5814 = vpop.xlane.xlu0 %5813
        %v5815 = vrcp.pop %v5814
        %v5816 = vmul.f32 %v5811, %v5815
        %5817 = vrot.lane.b32.xlu0 %v5718, 64
        %v5818 = vpop.permute.xlu0 %5817
        %v5821 = vsel %vm1521, %v5816, 0
        %5823 = vmatprep.subr.mxu0 0.0
        %5824 = vmatpush1.msra.mxu0 %v5818
        %5825 = vmatprep.subr.mxu0 0.0
        %5826 = vmatpush1.msra.mxu0 0.0
        %5827 = vmatprep.subr.mxu0 0.0
        %5828 = vmatpush1.msra.mxu0 0.0
        %5829 = vmatprep.subr.mxu0 0.0
        %5830 = vmatpush1.msra.mxu0 0.0
        %5831 = vmatprep.subr.mxu0 0.0
        %5832 = vmatpush1.msra.mxu0 0.0
        %5833 = vmatprep.subr.mxu0 0.0
        %5834 = vmatpush1.msra.mxu0 0.0
        %5835 = vmatprep.subr.mxu0 0.0
        %5836 = vmatpush1.msra.mxu0 0.0
        %5837 = vmatprep.subr.mxu0 0.0
        %5838 = vmatpush1.msra.mxu0 0.0
        %5839 = vmatprep.subr.mxu0 0.0
        %5840 = vmatpush1.msra.mxu0 0.0
        %5841 = vmatprep.subr.mxu0 0.0
        %5842 = vmatpush1.msra.mxu0 0.0
        %5843 = vmatprep.subr.mxu0 0.0
        %5844 = vmatpush1.msra.mxu0 0.0
        %5845 = vmatprep.subr.mxu0 0.0
        %5846 = vmatpush1.msra.mxu0 0.0
        %5847 = vmatprep.subr.mxu0 0.0
        %5848 = vmatpush1.msra.mxu0 0.0
        %5849 = vmatprep.subr.mxu0 0.0
        %5850 = vmatpush1.msra.mxu0 0.0
        %5851 = vmatprep.subr.mxu0 0.0
        %5852 = vmatpush1.msra.mxu0 0.0
        %5853 = vmatprep.subr.mxu0 0.0
        %5854 = vmatpush1.msra.mxu0 0.0
        %5855 = vmatprep.subr.mxu0 0.0
        %5856 = vmatpush1.msra.mxu0 0.0
        %5857 = vmatprep.subr.mxu0 0.0
        %5858 = vmatpush1.msra.mxu0 0.0
        %5859 = vmatprep.subr.mxu0 0.0
        %5860 = vmatpush1.msra.mxu0 0.0
        %5861 = vmatprep.subr.mxu0 0.0
        %5862 = vmatpush1.msra.mxu0 0.0
        %5863 = vmatprep.subr.mxu0 0.0
        %5864 = vmatpush1.msra.mxu0 0.0
        %5865 = vmatprep.subr.mxu0 0.0
        %5866 = vmatpush1.msra.mxu0 0.0
        %5867 = vmatprep.subr.mxu0 0.0
        %5868 = vmatpush1.msra.mxu0 0.0
        %5869 = vmatprep.subr.mxu0 0.0
        %5870 = vmatpush1.msra.mxu0 0.0
        %5871 = vmatprep.subr.mxu0 0.0
        %5872 = vmatpush1.msra.mxu0 0.0
        %5873 = vmatprep.subr.mxu0 0.0
        %5874 = vmatpush1.msra.mxu0 0.0
        %5875 = vmatprep.subr.mxu0 0.0
        %5876 = vmatpush1.msra.mxu0 0.0
        %5877 = vmatprep.subr.mxu0 0.0
        %5878 = vmatpush1.msra.mxu0 0.0
        %5879 = vmatprep.subr.mxu0 0.0
        %5880 = vmatpush1.msra.mxu0 0.0
        %5881 = vmatprep.subr.mxu0 0.0
        %5882 = vmatpush1.msra.mxu0 0.0
        %5883 = vmatprep.subr.mxu0 0.0
        %5884 = vmatpush1.msra.mxu0 0.0
        %5885 = vmatprep.subr.mxu0 0.0
        %5886 = vmatpush1.msra.mxu0 0.0
        %5887 = vmatprep.mubr.f32.mxu0 0.0
        %5888 = vmatmul.mubr.f32.gmra.mrb[0].mxu0 %v5821
        %v5889 = vpop.f32.mrb[0].mxu0
        %v5890 = vadd.f32 0.0, %v5889
        %v5891 = vpop.f32.mrb[0].mxu0
        %5892 = vdwg.mxu0
        %5893 = vrot.lane.b32.xlu0 %v5718, 120
        %v5894 = vpop.permute.xlu0 %5893
        %5895 = vrot.lane.b32.xlu0 %v5718, 88
        %v5896 = vpop.permute.xlu0 %5895
        %v5897 = vsel %vm1521, %v5894, 0
        %v5899 = vsel %vm1521, %v5896, 0
        %5901 = vmatprep.subr.mxu0 0.0
        %5902 = vmatpush1.xpose.msra.mxu0 %v5899
        %5903 = vmatprep.subr.mxu0 0.0
        %5904 = vmatpush1.xpose.msra.mxu0 0.0
        %5905 = vmatprep.subr.mxu0 0.0
        %5906 = vmatpush1.xpose.msra.mxu0 0.0
        %5907 = vmatprep.subr.mxu0 0.0
        %5908 = vmatpush1.xpose.msra.mxu0 0.0
        %5909 = vmatprep.subr.mxu0 0.0
        %5910 = vmatpush1.xpose.msra.mxu0 0.0
        %5911 = vmatprep.subr.mxu0 0.0
        %5912 = vmatpush1.xpose.msra.mxu0 0.0
        %5913 = vmatprep.subr.mxu0 0.0
        %5914 = vmatpush1.xpose.msra.mxu0 0.0
        %5915 = vmatprep.subr.mxu0 0.0
        %5916 = vmatpush1.xpose.msra.mxu0 0.0
        %5917 = vmatprep.subr.mxu0 0.0
        %5918 = vmatpush1.xpose.msra.mxu0 0.0
        %5919 = vmatprep.subr.mxu0 0.0
        %5920 = vmatpush1.xpose.msra.mxu0 0.0
        %5921 = vmatprep.subr.mxu0 0.0
        %5922 = vmatpush1.xpose.msra.mxu0 0.0
        %5923 = vmatprep.subr.mxu0 0.0
        %5924 = vmatpush1.xpose.msra.mxu0 0.0
        %5925 = vmatprep.subr.mxu0 0.0
        %5926 = vmatpush1.xpose.msra.mxu0 0.0
        %5927 = vmatprep.subr.mxu0 0.0
        %5928 = vmatpush1.xpose.msra.mxu0 0.0
        %5929 = vmatprep.subr.mxu0 0.0
        %5930 = vmatpush1.xpose.msra.mxu0 0.0
        %5931 = vmatprep.subr.mxu0 0.0
        %5932 = vmatpush1.xpose.msra.mxu0 0.0
        %5933 = vmatprep.subr.mxu0 0.0
        %5934 = vmatpush1.xpose.msra.mxu0 0.0
        %5935 = vmatprep.subr.mxu0 0.0
        %5936 = vmatpush1.xpose.msra.mxu0 0.0
        %5937 = vmatprep.subr.mxu0 0.0
        %5938 = vmatpush1.xpose.msra.mxu0 0.0
        %5939 = vmatprep.subr.mxu0 0.0
        %5940 = vmatpush1.xpose.msra.mxu0 0.0
        %5941 = vmatprep.subr.mxu0 0.0
        %5942 = vmatpush1.xpose.msra.mxu0 0.0
        %5943 = vmatprep.subr.mxu0 0.0
        %5944 = vmatpush1.xpose.msra.mxu0 0.0
        %5945 = vmatprep.subr.mxu0 0.0
        %5946 = vmatpush1.xpose.msra.mxu0 0.0
        %5947 = vmatprep.subr.mxu0 0.0
        %5948 = vmatpush1.xpose.msra.mxu0 0.0
        %5949 = vmatprep.subr.mxu0 0.0
        %5950 = vmatpush1.xpose.msra.mxu0 0.0
        %5951 = vmatprep.subr.mxu0 0.0
        %5952 = vmatpush1.xpose.msra.mxu0 0.0
        %5953 = vmatprep.subr.mxu0 0.0
        %5954 = vmatpush1.xpose.msra.mxu0 0.0
        %5955 = vmatprep.subr.mxu0 0.0
        %5956 = vmatpush1.xpose.msra.mxu0 0.0
        %5957 = vmatprep.subr.mxu0 0.0
        %5958 = vmatpush1.xpose.msra.mxu0 0.0
        %5959 = vmatprep.subr.mxu0 0.0
        %5960 = vmatpush1.xpose.msra.mxu0 0.0
        %5961 = vmatprep.subr.mxu0 0.0
        %5962 = vmatpush1.xpose.msra.mxu0 0.0
        %5963 = vmatprep.subr.mxu0 0.0
        %5964 = vmatpush1.xpose.msra.mxu0 0.0
        %5965 = vmatprep.mubr.f32.mxu0 0.0
        %5966 = vmatmul.mubr.f32.gmra.mrb[0].mxu0 %v5897
        %v5967 = vpop.f32.mrb[0].mxu0
        %v5968 = vadd.f32 0.0, %v5967
        %v5969 = vpop.f32.mrb[0].mxu0
        %5970 = vdwg.mxu0
        %v5971 = vsel %vm3600, -1e+09, %v5968
        %v5972 = vsel %vm1521, %v5971, -inf
        %5973 = vmax.xlane.f32.xlu0 %v5972
        %v5974 = vpop.xlane.xlu0 %5973
        %v5975 = vsub.f32 %v5971, %v5974
        %v5976 = vmul.f32 %v5975, 1.442695
        %v5977 = vpow.pop %v5976
        %v5978 = vsel %vm1521, %v5977, 0.0
        %5979 = vadd.xlane.f32.xlu0 %v5978
        %v5980 = vpop.xlane.xlu0 %5979
        %v5981 = vrcp.pop %v5980
        %v5982 = vmul.f32 %v5977, %v5981
        %5983 = vrot.lane.b32.xlu0 %v5718, 56
        %v5984 = vpop.permute.xlu0 %5983
        %v5987 = vsel %vm1521, %v5982, 0
        %5989 = vmatprep.subr.mxu0 0.0
        %5990 = vmatpush1.msra.mxu0 %v5984
        %5991 = vmatprep.subr.mxu0 0.0
        %5992 = vmatpush1.msra.mxu0 0.0
        %5993 = vmatprep.subr.mxu0 0.0
        %5994 = vmatpush1.msra.mxu0 0.0
        %5995 = vmatprep.subr.mxu0 0.0
        %5996 = vmatpush1.msra.mxu0 0.0
        %5997 = vmatprep.subr.mxu0 0.0
        %5998 = vmatpush1.msra.mxu0 0.0
        %5999 = vmatprep.subr.mxu0 0.0
        %6000 = vmatpush1.msra.mxu0 0.0
        %6001 = vmatprep.subr.mxu0 0.0
        %6002 = vmatpush1.msra.mxu0 0.0
        %6003 = vmatprep.subr.mxu0 0.0
        %6004 = vmatpush1.msra.mxu0 0.0
        %6005 = vmatprep.subr.mxu0 0.0
        %6006 = vmatpush1.msra.mxu0 0.0
        %6007 = vmatprep.subr.mxu0 0.0
        %6008 = vmatpush1.msra.mxu0 0.0
        %6009 = vmatprep.subr.mxu0 0.0
        %6010 = vmatpush1.msra.mxu0 0.0
        %6011 = vmatprep.subr.mxu0 0.0
        %6012 = vmatpush1.msra.mxu0 0.0
        %6013 = vmatprep.subr.mxu0 0.0
        %6014 = vmatpush1.msra.mxu0 0.0
        %6015 = vmatprep.subr.mxu0 0.0
        %6016 = vmatpush1.msra.mxu0 0.0
        %6017 = vmatprep.subr.mxu0 0.0
        %6018 = vmatpush1.msra.mxu0 0.0
        %6019 = vmatprep.subr.mxu0 0.0
        %6020 = vmatpush1.msra.mxu0 0.0
        %6021 = vmatprep.subr.mxu0 0.0
        %6022 = vmatpush1.msra.mxu0 0.0
        %6023 = vmatprep.subr.mxu0 0.0
        %6024 = vmatpush1.msra.mxu0 0.0
        %6025 = vmatprep.subr.mxu0 0.0
        %6026 = vmatpush1.msra.mxu0 0.0
        %6027 = vmatprep.subr.mxu0 0.0
        %6028 = vmatpush1.msra.mxu0 0.0
        %6029 = vmatprep.subr.mxu0 0.0
        %6030 = vmatpush1.msra.mxu0 0.0
        %6031 = vmatprep.subr.mxu0 0.0
        %6032 = vmatpush1.msra.mxu0 0.0
        %6033 = vmatprep.subr.mxu0 0.0
        %6034 = vmatpush1.msra.mxu0 0.0
        %6035 = vmatprep.subr.mxu0 0.0
        %6036 = vmatpush1.msra.mxu0 0.0
        %6037 = vmatprep.subr.mxu0 0.0
        %6038 = vmatpush1.msra.mxu0 0.0
        %6039 = vmatprep.subr.mxu0 0.0
        %6040 = vmatpush1.msra.mxu0 0.0
        %6041 = vmatprep.subr.mxu0 0.0
        %6042 = vmatpush1.msra.mxu0 0.0
        %6043 = vmatprep.subr.mxu0 0.0
        %6044 = vmatpush1.msra.mxu0 0.0
        %6045 = vmatprep.subr.mxu0 0.0
        %6046 = vmatpush1.msra.mxu0 0.0
        %6047 = vmatprep.subr.mxu0 0.0
        %6048 = vmatpush1.msra.mxu0 0.0
        %6049 = vmatprep.subr.mxu0 0.0
        %6050 = vmatpush1.msra.mxu0 0.0
        %6051 = vmatprep.subr.mxu0 0.0
        %6052 = vmatpush1.msra.mxu0 0.0
        %6053 = vmatprep.mubr.f32.mxu0 0.0
        %6054 = vmatmul.mubr.f32.gmra.mrb[0].mxu0 %v5987
        %v6055 = vpop.f32.mrb[0].mxu0
        %v6056 = vadd.f32 0.0, %v6055
        %v6057 = vpop.f32.mrb[0].mxu0
        %6058 = vdwg.mxu0
        %6059 = vrot.lane.b32.xlu0 %v5718, 112
        %v6060 = vpop.permute.xlu0 %6059
        %6061 = vrot.lane.b32.xlu0 %v5718, 80
        %v6062 = vpop.permute.xlu0 %6061
        %v6063 = vsel %vm1521, %v6060, 0
        %v6065 = vsel %vm1521, %v6062, 0
        %6067 = vmatprep.subr.mxu0 0.0
        %6068 = vmatpush1.xpose.msra.mxu0 %v6065
        %6069 = vmatprep.subr.mxu0 0.0
        %6070 = vmatpush1.xpose.msra.mxu0 0.0
        %6071 = vmatprep.subr.mxu0 0.0
        %6072 = vmatpush1.xpose.msra.mxu0 0.0
        %6073 = vmatprep.subr.mxu0 0.0
        %6074 = vmatpush1.xpose.msra.mxu0 0.0
        %6075 = vmatprep.subr.mxu0 0.0
        %6076 = vmatpush1.xpose.msra.mxu0 0.0
        %6077 = vmatprep.subr.mxu0 0.0
        %6078 = vmatpush1.xpose.msra.mxu0 0.0
        %6079 = vmatprep.subr.mxu0 0.0
        %6080 = vmatpush1.xpose.msra.mxu0 0.0
        %6081 = vmatprep.subr.mxu0 0.0
        %6082 = vmatpush1.xpose.msra.mxu0 0.0
        %6083 = vmatprep.subr.mxu0 0.0
        %6084 = vmatpush1.xpose.msra.mxu0 0.0
        %6085 = vmatprep.subr.mxu0 0.0
        %6086 = vmatpush1.xpose.msra.mxu0 0.0
        %6087 = vmatprep.subr.mxu0 0.0
        %6088 = vmatpush1.xpose.msra.mxu0 0.0
        %6089 = vmatprep.subr.mxu0 0.0
        %6090 = vmatpush1.xpose.msra.mxu0 0.0
        %6091 = vmatprep.subr.mxu0 0.0
        %6092 = vmatpush1.xpose.msra.mxu0 0.0
        %6093 = vmatprep.subr.mxu0 0.0
        %6094 = vmatpush1.xpose.msra.mxu0 0.0
        %6095 = vmatprep.subr.mxu0 0.0
        %6096 = vmatpush1.xpose.msra.mxu0 0.0
        %6097 = vmatprep.subr.mxu0 0.0
        %6098 = vmatpush1.xpose.msra.mxu0 0.0
        %6099 = vmatprep.subr.mxu0 0.0
        %6100 = vmatpush1.xpose.msra.mxu0 0.0
        %6101 = vmatprep.subr.mxu0 0.0
        %6102 = vmatpush1.xpose.msra.mxu0 0.0
        %6103 = vmatprep.subr.mxu0 0.0
        %6104 = vmatpush1.xpose.msra.mxu0 0.0
        %6105 = vmatprep.subr.mxu0 0.0
        %6106 = vmatpush1.xpose.msra.mxu0 0.0
        %6107 = vmatprep.subr.mxu0 0.0
        %6108 = vmatpush1.xpose.msra.mxu0 0.0
        %6109 = vmatprep.subr.mxu0 0.0
        %6110 = vmatpush1.xpose.msra.mxu0 0.0
        %6111 = vmatprep.subr.mxu0 0.0
        %6112 = vmatpush1.xpose.msra.mxu0 0.0
        %6113 = vmatprep.subr.mxu0 0.0
        %6114 = vmatpush1.xpose.msra.mxu0 0.0
        %6115 = vmatprep.subr.mxu0 0.0
        %6116 = vmatpush1.xpose.msra.mxu0 0.0
        %6117 = vmatprep.subr.mxu0 0.0
        %6118 = vmatpush1.xpose.msra.mxu0 0.0
        %6119 = vmatprep.subr.mxu0 0.0
        %6120 = vmatpush1.xpose.msra.mxu0 0.0
        %6121 = vmatprep.subr.mxu0 0.0
        %6122 = vmatpush1.xpose.msra.mxu0 0.0
        %6123 = vmatprep.subr.mxu0 0.0
        %6124 = vmatpush1.xpose.msra.mxu0 0.0
        %6125 = vmatprep.subr.mxu0 0.0
        %6126 = vmatpush1.xpose.msra.mxu0 0.0
        %6127 = vmatprep.subr.mxu0 0.0
        %6128 = vmatpush1.xpose.msra.mxu0 0.0
        %6129 = vmatprep.subr.mxu0 0.0
        %6130 = vmatpush1.xpose.msra.mxu0 0.0
        %6131 = vmatprep.mubr.f32.mxu0 0.0
        %6132 = vmatmul.mubr.f32.gmra.mrb[0].mxu0 %v6063
        %v6133 = vpop.f32.mrb[0].mxu0
        %v6134 = vadd.f32 0.0, %v6133
        %v6135 = vpop.f32.mrb[0].mxu0
        %6136 = vdwg.mxu0
        %v6137 = vsel %vm3600, -1e+09, %v6134
        %v6138 = vsel %vm1521, %v6137, -inf
        %6139 = vmax.xlane.f32.xlu0 %v6138
        %v6140 = vpop.xlane.xlu0 %6139
        %v6141 = vsub.f32 %v6137, %v6140
        %v6142 = vmul.f32 %v6141, 1.442695
        %v6143 = vpow.pop %v6142
        %v6144 = vsel %vm1521, %v6143, 0.0
        %6145 = vadd.xlane.f32.xlu0 %v6144
        %v6146 = vpop.xlane.xlu0 %6145
        %v6147 = vrcp.pop %v6146
        %v6148 = vmul.f32 %v6143, %v6147
        %6149 = vrot.lane.b32.xlu0 %v5718, 48
        %v6150 = vpop.permute.xlu0 %6149
        %v6153 = vsel %vm1521, %v6148, 0
        %6155 = vmatprep.subr.mxu0 0.0
        %6156 = vmatpush1.msra.mxu0 %v6150
        %6157 = vmatprep.subr.mxu0 0.0
        %6158 = vmatpush1.msra.mxu0 0.0
        %6159 = vmatprep.subr.mxu0 0.0
        %6160 = vmatpush1.msra.mxu0 0.0
        %6161 = vmatprep.subr.mxu0 0.0
        %6162 = vmatpush1.msra.mxu0 0.0
        %6163 = vmatprep.subr.mxu0 0.0
        %6164 = vmatpush1.msra.mxu0 0.0
        %6165 = vmatprep.subr.mxu0 0.0
        %6166 = vmatpush1.msra.mxu0 0.0
        %6167 = vmatprep.subr.mxu0 0.0
        %6168 = vmatpush1.msra.mxu0 0.0
        %6169 = vmatprep.subr.mxu0 0.0
        %6170 = vmatpush1.msra.mxu0 0.0
        %6171 = vmatprep.subr.mxu0 0.0
        %6172 = vmatpush1.msra.mxu0 0.0
        %6173 = vmatprep.subr.mxu0 0.0
        %6174 = vmatpush1.msra.mxu0 0.0
        %6175 = vmatprep.subr.mxu0 0.0
        %6176 = vmatpush1.msra.mxu0 0.0
        %6177 = vmatprep.subr.mxu0 0.0
        %6178 = vmatpush1.msra.mxu0 0.0
        %6179 = vmatprep.subr.mxu0 0.0
        %6180 = vmatpush1.msra.mxu0 0.0
        %6181 = vmatprep.subr.mxu0 0.0
        %6182 = vmatpush1.msra.mxu0 0.0
        %6183 = vmatprep.subr.mxu0 0.0
        %6184 = vmatpush1.msra.mxu0 0.0
        %6185 = vmatprep.subr.mxu0 0.0
        %6186 = vmatpush1.msra.mxu0 0.0
        %6187 = vmatprep.subr.mxu0 0.0
        %6188 = vmatpush1.msra.mxu0 0.0
        %6189 = vmatprep.subr.mxu0 0.0
        %6190 = vmatpush1.msra.mxu0 0.0
        %6191 = vmatprep.subr.mxu0 0.0
        %6192 = vmatpush1.msra.mxu0 0.0
        %6193 = vmatprep.subr.mxu0 0.0
        %6194 = vmatpush1.msra.mxu0 0.0
        %6195 = vmatprep.subr.mxu0 0.0
        %6196 = vmatpush1.msra.mxu0 0.0
        %6197 = vmatprep.subr.mxu0 0.0
        %6198 = vmatpush1.msra.mxu0 0.0
        %6199 = vmatprep.subr.mxu0 0.0
        %6200 = vmatpush1.msra.mxu0 0.0
        %6201 = vmatprep.subr.mxu0 0.0
        %6202 = vmatpush1.msra.mxu0 0.0
        %6203 = vmatprep.subr.mxu0 0.0
        %6204 = vmatpush1.msra.mxu0 0.0
        %6205 = vmatprep.subr.mxu0 0.0
        %6206 = vmatpush1.msra.mxu0 0.0
        %6207 = vmatprep.subr.mxu0 0.0
        %6208 = vmatpush1.msra.mxu0 0.0
        %6209 = vmatprep.subr.mxu0 0.0
        %6210 = vmatpush1.msra.mxu0 0.0
        %6211 = vmatprep.subr.mxu0 0.0
        %6212 = vmatpush1.msra.mxu0 0.0
        %6213 = vmatprep.subr.mxu0 0.0
        %6214 = vmatpush1.msra.mxu0 0.0
        %6215 = vmatprep.subr.mxu0 0.0
        %6216 = vmatpush1.msra.mxu0 0.0
        %6217 = vmatprep.subr.mxu0 0.0
        %6218 = vmatpush1.msra.mxu0 0.0
        %6219 = vmatprep.mubr.f32.mxu0 0.0
        %6220 = vmatmul.mubr.f32.gmra.mrb[0].mxu0 %v6153
        %v6221 = vpop.f32.mrb[0].mxu0
        %v6222 = vadd.f32 0.0, %v6221
        %v6223 = vpop.f32.mrb[0].mxu0
        %6224 = vdwg.mxu0
        %6225 = vrot.lane.b32.xlu0 %v5718, 104
        %v6226 = vpop.permute.xlu0 %6225
        %6227 = vrot.lane.b32.xlu0 %v5718, 72
        %v6228 = vpop.permute.xlu0 %6227
        %v6229 = vsel %vm1521, %v6226, 0
        %v6231 = vsel %vm1521, %v6228, 0
        %6233 = vmatprep.subr.mxu0 0.0
        %6234 = vmatpush1.xpose.msra.mxu0 %v6231
        %6235 = vmatprep.subr.mxu0 0.0
        %6236 = vmatpush1.xpose.msra.mxu0 0.0
        %6237 = vmatprep.subr.mxu0 0.0
        %6238 = vmatpush1.xpose.msra.mxu0 0.0
        %6239 = vmatprep.subr.mxu0 0.0
        %6240 = vmatpush1.xpose.msra.mxu0 0.0
        %6241 = vmatprep.subr.mxu0 0.0
        %6242 = vmatpush1.xpose.msra.mxu0 0.0
        %6243 = vmatprep.subr.mxu0 0.0
        %6244 = vmatpush1.xpose.msra.mxu0 0.0
        %6245 = vmatprep.subr.mxu0 0.0
        %6246 = vmatpush1.xpose.msra.mxu0 0.0
        %6247 = vmatprep.subr.mxu0 0.0
        %6248 = vmatpush1.xpose.msra.mxu0 0.0
        %6249 = vmatprep.subr.mxu0 0.0
        %6250 = vmatpush1.xpose.msra.mxu0 0.0
        %6251 = vmatprep.subr.mxu0 0.0
        %6252 = vmatpush1.xpose.msra.mxu0 0.0
        %6253 = vmatprep.subr.mxu0 0.0
        %6254 = vmatpush1.xpose.msra.mxu0 0.0
        %6255 = vmatprep.subr.mxu0 0.0
        %6256 = vmatpush1.xpose.msra.mxu0 0.0
        %6257 = vmatprep.subr.mxu0 0.0
        %6258 = vmatpush1.xpose.msra.mxu0 0.0
        %6259 = vmatprep.subr.mxu0 0.0
        %6260 = vmatpush1.xpose.msra.mxu0 0.0
        %6261 = vmatprep.subr.mxu0 0.0
        %6262 = vmatpush1.xpose.msra.mxu0 0.0
        %6263 = vmatprep.subr.mxu0 0.0
        %6264 = vmatpush1.xpose.msra.mxu0 0.0
        %6265 = vmatprep.subr.mxu0 0.0
        %6266 = vmatpush1.xpose.msra.mxu0 0.0
        %6267 = vmatprep.subr.mxu0 0.0
        %6268 = vmatpush1.xpose.msra.mxu0 0.0
        %6269 = vmatprep.subr.mxu0 0.0
        %6270 = vmatpush1.xpose.msra.mxu0 0.0
        %6271 = vmatprep.subr.mxu0 0.0
        %6272 = vmatpush1.xpose.msra.mxu0 0.0
        %6273 = vmatprep.subr.mxu0 0.0
        %6274 = vmatpush1.xpose.msra.mxu0 0.0
        %6275 = vmatprep.subr.mxu0 0.0
        %6276 = vmatpush1.xpose.msra.mxu0 0.0
        %6277 = vmatprep.subr.mxu0 0.0
        %6278 = vmatpush1.xpose.msra.mxu0 0.0
        %6279 = vmatprep.subr.mxu0 0.0
        %6280 = vmatpush1.xpose.msra.mxu0 0.0
        %6281 = vmatprep.subr.mxu0 0.0
        %6282 = vmatpush1.xpose.msra.mxu0 0.0
        %6283 = vmatprep.subr.mxu0 0.0
        %6284 = vmatpush1.xpose.msra.mxu0 0.0
        %6285 = vmatprep.subr.mxu0 0.0
        %6286 = vmatpush1.xpose.msra.mxu0 0.0
        %6287 = vmatprep.subr.mxu0 0.0
        %6288 = vmatpush1.xpose.msra.mxu0 0.0
        %6289 = vmatprep.subr.mxu0 0.0
        %6290 = vmatpush1.xpose.msra.mxu0 0.0
        %6291 = vmatprep.subr.mxu0 0.0
        %6292 = vmatpush1.xpose.msra.mxu0 0.0
        %6293 = vmatprep.subr.mxu0 0.0
        %6294 = vmatpush1.xpose.msra.mxu0 0.0
        %6295 = vmatprep.subr.mxu0 0.0
        %6296 = vmatpush1.xpose.msra.mxu0 0.0
        %6297 = vmatprep.mubr.f32.mxu0 0.0
        %6298 = vmatmul.mubr.f32.gmra.mrb[0].mxu0 %v6229
        %v6299 = vpop.f32.mrb[0].mxu0
        %v6300 = vadd.f32 0.0, %v6299
        %v6301 = vpop.f32.mrb[0].mxu0
        %6302 = vdwg.mxu0
        %v6303 = vsel %vm3600, -1e+09, %v6300
        %v6304 = vsel %vm1521, %v6303, -inf
        %6305 = vmax.xlane.f32.xlu0 %v6304
        %v6306 = vpop.xlane.xlu0 %6305
        %v6307 = vsub.f32 %v6303, %v6306
        %v6308 = vmul.f32 %v6307, 1.442695
        %v6309 = vpow.pop %v6308
        %v6310 = vsel %vm1521, %v6309, 0.0
        %6311 = vadd.xlane.f32.xlu0 %v6310
        %v6312 = vpop.xlane.xlu0 %6311
        %v6313 = vrcp.pop %v6312
        %v6314 = vmul.f32 %v6309, %v6313
        %6315 = vrot.lane.b32.xlu0 %v5718, 40
        %v6316 = vpop.permute.xlu0 %6315
        %v6319 = vsel %vm1521, %v6314, 0
        %6321 = vmatprep.subr.mxu0 0.0
        %6322 = vmatpush1.msra.mxu0 %v6316
        %6323 = vmatprep.subr.mxu0 0.0
        %6324 = vmatpush1.msra.mxu0 0.0
        %6325 = vmatprep.subr.mxu0 0.0
        %6326 = vmatpush1.msra.mxu0 0.0
        %6327 = vmatprep.subr.mxu0 0.0
        %6328 = vmatpush1.msra.mxu0 0.0
        %6329 = vmatprep.subr.mxu0 0.0
        %6330 = vmatpush1.msra.mxu0 0.0
        %6331 = vmatprep.subr.mxu0 0.0
        %6332 = vmatpush1.msra.mxu0 0.0
        %6333 = vmatprep.subr.mxu0 0.0
        %6334 = vmatpush1.msra.mxu0 0.0
        %6335 = vmatprep.subr.mxu0 0.0
        %6336 = vmatpush1.msra.mxu0 0.0
        %6337 = vmatprep.subr.mxu0 0.0
        %6338 = vmatpush1.msra.mxu0 0.0
        %6339 = vmatprep.subr.mxu0 0.0
        %6340 = vmatpush1.msra.mxu0 0.0
        %6341 = vmatprep.subr.mxu0 0.0
        %6342 = vmatpush1.msra.mxu0 0.0
        %6343 = vmatprep.subr.mxu0 0.0
        %6344 = vmatpush1.msra.mxu0 0.0
        %6345 = vmatprep.subr.mxu0 0.0
        %6346 = vmatpush1.msra.mxu0 0.0
        %6347 = vmatprep.subr.mxu0 0.0
        %6348 = vmatpush1.msra.mxu0 0.0
        %6349 = vmatprep.subr.mxu0 0.0
        %6350 = vmatpush1.msra.mxu0 0.0
        %6351 = vmatprep.subr.mxu0 0.0
        %6352 = vmatpush1.msra.mxu0 0.0
        %6353 = vmatprep.subr.mxu0 0.0
        %6354 = vmatpush1.msra.mxu0 0.0
        %6355 = vmatprep.subr.mxu0 0.0
        %6356 = vmatpush1.msra.mxu0 0.0
        %6357 = vmatprep.subr.mxu0 0.0
        %6358 = vmatpush1.msra.mxu0 0.0
        %6359 = vmatprep.subr.mxu0 0.0
        %6360 = vmatpush1.msra.mxu0 0.0
        %6361 = vmatprep.subr.mxu0 0.0
        %6362 = vmatpush1.msra.mxu0 0.0
        %6363 = vmatprep.subr.mxu0 0.0
        %6364 = vmatpush1.msra.mxu0 0.0
        %6365 = vmatprep.subr.mxu0 0.0
        %6366 = vmatpush1.msra.mxu0 0.0
        %6367 = vmatprep.subr.mxu0 0.0
        %6368 = vmatpush1.msra.mxu0 0.0
        %6369 = vmatprep.subr.mxu0 0.0
        %6370 = vmatpush1.msra.mxu0 0.0
        %6371 = vmatprep.subr.mxu0 0.0
        %6372 = vmatpush1.msra.mxu0 0.0
        %6373 = vmatprep.subr.mxu0 0.0
        %6374 = vmatpush1.msra.mxu0 0.0
        %6375 = vmatprep.subr.mxu0 0.0
        %6376 = vmatpush1.msra.mxu0 0.0
        %6377 = vmatprep.subr.mxu0 0.0
        %6378 = vmatpush1.msra.mxu0 0.0
        %6379 = vmatprep.subr.mxu0 0.0
        %6380 = vmatpush1.msra.mxu0 0.0
        %6381 = vmatprep.subr.mxu0 0.0
        %6382 = vmatpush1.msra.mxu0 0.0
        %6383 = vmatprep.subr.mxu0 0.0
        %6384 = vmatpush1.msra.mxu0 0.0
        %6385 = vmatprep.mubr.f32.mxu0 0.0
        %6386 = vmatmul.mubr.f32.gmra.mrb[0].mxu0 %v6319
        %v6387 = vpop.f32.mrb[0].mxu0
        %v6388 = vadd.f32 0.0, %v6387
        %v6389 = vpop.f32.mrb[0].mxu0
        %6390 = vdwg.mxu0
        %6392 = vrot.lane.b32.xlu0 %v6056, 8
        %v6393 = vpop.permute.xlu0 %6392
        %6396 = vrot.lane.b32.xlu0 %v6222, 16
        %v6397 = vpop.permute.xlu0 %6396
        %6400 = vrot.lane.b32.xlu0 %v6388, 24
        %v6401 = vpop.permute.xlu0 %6400
        %v6403 = vsel %vm1521, %v5890, %v6393
        %v6404 = vsel %vm2191, %v6403, %v6397
        %v6405 = vsel %vm2193, %v6404, %v6401
        %v6407 = vlaneseq
        %v6408 = vshrl.u32 %v6407, 7
        %v6409 = vsub.s32 0, %v6408
        %v6410 = vrot.slane %v5727, %v6409
        %v6413 = vsel %vm1439, %v6405, 0
        %6415 = vmatprep.subr.mxu0 0.0
        %6416 = vmatpush1.msra.mxu0 %v5722
        %6417 = vmatprep.subr.mxu0 0.0
        %6418 = vmatpush1.msra.mxu0 %v5723
        %6419 = vmatprep.subr.mxu0 0.0
        %6420 = vmatpush1.msra.mxu0 %v5724
        %6421 = vmatprep.subr.mxu0 0.0
        %6422 = vmatpush1.msra.mxu0 %v5725
        %6423 = vmatprep.subr.mxu0 0.0
        %6424 = vmatpush1.msra.mxu0 0.0
        %6425 = vmatprep.subr.mxu0 0.0
        %6426 = vmatpush1.msra.mxu0 0.0
        %6427 = vmatprep.subr.mxu0 0.0
        %6428 = vmatpush1.msra.mxu0 0.0
        %6429 = vmatprep.subr.mxu0 0.0
        %6430 = vmatpush1.msra.mxu0 0.0
        %6431 = vmatprep.subr.mxu0 0.0
        %6432 = vmatpush1.msra.mxu0 0.0
        %6433 = vmatprep.subr.mxu0 0.0
        %6434 = vmatpush1.msra.mxu0 0.0
        %6435 = vmatprep.subr.mxu0 0.0
        %6436 = vmatpush1.msra.mxu0 0.0
        %6437 = vmatprep.subr.mxu0 0.0
        %6438 = vmatpush1.msra.mxu0 0.0
        %6439 = vmatprep.subr.mxu0 0.0
        %6440 = vmatpush1.msra.mxu0 0.0
        %6441 = vmatprep.subr.mxu0 0.0
        %6442 = vmatpush1.msra.mxu0 0.0
        %6443 = vmatprep.subr.mxu0 0.0
        %6444 = vmatpush1.msra.mxu0 0.0
        %6445 = vmatprep.subr.mxu0 0.0
        %6446 = vmatpush1.msra.mxu0 0.0
        %6447 = vmatprep.subr.mxu0 0.0
        %6448 = vmatpush1.msra.mxu0 0.0
        %6449 = vmatprep.subr.mxu0 0.0
        %6450 = vmatpush1.msra.mxu0 0.0
        %6451 = vmatprep.subr.mxu0 0.0
        %6452 = vmatpush1.msra.mxu0 0.0
        %6453 = vmatprep.subr.mxu0 0.0
        %6454 = vmatpush1.msra.mxu0 0.0
        %6455 = vmatprep.subr.mxu0 0.0
        %6456 = vmatpush1.msra.mxu0 0.0
        %6457 = vmatprep.subr.mxu0 0.0
        %6458 = vmatpush1.msra.mxu0 0.0
        %6459 = vmatprep.subr.mxu0 0.0
        %6460 = vmatpush1.msra.mxu0 0.0
        %6461 = vmatprep.subr.mxu0 0.0
        %6462 = vmatpush1.msra.mxu0 0.0
        %6463 = vmatprep.subr.mxu0 0.0
        %6464 = vmatpush1.msra.mxu0 0.0
        %6465 = vmatprep.subr.mxu0 0.0
        %6466 = vmatpush1.msra.mxu0 0.0
        %6467 = vmatprep.subr.mxu0 0.0
        %6468 = vmatpush1.msra.mxu0 0.0
        %6469 = vmatprep.subr.mxu0 0.0
        %6470 = vmatpush1.msra.mxu0 0.0
        %6471 = vmatprep.subr.mxu0 0.0
        %6472 = vmatpush1.msra.mxu0 0.0
        %6473 = vmatprep.subr.mxu0 0.0
        %6474 = vmatpush1.msra.mxu0 0.0
        %6475 = vmatprep.subr.mxu0 0.0
        %6476 = vmatpush1.msra.mxu0 0.0
        %6477 = vmatprep.subr.mxu0 0.0
        %6478 = vmatpush1.msra.mxu0 0.0
        %6479 = vmatprep.mubr.f32.mxu0 0.0
        %6480 = vmatmul.mubr.f32.gmra.mrb[0].mxu0 %v6413
        %v6481 = vpop.f32.mrb[0].mxu0
        %v6482 = vadd.f32 %v6410, %v6481
        %v6483 = vpop.f32.mrb[0].mxu0
        %6484 = vdwg.mxu0
        %v6485 = vadd.f32 %v5634, %v6482
        %s6486 = scalar_lea.vmem [#allocation20], 1
        %v6487 = vld [vmem:[%s6486] sm:$0x1]
        %s6488 = scalar_lea.vmem [#allocation22], 1
        %v6489 = vld [vmem:[%s6488] sm:$0x1]
        %v6490 = vsel %vm1439, %v6485, 0.0
        %6491 = vadd.xlane.f32.xlu0 %v6490
        %v6492 = vpop.xlane.xlu0 %6491
        %v6493 = vmul.f32 %v6492, %v2280
        %v6494 = vsub.f32 %v6485, %v6493
        %v6495 = vmul.f32 %v6494, %v6494
        %v6496 = vsel %vm1439, %v6495, 0.0
        %6497 = vadd.xlane.f32.xlu0 %v6496
        %v6498 = vpop.xlane.xlu0 %6497
        %v6499 = vmul.f32 %v6498, %v2280
        %v6500 = vadd.f32 %v6499, 1e-10
        %v6501 = vrsqrt.pop %v6500
        %v6502 = vmul.f32 %v6494, %v6501
        %v6504 = vlaneseq
        %v6505 = vshrl.u32 %v6504, 7
        %v6506 = vsub.s32 0, %v6505
        %v6507 = vrot.slane %v6487, %v6506
        %v6509 = vmul.f32 %v6507, %v6502
        %v6511 = vlaneseq
        %v6512 = vshrl.u32 %v6511, 7
        %v6513 = vsub.s32 0, %v6512
        %v6514 = vrot.slane %v6489, %v6513
        %v6516 = vadd.f32 %v6509, %v6514
        %s6517 = scalar_lea.vmem %s41, 32
        %v6518 = vld [vmem:[%s6517] sm:$0xff]
        %v6519 = vld [vmem:[%s6517 + $0x8] sm:$0xff]
        %v6520 = vld [vmem:[%s6517 + $0x10] sm:$0xff]
        %v6521 = vld [vmem:[%s6517 + $0x18] sm:$0xff]
        %s6522 = scalar_lea.vmem [#allocation23], 1
        %v6523 = vld [vmem:[%s6522] sm:$0x1]
        %v6525 = vlaneseq
        %v6526 = vshrl.u32 %v6525, 7
        %v6527 = vsub.s32 0, %v6526
        %v6528 = vrot.slane %v6523, %v6527
        %v6531 = vsel %vm1439, %v6516, 0
        %6533 = vmatprep.subr.mxu0 0.0
        %6534 = vmatpush1.msra.mxu0 %v6518
        %6535 = vmatprep.subr.mxu0 0.0
        %6536 = vmatpush1.msra.mxu0 %v6519
        %6537 = vmatprep.subr.mxu0 0.0
        %6538 = vmatpush1.msra.mxu0 %v6520
        %6539 = vmatprep.subr.mxu0 0.0
        %6540 = vmatpush1.msra.mxu0 %v6521
        %6541 = vmatprep.subr.mxu0 0.0
        %6542 = vmatpush1.msra.mxu0 0.0
        %6543 = vmatprep.subr.mxu0 0.0
        %6544 = vmatpush1.msra.mxu0 0.0
        %6545 = vmatprep.subr.mxu0 0.0
        %6546 = vmatpush1.msra.mxu0 0.0
        %6547 = vmatprep.subr.mxu0 0.0
        %6548 = vmatpush1.msra.mxu0 0.0
        %6549 = vmatprep.subr.mxu0 0.0
        %6550 = vmatpush1.msra.mxu0 0.0
        %6551 = vmatprep.subr.mxu0 0.0
        %6552 = vmatpush1.msra.mxu0 0.0
        %6553 = vmatprep.subr.mxu0 0.0
        %6554 = vmatpush1.msra.mxu0 0.0
        %6555 = vmatprep.subr.mxu0 0.0
        %6556 = vmatpush1.msra.mxu0 0.0
        %6557 = vmatprep.subr.mxu0 0.0
        %6558 = vmatpush1.msra.mxu0 0.0
        %6559 = vmatprep.subr.mxu0 0.0
        %6560 = vmatpush1.msra.mxu0 0.0
        %6561 = vmatprep.subr.mxu0 0.0
        %6562 = vmatpush1.msra.mxu0 0.0
        %6563 = vmatprep.subr.mxu0 0.0
        %6564 = vmatpush1.msra.mxu0 0.0
        %6565 = vmatprep.subr.mxu0 0.0
        %6566 = vmatpush1.msra.mxu0 0.0
        %6567 = vmatprep.subr.mxu0 0.0
        %6568 = vmatpush1.msra.mxu0 0.0
        %6569 = vmatprep.subr.mxu0 0.0
        %6570 = vmatpush1.msra.mxu0 0.0
        %6571 = vmatprep.subr.mxu0 0.0
        %6572 = vmatpush1.msra.mxu0 0.0
        %6573 = vmatprep.subr.mxu0 0.0
        %6574 = vmatpush1.msra.mxu0 0.0
        %6575 = vmatprep.subr.mxu0 0.0
        %6576 = vmatpush1.msra.mxu0 0.0
        %6577 = vmatprep.subr.mxu0 0.0
        %6578 = vmatpush1.msra.mxu0 0.0
        %6579 = vmatprep.subr.mxu0 0.0
        %6580 = vmatpush1.msra.mxu0 0.0
        %6581 = vmatprep.subr.mxu0 0.0
        %6582 = vmatpush1.msra.mxu0 0.0
        %6583 = vmatprep.subr.mxu0 0.0
        %6584 = vmatpush1.msra.mxu0 0.0
        %6585 = vmatprep.subr.mxu0 0.0
        %6586 = vmatpush1.msra.mxu0 0.0
        %6587 = vmatprep.subr.mxu0 0.0
        %6588 = vmatpush1.msra.mxu0 0.0
        %6589 = vmatprep.subr.mxu0 0.0
        %6590 = vmatpush1.msra.mxu0 0.0
        %6591 = vmatprep.subr.mxu0 0.0
        %6592 = vmatpush1.msra.mxu0 0.0
        %6593 = vmatprep.subr.mxu0 0.0
        %6594 = vmatpush1.msra.mxu0 0.0
        %6595 = vmatprep.subr.mxu0 0.0
        %6596 = vmatpush1.msra.mxu0 0.0
        %6597 = vmatprep.mubr.f32.mxu0 0.0
        %6598 = vmatmul.mubr.f32.gmra.mrb[0].mxu0 %v6531
        %v6599 = vpop.f32.mrb[0].mxu0
        %v6600 = vadd.f32 %v6528, %v6599
        %v6601 = vpop.f32.mrb[0].mxu0
        %6602 = vdwg.mxu0
        %s6603 = scalar_lea.vmem [#allocation25], 32
        %v6604 = vld [vmem:[%s6603] sm:$0xff]
        %v6605 = vld [vmem:[%s6603 + $0x8] sm:$0xff]
        %v6606 = vld [vmem:[%s6603 + $0x10] sm:$0xff]
        %v6607 = vld [vmem:[%s6603 + $0x18] sm:$0xff]
        %s6608 = scalar_lea.vmem [#allocation26], 1
        %v6609 = vld [vmem:[%s6608] sm:$0x1]
        %v6611 = vlaneseq
        %v6612 = vshrl.u32 %v6611, 7
        %v6613 = vsub.s32 0, %v6612
        %v6614 = vrot.slane %v6609, %v6613
        %6616 = vmatprep.subr.mxu0 0.0
        %6617 = vmatpush1.msra.mxu0 %v6604
        %6618 = vmatprep.subr.mxu0 0.0
        %6619 = vmatpush1.msra.mxu0 %v6605
        %6620 = vmatprep.subr.mxu0 0.0
        %6621 = vmatpush1.msra.mxu0 %v6606
        %6622 = vmatprep.subr.mxu0 0.0
        %6623 = vmatpush1.msra.mxu0 %v6607
        %6624 = vmatprep.subr.mxu0 0.0
        %6625 = vmatpush1.msra.mxu0 0.0
        %6626 = vmatprep.subr.mxu0 0.0
        %6627 = vmatpush1.msra.mxu0 0.0
        %6628 = vmatprep.subr.mxu0 0.0
        %6629 = vmatpush1.msra.mxu0 0.0
        %6630 = vmatprep.subr.mxu0 0.0
        %6631 = vmatpush1.msra.mxu0 0.0
        %6632 = vmatprep.subr.mxu0 0.0
        %6633 = vmatpush1.msra.mxu0 0.0
        %6634 = vmatprep.subr.mxu0 0.0
        %6635 = vmatpush1.msra.mxu0 0.0
        %6636 = vmatprep.subr.mxu0 0.0
        %6637 = vmatpush1.msra.mxu0 0.0
        %6638 = vmatprep.subr.mxu0 0.0
        %6639 = vmatpush1.msra.mxu0 0.0
        %6640 = vmatprep.subr.mxu0 0.0
        %6641 = vmatpush1.msra.mxu0 0.0
        %6642 = vmatprep.subr.mxu0 0.0
        %6643 = vmatpush1.msra.mxu0 0.0
        %6644 = vmatprep.subr.mxu0 0.0
        %6645 = vmatpush1.msra.mxu0 0.0
        %6646 = vmatprep.subr.mxu0 0.0
        %6647 = vmatpush1.msra.mxu0 0.0
        %6648 = vmatprep.subr.mxu0 0.0
        %6649 = vmatpush1.msra.mxu0 0.0
        %6650 = vmatprep.subr.mxu0 0.0
        %6651 = vmatpush1.msra.mxu0 0.0
        %6652 = vmatprep.subr.mxu0 0.0
        %6653 = vmatpush1.msra.mxu0 0.0
        %6654 = vmatprep.subr.mxu0 0.0
        %6655 = vmatpush1.msra.mxu0 0.0
        %6656 = vmatprep.subr.mxu0 0.0
        %6657 = vmatpush1.msra.mxu0 0.0
        %6658 = vmatprep.subr.mxu0 0.0
        %6659 = vmatpush1.msra.mxu0 0.0
        %6660 = vmatprep.subr.mxu0 0.0
        %6661 = vmatpush1.msra.mxu0 0.0
        %6662 = vmatprep.subr.mxu0 0.0
        %6663 = vmatpush1.msra.mxu0 0.0
        %6664 = vmatprep.subr.mxu0 0.0
        %6665 = vmatpush1.msra.mxu0 0.0
        %6666 = vmatprep.subr.mxu0 0.0
        %6667 = vmatpush1.msra.mxu0 0.0
        %6668 = vmatprep.subr.mxu0 0.0
        %6669 = vmatpush1.msra.mxu0 0.0
        %6670 = vmatprep.subr.mxu0 0.0
        %6671 = vmatpush1.msra.mxu0 0.0
        %6672 = vmatprep.subr.mxu0 0.0
        %6673 = vmatpush1.msra.mxu0 0.0
        %6674 = vmatprep.subr.mxu0 0.0
        %6675 = vmatpush1.msra.mxu0 0.0
        %6676 = vmatprep.subr.mxu0 0.0
        %6677 = vmatpush1.msra.mxu0 0.0
        %6678 = vmatprep.subr.mxu0 0.0
        %6679 = vmatpush1.msra.mxu0 0.0
        %6680 = vmatprep.mubr.f32.mxu0 0.0
        %6681 = vmatmul.mubr.f32.gmra.mrb[0].mxu0 %v4573
        %v6682 = vpop.f32.mrb[0].mxu0
        %v6683 = vadd.f32 %v6614, %v6682
        %v6684 = vpop.f32.mrb[0].mxu0
        %6685 = vdwg.mxu0
        %s6686 = scalar_lea.vmem [#allocation28], 32
        %v6687 = vld [vmem:[%s6686] sm:$0xff]
        %v6688 = vld [vmem:[%s6686 + $0x8] sm:$0xff]
        %v6689 = vld [vmem:[%s6686 + $0x10] sm:$0xff]
        %v6690 = vld [vmem:[%s6686 + $0x18] sm:$0xff]
        %s6691 = scalar_lea.vmem [#allocation29], 1
        %v6692 = vld [vmem:[%s6691] sm:$0x1]
        %v6694 = vsel %vm1521, %v6600, 0
        %v6697 = vsel %vm1521, %v6683, 0
        %6699 = vmatprep.subr.mxu0 0.0
        %6700 = vmatpush1.xpose.msra.mxu0 %v6697
        %6701 = vmatprep.subr.mxu0 0.0
        %6702 = vmatpush1.xpose.msra.mxu0 0.0
        %6703 = vmatprep.subr.mxu0 0.0
        %6704 = vmatpush1.xpose.msra.mxu0 0.0
        %6705 = vmatprep.subr.mxu0 0.0
        %6706 = vmatpush1.xpose.msra.mxu0 0.0
        %6707 = vmatprep.subr.mxu0 0.0
        %6708 = vmatpush1.xpose.msra.mxu0 0.0
        %6709 = vmatprep.subr.mxu0 0.0
        %6710 = vmatpush1.xpose.msra.mxu0 0.0
        %6711 = vmatprep.subr.mxu0 0.0
        %6712 = vmatpush1.xpose.msra.mxu0 0.0
        %6713 = vmatprep.subr.mxu0 0.0
        %6714 = vmatpush1.xpose.msra.mxu0 0.0
        %6715 = vmatprep.subr.mxu0 0.0
        %6716 = vmatpush1.xpose.msra.mxu0 0.0
        %6717 = vmatprep.subr.mxu0 0.0
        %6718 = vmatpush1.xpose.msra.mxu0 0.0
        %6719 = vmatprep.subr.mxu0 0.0
        %6720 = vmatpush1.xpose.msra.mxu0 0.0
        %6721 = vmatprep.subr.mxu0 0.0
        %6722 = vmatpush1.xpose.msra.mxu0 0.0
        %6723 = vmatprep.subr.mxu0 0.0
        %6724 = vmatpush1.xpose.msra.mxu0 0.0
        %6725 = vmatprep.subr.mxu0 0.0
        %6726 = vmatpush1.xpose.msra.mxu0 0.0
        %6727 = vmatprep.subr.mxu0 0.0
        %6728 = vmatpush1.xpose.msra.mxu0 0.0
        %6729 = vmatprep.subr.mxu0 0.0
        %6730 = vmatpush1.xpose.msra.mxu0 0.0
        %6731 = vmatprep.subr.mxu0 0.0
        %6732 = vmatpush1.xpose.msra.mxu0 0.0
        %6733 = vmatprep.subr.mxu0 0.0
        %6734 = vmatpush1.xpose.msra.mxu0 0.0
        %6735 = vmatprep.subr.mxu0 0.0
        %6736 = vmatpush1.xpose.msra.mxu0 0.0
        %6737 = vmatprep.subr.mxu0 0.0
        %6738 = vmatpush1.xpose.msra.mxu0 0.0
        %6739 = vmatprep.subr.mxu0 0.0
        %6740 = vmatpush1.xpose.msra.mxu0 0.0
        %6741 = vmatprep.subr.mxu0 0.0
        %6742 = vmatpush1.xpose.msra.mxu0 0.0
        %6743 = vmatprep.subr.mxu0 0.0
        %6744 = vmatpush1.xpose.msra.mxu0 0.0
        %6745 = vmatprep.subr.mxu0 0.0
        %6746 = vmatpush1.xpose.msra.mxu0 0.0
        %6747 = vmatprep.subr.mxu0 0.0
        %6748 = vmatpush1.xpose.msra.mxu0 0.0
        %6749 = vmatprep.subr.mxu0 0.0
        %6750 = vmatpush1.xpose.msra.mxu0 0.0
        %6751 = vmatprep.subr.mxu0 0.0
        %6752 = vmatpush1.xpose.msra.mxu0 0.0
        %6753 = vmatprep.subr.mxu0 0.0
        %6754 = vmatpush1.xpose.msra.mxu0 0.0
        %6755 = vmatprep.subr.mxu0 0.0
        %6756 = vmatpush1.xpose.msra.mxu0 0.0
        %6757 = vmatprep.subr.mxu0 0.0
        %6758 = vmatpush1.xpose.msra.mxu0 0.0
        %6759 = vmatprep.subr.mxu0 0.0
        %6760 = vmatpush1.xpose.msra.mxu0 0.0
        %6761 = vmatprep.subr.mxu0 0.0
        %6762 = vmatpush1.xpose.msra.mxu0 0.0
        %6763 = vmatprep.mubr.f32.mxu0 0.0
        %6764 = vmatmul.mubr.f32.gmra.mrb[0].mxu0 %v6694
        %v6765 = vpop.f32.mrb[0].mxu0
        %v6766 = vadd.f32 0.0, %v6765
        %v6767 = vpop.f32.mrb[0].mxu0
        %6768 = vdwg.mxu0
        %v6769 = vsel %vm1521, %v6766, -inf
        %6770 = vmax.xlane.f32.xlu0 %v6769
        %v6771 = vpop.xlane.xlu0 %6770
        %v6772 = vsub.f32 %v6766, %v6771
        %v6773 = vmul.f32 %v6772, 1.442695
        %v6774 = vpow.pop %v6773
        %v6775 = vsel %vm1521, %v6774, 0.0
        %6776 = vadd.xlane.f32.xlu0 %v6775
        %v6777 = vpop.xlane.xlu0 %6776
        %v6778 = vrcp.pop %v6777
        %v6779 = vmul.f32 %v6774, %v6778
        %6780 = vrot.lane.b32.xlu0 %v6683, 96
        %v6781 = vpop.permute.xlu0 %6780
        %v6784 = vsel %vm1521, %v6779, 0
        %6786 = vmatprep.subr.mxu0 0.0
        %6787 = vmatpush1.msra.mxu0 %v6781
        %6788 = vmatprep.subr.mxu0 0.0
        %6789 = vmatpush1.msra.mxu0 0.0
        %6790 = vmatprep.subr.mxu0 0.0
        %6791 = vmatpush1.msra.mxu0 0.0
        %6792 = vmatprep.subr.mxu0 0.0
        %6793 = vmatpush1.msra.mxu0 0.0
        %6794 = vmatprep.subr.mxu0 0.0
        %6795 = vmatpush1.msra.mxu0 0.0
        %6796 = vmatprep.subr.mxu0 0.0
        %6797 = vmatpush1.msra.mxu0 0.0
        %6798 = vmatprep.subr.mxu0 0.0
        %6799 = vmatpush1.msra.mxu0 0.0
        %6800 = vmatprep.subr.mxu0 0.0
        %6801 = vmatpush1.msra.mxu0 0.0
        %6802 = vmatprep.subr.mxu0 0.0
        %6803 = vmatpush1.msra.mxu0 0.0
        %6804 = vmatprep.subr.mxu0 0.0
        %6805 = vmatpush1.msra.mxu0 0.0
        %6806 = vmatprep.subr.mxu0 0.0
        %6807 = vmatpush1.msra.mxu0 0.0
        %6808 = vmatprep.subr.mxu0 0.0
        %6809 = vmatpush1.msra.mxu0 0.0
        %6810 = vmatprep.subr.mxu0 0.0
        %6811 = vmatpush1.msra.mxu0 0.0
        %6812 = vmatprep.subr.mxu0 0.0
        %6813 = vmatpush1.msra.mxu0 0.0
        %6814 = vmatprep.subr.mxu0 0.0
        %6815 = vmatpush1.msra.mxu0 0.0
        %6816 = vmatprep.subr.mxu0 0.0
        %6817 = vmatpush1.msra.mxu0 0.0
        %6818 = vmatprep.subr.mxu0 0.0
        %6819 = vmatpush1.msra.mxu0 0.0
        %6820 = vmatprep.subr.mxu0 0.0
        %6821 = vmatpush1.msra.mxu0 0.0
        %6822 = vmatprep.subr.mxu0 0.0
        %6823 = vmatpush1.msra.mxu0 0.0
        %6824 = vmatprep.subr.mxu0 0.0
        %6825 = vmatpush1.msra.mxu0 0.0
        %6826 = vmatprep.subr.mxu0 0.0
        %6827 = vmatpush1.msra.mxu0 0.0
        %6828 = vmatprep.subr.mxu0 0.0
        %6829 = vmatpush1.msra.mxu0 0.0
        %6830 = vmatprep.subr.mxu0 0.0
        %6831 = vmatpush1.msra.mxu0 0.0
        %6832 = vmatprep.subr.mxu0 0.0
        %6833 = vmatpush1.msra.mxu0 0.0
        %6834 = vmatprep.subr.mxu0 0.0
        %6835 = vmatpush1.msra.mxu0 0.0
        %6836 = vmatprep.subr.mxu0 0.0
        %6837 = vmatpush1.msra.mxu0 0.0
        %6838 = vmatprep.subr.mxu0 0.0
        %6839 = vmatpush1.msra.mxu0 0.0
        %6840 = vmatprep.subr.mxu0 0.0
        %6841 = vmatpush1.msra.mxu0 0.0
        %6842 = vmatprep.subr.mxu0 0.0
        %6843 = vmatpush1.msra.mxu0 0.0
        %6844 = vmatprep.subr.mxu0 0.0
        %6845 = vmatpush1.msra.mxu0 0.0
        %6846 = vmatprep.subr.mxu0 0.0
        %6847 = vmatpush1.msra.mxu0 0.0
        %6848 = vmatprep.subr.mxu0 0.0
        %6849 = vmatpush1.msra.mxu0 0.0
        %6850 = vmatprep.mubr.f32.mxu0 0.0
        %6851 = vmatmul.mubr.f32.gmra.mrb[0].mxu0 %v6784
        %v6852 = vpop.f32.mrb[0].mxu0
        %v6853 = vadd.f32 0.0, %v6852
        %v6854 = vpop.f32.mrb[0].mxu0
        %6855 = vdwg.mxu0
        %6856 = vrot.lane.b32.xlu0 %v6600, 120
        %v6857 = vpop.permute.xlu0 %6856
        %6858 = vrot.lane.b32.xlu0 %v6683, 120
        %v6859 = vpop.permute.xlu0 %6858
        %v6860 = vsel %vm1521, %v6857, 0
        %v6862 = vsel %vm1521, %v6859, 0
        %6864 = vmatprep.subr.mxu0 0.0
        %6865 = vmatpush1.xpose.msra.mxu0 %v6862
        %6866 = vmatprep.subr.mxu0 0.0
        %6867 = vmatpush1.xpose.msra.mxu0 0.0
        %6868 = vmatprep.subr.mxu0 0.0
        %6869 = vmatpush1.xpose.msra.mxu0 0.0
        %6870 = vmatprep.subr.mxu0 0.0
        %6871 = vmatpush1.xpose.msra.mxu0 0.0
        %6872 = vmatprep.subr.mxu0 0.0
        %6873 = vmatpush1.xpose.msra.mxu0 0.0
        %6874 = vmatprep.subr.mxu0 0.0
        %6875 = vmatpush1.xpose.msra.mxu0 0.0
        %6876 = vmatprep.subr.mxu0 0.0
        %6877 = vmatpush1.xpose.msra.mxu0 0.0
        %6878 = vmatprep.subr.mxu0 0.0
        %6879 = vmatpush1.xpose.msra.mxu0 0.0
        %6880 = vmatprep.subr.mxu0 0.0
        %6881 = vmatpush1.xpose.msra.mxu0 0.0
        %6882 = vmatprep.subr.mxu0 0.0
        %6883 = vmatpush1.xpose.msra.mxu0 0.0
        %6884 = vmatprep.subr.mxu0 0.0
        %6885 = vmatpush1.xpose.msra.mxu0 0.0
        %6886 = vmatprep.subr.mxu0 0.0
        %6887 = vmatpush1.xpose.msra.mxu0 0.0
        %6888 = vmatprep.subr.mxu0 0.0
        %6889 = vmatpush1.xpose.msra.mxu0 0.0
        %6890 = vmatprep.subr.mxu0 0.0
        %6891 = vmatpush1.xpose.msra.mxu0 0.0
        %6892 = vmatprep.subr.mxu0 0.0
        %6893 = vmatpush1.xpose.msra.mxu0 0.0
        %6894 = vmatprep.subr.mxu0 0.0
        %6895 = vmatpush1.xpose.msra.mxu0 0.0
        %6896 = vmatprep.subr.mxu0 0.0
        %6897 = vmatpush1.xpose.msra.mxu0 0.0
        %6898 = vmatprep.subr.mxu0 0.0
        %6899 = vmatpush1.xpose.msra.mxu0 0.0
        %6900 = vmatprep.subr.mxu0 0.0
        %6901 = vmatpush1.xpose.msra.mxu0 0.0
        %6902 = vmatprep.subr.mxu0 0.0
        %6903 = vmatpush1.xpose.msra.mxu0 0.0
        %6904 = vmatprep.subr.mxu0 0.0
        %6905 = vmatpush1.xpose.msra.mxu0 0.0
        %6906 = vmatprep.subr.mxu0 0.0
        %6907 = vmatpush1.xpose.msra.mxu0 0.0
        %6908 = vmatprep.subr.mxu0 0.0
        %6909 = vmatpush1.xpose.msra.mxu0 0.0
        %6910 = vmatprep.subr.mxu0 0.0
        %6911 = vmatpush1.xpose.msra.mxu0 0.0
        %6912 = vmatprep.subr.mxu0 0.0
        %6913 = vmatpush1.xpose.msra.mxu0 0.0
        %6914 = vmatprep.subr.mxu0 0.0
        %6915 = vmatpush1.xpose.msra.mxu0 0.0
        %6916 = vmatprep.subr.mxu0 0.0
        %6917 = vmatpush1.xpose.msra.mxu0 0.0
        %6918 = vmatprep.subr.mxu0 0.0
        %6919 = vmatpush1.xpose.msra.mxu0 0.0
        %6920 = vmatprep.subr.mxu0 0.0
        %6921 = vmatpush1.xpose.msra.mxu0 0.0
        %6922 = vmatprep.subr.mxu0 0.0
        %6923 = vmatpush1.xpose.msra.mxu0 0.0
        %6924 = vmatprep.subr.mxu0 0.0
        %6925 = vmatpush1.xpose.msra.mxu0 0.0
        %6926 = vmatprep.subr.mxu0 0.0
        %6927 = vmatpush1.xpose.msra.mxu0 0.0
        %6928 = vmatprep.mubr.f32.mxu0 0.0
        %6929 = vmatmul.mubr.f32.gmra.mrb[0].mxu0 %v6860
        %v6930 = vpop.f32.mrb[0].mxu0
        %v6931 = vadd.f32 0.0, %v6930
        %v6932 = vpop.f32.mrb[0].mxu0
        %6933 = vdwg.mxu0
        %v6934 = vsel %vm1521, %v6931, -inf
        %6935 = vmax.xlane.f32.xlu0 %v6934
        %v6936 = vpop.xlane.xlu0 %6935
        %v6937 = vsub.f32 %v6931, %v6936
        %v6938 = vmul.f32 %v6937, 1.442695
        %v6939 = vpow.pop %v6938
        %v6940 = vsel %vm1521, %v6939, 0.0
        %6941 = vadd.xlane.f32.xlu0 %v6940
        %v6942 = vpop.xlane.xlu0 %6941
        %v6943 = vrcp.pop %v6942
        %v6944 = vmul.f32 %v6939, %v6943
        %6945 = vrot.lane.b32.xlu0 %v6683, 88
        %v6946 = vpop.permute.xlu0 %6945
        %v6949 = vsel %vm1521, %v6944, 0
        %6951 = vmatprep.subr.mxu0 0.0
        %6952 = vmatpush1.msra.mxu0 %v6946
        %6953 = vmatprep.subr.mxu0 0.0
        %6954 = vmatpush1.msra.mxu0 0.0
        %6955 = vmatprep.subr.mxu0 0.0
        %6956 = vmatpush1.msra.mxu0 0.0
        %6957 = vmatprep.subr.mxu0 0.0
        %6958 = vmatpush1.msra.mxu0 0.0
        %6959 = vmatprep.subr.mxu0 0.0
        %6960 = vmatpush1.msra.mxu0 0.0
        %6961 = vmatprep.subr.mxu0 0.0
        %6962 = vmatpush1.msra.mxu0 0.0
        %6963 = vmatprep.subr.mxu0 0.0
        %6964 = vmatpush1.msra.mxu0 0.0
        %6965 = vmatprep.subr.mxu0 0.0
        %6966 = vmatpush1.msra.mxu0 0.0
        %6967 = vmatprep.subr.mxu0 0.0
        %6968 = vmatpush1.msra.mxu0 0.0
        %6969 = vmatprep.subr.mxu0 0.0
        %6970 = vmatpush1.msra.mxu0 0.0
        %6971 = vmatprep.subr.mxu0 0.0
        %6972 = vmatpush1.msra.mxu0 0.0
        %6973 = vmatprep.subr.mxu0 0.0
        %6974 = vmatpush1.msra.mxu0 0.0
        %6975 = vmatprep.subr.mxu0 0.0
        %6976 = vmatpush1.msra.mxu0 0.0
        %6977 = vmatprep.subr.mxu0 0.0
        %6978 = vmatpush1.msra.mxu0 0.0
        %6979 = vmatprep.subr.mxu0 0.0
        %6980 = vmatpush1.msra.mxu0 0.0
        %6981 = vmatprep.subr.mxu0 0.0
        %6982 = vmatpush1.msra.mxu0 0.0
        %6983 = vmatprep.subr.mxu0 0.0
        %6984 = vmatpush1.msra.mxu0 0.0
        %6985 = vmatprep.subr.mxu0 0.0
        %6986 = vmatpush1.msra.mxu0 0.0
        %6987 = vmatprep.subr.mxu0 0.0
        %6988 = vmatpush1.msra.mxu0 0.0
        %6989 = vmatprep.subr.mxu0 0.0
        %6990 = vmatpush1.msra.mxu0 0.0
        %6991 = vmatprep.subr.mxu0 0.0
        %6992 = vmatpush1.msra.mxu0 0.0
        %6993 = vmatprep.subr.mxu0 0.0
        %6994 = vmatpush1.msra.mxu0 0.0
        %6995 = vmatprep.subr.mxu0 0.0
        %6996 = vmatpush1.msra.mxu0 0.0
        %6997 = vmatprep.subr.mxu0 0.0
        %6998 = vmatpush1.msra.mxu0 0.0
        %6999 = vmatprep.subr.mxu0 0.0
        %7000 = vmatpush1.msra.mxu0 0.0
        %7001 = vmatprep.subr.mxu0 0.0
        %7002 = vmatpush1.msra.mxu0 0.0
        %7003 = vmatprep.subr.mxu0 0.0
        %7004 = vmatpush1.msra.mxu0 0.0
        %7005 = vmatprep.subr.mxu0 0.0
        %7006 = vmatpush1.msra.mxu0 0.0
        %7007 = vmatprep.subr.mxu0 0.0
        %7008 = vmatpush1.msra.mxu0 0.0
        %7009 = vmatprep.subr.mxu0 0.0
        %7010 = vmatpush1.msra.mxu0 0.0
        %7011 = vmatprep.subr.mxu0 0.0
        %7012 = vmatpush1.msra.mxu0 0.0
        %7013 = vmatprep.subr.mxu0 0.0
        %7014 = vmatpush1.msra.mxu0 0.0
        %7015 = vmatprep.mubr.f32.mxu0 0.0
        %7016 = vmatmul.mubr.f32.gmra.mrb[0].mxu0 %v6949
        %v7017 = vpop.f32.mrb[0].mxu0
        %v7018 = vadd.f32 0.0, %v7017
        %v7019 = vpop.f32.mrb[0].mxu0
        %7020 = vdwg.mxu0
        %7021 = vrot.lane.b32.xlu0 %v6600, 112
        %v7022 = vpop.permute.xlu0 %7021
        %7023 = vrot.lane.b32.xlu0 %v6683, 112
        %v7024 = vpop.permute.xlu0 %7023
        %v7025 = vsel %vm1521, %v7022, 0
        %v7027 = vsel %vm1521, %v7024, 0
        %7029 = vmatprep.subr.mxu0 0.0
        %7030 = vmatpush1.xpose.msra.mxu0 %v7027
        %7031 = vmatprep.subr.mxu0 0.0
        %7032 = vmatpush1.xpose.msra.mxu0 0.0
        %7033 = vmatprep.subr.mxu0 0.0
        %7034 = vmatpush1.xpose.msra.mxu0 0.0
        %7035 = vmatprep.subr.mxu0 0.0
        %7036 = vmatpush1.xpose.msra.mxu0 0.0
        %7037 = vmatprep.subr.mxu0 0.0
        %7038 = vmatpush1.xpose.msra.mxu0 0.0
        %7039 = vmatprep.subr.mxu0 0.0
        %7040 = vmatpush1.xpose.msra.mxu0 0.0
        %7041 = vmatprep.subr.mxu0 0.0
        %7042 = vmatpush1.xpose.msra.mxu0 0.0
        %7043 = vmatprep.subr.mxu0 0.0
        %7044 = vmatpush1.xpose.msra.mxu0 0.0
        %7045 = vmatprep.subr.mxu0 0.0
        %7046 = vmatpush1.xpose.msra.mxu0 0.0
        %7047 = vmatprep.subr.mxu0 0.0
        %7048 = vmatpush1.xpose.msra.mxu0 0.0
        %7049 = vmatprep.subr.mxu0 0.0
        %7050 = vmatpush1.xpose.msra.mxu0 0.0
        %7051 = vmatprep.subr.mxu0 0.0
        %7052 = vmatpush1.xpose.msra.mxu0 0.0
        %7053 = vmatprep.subr.mxu0 0.0
        %7054 = vmatpush1.xpose.msra.mxu0 0.0
        %7055 = vmatprep.subr.mxu0 0.0
        %7056 = vmatpush1.xpose.msra.mxu0 0.0
        %7057 = vmatprep.subr.mxu0 0.0
        %7058 = vmatpush1.xpose.msra.mxu0 0.0
        %7059 = vmatprep.subr.mxu0 0.0
        %7060 = vmatpush1.xpose.msra.mxu0 0.0
        %7061 = vmatprep.subr.mxu0 0.0
        %7062 = vmatpush1.xpose.msra.mxu0 0.0
        %7063 = vmatprep.subr.mxu0 0.0
        %7064 = vmatpush1.xpose.msra.mxu0 0.0
        %7065 = vmatprep.subr.mxu0 0.0
        %7066 = vmatpush1.xpose.msra.mxu0 0.0
        %7067 = vmatprep.subr.mxu0 0.0
        %7068 = vmatpush1.xpose.msra.mxu0 0.0
        %7069 = vmatprep.subr.mxu0 0.0
        %7070 = vmatpush1.xpose.msra.mxu0 0.0
        %7071 = vmatprep.subr.mxu0 0.0
        %7072 = vmatpush1.xpose.msra.mxu0 0.0
        %7073 = vmatprep.subr.mxu0 0.0
        %7074 = vmatpush1.xpose.msra.mxu0 0.0
        %7075 = vmatprep.subr.mxu0 0.0
        %7076 = vmatpush1.xpose.msra.mxu0 0.0
        %7077 = vmatprep.subr.mxu0 0.0
        %7078 = vmatpush1.xpose.msra.mxu0 0.0
        %7079 = vmatprep.subr.mxu0 0.0
        %7080 = vmatpush1.xpose.msra.mxu0 0.0
        %7081 = vmatprep.subr.mxu0 0.0
        %7082 = vmatpush1.xpose.msra.mxu0 0.0
        %7083 = vmatprep.subr.mxu0 0.0
        %7084 = vmatpush1.xpose.msra.mxu0 0.0
        %7085 = vmatprep.subr.mxu0 0.0
        %7086 = vmatpush1.xpose.msra.mxu0 0.0
        %7087 = vmatprep.subr.mxu0 0.0
        %7088 = vmatpush1.xpose.msra.mxu0 0.0
        %7089 = vmatprep.subr.mxu0 0.0
        %7090 = vmatpush1.xpose.msra.mxu0 0.0
        %7091 = vmatprep.subr.mxu0 0.0
        %7092 = vmatpush1.xpose.msra.mxu0 0.0
        %7093 = vmatprep.mubr.f32.mxu0 0.0
        %7094 = vmatmul.mubr.f32.gmra.mrb[0].mxu0 %v7025
        %v7095 = vpop.f32.mrb[0].mxu0
        %v7096 = vadd.f32 0.0, %v7095
        %v7097 = vpop.f32.mrb[0].mxu0
        %7098 = vdwg.mxu0
        %v7099 = vsel %vm1521, %v7096, -inf
        %7100 = vmax.xlane.f32.xlu0 %v7099
        %v7101 = vpop.xlane.xlu0 %7100
        %v7102 = vsub.f32 %v7096, %v7101
        %v7103 = vmul.f32 %v7102, 1.442695
        %v7104 = vpow.pop %v7103
        %v7105 = vsel %vm1521, %v7104, 0.0
        %7106 = vadd.xlane.f32.xlu0 %v7105
        %v7107 = vpop.xlane.xlu0 %7106
        %v7108 = vrcp.pop %v7107
        %v7109 = vmul.f32 %v7104, %v7108
        %7110 = vrot.lane.b32.xlu0 %v6683, 80
        %v7111 = vpop.permute.xlu0 %7110
        %v7114 = vsel %vm1521, %v7109, 0
        %7116 = vmatprep.subr.mxu0 0.0
        %7117 = vmatpush1.msra.mxu0 %v7111
        %7118 = vmatprep.subr.mxu0 0.0
        %7119 = vmatpush1.msra.mxu0 0.0
        %7120 = vmatprep.subr.mxu0 0.0
        %7121 = vmatpush1.msra.mxu0 0.0
        %7122 = vmatprep.subr.mxu0 0.0
        %7123 = vmatpush1.msra.mxu0 0.0
        %7124 = vmatprep.subr.mxu0 0.0
        %7125 = vmatpush1.msra.mxu0 0.0
        %7126 = vmatprep.subr.mxu0 0.0
        %7127 = vmatpush1.msra.mxu0 0.0
        %7128 = vmatprep.subr.mxu0 0.0
        %7129 = vmatpush1.msra.mxu0 0.0
        %7130 = vmatprep.subr.mxu0 0.0
        %7131 = vmatpush1.msra.mxu0 0.0
        %7132 = vmatprep.subr.mxu0 0.0
        %7133 = vmatpush1.msra.mxu0 0.0
        %7134 = vmatprep.subr.mxu0 0.0
        %7135 = vmatpush1.msra.mxu0 0.0
        %7136 = vmatprep.subr.mxu0 0.0
        %7137 = vmatpush1.msra.mxu0 0.0
        %7138 = vmatprep.subr.mxu0 0.0
        %7139 = vmatpush1.msra.mxu0 0.0
        %7140 = vmatprep.subr.mxu0 0.0
        %7141 = vmatpush1.msra.mxu0 0.0
        %7142 = vmatprep.subr.mxu0 0.0
        %7143 = vmatpush1.msra.mxu0 0.0
        %7144 = vmatprep.subr.mxu0 0.0
        %7145 = vmatpush1.msra.mxu0 0.0
        %7146 = vmatprep.subr.mxu0 0.0
        %7147 = vmatpush1.msra.mxu0 0.0
        %7148 = vmatprep.subr.mxu0 0.0
        %7149 = vmatpush1.msra.mxu0 0.0
        %7150 = vmatprep.subr.mxu0 0.0
        %7151 = vmatpush1.msra.mxu0 0.0
        %7152 = vmatprep.subr.mxu0 0.0
        %7153 = vmatpush1.msra.mxu0 0.0
        %7154 = vmatprep.subr.mxu0 0.0
        %7155 = vmatpush1.msra.mxu0 0.0
        %7156 = vmatprep.subr.mxu0 0.0
        %7157 = vmatpush1.msra.mxu0 0.0
        %7158 = vmatprep.subr.mxu0 0.0
        %7159 = vmatpush1.msra.mxu0 0.0
        %7160 = vmatprep.subr.mxu0 0.0
        %7161 = vmatpush1.msra.mxu0 0.0
        %7162 = vmatprep.subr.mxu0 0.0
        %7163 = vmatpush1.msra.mxu0 0.0
        %7164 = vmatprep.subr.mxu0 0.0
        %7165 = vmatpush1.msra.mxu0 0.0
        %7166 = vmatprep.subr.mxu0 0.0
        %7167 = vmatpush1.msra.mxu0 0.0
        %7168 = vmatprep.subr.mxu0 0.0
        %7169 = vmatpush1.msra.mxu0 0.0
        %7170 = vmatprep.subr.mxu0 0.0
        %7171 = vmatpush1.msra.mxu0 0.0
        %7172 = vmatprep.subr.mxu0 0.0
        %7173 = vmatpush1.msra.mxu0 0.0
        %7174 = vmatprep.subr.mxu0 0.0
        %7175 = vmatpush1.msra.mxu0 0.0
        %7176 = vmatprep.subr.mxu0 0.0
        %7177 = vmatpush1.msra.mxu0 0.0
        %7178 = vmatprep.subr.mxu0 0.0
        %7179 = vmatpush1.msra.mxu0 0.0
        %7180 = vmatprep.mubr.f32.mxu0 0.0
        %7181 = vmatmul.mubr.f32.gmra.mrb[0].mxu0 %v7114
        %v7182 = vpop.f32.mrb[0].mxu0
        %v7183 = vadd.f32 0.0, %v7182
        %v7184 = vpop.f32.mrb[0].mxu0
        %7185 = vdwg.mxu0
        %7186 = vrot.lane.b32.xlu0 %v6600, 104
        %v7187 = vpop.permute.xlu0 %7186
        %7188 = vrot.lane.b32.xlu0 %v6683, 104
        %v7189 = vpop.permute.xlu0 %7188
        %v7190 = vsel %vm1521, %v7187, 0
        %v7192 = vsel %vm1521, %v7189, 0
        %7194 = vmatprep.subr.mxu0 0.0
        %7195 = vmatpush1.xpose.msra.mxu0 %v7192
        %7196 = vmatprep.subr.mxu0 0.0
        %7197 = vmatpush1.xpose.msra.mxu0 0.0
        %7198 = vmatprep.subr.mxu0 0.0
        %7199 = vmatpush1.xpose.msra.mxu0 0.0
        %7200 = vmatprep.subr.mxu0 0.0
        %7201 = vmatpush1.xpose.msra.mxu0 0.0
        %7202 = vmatprep.subr.mxu0 0.0
        %7203 = vmatpush1.xpose.msra.mxu0 0.0
        %7204 = vmatprep.subr.mxu0 0.0
        %7205 = vmatpush1.xpose.msra.mxu0 0.0
        %7206 = vmatprep.subr.mxu0 0.0
        %7207 = vmatpush1.xpose.msra.mxu0 0.0
        %7208 = vmatprep.subr.mxu0 0.0
        %7209 = vmatpush1.xpose.msra.mxu0 0.0
        %7210 = vmatprep.subr.mxu0 0.0
        %7211 = vmatpush1.xpose.msra.mxu0 0.0
        %7212 = vmatprep.subr.mxu0 0.0
        %7213 = vmatpush1.xpose.msra.mxu0 0.0
        %7214 = vmatprep.subr.mxu0 0.0
        %7215 = vmatpush1.xpose.msra.mxu0 0.0
        %7216 = vmatprep.subr.mxu0 0.0
        %7217 = vmatpush1.xpose.msra.mxu0 0.0
        %7218 = vmatprep.subr.mxu0 0.0
        %7219 = vmatpush1.xpose.msra.mxu0 0.0
        %7220 = vmatprep.subr.mxu0 0.0
        %7221 = vmatpush1.xpose.msra.mxu0 0.0
        %7222 = vmatprep.subr.mxu0 0.0
        %7223 = vmatpush1.xpose.msra.mxu0 0.0
        %7224 = vmatprep.subr.mxu0 0.0
        %7225 = vmatpush1.xpose.msra.mxu0 0.0
        %7226 = vmatprep.subr.mxu0 0.0
        %7227 = vmatpush1.xpose.msra.mxu0 0.0
        %7228 = vmatprep.subr.mxu0 0.0
        %7229 = vmatpush1.xpose.msra.mxu0 0.0
        %7230 = vmatprep.subr.mxu0 0.0
        %7231 = vmatpush1.xpose.msra.mxu0 0.0
        %7232 = vmatprep.subr.mxu0 0.0
        %7233 = vmatpush1.xpose.msra.mxu0 0.0
        %7234 = vmatprep.subr.mxu0 0.0
        %7235 = vmatpush1.xpose.msra.mxu0 0.0
        %7236 = vmatprep.subr.mxu0 0.0
        %7237 = vmatpush1.xpose.msra.mxu0 0.0
        %7238 = vmatprep.subr.mxu0 0.0
        %7239 = vmatpush1.xpose.msra.mxu0 0.0
        %7240 = vmatprep.subr.mxu0 0.0
        %7241 = vmatpush1.xpose.msra.mxu0 0.0
        %7242 = vmatprep.subr.mxu0 0.0
        %7243 = vmatpush1.xpose.msra.mxu0 0.0
        %7244 = vmatprep.subr.mxu0 0.0
        %7245 = vmatpush1.xpose.msra.mxu0 0.0
        %7246 = vmatprep.subr.mxu0 0.0
        %7247 = vmatpush1.xpose.msra.mxu0 0.0
        %7248 = vmatprep.subr.mxu0 0.0
        %7249 = vmatpush1.xpose.msra.mxu0 0.0
        %7250 = vmatprep.subr.mxu0 0.0
        %7251 = vmatpush1.xpose.msra.mxu0 0.0
        %7252 = vmatprep.subr.mxu0 0.0
        %7253 = vmatpush1.xpose.msra.mxu0 0.0
        %7254 = vmatprep.subr.mxu0 0.0
        %7255 = vmatpush1.xpose.msra.mxu0 0.0
        %7256 = vmatprep.subr.mxu0 0.0
        %7257 = vmatpush1.xpose.msra.mxu0 0.0
        %7258 = vmatprep.mubr.f32.mxu0 0.0
        %7259 = vmatmul.mubr.f32.gmra.mrb[0].mxu0 %v7190
        %v7260 = vpop.f32.mrb[0].mxu0
        %v7261 = vadd.f32 0.0, %v7260
        %v7262 = vpop.f32.mrb[0].mxu0
        %7263 = vdwg.mxu0
        %v7264 = vsel %vm1521, %v7261, -inf
        %7265 = vmax.xlane.f32.xlu0 %v7264
        %v7266 = vpop.xlane.xlu0 %7265
        %v7267 = vsub.f32 %v7261, %v7266
        %v7268 = vmul.f32 %v7267, 1.442695
        %v7269 = vpow.pop %v7268
        %v7270 = vsel %vm1521, %v7269, 0.0
        %7271 = vadd.xlane.f32.xlu0 %v7270
        %v7272 = vpop.xlane.xlu0 %7271
        %v7273 = vrcp.pop %v7272
        %v7274 = vmul.f32 %v7269, %v7273
        %7275 = vrot.lane.b32.xlu0 %v6683, 72
        %v7276 = vpop.permute.xlu0 %7275
        %v7279 = vsel %vm1521, %v7274, 0
        %7281 = vmatprep.subr.mxu0 0.0
        %7282 = vmatpush1.msra.mxu0 %v7276
        %7283 = vmatprep.subr.mxu0 0.0
        %7284 = vmatpush1.msra.mxu0 0.0
        %7285 = vmatprep.subr.mxu0 0.0
        %7286 = vmatpush1.msra.mxu0 0.0
        %7287 = vmatprep.subr.mxu0 0.0
        %7288 = vmatpush1.msra.mxu0 0.0
        %7289 = vmatprep.subr.mxu0 0.0
        %7290 = vmatpush1.msra.mxu0 0.0
        %7291 = vmatprep.subr.mxu0 0.0
        %7292 = vmatpush1.msra.mxu0 0.0
        %7293 = vmatprep.subr.mxu0 0.0
        %7294 = vmatpush1.msra.mxu0 0.0
        %7295 = vmatprep.subr.mxu0 0.0
        %7296 = vmatpush1.msra.mxu0 0.0
        %7297 = vmatprep.subr.mxu0 0.0
        %7298 = vmatpush1.msra.mxu0 0.0
        %7299 = vmatprep.subr.mxu0 0.0
        %7300 = vmatpush1.msra.mxu0 0.0
        %7301 = vmatprep.subr.mxu0 0.0
        %7302 = vmatpush1.msra.mxu0 0.0
        %7303 = vmatprep.subr.mxu0 0.0
        %7304 = vmatpush1.msra.mxu0 0.0
        %7305 = vmatprep.subr.mxu0 0.0
        %7306 = vmatpush1.msra.mxu0 0.0
        %7307 = vmatprep.subr.mxu0 0.0
        %7308 = vmatpush1.msra.mxu0 0.0
        %7309 = vmatprep.subr.mxu0 0.0
        %7310 = vmatpush1.msra.mxu0 0.0
        %7311 = vmatprep.subr.mxu0 0.0
        %7312 = vmatpush1.msra.mxu0 0.0
        %7313 = vmatprep.subr.mxu0 0.0
        %7314 = vmatpush1.msra.mxu0 0.0
        %7315 = vmatprep.subr.mxu0 0.0
        %7316 = vmatpush1.msra.mxu0 0.0
        %7317 = vmatprep.subr.mxu0 0.0
        %7318 = vmatpush1.msra.mxu0 0.0
        %7319 = vmatprep.subr.mxu0 0.0
        %7320 = vmatpush1.msra.mxu0 0.0
        %7321 = vmatprep.subr.mxu0 0.0
        %7322 = vmatpush1.msra.mxu0 0.0
        %7323 = vmatprep.subr.mxu0 0.0
        %7324 = vmatpush1.msra.mxu0 0.0
        %7325 = vmatprep.subr.mxu0 0.0
        %7326 = vmatpush1.msra.mxu0 0.0
        %7327 = vmatprep.subr.mxu0 0.0
        %7328 = vmatpush1.msra.mxu0 0.0
        %7329 = vmatprep.subr.mxu0 0.0
        %7330 = vmatpush1.msra.mxu0 0.0
        %7331 = vmatprep.subr.mxu0 0.0
        %7332 = vmatpush1.msra.mxu0 0.0
        %7333 = vmatprep.subr.mxu0 0.0
        %7334 = vmatpush1.msra.mxu0 0.0
        %7335 = vmatprep.subr.mxu0 0.0
        %7336 = vmatpush1.msra.mxu0 0.0
        %7337 = vmatprep.subr.mxu0 0.0
        %7338 = vmatpush1.msra.mxu0 0.0
        %7339 = vmatprep.subr.mxu0 0.0
        %7340 = vmatpush1.msra.mxu0 0.0
        %7341 = vmatprep.subr.mxu0 0.0
        %7342 = vmatpush1.msra.mxu0 0.0
        %7343 = vmatprep.subr.mxu0 0.0
        %7344 = vmatpush1.msra.mxu0 0.0
        %7345 = vmatprep.mubr.f32.mxu0 0.0
        %7346 = vmatmul.mubr.f32.gmra.mrb[0].mxu0 %v7279
        %v7347 = vpop.f32.mrb[0].mxu0
        %v7348 = vadd.f32 0.0, %v7347
        %v7349 = vpop.f32.mrb[0].mxu0
        %7350 = vdwg.mxu0
        %7352 = vrot.lane.b32.xlu0 %v7018, 8
        %v7353 = vpop.permute.xlu0 %7352
        %7356 = vrot.lane.b32.xlu0 %v7183, 16
        %v7357 = vpop.permute.xlu0 %7356
        %7360 = vrot.lane.b32.xlu0 %v7348, 24
        %v7361 = vpop.permute.xlu0 %7360
        %v7363 = vsel %vm1521, %v6853, %v7353
        %v7364 = vsel %vm2191, %v7363, %v7357
        %v7365 = vsel %vm2193, %v7364, %v7361
        %v7367 = vlaneseq
        %v7368 = vshrl.u32 %v7367, 7
        %v7369 = vsub.s32 0, %v7368
        %v7370 = vrot.slane %v6692, %v7369
        %v7373 = vsel %vm1439, %v7365, 0
        %7375 = vmatprep.subr.mxu0 0.0
        %7376 = vmatpush1.msra.mxu0 %v6687
        %7377 = vmatprep.subr.mxu0 0.0
        %7378 = vmatpush1.msra.mxu0 %v6688
        %7379 = vmatprep.subr.mxu0 0.0
        %7380 = vmatpush1.msra.mxu0 %v6689
        %7381 = vmatprep.subr.mxu0 0.0
        %7382 = vmatpush1.msra.mxu0 %v6690
        %7383 = vmatprep.subr.mxu0 0.0
        %7384 = vmatpush1.msra.mxu0 0.0
        %7385 = vmatprep.subr.mxu0 0.0
        %7386 = vmatpush1.msra.mxu0 0.0
        %7387 = vmatprep.subr.mxu0 0.0
        %7388 = vmatpush1.msra.mxu0 0.0
        %7389 = vmatprep.subr.mxu0 0.0
        %7390 = vmatpush1.msra.mxu0 0.0
        %7391 = vmatprep.subr.mxu0 0.0
        %7392 = vmatpush1.msra.mxu0 0.0
        %7393 = vmatprep.subr.mxu0 0.0
        %7394 = vmatpush1.msra.mxu0 0.0
        %7395 = vmatprep.subr.mxu0 0.0
        %7396 = vmatpush1.msra.mxu0 0.0
        %7397 = vmatprep.subr.mxu0 0.0
        %7398 = vmatpush1.msra.mxu0 0.0
        %7399 = vmatprep.subr.mxu0 0.0
        %7400 = vmatpush1.msra.mxu0 0.0
        %7401 = vmatprep.subr.mxu0 0.0
        %7402 = vmatpush1.msra.mxu0 0.0
        %7403 = vmatprep.subr.mxu0 0.0
        %7404 = vmatpush1.msra.mxu0 0.0
        %7405 = vmatprep.subr.mxu0 0.0
        %7406 = vmatpush1.msra.mxu0 0.0
        %7407 = vmatprep.subr.mxu0 0.0
        %7408 = vmatpush1.msra.mxu0 0.0
        %7409 = vmatprep.subr.mxu0 0.0
        %7410 = vmatpush1.msra.mxu0 0.0
        %7411 = vmatprep.subr.mxu0 0.0
        %7412 = vmatpush1.msra.mxu0 0.0
        %7413 = vmatprep.subr.mxu0 0.0
        %7414 = vmatpush1.msra.mxu0 0.0
        %7415 = vmatprep.subr.mxu0 0.0
        %7416 = vmatpush1.msra.mxu0 0.0
        %7417 = vmatprep.subr.mxu0 0.0
        %7418 = vmatpush1.msra.mxu0 0.0
        %7419 = vmatprep.subr.mxu0 0.0
        %7420 = vmatpush1.msra.mxu0 0.0
        %7421 = vmatprep.subr.mxu0 0.0
        %7422 = vmatpush1.msra.mxu0 0.0
        %7423 = vmatprep.subr.mxu0 0.0
        %7424 = vmatpush1.msra.mxu0 0.0
        %7425 = vmatprep.subr.mxu0 0.0
        %7426 = vmatpush1.msra.mxu0 0.0
        %7427 = vmatprep.subr.mxu0 0.0
        %7428 = vmatpush1.msra.mxu0 0.0
        %7429 = vmatprep.subr.mxu0 0.0
        %7430 = vmatpush1.msra.mxu0 0.0
        %7431 = vmatprep.subr.mxu0 0.0
        %7432 = vmatpush1.msra.mxu0 0.0
        %7433 = vmatprep.subr.mxu0 0.0
        %7434 = vmatpush1.msra.mxu0 0.0
        %7435 = vmatprep.subr.mxu0 0.0
        %7436 = vmatpush1.msra.mxu0 0.0
        %7437 = vmatprep.subr.mxu0 0.0
        %7438 = vmatpush1.msra.mxu0 0.0
        %7439 = vmatprep.mubr.f32.mxu0 0.0
        %7440 = vmatmul.mubr.f32.gmra.mrb[0].mxu0 %v7373
        %v7441 = vpop.f32.mrb[0].mxu0
        %v7442 = vadd.f32 %v7370, %v7441
        %v7443 = vpop.f32.mrb[0].mxu0
        %7444 = vdwg.mxu0
        %v7445 = vadd.f32 %v6516, %v7442
        %s7446 = scalar_lea.vmem [#allocation31], 1
        %v7447 = vld [vmem:[%s7446] sm:$0x1]
        %s7448 = scalar_lea.vmem [#allocation32], 1
        %v7449 = vld [vmem:[%s7448] sm:$0x1]
        %v7450 = vsel %vm1439, %v7445, 0.0
        %7451 = vadd.xlane.f32.xlu0 %v7450
        %v7452 = vpop.xlane.xlu0 %7451
        %v7453 = vmul.f32 %v7452, %v2280
        %v7454 = vsub.f32 %v7445, %v7453
        %v7455 = vmul.f32 %v7454, %v7454
        %v7456 = vsel %vm1439, %v7455, 0.0
        %7457 = vadd.xlane.f32.xlu0 %v7456
        %v7458 = vpop.xlane.xlu0 %7457
        %v7459 = vmul.f32 %v7458, %v2280
        %v7460 = vadd.f32 %v7459, 1e-10
        %v7461 = vrsqrt.pop %v7460
        %v7462 = vmul.f32 %v7454, %v7461
        %v7464 = vlaneseq
        %v7465 = vshrl.u32 %v7464, 7
        %v7466 = vsub.s32 0, %v7465
        %v7467 = vrot.slane %v7447, %v7466
        %v7469 = vmul.f32 %v7467, %v7462
        %v7471 = vlaneseq
        %v7472 = vshrl.u32 %v7471, 7
        %v7473 = vsub.s32 0, %v7472
        %v7474 = vrot.slane %v7449, %v7473
        %v7476 = vadd.f32 %v7469, %v7474
        %s7477 = scalar_lea.vmem [#allocation34], 32
        %v7478 = vld [vmem:[%s7477] sm:$0xff]
        %v7479 = vld [vmem:[%s7477 + $0x8] sm:$0xff]
        %v7480 = vld [vmem:[%s7477 + $0x10] sm:$0xff]
        %v7481 = vld [vmem:[%s7477 + $0x18] sm:$0xff]
        %s7482 = scalar_lea.vmem %s59, 1
        %v7483 = vld [vmem:[%s7482] sm:$0x1]
        %s7484 = scalar_lea.vmem %s61, 64
        %v7485 = vld [vmem:[%s7484] sm:$0xff]
        %v7486 = vld [vmem:[%s7484 + $0x8] sm:$0xff]
        %v7487 = vld [vmem:[%s7484 + $0x10] sm:$0xff]
        %v7488 = vld [vmem:[%s7484 + $0x18] sm:$0xff]
        %v7489 = vld [vmem:[%s7484 + $0x20] sm:$0xff]
        %v7490 = vld [vmem:[%s7484 + $0x28] sm:$0xff]
        %v7491 = vld [vmem:[%s7484 + $0x30] sm:$0xff]
        %v7492 = vld [vmem:[%s7484 + $0x38] sm:$0xff]
        %s7493 = scalar_lea.vmem %s63, 1
        %v7494 = vld [vmem:[%s7493] sm:$0x1]
        %v7496 = vlaneseq
        %v7497 = vshrl.u32 %v7496, 7
        %v7498 = vsub.s32 0, %v7497
        %v7499 = vrot.slane %v7483, %v7498
        %v7502 = vsel %vm1439, %v7476, 0
        %7504 = vmatprep.subr.mxu0 0.0
        %7505 = vmatpush1.msra.mxu0 %v7478
        %7506 = vmatprep.subr.mxu0 0.0
        %7507 = vmatpush1.msra.mxu0 %v7479
        %7508 = vmatprep.subr.mxu0 0.0
        %7509 = vmatpush1.msra.mxu0 %v7480
        %7510 = vmatprep.subr.mxu0 0.0
        %7511 = vmatpush1.msra.mxu0 %v7481
        %7512 = vmatprep.subr.mxu0 0.0
        %7513 = vmatpush1.msra.mxu0 0.0
        %7514 = vmatprep.subr.mxu0 0.0
        %7515 = vmatpush1.msra.mxu0 0.0
        %7516 = vmatprep.subr.mxu0 0.0
        %7517 = vmatpush1.msra.mxu0 0.0
        %7518 = vmatprep.subr.mxu0 0.0
        %7519 = vmatpush1.msra.mxu0 0.0
        %7520 = vmatprep.subr.mxu0 0.0
        %7521 = vmatpush1.msra.mxu0 0.0
        %7522 = vmatprep.subr.mxu0 0.0
        %7523 = vmatpush1.msra.mxu0 0.0
        %7524 = vmatprep.subr.mxu0 0.0
        %7525 = vmatpush1.msra.mxu0 0.0
        %7526 = vmatprep.subr.mxu0 0.0
        %7527 = vmatpush1.msra.mxu0 0.0
        %7528 = vmatprep.subr.mxu0 0.0
        %7529 = vmatpush1.msra.mxu0 0.0
        %7530 = vmatprep.subr.mxu0 0.0
        %7531 = vmatpush1.msra.mxu0 0.0
        %7532 = vmatprep.subr.mxu0 0.0
        %7533 = vmatpush1.msra.mxu0 0.0
        %7534 = vmatprep.subr.mxu0 0.0
        %7535 = vmatpush1.msra.mxu0 0.0
        %7536 = vmatprep.subr.mxu0 0.0
        %7537 = vmatpush1.msra.mxu0 0.0
        %7538 = vmatprep.subr.mxu0 0.0
        %7539 = vmatpush1.msra.mxu0 0.0
        %7540 = vmatprep.subr.mxu0 0.0
        %7541 = vmatpush1.msra.mxu0 0.0
        %7542 = vmatprep.subr.mxu0 0.0
        %7543 = vmatpush1.msra.mxu0 0.0
        %7544 = vmatprep.subr.mxu0 0.0
        %7545 = vmatpush1.msra.mxu0 0.0
        %7546 = vmatprep.subr.mxu0 0.0
        %7547 = vmatpush1.msra.mxu0 0.0
        %7548 = vmatprep.subr.mxu0 0.0
        %7549 = vmatpush1.msra.mxu0 0.0
        %7550 = vmatprep.subr.mxu0 0.0
        %7551 = vmatpush1.msra.mxu0 0.0
        %7552 = vmatprep.subr.mxu0 0.0
        %7553 = vmatpush1.msra.mxu0 0.0
        %7554 = vmatprep.subr.mxu0 0.0
        %7555 = vmatpush1.msra.mxu0 0.0
        %7556 = vmatprep.subr.mxu0 0.0
        %7557 = vmatpush1.msra.mxu0 0.0
        %7558 = vmatprep.subr.mxu0 0.0
        %7559 = vmatpush1.msra.mxu0 0.0
        %7560 = vmatprep.subr.mxu0 0.0
        %7561 = vmatpush1.msra.mxu0 0.0
        %7562 = vmatprep.subr.mxu0 0.0
        %7563 = vmatpush1.msra.mxu0 0.0
        %7564 = vmatprep.subr.mxu0 0.0
        %7565 = vmatpush1.msra.mxu0 0.0
        %7566 = vmatprep.subr.mxu0 0.0
        %7567 = vmatpush1.msra.mxu0 0.0
        %7568 = vmatprep.mubr.f32.mxu0 0.0
        %7569 = vmatmul.mubr.f32.gmra.mrb[0].mxu0 %v7502
        %v7570 = vpop.f32.mrb[0].mxu0
        %v7571 = vadd.f32 %v7499, %v7570
        %v7572 = vpop.f32.mrb[0].mxu0
        %7573 = vdwg.mxu0
        %v7574 = vmax.f32 %v7571, 0.0
        %v7576 = vlaneseq
        %v7577 = vshrl.u32 %v7576, 7
        %v7578 = vsub.s32 0, %v7577
        %v7579 = vrot.slane %v7494, %v7578
        %v7582 = vsel %vm2405, %v7574, 0
        %7584 = vmatprep.subr.mxu0 0.0
        %7585 = vmatpush1.msra.mxu0 %v7485
        %7586 = vmatprep.subr.mxu0 0.0
        %7587 = vmatpush1.msra.mxu0 %v7486
        %7588 = vmatprep.subr.mxu0 0.0
        %7589 = vmatpush1.msra.mxu0 %v7487
        %7590 = vmatprep.subr.mxu0 0.0
        %7591 = vmatpush1.msra.mxu0 %v7488
        %7592 = vmatprep.subr.mxu0 0.0
        %7593 = vmatpush1.msra.mxu0 %v7489
        %7594 = vmatprep.subr.mxu0 0.0
        %7595 = vmatpush1.msra.mxu0 %v7490
        %7596 = vmatprep.subr.mxu0 0.0
        %7597 = vmatpush1.msra.mxu0 %v7491
        %7598 = vmatprep.subr.mxu0 0.0
        %7599 = vmatpush1.msra.mxu0 %v7492
        %7600 = vmatprep.subr.mxu0 0.0
        %7601 = vmatpush1.msra.mxu0 0.0
        %7602 = vmatprep.subr.mxu0 0.0
        %7603 = vmatpush1.msra.mxu0 0.0
        %7604 = vmatprep.subr.mxu0 0.0
        %7605 = vmatpush1.msra.mxu0 0.0
        %7606 = vmatprep.subr.mxu0 0.0
        %7607 = vmatpush1.msra.mxu0 0.0
        %7608 = vmatprep.subr.mxu0 0.0
        %7609 = vmatpush1.msra.mxu0 0.0
        %7610 = vmatprep.subr.mxu0 0.0
        %7611 = vmatpush1.msra.mxu0 0.0
        %7612 = vmatprep.subr.mxu0 0.0
        %7613 = vmatpush1.msra.mxu0 0.0
        %7614 = vmatprep.subr.mxu0 0.0
        %7615 = vmatpush1.msra.mxu0 0.0
        %7616 = vmatprep.subr.mxu0 0.0
        %7617 = vmatpush1.msra.mxu0 0.0
        %7618 = vmatprep.subr.mxu0 0.0
        %7619 = vmatpush1.msra.mxu0 0.0
        %7620 = vmatprep.subr.mxu0 0.0
        %7621 = vmatpush1.msra.mxu0 0.0
        %7622 = vmatprep.subr.mxu0 0.0
        %7623 = vmatpush1.msra.mxu0 0.0
        %7624 = vmatprep.subr.mxu0 0.0
        %7625 = vmatpush1.msra.mxu0 0.0
        %7626 = vmatprep.subr.mxu0 0.0
        %7627 = vmatpush1.msra.mxu0 0.0
        %7628 = vmatprep.subr.mxu0 0.0
        %7629 = vmatpush1.msra.mxu0 0.0
        %7630 = vmatprep.subr.mxu0 0.0
        %7631 = vmatpush1.msra.mxu0 0.0
        %7632 = vmatprep.subr.mxu0 0.0
        %7633 = vmatpush1.msra.mxu0 0.0
        %7634 = vmatprep.subr.mxu0 0.0
        %7635 = vmatpush1.msra.mxu0 0.0
        %7636 = vmatprep.subr.mxu0 0.0
        %7637 = vmatpush1.msra.mxu0 0.0
        %7638 = vmatprep.subr.mxu0 0.0
        %7639 = vmatpush1.msra.mxu0 0.0
        %7640 = vmatprep.subr.mxu0 0.0
        %7641 = vmatpush1.msra.mxu0 0.0
        %7642 = vmatprep.subr.mxu0 0.0
        %7643 = vmatpush1.msra.mxu0 0.0
        %7644 = vmatprep.subr.mxu0 0.0
        %7645 = vmatpush1.msra.mxu0 0.0
        %7646 = vmatprep.subr.mxu0 0.0
        %7647 = vmatpush1.msra.mxu0 0.0
        %7648 = vmatprep.mubr.f32.mxu0 0.0
        %7649 = vmatmul.mubr.f32.gmra.mrb[0].mxu0 %v7582
        %v7650 = vpop.f32.mrb[0].mxu0
        %v7651 = vadd.f32 %v7579, %v7650
        %v7652 = vpop.f32.mrb[0].mxu0
        %7653 = vdwg.mxu0
        %v7654 = vadd.f32 %v7476, %v7651
        %s7655 = scalar_lea.vmem %s65, 1
        %v7656 = vld [vmem:[%s7655] sm:$0x1]
        %s7657 = scalar_lea.vmem %s67, 1
        %v7658 = vld [vmem:[%s7657] sm:$0x1]
        %v7659 = vsel %vm1439, %v7654, 0.0
        %7660 = vadd.xlane.f32.xlu0 %v7659
        %v7661 = vpop.xlane.xlu0 %7660
        %v7662 = vmul.f32 %v7661, %v2280
        %v7663 = vsub.f32 %v7654, %v7662
        %v7664 = vmul.f32 %v7663, %v7663
        %v7665 = vsel %vm1439, %v7664, 0.0
        %7666 = vadd.xlane.f32.xlu0 %v7665
        %v7667 = vpop.xlane.xlu0 %7666
        %v7668 = vmul.f32 %v7667, %v2280
        %v7669 = vadd.f32 %v7668, 1e-10
        %v7670 = vrsqrt.pop %v7669
        %v7671 = vmul.f32 %v7663, %v7670
        %v7673 = vlaneseq
        %v7674 = vshrl.u32 %v7673, 7
        %v7675 = vsub.s32 0, %v7674
        %v7676 = vrot.slane %v7656, %v7675
        %v7678 = vmul.f32 %v7676, %v7671
        %v7680 = vlaneseq
        %v7681 = vshrl.u32 %v7680, 7
        %v7682 = vsub.s32 0, %v7681
        %v7683 = vrot.slane %v7658, %v7682
        %v7685 = vadd.f32 %v7678, %v7683
        %v7686 = vld [vmem:[%s69] sm:$0xff]
        %v7687 = vld [vmem:[%s69 + $0x8] sm:$0xff]
        %v7688 = vld [vmem:[%s69 + $0x10] sm:$0xff]
        %v7689 = vld [vmem:[%s69 + $0x18] sm:$0xff]
        %v7690 = vld [vmem:[%s71] sm:$0x1]
        %v7692 = vlaneseq
        %v7693 = vshrl.u32 %v7692, 7
        %v7694 = vsub.s32 0, %v7693
        %v7695 = vrot.slane %v7690, %v7694
        %v7698 = vsel %vm1439, %v7685, 0
        %7700 = vmatprep.subr.mxu0 0.0
        %7701 = vmatpush1.msra.mxu0 %v7686
        %7702 = vmatprep.subr.mxu0 0.0
        %7703 = vmatpush1.msra.mxu0 %v7687
        %7704 = vmatprep.subr.mxu0 0.0
        %7705 = vmatpush1.msra.mxu0 %v7688
        %7706 = vmatprep.subr.mxu0 0.0
        %7707 = vmatpush1.msra.mxu0 %v7689
        %7708 = vmatprep.subr.mxu0 0.0
        %7709 = vmatpush1.msra.mxu0 0.0
        %7710 = vmatprep.subr.mxu0 0.0
        %7711 = vmatpush1.msra.mxu0 0.0
        %7712 = vmatprep.subr.mxu0 0.0
        %7713 = vmatpush1.msra.mxu0 0.0
        %7714 = vmatprep.subr.mxu0 0.0
        %7715 = vmatpush1.msra.mxu0 0.0
        %7716 = vmatprep.subr.mxu0 0.0
        %7717 = vmatpush1.msra.mxu0 0.0
        %7718 = vmatprep.subr.mxu0 0.0
        %7719 = vmatpush1.msra.mxu0 0.0
        %7720 = vmatprep.subr.mxu0 0.0
        %7721 = vmatpush1.msra.mxu0 0.0
        %7722 = vmatprep.subr.mxu0 0.0
        %7723 = vmatpush1.msra.mxu0 0.0
        %7724 = vmatprep.subr.mxu0 0.0
        %7725 = vmatpush1.msra.mxu0 0.0
        %7726 = vmatprep.subr.mxu0 0.0
        %7727 = vmatpush1.msra.mxu0 0.0
        %7728 = vmatprep.subr.mxu0 0.0
        %7729 = vmatpush1.msra.mxu0 0.0
        %7730 = vmatprep.subr.mxu0 0.0
        %7731 = vmatpush1.msra.mxu0 0.0
        %7732 = vmatprep.subr.mxu0 0.0
        %7733 = vmatpush1.msra.mxu0 0.0
        %7734 = vmatprep.subr.mxu0 0.0
        %7735 = vmatpush1.msra.mxu0 0.0
        %7736 = vmatprep.subr.mxu0 0.0
        %7737 = vmatpush1.msra.mxu0 0.0
        %7738 = vmatprep.subr.mxu0 0.0
        %7739 = vmatpush1.msra.mxu0 0.0
        %7740 = vmatprep.subr.mxu0 0.0
        %7741 = vmatpush1.msra.mxu0 0.0
        %7742 = vmatprep.subr.mxu0 0.0
        %7743 = vmatpush1.msra.mxu0 0.0
        %7744 = vmatprep.subr.mxu0 0.0
        %7745 = vmatpush1.msra.mxu0 0.0
        %7746 = vmatprep.subr.mxu0 0.0
        %7747 = vmatpush1.msra.mxu0 0.0
        %7748 = vmatprep.subr.mxu0 0.0
        %7749 = vmatpush1.msra.mxu0 0.0
        %7750 = vmatprep.subr.mxu0 0.0
        %7751 = vmatpush1.msra.mxu0 0.0
        %7752 = vmatprep.subr.mxu0 0.0
        %7753 = vmatpush1.msra.mxu0 0.0
        %7754 = vmatprep.subr.mxu0 0.0
        %7755 = vmatpush1.msra.mxu0 0.0
        %7756 = vmatprep.subr.mxu0 0.0
        %7757 = vmatpush1.msra.mxu0 0.0
        %7758 = vmatprep.subr.mxu0 0.0
        %7759 = vmatpush1.msra.mxu0 0.0
        %7760 = vmatprep.subr.mxu0 0.0
        %7761 = vmatpush1.msra.mxu0 0.0
        %7762 = vmatprep.subr.mxu0 0.0
        %7763 = vmatpush1.msra.mxu0 0.0
        %7764 = vmatprep.mubr.f32.mxu0 0.0
        %7765 = vmatmul.mubr.f32.gmra.mrb[0].mxu0 %v7698
        %v7766 = vpop.f32.mrb[0].mxu0
        %v7767 = vadd.f32 %v7695, %v7766
        %v7768 = vpop.f32.mrb[0].mxu0
        %7769 = vdwg.mxu0
        %7770 = vst [vmem:[%s1425] sm:$0xff] %v7767
        %s7771 = sand.u32 %s876, 1
        %s7772 = scalar_lea.sflag [#allocation4], %s7771
        %s7773 = sand.u32 %s876, 1
        %s7774 = smul.addr %s7773, 8
        %s7775 = scalar_lea.vmem [#allocation35], %s7774
        // Predicated region
        $region249: #{tpu_custom_call.1} parent=163 // pred_check
          %p7776 = pneg %p886
        $region250: #{tpu_custom_call.1} parent=163 // pred_check_branch
          %7778 = sbr.rel (%p7776) target = $region252
        $region251: #{tpu_custom_call.1} parent=163 // pred_region
          %s7780 = ssub.s32 128, 128
          %7781 = vsyncadd %s7772, %s7780
          %s7782 = smul.addr %s102, 128
          %s7783 = scalar_lea.hbm %s73, %s7782
          %s7785 = sshll.u32 %s7775, 4
          %s7786 = int_to_ptr.vmem [resolvable:$true] %s7785
          %7788 = dma.vmem_to_hbm [thread:$0]  %s7786, 128, %s7783, %s7772
        $region252: #{tpu_custom_call.1} parent=163 // pred_fallthru
          _
      $region164: #{tpu_custom_call.1} parent=5 // pred_fallthru
        _
      %p7789 = scmp.le.s32.totalorder 2, %s97
      // Predicated region
      $region253: #{tpu_custom_call.1} parent=5 // pred_check
        %p7790 = pneg %p7789
      $region254: #{tpu_custom_call.1} parent=5 // pred_check_branch
        %7792 = sbr.rel (%p7790) target = $region256
      $region255: #{tpu_custom_call.1} parent=5 // pred_region
        %s7793 = ssub.s32 %s97, 2
        // Predicated region
        $region257: #{tpu_custom_call.1} parent=255 // pred_check
          %p7794 = pneg %p892
        $region258: #{tpu_custom_call.1} parent=255 // pred_check_branch
          %7796 = sbr.rel (%p7794) target = $region260
        $region259: #{tpu_custom_call.1} parent=255 // pred_region
          %s7797 = sand.u32 %s877, 1
          %s7798 = scalar_lea.sflag [#allocation4], %s7797
          %s7799 = sand.u32 %s877, 1
          %s7800 = smul.addr %s7799, 8
          %s7801 = scalar_lea.vmem [#allocation35], %s7800
          %7802 = dma.done %s7798, 128
        $region260: #{tpu_custom_call.1} parent=255 // pred_fallthru
          _
      $region256: #{tpu_custom_call.1} parent=5 // pred_fallthru
        _
    $region6: #{tpu_custom_call.1} parent=1 // loop_footer
      %s101 = sadd.s32 1, %s97
    $region7: #{tpu_custom_call.1} parent=1 // loop_footer_branch
      %96 = sbr.rel target = $region3
    $region8: #{tpu_custom_call.1} parent=1 // loop_exit
      _
    %7803 = vsyncpa [#allocation3], 1
    %s7804 = scalar_lea.sflag [#allocation3], 1
    %7805 = vsyncpa %s7804, 1
    %7806 = vsyncpa [#allocation6], 1
    %s7807 = scalar_lea.sflag [#allocation6], 1
    %7808 = vsyncpa %s7807, 1
    %7809 = vsyncpa [#allocation9], 1
    %7810 = vsyncpa [#allocation12], 1
    %7811 = vsyncpa [#allocation15], 1
    %7812 = vsyncpa [#allocation18], 1
    %7813 = vsyncpa [#allocation21], 1
    %7814 = vsyncpa [#allocation24], 1
    %7815 = vsyncpa [#allocation27], 1
    %7816 = vsyncpa [#allocation30], 1
    %7817 = vsyncpa [#allocation33], 1
    %7818 = vsyncpa [#allocation4], 1
    %s7819 = scalar_lea.sflag [#allocation4], 1
    %7820 = vsyncpa %s7819, 1

</llo_original>
